<compile_context>
chip_gen: v5e
topology: v5e:2x2
jax: 0.10.0
libtpu: 0.0.40
codegen_flags: <defaults>
</compile_context>

<pallas_src>
import functools

import numpy as np
import jax
import jax.numpy as jnp
from jax.experimental import pallas as pl
from jax.experimental.pallas import tpu as pltpu

ENTITY_SIZE = 32          # entity_size
STREAM_SIZE = 64          # stream_size
NUM_MOVES = 32            # synthetic moves vocabulary
MOVES_DIM = 30            # synthetic construct_moves_encoding(3) feature dim
SWITCH_TOKEN = 1          # synthetic MOVES_STOI['<SWITCH>']
NUM_ACTIONS = 10          # 4 moves + 6 switches
AP = 16                   # action axis padded to a sublane-aligned size
ACT_IN = MOVES_DIM + 2    # moves one-hot + legal one-hot (eye(2)) == 32
LN_EPS = 1e-5
NEG_INF = -1e30

# rows of the packed bias matrix (AP, ENTITY_SIZE)
_B_ACT, _B_MERGE, _B_Q, _B_K, _B_V, _B_O, _B_PQ, _B_PK0 = 0, 1, 2, 3, 4, 5, 6, 7


# ----------------------------------------------------------------------------
# Pallas kernel
# ----------------------------------------------------------------------------
def _ln(x):
    """LayerNorm (no affine), single-pass mean/var (both reductions co-issue)."""
    inv_n = 1.0 / x.shape[-1]
    s1 = jnp.sum(x, axis=-1, keepdims=True)
    s2 = jnp.sum(x * x, axis=-1, keepdims=True)
    m = s1 * inv_n
    var = jnp.maximum(s2 * inv_n - m * m, 0.0)
    return (x - m) * jax.lax.rsqrt(var + LN_EPS)


def policy_head_kernel(onehot_ref, user_ref, state_ref, legal_ref,
                       w_act_ref, w_merge_ref, w_qkv_ref, w_o_ref,
                       w_pq_ref, w_pk_ref, b_ref, out_ref):
    f32 = jnp.float32
    E = ENTITY_SIZE
    HD = E // 2
    TB = state_ref.shape[0]                       # examples in this block

    b = b_ref[...]                                # (AP, E) packed biases

    # --- actions_lin: (TB*AP, ACT_IN) @ (ACT_IN, E) --------------------------
    action = jnp.dot(onehot_ref[...], w_act_ref[...],
                     preferred_element_type=f32) + b[_B_ACT:_B_ACT + 1]

    # --- VectorMerge (GatingType.NONE): LN -> relu -> fused linear -----------
    a = jnp.maximum(_ln(action), 0.0)
    u = jnp.maximum(_ln(user_ref[...]), 0.0)
    merged = jnp.dot(jnp.concatenate([a, u], axis=-1), w_merge_ref[...],
                     preferred_element_type=f32) + b[_B_MERGE:_B_MERGE + 1]

    # --- 2-head self-attention, fused QKV projection --------------------------
    # Q columns / bias were pre-scaled by 1/sqrt(HD) in pack_params, so there is
    # no per-block score scaling here.
    qkv = jnp.dot(merged, w_qkv_ref[...], preferred_element_type=f32)  # (TB*AP, 3E)
    q = (qkv[:, 0:E] + b[_B_Q:_B_Q + 1]).reshape(TB, AP, E)
    k = (qkv[:, E:2 * E] + b[_B_K:_B_K + 1]).reshape(TB, AP, E)
    v = (qkv[:, 2 * E:3 * E] + b[_B_V:_B_V + 1]).reshape(TB, AP, E)

    # Stack the two heads onto the batch axis -> a SINGLE einsum pair and a
    # single softmax region for both heads (single batch dim for Mosaic).
    q2 = jnp.concatenate([q[:, :, :HD], q[:, :, HD:]], axis=0)        # (2TB, AP, HD)
    k2 = jnp.concatenate([k[:, :, :HD], k[:, :, HD:]], axis=0)
    v2 = jnp.concatenate([v[:, :, :HD], v[:, :, HD:]], axis=0)

    # lane mask for real (non-padded) action tokens as attention keys
    key_valid3 = jax.lax.broadcasted_iota(jnp.int32, (1, 1, AP), 2) < NUM_ACTIONS

    s = jnp.einsum('nid,njd->nij', q2, k2, preferred_element_type=f32)  # (2TB, AP, AP)
    s = jnp.where(key_valid3, s, NEG_INF)          # padded key tokens -> no weight
    s = s - jnp.max(s, axis=-1, keepdims=True)
    e = jnp.exp(s)
    p = e / jnp.sum(e, axis=-1, keepdims=True)     # exact divide (keeps 2e-3 tol)
    o = jnp.einsum('nij,njd->nid', p, v2, preferred_element_type=f32)   # (2TB, AP, HD)
    o = jnp.concatenate([o[:TB], o[TB:]], axis=-1).reshape(TB * AP, E)  # heads -> lanes
    attn = jnp.dot(o, w_o_ref[...], preferred_element_type=f32) + b[_B_O:_B_O + 1]

    # --- PointerLogits: 1 query layer / 3 key layers ---------------------------
    keys = attn
    for i in range(3):                             # static unroll
        keys = jnp.maximum(_ln(keys), 0.0)
        keys = jnp.dot(keys, w_pk_ref[i],
                       preferred_element_type=f32) + b[_B_PK0 + i:_B_PK0 + i + 1]
    keys3 = keys.reshape(TB, AP, E)

    qy = jnp.maximum(_ln(state_ref[...]), 0.0)                          # (TB, S)
    qy = jnp.dot(qy, w_pq_ref[...], preferred_element_type=f32) + b[_B_PQ:_B_PQ + 1]

    # M=1 pointer matvec -> VPU multiply + 32-lane reduce (no MXU RHS push).
    logits = jnp.sum(keys3 * qy[:, None, :], axis=-1)                   # (TB, AP)

    # --- _legal_policy / _legal_log_policy -------------------------------------
    # NOTE: relies on the module guarantee of >=1 legal action per example
    # (the wrapper also forces it for padded example rows).
    legal = legal_ref[...]                                              # (TB, AP)
    mask = legal > 0.5
    key_valid2 = jax.lax.broadcasted_iota(jnp.int32, (1, AP), 1) < NUM_ACTIONS

    l_min = jnp.min(jnp.where(key_valid2, logits, -NEG_INF),
                    axis=-1, keepdims=True)
    lm = jnp.where(mask, logits, l_min)
    lm = lm - jnp.max(lm, axis=-1, keepdims=True)
    lm = lm * legal
    e2 = jnp.where(mask, jnp.exp(lm), 0.0)
    # approx reciprocal (EUP slot): rows sum to 1 only within ~1e-3.
    policy = e2 * pl.reciprocal(jnp.sum(e2, axis=-1, keepdims=True), approx=True)

    masked = jnp.where(mask, logits, NEG_INF)
    mmax = jnp.max(masked, axis=-1, keepdims=True)
    lse = jnp.log(jnp.sum(jnp.where(mask, jnp.exp(masked - mmax), 0.0),
                          axis=-1, keepdims=True)) + mmax
    log_policy = jnp.where(mask, logits - lse, 0.0)

    # single packed 2-D output slab: [policy | log_policy | logits] on lanes
    out_ref[...] = jnp.concatenate([policy, log_policy, logits], axis=-1)


# ----------------------------------------------------------------------------
# pallas_call wrapper
# ----------------------------------------------------------------------------
def _round_up(x, m):
    return ((x + m - 1) // m) * m


def _cdiv(a, b):
    return -(-a // b)


def _full_spec(arr):
    shp = tuple(int(s) for s in arr.shape)
    nd = len(shp)
    return pl.BlockSpec(shp, lambda n, _nd=nd: (0,) * _nd)


def _vmem_limit_bytes():
    """Generation-aware scoped-VMEM limit (v7x has only 64 MiB physical)."""
    cap = 128 * 1024 * 1024
    try:
        cap = int(getattr(pltpu.get_tpu_info(), "vmem_capacity_bytes", cap))
    except Exception:
        pass
    return int(min(cap * 3 // 4, 100 * 1024 * 1024))   # headroom below physical


def _choose_tb(N, tb_block):
    """Block size: as large as allowed, but keep >= 2 grid steps once the batch
    is big enough (pipelining + v7x 2-TensorCore grid sharding)."""
    TB = min(int(tb_block), max(8, _round_up(N, 8)))
    TB = _round_up(TB, 8)
    if N >= 16 and _cdiv(N, TB) < 2:
        TB = max(8, _round_up(_cdiv(N, 2), 8))
    return TB


def pack_params(params):
    (w_act, b_act, w_ma, b_ma, w_mu, b_mu,
     wq, bq, wk, bk, wv, bv, wo, bo, wpq, bpq, wpk, bpk) = params
    scale = 1.0 / float(np.sqrt(ENTITY_SIZE // 2))
    w_merge = jnp.concatenate([w_ma, w_mu], axis=0)                  # (2E, E)
    # fold the 1/sqrt(head_dim) attention scale into the Q projection
    w_qkv = jnp.concatenate([wq * scale, wk, wv], axis=1)            # (E, 3E)
    rows = [b_act, b_ma + b_mu, bq * scale, bk, bv, bo, bpq,
            bpk[0], bpk[1], bpk[2]]
    b_mat = jnp.concatenate(
        [r.reshape(1, ENTITY_SIZE) for r in rows]
        + [jnp.zeros((AP - len(rows), ENTITY_SIZE), jnp.float32)], axis=0)  # (AP, E)
    return (w_act, w_merge, w_qkv, wo, wpq, wpk, b_mat)


def policy_head_pallas(params, onehot_flat, user_flat, state, legal, *,
                       tb_block=256):
    """Inputs already in the padded/flattened layout produced by the glue:
       onehot_flat (N*AP, ACT_IN), user_flat (N*AP, E), state (N, S),
       legal (N, AP) float (padded action lanes must be 0)."""
    N = state.shape[0]
    TB = _choose_tb(N, tb_block)
    NP = _round_up(N, TB)

    # pad only the batch axis (the action axis is already AP-padded by the glue)
    if NP > N:
        onehot_flat = jnp.pad(onehot_flat, ((0, (NP - N) * AP), (0, 0)))
        user_flat = jnp.pad(user_flat, ((0, (NP - N) * AP), (0, 0)))
        state = jnp.pad(state, ((0, NP - N), (0, 0)))
        legal = jnp.pad(legal, ((0, NP - N), (0, 0)))
        legal = legal.at[N:, 0].set(1.0)   # >=1 "legal" action in padded rows

    weights = pack_params(params)

    data_specs = [
        pl.BlockSpec((TB * AP, ACT_IN), lambda n: (n, 0)),
        pl.BlockSpec((TB * AP, ENTITY_SIZE), lambda n: (n, 0)),
        pl.BlockSpec((TB, STREAM_SIZE), lambda n: (n, 0)),
        pl.BlockSpec((TB, AP), lambda n: (n, 0)),
    ]
    w_specs = [_full_spec(w) for w in weights]

    out = pl.pallas_call(
        policy_head_kernel,
        grid=(NP // TB,),
        in_specs=data_specs + w_specs,
        out_specs=pl.BlockSpec((TB, 3 * AP), lambda n: (n, 0)),
        out_shape=jax.ShapeDtypeStruct((NP, 3 * AP), jnp.float32),
        compiler_params=pltpu.CompilerParams(
            dimension_semantics=("parallel",),
            vmem_limit_bytes=_vmem_limit_bytes()),
    )(onehot_flat, user_flat, state, legal, *weights)

    A = NUM_ACTIONS
    policy = out[:N, 0:A]
    log_policy = out[:N, AP:AP + A]
    logits = out[:N, 2 * AP:2 * AP + A]
    return policy, log_policy, logits


# ----------------------------------------------------------------------------
# JAX glue (token selection + embedding gathers, as in the torch module),
# emitting the kernel's padded flattened layout directly.
# ----------------------------------------------------------------------------
def get_action_tokens(active_weight, teams):
    T, B = teams.shape[:2]
    tf = teams.reshape(T, B, teams.shape[2], -1, teams.shape[-1])   # flatten(3,4)
    tf = tf[:, :, -1, :6, :].astype(jnp.float32)                    # (T,B,6,F)
    toks = jnp.matmul(active_weight, tf)                            # (T,B,1,F)
    return toks[..., -12:].squeeze(-2).astype(jnp.int32)            # (T,B,12)


def build_policy_inputs(active_weight, teams, legal, active_embedding,
                        entity_embeddings, state_embedding, moves_table):
    """Produces (onehot_flat, user_flat, state, legal_padded) in the layout the
    Pallas kernel consumes — padding is fused into the producers here instead
    of a second full pad/reshape pass inside the kernel wrapper."""
    T, B = legal.shape[:2]
    N = T * B
    pad_a = AP - NUM_ACTIONS

    action_tokens = get_action_tokens(active_weight, teams)                 # (T,B,12)
    moveset_tokens = action_tokens[..., 8:]                                 # (T,B,4)
    switch = jnp.full((T, B, 6), SWITCH_TOKEN, dtype=jnp.int32)             # (T,B,6)
    toks = jnp.concatenate([moveset_tokens, switch], axis=-1)               # (T,B,10)
    moves_oh = jnp.take(moves_table, toks, axis=0)                          # (T,B,10,MOVES_DIM)
    legal_oh = jnp.take(jnp.eye(2, dtype=jnp.float32),
                        legal.astype(jnp.int32), axis=0)                    # (T,B,10,2)
    onehot = jnp.concatenate([moves_oh, legal_oh], axis=-1)                 # (T,B,10,ACT_IN)

    user = jnp.concatenate(
        [jnp.broadcast_to(active_embedding, (T, B, 4, ENTITY_SIZE)),
         entity_embeddings], axis=-2)                                       # (T,B,10,E)

    onehot_flat = jnp.pad(
        onehot, ((0, 0), (0, 0), (0, pad_a), (0, 0))).reshape(N * AP, ACT_IN)
    user_flat = jnp.pad(
        user, ((0, 0), (0, 0), (0, pad_a), (0, 0))).reshape(N * AP, ENTITY_SIZE)
    legal_p = jnp.pad(legal.astype(jnp.float32),
                      ((0, 0), (0, 0), (0, pad_a))).reshape(N, AP)
    state = state_embedding.reshape(N, STREAM_SIZE)
    return onehot_flat, user_flat, state, legal_p


# ----------------------------------------------------------------------------
# Deterministic parameter init (logical / un-fused parameters)
# ----------------------------------------------------------------------------
def init_params(key):
    def lin(k, fin, fout):
        k1, k2 = jax.random.split(k)
        w = jax.random.normal(k1, (fin, fout), jnp.float32) / np.sqrt(fin)
        b = 0.01 * jax.random.normal(k2, (1, fout), jnp.float32)
        return w, b

    ks = jax.random.split(key, 11)
    w_act, b_act = lin(ks[0], ACT_IN, ENTITY_SIZE)
    w_ma, b_ma = lin(ks[1], ENTITY_SIZE, ENTITY_SIZE)
    w_mu, b_mu = lin(ks[2], ENTITY_SIZE, ENTITY_SIZE)
    wq, bq = lin(ks[3], ENTITY_SIZE, ENTITY_SIZE)
    wk, bk = lin(ks[4], ENTITY_SIZE, ENTITY_SIZE)
    wv, bv = lin(ks[5], ENTITY_SIZE, ENTITY_SIZE)
    wo, bo = lin(ks[6], ENTITY_SIZE, ENTITY_SIZE)
    wpq, bpq = lin(ks[7], STREAM_SIZE, ENTITY_SIZE)
    wpk_l, bpk_l = [], []
    for i in range(3):
        w, b = lin(ks[8 + i], ENTITY_SIZE, ENTITY_SIZE)
        wpk_l.append(w)
        bpk_l.append(b)
    wpk = jnp.stack(wpk_l)   # (3, E, E)
    bpk = jnp.stack(bpk_l)   # (3, 1, E)
    return (w_act, b_act, w_ma, b_ma, w_mu, b_mu,
            wq, bq, wk, bk, wv, bv, wo, bo, wpq, bpq, wpk, bpk)


# ----------------------------------------------------------------------------
# Pure-JAX reference (single example) for numerical validation
# ----------------------------------------------------------------------------
def ref_single(params, onehot, user, state, legal):
    (w_act, b_act, w_ma, b_ma, w_mu, b_mu,
     wq, bq, wk, bk, wv, bv, wo, bo, wpq, bpq, wpk, bpk) = params

    def ln(x):
        m = jnp.mean(x, -1, keepdims=True)
        c = x - m
        v = jnp.mean(c * c, -1, keepdims=True)
        return c * jax.lax.rsqrt(v + LN_EPS)

    hd = ENTITY_SIZE // 2
    action = onehot @ w_act + b_act
    merged = (jnp.maximum(ln(action), 0) @ w_ma + b_ma) + \
             (jnp.maximum(ln(user), 0) @ w_mu + b_mu)
    q = merged @ wq + bq
    k = merged @ wk + bk
    v = merged @ wv + bv

    def head(qh, kh, vh):
        s = (qh @ kh.T) / jnp.sqrt(jnp.float32(hd))
        return jax.nn.softmax(s, axis=-1) @ vh

    a0 = head(q[:, :hd], k[:, :hd], v[:, :hd])
    a1 = head(q[:, hd:], k[:, hd:], v[:, hd:])
    attn = a0 @ wo[:hd, :] + a1 @ wo[hd:, :] + bo

    qy = jnp.maximum(ln(state[None, :]), 0) @ wpq + bpq
    keys = attn
    for i in range(3):
        keys = jnp.maximum(ln(keys), 0) @ wpk[i] + bpk[i]
    logits = (qy @ keys.T)[0]                                        # (A,)

    mask = legal > 0.5
    l_min = jnp.min(logits, -1, keepdims=True)
    lm = jnp.where(mask, logits, l_min)
    lm = lm - jnp.max(lm, -1, keepdims=True)
    lm = lm * legal
    e = jnp.where(mask, jnp.exp(lm), 0.0)
    policy = e / jnp.sum(e, -1, keepdims=True)
    masked = jnp.where(mask, logits, -1e30)
    mmax = jnp.max(masked, -1, keepdims=True)
    lse = jnp.log(jnp.sum(jnp.where(mask, jnp.exp(masked - mmax), 0.0),
                          -1, keepdims=True)) + mmax
    log_policy = jnp.where(mask, logits - lse, 0.0)
    return policy, log_policy, logits


# ----------------------------------------------------------------------------
if __name__ == "__main__":
    key = jax.random.PRNGKey(0)
    T, B = 3, 6
    Hh, K, F = 2, 1, 16   # teams: (T, B, history, 6 entities, K, F), F >= 12

    kt, ka, kl, kae, kee, kse, kp, km = jax.random.split(key, 8)

    teams = jax.random.randint(kt, (T, B, Hh, 6, K, F), 0, NUM_MOVES)
    active_idx = jax.random.randint(ka, (T, B), 0, 6)
    active_weight = jax.nn.one_hot(active_idx, 6, dtype=jnp.float32)[:, :, None, :]
    legal = jax.random.bernoulli(kl, 0.7, (T, B, NUM_ACTIONS))
    legal = legal.at[..., 0].set(True)                           # >=1 legal action
    active_embedding = jax.random.normal(kae, (T, B, 1, ENTITY_SIZE), jnp.float32)
    entity_embeddings = jax.random.normal(kee, (T, B, 6, ENTITY_SIZE), jnp.float32)
    state_embedding = jax.random.normal(kse, (T, B, STREAM_SIZE), jnp.float32)
    moves_table = jax.random.normal(km, (NUM_MOVES, MOVES_DIM), jnp.float32)

    params = init_params(kp)

    # ---- glue: token selection + embedding gathers, padded kernel layout ----
    onehot_flat, user_flat, state_f, legal_f = build_policy_inputs(
        active_weight, teams, legal, active_embedding, entity_embeddings,
        state_embedding, moves_table)

    # ---- Pallas kernel (default TB logic gives a 2-step grid here) -----------
    policy, log_policy, logits = policy_head_pallas(
        params, onehot_flat, user_flat, state_f, legal_f)
    jax.block_until_ready((policy, log_policy, logits))

    # ---- validate against pure-JAX reference ---------------------------------
    N = T * B
    onehot_u = onehot_flat.reshape(N, AP, ACT_IN)[:, :NUM_ACTIONS]
    user_u = user_flat.reshape(N, AP, ENTITY_SIZE)[:, :NUM_ACTIONS]
    legal_u = legal_f[:, :NUM_ACTIONS]
    ref_p, ref_lp, ref_lg = jax.vmap(functools.partial(ref_single, params))(
        onehot_u, user_u, state_f, legal_u)

    assert np.allclose(np.asarray(policy), np.asarray(ref_p), atol=2e-3, rtol=2e-3)
    assert np.allclose(np.asarray(log_policy), np.asarray(ref_lp), atol=2e-3, rtol=2e-3)
    assert np.allclose(np.asarray(logits), np.asarray(ref_lg), atol=2e-3, rtol=2e-3)

    # final module outputs, shaped like the torch module: (T, B, 10)
    policy = policy.reshape(T, B, NUM_ACTIONS)
    log_policy = log_policy.reshape(T, B, NUM_ACTIONS)
    logits = logits.reshape(T, B, NUM_ACTIONS)

    print("KERNEL_OK")
</pallas_src>

<mosaic_0001>
module attributes {stable_mosaic.version = 11 : i64} {
  func.func @policy_head_kernel(%arg0: i32, %arg1: memref<256x32xf32, #tpu.memory_space<vmem>>, %arg2: memref<256x32xf32, #tpu.memory_space<vmem>>, %arg3: memref<16x64xf32, #tpu.memory_space<vmem>>, %arg4: memref<16x16xf32, #tpu.memory_space<vmem>>, %arg5: memref<32x32xf32, #tpu.memory_space<vmem>>, %arg6: memref<64x32xf32, #tpu.memory_space<vmem>>, %arg7: memref<32x96xf32, #tpu.memory_space<vmem>>, %arg8: memref<32x32xf32, #tpu.memory_space<vmem>>, %arg9: memref<64x32xf32, #tpu.memory_space<vmem>>, %arg10: memref<3x32x32xf32, #tpu.memory_space<vmem>>, %arg11: memref<16x32xf32, #tpu.memory_space<vmem>>, %arg12: memref<16x48xf32, #tpu.memory_space<vmem>>) attributes {dimension_semantics = [#tpu.dimension_semantics<parallel>], iteration_bounds = array<i64: 2>, scalar_prefetch = 0 : i64, scratch_operands = 0 : i64, tpu.core_type = #tpu.core_type<tc>, window_params = [{transform_indices = @transform_0, window_bounds = array<i64: 256, 32>}, {transform_indices = @transform_1, window_bounds = array<i64: 256, 32>}, {transform_indices = @transform_2, window_bounds = array<i64: 16, 64>}, {transform_indices = @transform_3, window_bounds = array<i64: 16, 16>}, {pipeline_mode = #tpu.pipeline_mode<synchronous>, transform_indices = @transform_4, window_bounds = array<i64: 32, 32>}, {pipeline_mode = #tpu.pipeline_mode<synchronous>, transform_indices = @transform_5, window_bounds = array<i64: 64, 32>}, {pipeline_mode = #tpu.pipeline_mode<synchronous>, transform_indices = @transform_6, window_bounds = array<i64: 32, 96>}, {pipeline_mode = #tpu.pipeline_mode<synchronous>, transform_indices = @transform_7, window_bounds = array<i64: 32, 32>}, {pipeline_mode = #tpu.pipeline_mode<synchronous>, transform_indices = @transform_8, window_bounds = array<i64: 64, 32>}, {pipeline_mode = #tpu.pipeline_mode<synchronous>, transform_indices = @transform_9, window_bounds = array<i64: 3, 32, 32>}, {pipeline_mode = #tpu.pipeline_mode<synchronous>, transform_indices = @transform_10, window_bounds = array<i64: 16, 32>}, {transform_indices = @transform_11, window_bounds = array<i64: 16, 48>}]} {
    %c0 = arith.constant 0 : index
    %c0_0 = arith.constant 0 : index
    %0 = vector.load %arg11[%c0, %c0_0] : memref<16x32xf32, #tpu.memory_space<vmem>>, vector<16x32xf32>
    %c0_1 = arith.constant 0 : index
    %c0_2 = arith.constant 0 : index
    %1 = vector.load %arg1[%c0_1, %c0_2] : memref<256x32xf32, #tpu.memory_space<vmem>>, vector<256x32xf32>
    %c0_3 = arith.constant 0 : index
    %c0_4 = arith.constant 0 : index
    %2 = vector.load %arg5[%c0_3, %c0_4] : memref<32x32xf32, #tpu.memory_space<vmem>>, vector<32x32xf32>
    %cst = arith.constant dense<0.000000e+00> : vector<256x32xf32>
    %3 = tpu.matmul %1, %2, %cst {dimension_numbers = #tpu.dot_dimension_numbers<[1], [0], [0], [1], [0, 0, 1, 1], [], []>} : vector<256x32xf32>, vector<32x32xf32>, vector<256x32xf32> -> vector<256x32xf32>
    %4 = vector.extract_strided_slice %0 {offsets = [0, 0], sizes = [1, 32], strides = [1, 1]} : vector<16x32xf32> to vector<1x32xf32>
    %5 = vector.broadcast %4 : vector<1x32xf32> to vector<256x32xf32>
    %6 = arith.addf %3, %5 : vector<256x32xf32>
    %cst_5 = arith.constant dense<0.000000e+00> : vector<256xf32>
    %7 = vector.multi_reduction <add>, %6, %cst_5 [1] : vector<256x32xf32> to vector<256xf32>
    %8 = vector.shape_cast %7 : vector<256xf32> to vector<256x1xf32>
    %9 = arith.mulf %6, %6 : vector<256x32xf32>
    %cst_6 = arith.constant dense<0.000000e+00> : vector<256xf32>
    %10 = vector.multi_reduction <add>, %9, %cst_6 [1] : vector<256x32xf32> to vector<256xf32>
    %11 = vector.shape_cast %10 : vector<256xf32> to vector<256x1xf32>
    %cst_7 = arith.constant 3.125000e-02 : f32
    %12 = vector.broadcast %cst_7 : f32 to vector<256x1xf32>
    %13 = arith.mulf %8, %12 : vector<256x1xf32>
    %cst_8 = arith.constant 3.125000e-02 : f32
    %14 = vector.broadcast %cst_8 : f32 to vector<256x1xf32>
    %15 = arith.mulf %11, %14 : vector<256x1xf32>
    %16 = arith.mulf %13, %13 : vector<256x1xf32>
    %17 = arith.subf %15, %16 : vector<256x1xf32>
    %cst_9 = arith.constant 0.000000e+00 : f32
    %18 = vector.broadcast %cst_9 : f32 to vector<256x1xf32>
    %19 = arith.maximumf %17, %18 : vector<256x1xf32>
    %20 = vector.broadcast %13 : vector<256x1xf32> to vector<256x32xf32>
    %21 = arith.subf %6, %20 : vector<256x32xf32>
    %cst_10 = arith.constant 9.99999974E-6 : f32
    %22 = vector.broadcast %cst_10 : f32 to vector<256x1xf32>
    %23 = arith.addf %19, %22 : vector<256x1xf32>
    %24 = math.rsqrt %23 : vector<256x1xf32>
    %25 = vector.broadcast %24 : vector<256x1xf32> to vector<256x32xf32>
    %26 = arith.mulf %21, %25 : vector<256x32xf32>
    %cst_11 = arith.constant 0.000000e+00 : f32
    %27 = vector.broadcast %cst_11 : f32 to vector<256x32xf32>
    %28 = arith.maximumf %26, %27 : vector<256x32xf32>
    %c0_12 = arith.constant 0 : index
    %c0_13 = arith.constant 0 : index
    %29 = vector.load %arg2[%c0_12, %c0_13] : memref<256x32xf32, #tpu.memory_space<vmem>>, vector<256x32xf32>
    %cst_14 = arith.constant dense<0.000000e+00> : vector<256xf32>
    %30 = vector.multi_reduction <add>, %29, %cst_14 [1] : vector<256x32xf32> to vector<256xf32>
    %31 = vector.shape_cast %30 : vector<256xf32> to vector<256x1xf32>
    %32 = arith.mulf %29, %29 : vector<256x32xf32>
    %cst_15 = arith.constant dense<0.000000e+00> : vector<256xf32>
    %33 = vector.multi_reduction <add>, %32, %cst_15 [1] : vector<256x32xf32> to vector<256xf32>
    %34 = vector.shape_cast %33 : vector<256xf32> to vector<256x1xf32>
    %cst_16 = arith.constant 3.125000e-02 : f32
    %35 = vector.broadcast %cst_16 : f32 to vector<256x1xf32>
    %36 = arith.mulf %31, %35 : vector<256x1xf32>
    %cst_17 = arith.constant 3.125000e-02 : f32
    %37 = vector.broadcast %cst_17 : f32 to vector<256x1xf32>
    %38 = arith.mulf %34, %37 : vector<256x1xf32>
    %39 = arith.mulf %36, %36 : vector<256x1xf32>
    %40 = arith.subf %38, %39 : vector<256x1xf32>
    %cst_18 = arith.constant 0.000000e+00 : f32
    %41 = vector.broadcast %cst_18 : f32 to vector<256x1xf32>
    %42 = arith.maximumf %40, %41 : vector<256x1xf32>
    %43 = vector.broadcast %36 : vector<256x1xf32> to vector<256x32xf32>
    %44 = arith.subf %29, %43 : vector<256x32xf32>
    %cst_19 = arith.constant 9.99999974E-6 : f32
    %45 = vector.broadcast %cst_19 : f32 to vector<256x1xf32>
    %46 = arith.addf %42, %45 : vector<256x1xf32>
    %47 = math.rsqrt %46 : vector<256x1xf32>
    %48 = vector.broadcast %47 : vector<256x1xf32> to vector<256x32xf32>
    %49 = arith.mulf %44, %48 : vector<256x32xf32>
    %cst_20 = arith.constant 0.000000e+00 : f32
    %50 = vector.broadcast %cst_20 : f32 to vector<256x32xf32>
    %51 = arith.maximumf %49, %50 : vector<256x32xf32>
    %52 = tpu.concatenate %28, %51 in 1 : vector<256x32xf32>, vector<256x32xf32> -> vector<256x64xf32>
    %c0_21 = arith.constant 0 : index
    %c0_22 = arith.constant 0 : index
    %53 = vector.load %arg6[%c0_21, %c0_22] : memref<64x32xf32, #tpu.memory_space<vmem>>, vector<64x32xf32>
    %cst_23 = arith.constant dense<0.000000e+00> : vector<256x32xf32>
    %54 = tpu.matmul %52, %53, %cst_23 {dimension_numbers = #tpu.dot_dimension_numbers<[1], [0], [0], [1], [0, 0, 1, 1], [], []>} : vector<256x64xf32>, vector<64x32xf32>, vector<256x32xf32> -> vector<256x32xf32>
    %55 = vector.extract_strided_slice %0 {offsets = [1, 0], sizes = [1, 32], strides = [1, 1]} : vector<16x32xf32> to vector<1x32xf32>
    %56 = vector.broadcast %55 : vector<1x32xf32> to vector<256x32xf32>
    %57 = arith.addf %54, %56 : vector<256x32xf32>
    %c0_24 = arith.constant 0 : index
    %c0_25 = arith.constant 0 : index
    %58 = vector.load %arg7[%c0_24, %c0_25] : memref<32x96xf32, #tpu.memory_space<vmem>>, vector<32x96xf32>
    %cst_26 = arith.constant dense<0.000000e+00> : vector<256x96xf32>
    %59 = tpu.matmul %57, %58, %cst_26 {dimension_numbers = #tpu.dot_dimension_numbers<[1], [0], [0], [1], [0, 0, 1, 1], [], []>} : vector<256x32xf32>, vector<32x96xf32>, vector<256x96xf32> -> vector<256x96xf32>
    %60 = vector.extract_strided_slice %59 {offsets = [0, 0], sizes = [256, 32], strides = [1, 1]} : vector<256x96xf32> to vector<256x32xf32>
    %61 = vector.extract_strided_slice %0 {offsets = [2, 0], sizes = [1, 32], strides = [1, 1]} : vector<16x32xf32> to vector<1x32xf32>
    %62 = vector.broadcast %61 : vector<1x32xf32> to vector<256x32xf32>
    %63 = arith.addf %60, %62 : vector<256x32xf32>
    %64 = vector.shape_cast %63 : vector<256x32xf32> to vector<16x16x32xf32>
    %65 = vector.extract_strided_slice %59 {offsets = [0, 32], sizes = [256, 32], strides = [1, 1]} : vector<256x96xf32> to vector<256x32xf32>
    %66 = vector.extract_strided_slice %0 {offsets = [3, 0], sizes = [1, 32], strides = [1, 1]} : vector<16x32xf32> to vector<1x32xf32>
    %67 = vector.broadcast %66 : vector<1x32xf32> to vector<256x32xf32>
    %68 = arith.addf %65, %67 : vector<256x32xf32>
    %69 = vector.shape_cast %68 : vector<256x32xf32> to vector<16x16x32xf32>
    %70 = vector.extract_strided_slice %59 {offsets = [0, 64], sizes = [256, 32], strides = [1, 1]} : vector<256x96xf32> to vector<256x32xf32>
    %71 = vector.extract_strided_slice %0 {offsets = [4, 0], sizes = [1, 32], strides = [1, 1]} : vector<16x32xf32> to vector<1x32xf32>
    %72 = vector.broadcast %71 : vector<1x32xf32> to vector<256x32xf32>
    %73 = arith.addf %70, %72 : vector<256x32xf32>
    %74 = vector.shape_cast %73 : vector<256x32xf32> to vector<16x16x32xf32>
    %75 = vector.extract_strided_slice %64 {offsets = [0, 0, 0], sizes = [16, 16, 16], strides = [1, 1, 1]} : vector<16x16x32xf32> to vector<16x16x16xf32>
    %76 = vector.extract_strided_slice %64 {offsets = [0, 0, 16], sizes = [16, 16, 16], strides = [1, 1, 1]} : vector<16x16x32xf32> to vector<16x16x16xf32>
    %77 = tpu.concatenate %75, %76 in 0 : vector<16x16x16xf32>, vector<16x16x16xf32> -> vector<32x16x16xf32>
    %78 = vector.extract_strided_slice %69 {offsets = [0, 0, 0], sizes = [16, 16, 16], strides = [1, 1, 1]} : vector<16x16x32xf32> to vector<16x16x16xf32>
    %79 = vector.extract_strided_slice %69 {offsets = [0, 0, 16], sizes = [16, 16, 16], strides = [1, 1, 1]} : vector<16x16x32xf32> to vector<16x16x16xf32>
    %80 = tpu.concatenate %78, %79 in 0 : vector<16x16x16xf32>, vector<16x16x16xf32> -> vector<32x16x16xf32>
    %81 = vector.extract_strided_slice %74 {offsets = [0, 0, 0], sizes = [16, 16, 16], strides = [1, 1, 1]} : vector<16x16x32xf32> to vector<16x16x16xf32>
    %82 = vector.extract_strided_slice %74 {offsets = [0, 0, 16], sizes = [16, 16, 16], strides = [1, 1, 1]} : vector<16x16x32xf32> to vector<16x16x16xf32>
    %83 = tpu.concatenate %81, %82 in 0 : vector<16x16x16xf32>, vector<16x16x16xf32> -> vector<32x16x16xf32>
    %84 = tpu.iota {dimensions = array<i32: 2>} : vector<1x1x16xi32>
    %c10_i32 = arith.constant 10 : i32
    %85 = vector.broadcast %c10_i32 : i32 to vector<1x1x16xi32>
    %86 = arith.cmpi slt, %84, %85 : vector<1x1x16xi32>
    "tpu.trace_start"() <{level = 10 : i32, message = "nid,njd->nij"}> : () -> ()
    %cst_27 = arith.constant dense<0.000000e+00> : vector<32x16x16xf32>
    %87 = tpu.matmul %77, %80, %cst_27 {dimension_numbers = #tpu.dot_dimension_numbers<[2], [2], [1], [1], [0, 0, 0, 1, 1, 1], [0], [0]>} : vector<32x16x16xf32>, vector<32x16x16xf32>, vector<32x16x16xf32> -> vector<32x16x16xf32>
    %cst_28 = arith.constant -1.000000e+30 : f32
    "tpu.trace_stop"() : () -> ()
    %88 = vector.shape_cast %86 : vector<1x1x16xi1> to vector<1x1x16xi1>
    %89 = vector.broadcast %88 : vector<1x1x16xi1> to vector<32x16x16xi1>
    %90 = vector.broadcast %cst_28 : f32 to vector<32x16x16xf32>
    %91 = arith.select %89, %87, %90 : vector<32x16x16xi1>, vector<32x16x16xf32>
    %cst_29 = arith.constant dense<0xFF800000> : vector<32x16xf32>
    %92 = vector.multi_reduction <maximumf>, %91, %cst_29 [2] : vector<32x16x16xf32> to vector<32x16xf32>
    %93 = vector.shape_cast %92 : vector<32x16xf32> to vector<32x16x1xf32>
    %94 = vector.broadcast %93 : vector<32x16x1xf32> to vector<32x16x16xf32>
    %95 = arith.subf %91, %94 : vector<32x16x16xf32>
    %96 = math.exp %95 : vector<32x16x16xf32>
    %cst_30 = arith.constant dense<0.000000e+00> : vector<32x16xf32>
    %97 = vector.multi_reduction <add>, %96, %cst_30 [2] : vector<32x16x16xf32> to vector<32x16xf32>
    %98 = vector.shape_cast %97 : vector<32x16xf32> to vector<32x16x1xf32>
    %99 = vector.broadcast %98 : vector<32x16x1xf32> to vector<32x16x16xf32>
    %100 = arith.divf %96, %99 : vector<32x16x16xf32>
    "tpu.trace_start"() <{level = 10 : i32, message = "nij,njd->nid"}> : () -> ()
    %cst_31 = arith.constant dense<0.000000e+00> : vector<32x16x16xf32>
    %101 = tpu.matmul %100, %83, %cst_31 {dimension_numbers = #tpu.dot_dimension_numbers<[2], [1], [1], [2], [0, 0, 0, 1, 1, 2], [0], [0]>} : vector<32x16x16xf32>, vector<32x16x16xf32>, vector<32x16x16xf32> -> vector<32x16x16xf32>
    "tpu.trace_stop"() : () -> ()
    %102 = vector.extract_strided_slice %101 {offsets = [0, 0, 0], sizes = [16, 16, 16], strides = [1, 1, 1]} : vector<32x16x16xf32> to vector<16x16x16xf32>
    %103 = vector.extract_strided_slice %101 {offsets = [16, 0, 0], sizes = [16, 16, 16], strides = [1, 1, 1]} : vector<32x16x16xf32> to vector<16x16x16xf32>
    %104 = tpu.concatenate %102, %103 in 2 : vector<16x16x16xf32>, vector<16x16x16xf32> -> vector<16x16x32xf32>
    %105 = vector.shape_cast %104 : vector<16x16x32xf32> to vector<256x32xf32>
    %c0_32 = arith.constant 0 : index
    %c0_33 = arith.constant 0 : index
    %106 = vector.load %arg8[%c0_32, %c0_33] : memref<32x32xf32, #tpu.memory_space<vmem>>, vector<32x32xf32>
    %cst_34 = arith.constant dense<0.000000e+00> : vector<256x32xf32>
    %107 = tpu.matmul %105, %106, %cst_34 {dimension_numbers = #tpu.dot_dimension_numbers<[1], [0], [0], [1], [0, 0, 1, 1], [], []>} : vector<256x32xf32>, vector<32x32xf32>, vector<256x32xf32> -> vector<256x32xf32>
    %108 = vector.extract_strided_slice %0 {offsets = [5, 0], sizes = [1, 32], strides = [1, 1]} : vector<16x32xf32> to vector<1x32xf32>
    %109 = vector.broadcast %108 : vector<1x32xf32> to vector<256x32xf32>
    %110 = arith.addf %107, %109 : vector<256x32xf32>
    %cst_35 = arith.constant dense<0.000000e+00> : vector<256xf32>
    %111 = vector.multi_reduction <add>, %110, %cst_35 [1] : vector<256x32xf32> to vector<256xf32>
    %112 = vector.shape_cast %111 : vector<256xf32> to vector<256x1xf32>
    %113 = arith.mulf %110, %110 : vector<256x32xf32>
    %cst_36 = arith.constant dense<0.000000e+00> : vector<256xf32>
    %114 = vector.multi_reduction <add>, %113, %cst_36 [1] : vector<256x32xf32> to vector<256xf32>
    %115 = vector.shape_cast %114 : vector<256xf32> to vector<256x1xf32>
    %cst_37 = arith.constant 3.125000e-02 : f32
    %116 = vector.broadcast %cst_37 : f32 to vector<256x1xf32>
    %117 = arith.mulf %112, %116 : vector<256x1xf32>
    %cst_38 = arith.constant 3.125000e-02 : f32
    %118 = vector.broadcast %cst_38 : f32 to vector<256x1xf32>
    %119 = arith.mulf %115, %118 : vector<256x1xf32>
    %120 = arith.mulf %117, %117 : vector<256x1xf32>
    %121 = arith.subf %119, %120 : vector<256x1xf32>
    %cst_39 = arith.constant 0.000000e+00 : f32
    %122 = vector.broadcast %cst_39 : f32 to vector<256x1xf32>
    %123 = arith.maximumf %121, %122 : vector<256x1xf32>
    %124 = vector.broadcast %117 : vector<256x1xf32> to vector<256x32xf32>
    %125 = arith.subf %110, %124 : vector<256x32xf32>
    %cst_40 = arith.constant 9.99999974E-6 : f32
    %126 = vector.broadcast %cst_40 : f32 to vector<256x1xf32>
    %127 = arith.addf %123, %126 : vector<256x1xf32>
    %128 = math.rsqrt %127 : vector<256x1xf32>
    %129 = vector.broadcast %128 : vector<256x1xf32> to vector<256x32xf32>
    %130 = arith.mulf %125, %129 : vector<256x32xf32>
    %cst_41 = arith.constant 0.000000e+00 : f32
    %131 = vector.broadcast %cst_41 : f32 to vector<256x32xf32>
    %132 = arith.maximumf %130, %131 : vector<256x32xf32>
    %c0_42 = arith.constant 0 : index
    %c0_43 = arith.constant 0 : index
    %c0_44 = arith.constant 0 : index
    %133 = vector.load %arg10[%c0_42, %c0_43, %c0_44] : memref<3x32x32xf32, #tpu.memory_space<vmem>>, vector<1x32x32xf32>
    %134 = vector.shape_cast %133 : vector<1x32x32xf32> to vector<32x32xf32>
    %cst_45 = arith.constant dense<0.000000e+00> : vector<256x32xf32>
    %135 = tpu.matmul %132, %134, %cst_45 {dimension_numbers = #tpu.dot_dimension_numbers<[1], [0], [0], [1], [0, 0, 1, 1], [], []>} : vector<256x32xf32>, vector<32x32xf32>, vector<256x32xf32> -> vector<256x32xf32>
    %136 = vector.extract_strided_slice %0 {offsets = [7, 0], sizes = [1, 32], strides = [1, 1]} : vector<16x32xf32> to vector<1x32xf32>
    %137 = vector.broadcast %136 : vector<1x32xf32> to vector<256x32xf32>
    %138 = arith.addf %135, %137 : vector<256x32xf32>
    %cst_46 = arith.constant dense<0.000000e+00> : vector<256xf32>
    %139 = vector.multi_reduction <add>, %138, %cst_46 [1] : vector<256x32xf32> to vector<256xf32>
    %140 = vector.shape_cast %139 : vector<256xf32> to vector<256x1xf32>
    %141 = arith.mulf %138, %138 : vector<256x32xf32>
    %cst_47 = arith.constant dense<0.000000e+00> : vector<256xf32>
    %142 = vector.multi_reduction <add>, %141, %cst_47 [1] : vector<256x32xf32> to vector<256xf32>
    %143 = vector.shape_cast %142 : vector<256xf32> to vector<256x1xf32>
    %cst_48 = arith.constant 3.125000e-02 : f32
    %144 = vector.broadcast %cst_48 : f32 to vector<256x1xf32>
    %145 = arith.mulf %140, %144 : vector<256x1xf32>
    %cst_49 = arith.constant 3.125000e-02 : f32
    %146 = vector.broadcast %cst_49 : f32 to vector<256x1xf32>
    %147 = arith.mulf %143, %146 : vector<256x1xf32>
    %148 = arith.mulf %145, %145 : vector<256x1xf32>
    %149 = arith.subf %147, %148 : vector<256x1xf32>
    %cst_50 = arith.constant 0.000000e+00 : f32
    %150 = vector.broadcast %cst_50 : f32 to vector<256x1xf32>
    %151 = arith.maximumf %149, %150 : vector<256x1xf32>
    %152 = vector.broadcast %145 : vector<256x1xf32> to vector<256x32xf32>
    %153 = arith.subf %138, %152 : vector<256x32xf32>
    %cst_51 = arith.constant 9.99999974E-6 : f32
    %154 = vector.broadcast %cst_51 : f32 to vector<256x1xf32>
    %155 = arith.addf %151, %154 : vector<256x1xf32>
    %156 = math.rsqrt %155 : vector<256x1xf32>
    %157 = vector.broadcast %156 : vector<256x1xf32> to vector<256x32xf32>
    %158 = arith.mulf %153, %157 : vector<256x32xf32>
    %cst_52 = arith.constant 0.000000e+00 : f32
    %159 = vector.broadcast %cst_52 : f32 to vector<256x32xf32>
    %160 = arith.maximumf %158, %159 : vector<256x32xf32>
    %c1 = arith.constant 1 : index
    %c0_53 = arith.constant 0 : index
    %c0_54 = arith.constant 0 : index
    %161 = vector.load %arg10[%c1, %c0_53, %c0_54] : memref<3x32x32xf32, #tpu.memory_space<vmem>>, vector<1x32x32xf32>
    %162 = vector.shape_cast %161 : vector<1x32x32xf32> to vector<32x32xf32>
    %cst_55 = arith.constant dense<0.000000e+00> : vector<256x32xf32>
    %163 = tpu.matmul %160, %162, %cst_55 {dimension_numbers = #tpu.dot_dimension_numbers<[1], [0], [0], [1], [0, 0, 1, 1], [], []>} : vector<256x32xf32>, vector<32x32xf32>, vector<256x32xf32> -> vector<256x32xf32>
    %164 = vector.extract_strided_slice %0 {offsets = [8, 0], sizes = [1, 32], strides = [1, 1]} : vector<16x32xf32> to vector<1x32xf32>
    %165 = vector.broadcast %164 : vector<1x32xf32> to vector<256x32xf32>
    %166 = arith.addf %163, %165 : vector<256x32xf32>
    %cst_56 = arith.constant dense<0.000000e+00> : vector<256xf32>
    %167 = vector.multi_reduction <add>, %166, %cst_56 [1] : vector<256x32xf32> to vector<256xf32>
    %168 = vector.shape_cast %167 : vector<256xf32> to vector<256x1xf32>
    %169 = arith.mulf %166, %166 : vector<256x32xf32>
    %cst_57 = arith.constant dense<0.000000e+00> : vector<256xf32>
    %170 = vector.multi_reduction <add>, %169, %cst_57 [1] : vector<256x32xf32> to vector<256xf32>
    %171 = vector.shape_cast %170 : vector<256xf32> to vector<256x1xf32>
    %cst_58 = arith.constant 3.125000e-02 : f32
    %172 = vector.broadcast %cst_58 : f32 to vector<256x1xf32>
    %173 = arith.mulf %168, %172 : vector<256x1xf32>
    %cst_59 = arith.constant 3.125000e-02 : f32
    %174 = vector.broadcast %cst_59 : f32 to vector<256x1xf32>
    %175 = arith.mulf %171, %174 : vector<256x1xf32>
    %176 = arith.mulf %173, %173 : vector<256x1xf32>
    %177 = arith.subf %175, %176 : vector<256x1xf32>
    %cst_60 = arith.constant 0.000000e+00 : f32
    %178 = vector.broadcast %cst_60 : f32 to vector<256x1xf32>
    %179 = arith.maximumf %177, %178 : vector<256x1xf32>
    %180 = vector.broadcast %173 : vector<256x1xf32> to vector<256x32xf32>
    %181 = arith.subf %166, %180 : vector<256x32xf32>
    %cst_61 = arith.constant 9.99999974E-6 : f32
    %182 = vector.broadcast %cst_61 : f32 to vector<256x1xf32>
    %183 = arith.addf %179, %182 : vector<256x1xf32>
    %184 = math.rsqrt %183 : vector<256x1xf32>
    %185 = vector.broadcast %184 : vector<256x1xf32> to vector<256x32xf32>
    %186 = arith.mulf %181, %185 : vector<256x32xf32>
    %cst_62 = arith.constant 0.000000e+00 : f32
    %187 = vector.broadcast %cst_62 : f32 to vector<256x32xf32>
    %188 = arith.maximumf %186, %187 : vector<256x32xf32>
    %c2 = arith.constant 2 : index
    %c0_63 = arith.constant 0 : index
    %c0_64 = arith.constant 0 : index
    %189 = vector.load %arg10[%c2, %c0_63, %c0_64] : memref<3x32x32xf32, #tpu.memory_space<vmem>>, vector<1x32x32xf32>
    %190 = vector.shape_cast %189 : vector<1x32x32xf32> to vector<32x32xf32>
    %cst_65 = arith.constant dense<0.000000e+00> : vector<256x32xf32>
    %191 = tpu.matmul %188, %190, %cst_65 {dimension_numbers = #tpu.dot_dimension_numbers<[1], [0], [0], [1], [0, 0, 1, 1], [], []>} : vector<256x32xf32>, vector<32x32xf32>, vector<256x32xf32> -> vector<256x32xf32>
    %192 = vector.extract_strided_slice %0 {offsets = [9, 0], sizes = [1, 32], strides = [1, 1]} : vector<16x32xf32> to vector<1x32xf32>
    %193 = vector.broadcast %192 : vector<1x32xf32> to vector<256x32xf32>
    %194 = arith.addf %191, %193 : vector<256x32xf32>
    %195 = vector.shape_cast %194 : vector<256x32xf32> to vector<16x16x32xf32>
    %c0_66 = arith.constant 0 : index
    %c0_67 = arith.constant 0 : index
    %196 = vector.load %arg3[%c0_66, %c0_67] : memref<16x64xf32, #tpu.memory_space<vmem>>, vector<16x64xf32>
    %cst_68 = arith.constant dense<0.000000e+00> : vector<16xf32>
    %197 = vector.multi_reduction <add>, %196, %cst_68 [1] : vector<16x64xf32> to vector<16xf32>
    %198 = vector.shape_cast %197 : vector<16xf32> to vector<16x1xf32>
    %199 = arith.mulf %196, %196 : vector<16x64xf32>
    %cst_69 = arith.constant dense<0.000000e+00> : vector<16xf32>
    %200 = vector.multi_reduction <add>, %199, %cst_69 [1] : vector<16x64xf32> to vector<16xf32>
    %201 = vector.shape_cast %200 : vector<16xf32> to vector<16x1xf32>
    %cst_70 = arith.constant 1.562500e-02 : f32
    %202 = vector.broadcast %cst_70 : f32 to vector<16x1xf32>
    %203 = arith.mulf %198, %202 : vector<16x1xf32>
    %cst_71 = arith.constant 1.562500e-02 : f32
    %204 = vector.broadcast %cst_71 : f32 to vector<16x1xf32>
    %205 = arith.mulf %201, %204 : vector<16x1xf32>
    %206 = arith.mulf %203, %203 : vector<16x1xf32>
    %207 = arith.subf %205, %206 : vector<16x1xf32>
    %cst_72 = arith.constant 0.000000e+00 : f32
    %208 = vector.broadcast %cst_72 : f32 to vector<16x1xf32>
    %209 = arith.maximumf %207, %208 : vector<16x1xf32>
    %210 = vector.broadcast %203 : vector<16x1xf32> to vector<16x64xf32>
    %211 = arith.subf %196, %210 : vector<16x64xf32>
    %cst_73 = arith.constant 9.99999974E-6 : f32
    %212 = vector.broadcast %cst_73 : f32 to vector<16x1xf32>
    %213 = arith.addf %209, %212 : vector<16x1xf32>
    %214 = math.rsqrt %213 : vector<16x1xf32>
    %215 = vector.broadcast %214 : vector<16x1xf32> to vector<16x64xf32>
    %216 = arith.mulf %211, %215 : vector<16x64xf32>
    %cst_74 = arith.constant 0.000000e+00 : f32
    %217 = vector.broadcast %cst_74 : f32 to vector<16x64xf32>
    %218 = arith.maximumf %216, %217 : vector<16x64xf32>
    %c0_75 = arith.constant 0 : index
    %c0_76 = arith.constant 0 : index
    %219 = vector.load %arg9[%c0_75, %c0_76] : memref<64x32xf32, #tpu.memory_space<vmem>>, vector<64x32xf32>
    %cst_77 = arith.constant dense<0.000000e+00> : vector<16x32xf32>
    %220 = tpu.matmul %218, %219, %cst_77 {dimension_numbers = #tpu.dot_dimension_numbers<[1], [0], [0], [1], [0, 0, 1, 1], [], []>} : vector<16x64xf32>, vector<64x32xf32>, vector<16x32xf32> -> vector<16x32xf32>
    %221 = vector.extract_strided_slice %0 {offsets = [6, 0], sizes = [1, 32], strides = [1, 1]} : vector<16x32xf32> to vector<1x32xf32>
    %222 = vector.broadcast %221 : vector<1x32xf32> to vector<16x32xf32>
    %223 = arith.addf %220, %222 : vector<16x32xf32>
    %224 = vector.shape_cast %223 : vector<16x32xf32> to vector<16x1x32xf32>
    %225 = vector.broadcast %224 : vector<16x1x32xf32> to vector<16x16x32xf32>
    %226 = arith.mulf %195, %225 : vector<16x16x32xf32>
    %cst_78 = arith.constant dense<0.000000e+00> : vector<16x16xf32>
    %227 = vector.multi_reduction <add>, %226, %cst_78 [2] : vector<16x16x32xf32> to vector<16x16xf32>
    %c0_79 = arith.constant 0 : index
    %c0_80 = arith.constant 0 : index
    %228 = vector.load %arg4[%c0_79, %c0_80] : memref<16x16xf32, #tpu.memory_space<vmem>>, vector<16x16xf32>
    %cst_81 = arith.constant 5.000000e-01 : f32
    %229 = vector.broadcast %cst_81 : f32 to vector<16x16xf32>
    %230 = arith.cmpf ogt, %228, %229 : vector<16x16xf32>
    %231 = tpu.iota {dimensions = array<i32: 1>} : vector<1x16xi32>
    %c10_i32_82 = arith.constant 10 : i32
    %232 = vector.broadcast %c10_i32_82 : i32 to vector<1x16xi32>
    %233 = arith.cmpi slt, %231, %232 : vector<1x16xi32>
    %cst_83 = arith.constant 1.000000e+30 : f32
    %234 = vector.shape_cast %233 : vector<1x16xi1> to vector<1x16xi1>
    %235 = vector.broadcast %234 : vector<1x16xi1> to vector<16x16xi1>
    %236 = vector.broadcast %cst_83 : f32 to vector<16x16xf32>
    %237 = arith.select %235, %227, %236 : vector<16x16xi1>, vector<16x16xf32>
    %cst_84 = arith.constant dense<0x7F800000> : vector<16xf32>
    %238 = vector.multi_reduction <minimumf>, %237, %cst_84 [1] : vector<16x16xf32> to vector<16xf32>
    %239 = vector.shape_cast %238 : vector<16xf32> to vector<16x1xf32>
    %240 = vector.shape_cast %239 : vector<16x1xf32> to vector<16x1xf32>
    %241 = vector.broadcast %240 : vector<16x1xf32> to vector<16x16xf32>
    %242 = arith.select %230, %227, %241 : vector<16x16xi1>, vector<16x16xf32>
    %cst_85 = arith.constant dense<0xFF800000> : vector<16xf32>
    %243 = vector.multi_reduction <maximumf>, %242, %cst_85 [1] : vector<16x16xf32> to vector<16xf32>
    %244 = vector.shape_cast %243 : vector<16xf32> to vector<16x1xf32>
    %245 = vector.broadcast %244 : vector<16x1xf32> to vector<16x16xf32>
    %246 = arith.subf %242, %245 : vector<16x16xf32>
    %247 = arith.mulf %246, %228 : vector<16x16xf32>
    %248 = math.exp %247 : vector<16x16xf32>
    %cst_86 = arith.constant 0.000000e+00 : f32
    %249 = vector.broadcast %cst_86 : f32 to vector<16x16xf32>
    %250 = arith.select %230, %248, %249 : vector<16x16xi1>, vector<16x16xf32>
    %cst_87 = arith.constant dense<0.000000e+00> : vector<16xf32>
    %251 = vector.multi_reduction <add>, %250, %cst_87 [1] : vector<16x16xf32> to vector<16xf32>
    %252 = vector.shape_cast %251 : vector<16xf32> to vector<16x1xf32>
    %253 = tpu.reciprocal %252 {approx = true} : vector<16x1xf32> -> vector<16x1xf32>
    %254 = vector.broadcast %253 : vector<16x1xf32> to vector<16x16xf32>
    %255 = arith.mulf %250, %254 : vector<16x16xf32>
    %cst_88 = arith.constant -1.000000e+30 : f32
    %256 = vector.broadcast %cst_88 : f32 to vector<16x16xf32>
    %257 = arith.select %230, %227, %256 : vector<16x16xi1>, vector<16x16xf32>
    %cst_89 = arith.constant dense<0xFF800000> : vector<16xf32>
    %258 = vector.multi_reduction <maximumf>, %257, %cst_89 [1] : vector<16x16xf32> to vector<16xf32>
    %259 = vector.shape_cast %258 : vector<16xf32> to vector<16x1xf32>
    %260 = vector.broadcast %259 : vector<16x1xf32> to vector<16x16xf32>
    %261 = arith.subf %257, %260 : vector<16x16xf32>
    %262 = math.exp %261 : vector<16x16xf32>
    %cst_90 = arith.constant 0.000000e+00 : f32
    %263 = vector.broadcast %cst_90 : f32 to vector<16x16xf32>
    %264 = arith.select %230, %262, %263 : vector<16x16xi1>, vector<16x16xf32>
    %cst_91 = arith.constant dense<0.000000e+00> : vector<16xf32>
    %265 = vector.multi_reduction <add>, %264, %cst_91 [1] : vector<16x16xf32> to vector<16xf32>
    %266 = vector.shape_cast %265 : vector<16xf32> to vector<16x1xf32>
    %267 = math.log %266 : vector<16x1xf32>
    %268 = arith.addf %267, %259 : vector<16x1xf32>
    %269 = vector.broadcast %268 : vector<16x1xf32> to vector<16x16xf32>
    %270 = arith.subf %227, %269 : vector<16x16xf32>
    %cst_92 = arith.constant 0.000000e+00 : f32
    %271 = vector.broadcast %cst_92 : f32 to vector<16x16xf32>
    %272 = arith.select %230, %270, %271 : vector<16x16xi1>, vector<16x16xf32>
    %273 = tpu.concatenate %255, %272, %227 in 1 : vector<16x16xf32>, vector<16x16xf32>, vector<16x16xf32> -> vector<16x48xf32>
    %c0_93 = arith.constant 0 : index
    %c0_94 = arith.constant 0 : index
    %274 = vector.load %arg12[%c0_93, %c0_94] : memref<16x48xf32, #tpu.memory_space<vmem>>, vector<16x48xf32>
    tpu.vector_store %arg12[%c0_93, %c0_94], %273 {strides = array<i32>} : memref<16x48xf32, #tpu.memory_space<vmem>>, vector<16x48xf32>,
    return
  }
  func.func @transform_0(%arg0: i32) -> (i32, i32) {
    %c0_i32 = arith.constant 0 : i32
    %c0_i32_0 = arith.constant 0 : i32
    return %arg0, %c0_i32 : i32, i32
  }
  func.func @transform_1(%arg0: i32) -> (i32, i32) {
    %c0_i32 = arith.constant 0 : i32
    %c0_i32_0 = arith.constant 0 : i32
    return %arg0, %c0_i32 : i32, i32
  }
  func.func @transform_2(%arg0: i32) -> (i32, i32) {
    %c0_i32 = arith.constant 0 : i32
    %c0_i32_0 = arith.constant 0 : i32
    return %arg0, %c0_i32 : i32, i32
  }
  func.func @transform_3(%arg0: i32) -> (i32, i32) {
    %c0_i32 = arith.constant 0 : i32
    %c0_i32_0 = arith.constant 0 : i32
    return %arg0, %c0_i32 : i32, i32
  }
  func.func @transform_4(%arg0: i32) -> (i32, i32) {
    %c0_i32 = arith.constant 0 : i32
    %c0_i32_0 = arith.constant 0 : i32
    %c0_i32_1 = arith.constant 0 : i32
    return %c0_i32, %c0_i32_0 : i32, i32
  }
  func.func @transform_5(%arg0: i32) -> (i32, i32) {
    %c0_i32 = arith.constant 0 : i32
    %c0_i32_0 = arith.constant 0 : i32
    %c0_i32_1 = arith.constant 0 : i32
    return %c0_i32, %c0_i32_0 : i32, i32
  }
  func.func @transform_6(%arg0: i32) -> (i32, i32) {
    %c0_i32 = arith.constant 0 : i32
    %c0_i32_0 = arith.constant 0 : i32
    %c0_i32_1 = arith.constant 0 : i32
    return %c0_i32, %c0_i32_0 : i32, i32
  }
  func.func @transform_7(%arg0: i32) -> (i32, i32) {
    %c0_i32 = arith.constant 0 : i32
    %c0_i32_0 = arith.constant 0 : i32
    %c0_i32_1 = arith.constant 0 : i32
    return %c0_i32, %c0_i32_0 : i32, i32
  }
  func.func @transform_8(%arg0: i32) -> (i32, i32) {
    %c0_i32 = arith.constant 0 : i32
    %c0_i32_0 = arith.constant 0 : i32
    %c0_i32_1 = arith.constant 0 : i32
    return %c0_i32, %c0_i32_0 : i32, i32
  }
  func.func @transform_9(%arg0: i32) -> (i32, i32, i32) {
    %c0_i32 = arith.constant 0 : i32
    %c0_i32_0 = arith.constant 0 : i32
    %c0_i32_1 = arith.constant 0 : i32
    %c0_i32_2 = arith.constant 0 : i32
    return %c0_i32, %c0_i32_0, %c0_i32_1 : i32, i32, i32
  }
  func.func @transform_10(%arg0: i32) -> (i32, i32) {
    %c0_i32 = arith.constant 0 : i32
    %c0_i32_0 = arith.constant 0 : i32
    %c0_i32_1 = arith.constant 0 : i32
    return %c0_i32, %c0_i32_0 : i32, i32
  }
  func.func @transform_11(%arg0: i32) -> (i32, i32) {
    %c0_i32 = arith.constant 0 : i32
    %c0_i32_0 = arith.constant 0 : i32
    return %arg0, %c0_i32 : i32, i32
  }
}

</mosaic_0001>

<llo_original>
// kernel: tpu_custom_call.1
$region0: #{tpu_custom_call.1}
  #allocation0 [shape = 'u32[]', space=smem, size = 0x4, offset = 0x4, fixed_abs, tag = 'smem constant byte address 0x4 - core index']
  #allocation1 [shape = 'u32[72,128]{1,0:T(1,128)}', space=vmem, size = 0x9000, scoped, tag = 'internal scratch']
  %s0 = inlined_call_operand.vmem [shape: f32[512,32], index: 0, kind: input, shape index: {}]
  %s1 = inlined_call_operand.vmem [shape: f32[512,32], index: 1, kind: input, shape index: {}]
  %s2 = inlined_call_operand.vmem [shape: f32[32,64], index: 2, kind: input, shape index: {}]
  %s3 = inlined_call_operand.vmem [shape: f32[32,16], index: 3, kind: input, shape index: {}]
  %s4 = inlined_call_operand.vmem [shape: f32[32,32], index: 4, kind: input, shape index: {}]
  %s5 = inlined_call_operand.vmem [shape: f32[64,32], index: 5, kind: input, shape index: {}]
  %s6 = inlined_call_operand.vmem [shape: f32[32,96], index: 6, kind: input, shape index: {}]
  %s7 = inlined_call_operand.vmem [shape: f32[32,32], index: 7, kind: input, shape index: {}]
  %s8 = inlined_call_operand.vmem [shape: f32[64,32], index: 8, kind: input, shape index: {}]
  %s9 = inlined_call_operand.vmem [shape: f32[3,32,32], index: 9, kind: input, shape index: {}]
  %s10 = inlined_call_operand.vmem [shape: f32[16,32], index: 10, kind: input, shape index: {}]
  %s11 = inlined_call_operand.hbm [shape: f32[32,48], index: 11, kind: output, shape index: {}]
  %s12 = sld [smem:[#allocation0]]
  $region77: #{tpu_custom_call.1} parent=0
    _
  %s14 = ssub.s32 1, %s12
  %s15 = scalar_select 0, %s14, %s12
  $region1: #{tpu_custom_call.1} parent=0
    #allocation2 [shape = 'u8[16384]{0}', space=vmem, size = 0x4000, scoped, tag = 'output window, operand 0']
    #allocation3 [shape = 's32[2]{0}', space=sflag, size = 0x8, scoped, tag = 'scoped memory for tpu_custom_call.1']
    %16 = vsyncpa [#allocation3], 0
    %s17 = scalar_lea.sflag [#allocation3], 1
    %18 = vsyncpa %s17, 0
    loop: start=0, step=1, limit=4
    $region2: #{tpu_custom_call.1} parent=1 // loop_pre_header
      _
    $region3: #{tpu_custom_call.1} parent=1 // loop_header
      %s20 = sphi 0, %s24
      %p21 = scmp.ge.s32.totalorder %s20, 4
      %s30 = sphi 0, %s32
      %s33 = sphi 0, %s30
      %s34 = sphi 0, %s33
      %s50 = sphi 0, %s34
      %s56 = sphi 0, %s58
      %s59 = sphi 0, %s56
      %s60 = sphi 0, %s59
      %s76 = sphi 0, %s60
      %s82 = sphi 0, %s84
      %s85 = sphi 0, %s82
      %s86 = sphi 0, %s85
      %s102 = sphi 0, %s86
      %s108 = sphi 0, %s110
      %s111 = sphi 0, %s108
      %s112 = sphi 0, %s111
      %s128 = sphi 0, %s112
      %s132 = sphi 0, %s132
      %s134 = sphi 0, %s132
      %s135 = sphi 0, %s134
      %s149 = sphi 0, %s135
      %s153 = sphi 0, %s153
      %s155 = sphi 0, %s153
      %s156 = sphi 0, %s155
      %s170 = sphi 0, %s156
      %s174 = sphi 0, %s174
      %s176 = sphi 0, %s174
      %s177 = sphi 0, %s176
      %s191 = sphi 0, %s177
      %s195 = sphi 0, %s195
      %s197 = sphi 0, %s195
      %s198 = sphi 0, %s197
      %s212 = sphi 0, %s198
      %s216 = sphi 0, %s216
      %s218 = sphi 0, %s216
      %s219 = sphi 0, %s218
      %s233 = sphi 0, %s219
      %s237 = sphi 0, %s237
      %s239 = sphi 0, %s237
      %s240 = sphi 0, %s239
      %s254 = sphi 0, %s240
      %s258 = sphi 0, %s258
      %s260 = sphi 0, %s258
      %s261 = sphi 0, %s260
      %s275 = sphi 0, %s261
      %s281 = sphi 0, %s283
      %s284 = sphi 0, %s281
      %s285 = sphi 0, %s284
      %s301 = sphi 0, %s285
    $region4: #{tpu_custom_call.1} parent=1 // loop_header_branch
      %23 = sbr.rel (%p21) target = $region8
    $region5: #{tpu_custom_call.1} parent=1 // loop_body
      %s25 = ssub.s32 %s20, 1
      %s26 = ssub.s32 %s20, 2
      %s27 = sadd.s32 %s20, 1
      %s28 = ssub.s32 %s20, %s27
      %p29 = scmp.eq.s32.totalorder %s28, 0
      %s31 = sadd.s32 %s30, 1
      %s32 = scalar_select %p29, %s30, %s31
      %p35 = pneg %p29
      %p36 = scmp.eq.s32.totalorder %s20, 1
      %p37 = por %p35, %p36
      %p38 = scmp.ne.s32.totalorder %s30, %s33
      %p39 = scmp.eq.s32.totalorder %s20, 0
      %p40 = por %p38, %p39
      %p41 = scmp.ne.s32.totalorder %s30, %s33
      %p42 = scmp.eq.s32.totalorder %s25, 1
      %p43 = por %p41, %p42
      %p44 = scmp.ne.s32.totalorder %s33, %s34
      %p45 = scmp.eq.s32.totalorder %s25, 0
      %p46 = por %p44, %p45
      %p47 = scmp.ne.s32.totalorder %s33, %s34
      %p48 = scmp.eq.s32.totalorder %s26, 1
      %p49 = por %p47, %p48
      %p51 = scmp.ne.s32.totalorder %s34, %s50
      %p52 = scmp.eq.s32.totalorder %s26, 0
      %p53 = por %p51, %p52
      %s54 = ssub.s32 %s20, %s27
      %p55 = scmp.eq.s32.totalorder %s54, 0
      %s57 = sadd.s32 %s56, 1
      %s58 = scalar_select %p55, %s56, %s57
      %p61 = pneg %p55
      %p62 = scmp.eq.s32.totalorder %s20, 1
      %p63 = por %p61, %p62
      %p64 = scmp.ne.s32.totalorder %s56, %s59
      %p65 = scmp.eq.s32.totalorder %s20, 0
      %p66 = por %p64, %p65
      %p67 = scmp.ne.s32.totalorder %s56, %s59
      %p68 = scmp.eq.s32.totalorder %s25, 1
      %p69 = por %p67, %p68
      %p70 = scmp.ne.s32.totalorder %s59, %s60
      %p71 = scmp.eq.s32.totalorder %s25, 0
      %p72 = por %p70, %p71
      %p73 = scmp.ne.s32.totalorder %s59, %s60
      %p74 = scmp.eq.s32.totalorder %s26, 1
      %p75 = por %p73, %p74
      %p77 = scmp.ne.s32.totalorder %s60, %s76
      %p78 = scmp.eq.s32.totalorder %s26, 0
      %p79 = por %p77, %p78
      %s80 = ssub.s32 %s20, %s27
      %p81 = scmp.eq.s32.totalorder %s80, 0
      %s83 = sadd.s32 %s82, 1
      %s84 = scalar_select %p81, %s82, %s83
      %p87 = pneg %p81
      %p88 = scmp.eq.s32.totalorder %s20, 1
      %p89 = por %p87, %p88
      %p90 = scmp.ne.s32.totalorder %s82, %s85
      %p91 = scmp.eq.s32.totalorder %s20, 0
      %p92 = por %p90, %p91
      %p93 = scmp.ne.s32.totalorder %s82, %s85
      %p94 = scmp.eq.s32.totalorder %s25, 1
      %p95 = por %p93, %p94
      %p96 = scmp.ne.s32.totalorder %s85, %s86
      %p97 = scmp.eq.s32.totalorder %s25, 0
      %p98 = por %p96, %p97
      %p99 = scmp.ne.s32.totalorder %s85, %s86
      %p100 = scmp.eq.s32.totalorder %s26, 1
      %p101 = por %p99, %p100
      %p103 = scmp.ne.s32.totalorder %s86, %s102
      %p104 = scmp.eq.s32.totalorder %s26, 0
      %p105 = por %p103, %p104
      %s106 = ssub.s32 %s20, %s27
      %p107 = scmp.eq.s32.totalorder %s106, 0
      %s109 = sadd.s32 %s108, 1
      %s110 = scalar_select %p107, %s108, %s109
      %p113 = pneg %p107
      %p114 = scmp.eq.s32.totalorder %s20, 1
      %p115 = por %p113, %p114
      %p116 = scmp.ne.s32.totalorder %s108, %s111
      %p117 = scmp.eq.s32.totalorder %s20, 0
      %p118 = por %p116, %p117
      %p119 = scmp.ne.s32.totalorder %s108, %s111
      %p120 = scmp.eq.s32.totalorder %s25, 1
      %p121 = por %p119, %p120
      %p122 = scmp.ne.s32.totalorder %s111, %s112
      %p123 = scmp.eq.s32.totalorder %s25, 0
      %p124 = por %p122, %p123
      %p125 = scmp.ne.s32.totalorder %s111, %s112
      %p126 = scmp.eq.s32.totalorder %s26, 1
      %p127 = por %p125, %p126
      %p129 = scmp.ne.s32.totalorder %s112, %s128
      %p130 = scmp.eq.s32.totalorder %s26, 0
      %p131 = por %p129, %p130
      %s133 = sadd.s32 %s132, 1
      %p136 = scmp.eq.s32.totalorder %s20, 1
      %p137 = scmp.ne.s32.totalorder %s132, %s134
      %p138 = scmp.eq.s32.totalorder %s20, 0
      %p139 = por %p137, %p138
      %p140 = scmp.ne.s32.totalorder %s132, %s134
      %p141 = scmp.eq.s32.totalorder %s25, 1
      %p142 = por %p140, %p141
      %p143 = scmp.ne.s32.totalorder %s134, %s135
      %p144 = scmp.eq.s32.totalorder %s25, 0
      %p145 = por %p143, %p144
      %p146 = scmp.ne.s32.totalorder %s134, %s135
      %p147 = scmp.eq.s32.totalorder %s26, 1
      %p148 = por %p146, %p147
      %p150 = scmp.ne.s32.totalorder %s135, %s149
      %p151 = scmp.eq.s32.totalorder %s26, 0
      %p152 = por %p150, %p151
      %s154 = sadd.s32 %s153, 1
      %p157 = scmp.eq.s32.totalorder %s20, 1
      %p158 = scmp.ne.s32.totalorder %s153, %s155
      %p159 = scmp.eq.s32.totalorder %s20, 0
      %p160 = por %p158, %p159
      %p161 = scmp.ne.s32.totalorder %s153, %s155
      %p162 = scmp.eq.s32.totalorder %s25, 1
      %p163 = por %p161, %p162
      %p164 = scmp.ne.s32.totalorder %s155, %s156
      %p165 = scmp.eq.s32.totalorder %s25, 0
      %p166 = por %p164, %p165
      %p167 = scmp.ne.s32.totalorder %s155, %s156
      %p168 = scmp.eq.s32.totalorder %s26, 1
      %p169 = por %p167, %p168
      %p171 = scmp.ne.s32.totalorder %s156, %s170
      %p172 = scmp.eq.s32.totalorder %s26, 0
      %p173 = por %p171, %p172
      %s175 = sadd.s32 %s174, 1
      %p178 = scmp.eq.s32.totalorder %s20, 1
      %p179 = scmp.ne.s32.totalorder %s174, %s176
      %p180 = scmp.eq.s32.totalorder %s20, 0
      %p181 = por %p179, %p180
      %p182 = scmp.ne.s32.totalorder %s174, %s176
      %p183 = scmp.eq.s32.totalorder %s25, 1
      %p184 = por %p182, %p183
      %p185 = scmp.ne.s32.totalorder %s176, %s177
      %p186 = scmp.eq.s32.totalorder %s25, 0
      %p187 = por %p185, %p186
      %p188 = scmp.ne.s32.totalorder %s176, %s177
      %p189 = scmp.eq.s32.totalorder %s26, 1
      %p190 = por %p188, %p189
      %p192 = scmp.ne.s32.totalorder %s177, %s191
      %p193 = scmp.eq.s32.totalorder %s26, 0
      %p194 = por %p192, %p193
      %s196 = sadd.s32 %s195, 1
      %p199 = scmp.eq.s32.totalorder %s20, 1
      %p200 = scmp.ne.s32.totalorder %s195, %s197
      %p201 = scmp.eq.s32.totalorder %s20, 0
      %p202 = por %p200, %p201
      %p203 = scmp.ne.s32.totalorder %s195, %s197
      %p204 = scmp.eq.s32.totalorder %s25, 1
      %p205 = por %p203, %p204
      %p206 = scmp.ne.s32.totalorder %s197, %s198
      %p207 = scmp.eq.s32.totalorder %s25, 0
      %p208 = por %p206, %p207
      %p209 = scmp.ne.s32.totalorder %s197, %s198
      %p210 = scmp.eq.s32.totalorder %s26, 1
      %p211 = por %p209, %p210
      %p213 = scmp.ne.s32.totalorder %s198, %s212
      %p214 = scmp.eq.s32.totalorder %s26, 0
      %p215 = por %p213, %p214
      %s217 = sadd.s32 %s216, 1
      %p220 = scmp.eq.s32.totalorder %s20, 1
      %p221 = scmp.ne.s32.totalorder %s216, %s218
      %p222 = scmp.eq.s32.totalorder %s20, 0
      %p223 = por %p221, %p222
      %p224 = scmp.ne.s32.totalorder %s216, %s218
      %p225 = scmp.eq.s32.totalorder %s25, 1
      %p226 = por %p224, %p225
      %p227 = scmp.ne.s32.totalorder %s218, %s219
      %p228 = scmp.eq.s32.totalorder %s25, 0
      %p229 = por %p227, %p228
      %p230 = scmp.ne.s32.totalorder %s218, %s219
      %p231 = scmp.eq.s32.totalorder %s26, 1
      %p232 = por %p230, %p231
      %p234 = scmp.ne.s32.totalorder %s219, %s233
      %p235 = scmp.eq.s32.totalorder %s26, 0
      %p236 = por %p234, %p235
      %s238 = sadd.s32 %s237, 1
      %p241 = scmp.eq.s32.totalorder %s20, 1
      %p242 = scmp.ne.s32.totalorder %s237, %s239
      %p243 = scmp.eq.s32.totalorder %s20, 0
      %p244 = por %p242, %p243
      %p245 = scmp.ne.s32.totalorder %s237, %s239
      %p246 = scmp.eq.s32.totalorder %s25, 1
      %p247 = por %p245, %p246
      %p248 = scmp.ne.s32.totalorder %s239, %s240
      %p249 = scmp.eq.s32.totalorder %s25, 0
      %p250 = por %p248, %p249
      %p251 = scmp.ne.s32.totalorder %s239, %s240
      %p252 = scmp.eq.s32.totalorder %s26, 1
      %p253 = por %p251, %p252
      %p255 = scmp.ne.s32.totalorder %s240, %s254
      %p256 = scmp.eq.s32.totalorder %s26, 0
      %p257 = por %p255, %p256
      %s259 = sadd.s32 %s258, 1
      %p262 = scmp.eq.s32.totalorder %s20, 1
      %p263 = scmp.ne.s32.totalorder %s258, %s260
      %p264 = scmp.eq.s32.totalorder %s20, 0
      %p265 = por %p263, %p264
      %p266 = scmp.ne.s32.totalorder %s258, %s260
      %p267 = scmp.eq.s32.totalorder %s25, 1
      %p268 = por %p266, %p267
      %p269 = scmp.ne.s32.totalorder %s260, %s261
      %p270 = scmp.eq.s32.totalorder %s25, 0
      %p271 = por %p269, %p270
      %p272 = scmp.ne.s32.totalorder %s260, %s261
      %p273 = scmp.eq.s32.totalorder %s26, 1
      %p274 = por %p272, %p273
      %p276 = scmp.ne.s32.totalorder %s261, %s275
      %p277 = scmp.eq.s32.totalorder %s26, 0
      %p278 = por %p276, %p277
      %s279 = ssub.s32 %s20, %s27
      %p280 = scmp.eq.s32.totalorder %s279, 0
      %s282 = sadd.s32 %s281, 1
      %s283 = scalar_select %p280, %s281, %s282
      %p286 = pneg %p280
      %p287 = scmp.eq.s32.totalorder %s20, 1
      %p288 = por %p286, %p287
      %p289 = scmp.ne.s32.totalorder %s281, %s284
      %p290 = scmp.eq.s32.totalorder %s20, 0
      %p291 = por %p289, %p290
      %p292 = scmp.ne.s32.totalorder %s281, %s284
      %p293 = scmp.eq.s32.totalorder %s25, 1
      %p294 = por %p292, %p293
      %p295 = scmp.ne.s32.totalorder %s284, %s285
      %p296 = scmp.eq.s32.totalorder %s25, 0
      %p297 = por %p295, %p296
      %p298 = scmp.ne.s32.totalorder %s284, %s285
      %p299 = scmp.eq.s32.totalorder %s26, 1
      %p300 = por %p298, %p299
      %p302 = scmp.ne.s32.totalorder %s285, %s301
      %p303 = scmp.eq.s32.totalorder %s26, 0
      %p304 = por %p302, %p303
      %p305 = scmp.le.s32.totalorder 1, %s20
      %p306 = scmp.lt.s32.totalorder %s20, 3
      %p307 = pnand %p305, %p306
      %p308 = pneg %p307
      // Predicated region
      $region9: #{tpu_custom_call.1} parent=5 // pred_check
        _
      $region10: #{tpu_custom_call.1} parent=5 // pred_check_branch
        %310 = sbr.rel (%p307) target = $region12
      $region11: #{tpu_custom_call.1} parent=5 // pred_region
        %s311 = ssub.s32 %s20, 1
        // Predicated region
        $region13: #{tpu_custom_call.1} parent=11 // pred_check
          %p312 = pneg %p145
        $region14: #{tpu_custom_call.1} parent=11 // pred_check_branch
          %314 = sbr.rel (%p312) target = $region16
        $region15: #{tpu_custom_call.1} parent=11 // pred_region
          _
        $region16: #{tpu_custom_call.1} parent=11 // pred_fallthru
          _
        // Predicated region
        $region17: #{tpu_custom_call.1} parent=11 // pred_check
          %p315 = pneg %p166
        $region18: #{tpu_custom_call.1} parent=11 // pred_check_branch
          %317 = sbr.rel (%p315) target = $region20
        $region19: #{tpu_custom_call.1} parent=11 // pred_region
          _
        $region20: #{tpu_custom_call.1} parent=11 // pred_fallthru
          _
        // Predicated region
        $region21: #{tpu_custom_call.1} parent=11 // pred_check
          %p318 = pneg %p187
        $region22: #{tpu_custom_call.1} parent=11 // pred_check_branch
          %320 = sbr.rel (%p318) target = $region24
        $region23: #{tpu_custom_call.1} parent=11 // pred_region
          _
        $region24: #{tpu_custom_call.1} parent=11 // pred_fallthru
          _
        // Predicated region
        $region25: #{tpu_custom_call.1} parent=11 // pred_check
          %p321 = pneg %p208
        $region26: #{tpu_custom_call.1} parent=11 // pred_check_branch
          %323 = sbr.rel (%p321) target = $region28
        $region27: #{tpu_custom_call.1} parent=11 // pred_region
          _
        $region28: #{tpu_custom_call.1} parent=11 // pred_fallthru
          _
        // Predicated region
        $region29: #{tpu_custom_call.1} parent=11 // pred_check
          %p324 = pneg %p229
        $region30: #{tpu_custom_call.1} parent=11 // pred_check_branch
          %326 = sbr.rel (%p324) target = $region32
        $region31: #{tpu_custom_call.1} parent=11 // pred_region
          _
        $region32: #{tpu_custom_call.1} parent=11 // pred_fallthru
          _
        // Predicated region
        $region33: #{tpu_custom_call.1} parent=11 // pred_check
          %p327 = pneg %p250
        $region34: #{tpu_custom_call.1} parent=11 // pred_check_branch
          %329 = sbr.rel (%p327) target = $region36
        $region35: #{tpu_custom_call.1} parent=11 // pred_region
          _
        $region36: #{tpu_custom_call.1} parent=11 // pred_fallthru
          _
        // Predicated region
        $region37: #{tpu_custom_call.1} parent=11 // pred_check
          %p330 = pneg %p271
        $region38: #{tpu_custom_call.1} parent=11 // pred_check_branch
          %332 = sbr.rel (%p330) target = $region40
        $region39: #{tpu_custom_call.1} parent=11 // pred_region
          _
        $region40: #{tpu_custom_call.1} parent=11 // pred_fallthru
          _
      $region12: #{tpu_custom_call.1} parent=5 // pred_fallthru
        _
      %p333 = scmp.lt.s32.totalorder %s20, 2
      // Predicated region
      $region41: #{tpu_custom_call.1} parent=5 // pred_check
        %p334 = pneg %p333
      $region42: #{tpu_custom_call.1} parent=5 // pred_check_branch
        %336 = sbr.rel (%p334) target = $region44
      $region43: #{tpu_custom_call.1} parent=5 // pred_region
        // Predicated region
        $region45: #{tpu_custom_call.1} parent=43 // pred_check
          %p337 = pneg %p40
        $region46: #{tpu_custom_call.1} parent=43 // pred_check_branch
          %339 = sbr.rel (%p337) target = $region48
        $region47: #{tpu_custom_call.1} parent=43 // pred_region
          %s340 = smul.u32 32, %s20
          %p341 = scmp.lt.s32.totalorder %s340, 63
          %s342 = scalar_select %p341, %s340, 63
          %s343 = smul.addr %s342, 8
          %s344 = scalar_lea.vmem %s0, %s343
          %s345 = smul.u32 32, %s20
        $region48: #{tpu_custom_call.1} parent=43 // pred_fallthru
          _
        // Predicated region
        $region49: #{tpu_custom_call.1} parent=43 // pred_check
          %p346 = pneg %p66
        $region50: #{tpu_custom_call.1} parent=43 // pred_check_branch
          %348 = sbr.rel (%p346) target = $region52
        $region51: #{tpu_custom_call.1} parent=43 // pred_region
          %s349 = smul.u32 32, %s20
          %p350 = scmp.lt.s32.totalorder %s349, 63
          %s351 = scalar_select %p350, %s349, 63
          %s352 = smul.addr %s351, 8
          %s353 = scalar_lea.vmem %s1, %s352
          %s354 = smul.u32 32, %s20
        $region52: #{tpu_custom_call.1} parent=43 // pred_fallthru
          _
        // Predicated region
        $region53: #{tpu_custom_call.1} parent=43 // pred_check
          %p355 = pneg %p92
        $region54: #{tpu_custom_call.1} parent=43 // pred_check_branch
          %357 = sbr.rel (%p355) target = $region56
        $region55: #{tpu_custom_call.1} parent=43 // pred_region
          %s358 = smul.u32 2, %s20
          %p359 = scmp.lt.s32.totalorder %s358, 3
          %s360 = scalar_select %p359, %s358, 3
          %s361 = smul.addr %s360, 8
          %s362 = scalar_lea.vmem %s2, %s361
          %s363 = smul.u32 2, %s20
        $region56: #{tpu_custom_call.1} parent=43 // pred_fallthru
          _
        // Predicated region
        $region57: #{tpu_custom_call.1} parent=43 // pred_check
          %p364 = pneg %p118
        $region58: #{tpu_custom_call.1} parent=43 // pred_check_branch
          %366 = sbr.rel (%p364) target = $region60
        $region59: #{tpu_custom_call.1} parent=43 // pred_region
          %s367 = smul.u32 2, %s20
          %p368 = scmp.lt.s32.totalorder %s367, 3
          %s369 = scalar_select %p368, %s367, 3
          %s370 = smul.addr %s369, 8
          %s371 = scalar_lea.vmem %s3, %s370
          %s372 = smul.u32 2, %s20
        $region60: #{tpu_custom_call.1} parent=43 // pred_fallthru
          _
      $region44: #{tpu_custom_call.1} parent=5 // pred_fallthru
        _
      %p373 = scmp.le.s32.totalorder 1, %s20
      %p374 = scmp.lt.s32.totalorder %s20, 3
      %p375 = pnand %p373, %p374
      %p376 = pneg %p375
      // Predicated region
      $region61: #{tpu_custom_call.1} parent=5 // pred_check
        _
      $region62: #{tpu_custom_call.1} parent=5 // pred_check_branch
        %378 = sbr.rel (%p375) target = $region64
      $region63: #{tpu_custom_call.1} parent=5 // pred_region
        %s379 = ssub.s32 %s20, 1
        %s380 = smul.u32 32, %s25
        %p381 = scmp.lt.s32.totalorder %s380, 63
        %s382 = scalar_select %p381, %s380, 63
        %s383 = smul.addr %s382, 8
        %s384 = scalar_lea.vmem %s0, %s383
        %p385 = pneg %p46
        %p386 = pneg %p43
        %s387 = smul.u32 32, %s25
        %p388 = scmp.lt.s32.totalorder %s387, 63
        %s389 = scalar_select %p388, %s387, 63
        %s390 = smul.addr %s389, 8
        %s391 = scalar_lea.vmem %s1, %s390
        %p392 = pneg %p72
        %p393 = pneg %p69
        %s394 = smul.u32 2, %s25
        %p395 = scmp.lt.s32.totalorder %s394, 3
        %s396 = scalar_select %p395, %s394, 3
        %s397 = smul.addr %s396, 8
        %s398 = scalar_lea.vmem %s2, %s397
        %p399 = pneg %p98
        %p400 = pneg %p95
        %s401 = smul.u32 2, %s25
        %p402 = scmp.lt.s32.totalorder %s401, 3
        %s403 = scalar_select %p402, %s401, 3
        %s404 = smul.addr %s403, 8
        %s405 = scalar_lea.vmem %s3, %s404
        %p406 = pneg %p124
        %p407 = pneg %p121
        %p408 = pneg %p145
        %p409 = pneg %p142
        %p410 = pneg %p166
        %p411 = pneg %p163
        %p412 = pneg %p187
        %p413 = pneg %p184
        %p414 = pneg %p208
        %p415 = pneg %p205
        %p416 = pneg %p229
        %p417 = pneg %p226
        %p418 = pneg %p250
        %p419 = pneg %p247
        %p420 = pneg %p271
        %p421 = pneg %p268
        %p422 = pneg %p297
        %p423 = pneg %p294
        %s424 = sand.u32 %s284, 1
        %s425 = scalar_lea.sflag [#allocation3], %s424
        %s426 = sand.u32 %s284, 1
        %s427 = smul.addr %s426, 16
        %s428 = scalar_lea.vmem [#allocation2], %s427
        %s429 = smul.u32 32, %s25
        %p430 = scmp.lt.s32.totalorder %s429, 63
        %s431 = scalar_select %p430, %s429, 63
        %s432 = smul.addr %s431, 8
        %s433 = scalar_lea.vmem %s0, %s432
        %s434 = smul.u32 32, %s25
        %s435 = smul.u32 32, %s25
        %p436 = scmp.lt.s32.totalorder %s435, 63
        %s437 = scalar_select %p436, %s435, 63
        %s438 = smul.addr %s437, 8
        %s439 = scalar_lea.vmem %s1, %s438
        %s440 = smul.u32 32, %s25
        %s441 = smul.u32 2, %s25
        %p442 = scmp.lt.s32.totalorder %s441, 3
        %s443 = scalar_select %p442, %s441, 3
        %s444 = smul.addr %s443, 8
        %s445 = scalar_lea.vmem %s2, %s444
        %s446 = smul.u32 2, %s25
        %s447 = smul.u32 2, %s25
        %p448 = scmp.lt.s32.totalorder %s447, 3
        %s449 = scalar_select %p448, %s447, 3
        %s450 = smul.addr %s449, 8
        %s451 = scalar_lea.vmem %s3, %s450
        %s452 = smul.u32 2, %s25
        %s453 = smul.u32 2, %s25
        %v454 = vld [vmem:[%s10] sm:$0xff]
        %v455 = vld [vmem:[%s10 + $0x8] sm:$0xff]
        %v456 = vld [vmem:[%s433] sm:$0xff]
        %v457 = vld [vmem:[%s433 + $0x8] sm:$0xff]
        %v458 = vld [vmem:[%s433 + $0x10] sm:$0xff]
        %v459 = vld [vmem:[%s433 + $0x18] sm:$0xff]
        %v460 = vld [vmem:[%s433 + $0x20] sm:$0xff]
        %v461 = vld [vmem:[%s433 + $0x28] sm:$0xff]
        %v462 = vld [vmem:[%s433 + $0x30] sm:$0xff]
        %v463 = vld [vmem:[%s433 + $0x38] sm:$0xff]
        %v464 = vld [vmem:[%s433 + $0x40] sm:$0xff]
        %v465 = vld [vmem:[%s433 + $0x48] sm:$0xff]
        %v466 = vld [vmem:[%s433 + $0x50] sm:$0xff]
        %v467 = vld [vmem:[%s433 + $0x58] sm:$0xff]
        %v468 = vld [vmem:[%s433 + $0x60] sm:$0xff]
        %v469 = vld [vmem:[%s433 + $0x68] sm:$0xff]
        %v470 = vld [vmem:[%s433 + $0x70] sm:$0xff]
        %v471 = vld [vmem:[%s433 + $0x78] sm:$0xff]
        %v472 = vld [vmem:[%s433 + $0x80] sm:$0xff]
        %v473 = vld [vmem:[%s433 + $0x88] sm:$0xff]
        %v474 = vld [vmem:[%s433 + $0x90] sm:$0xff]
        %v475 = vld [vmem:[%s433 + $0x98] sm:$0xff]
        %v476 = vld [vmem:[%s433 + $0xa0] sm:$0xff]
        %v477 = vld [vmem:[%s433 + $0xa8] sm:$0xff]
        %v478 = vld [vmem:[%s433 + $0xb0] sm:$0xff]
        %v479 = vld [vmem:[%s433 + $0xb8] sm:$0xff]
        %v480 = vld [vmem:[%s433 + $0xc0] sm:$0xff]
        %v481 = vld [vmem:[%s433 + $0xc8] sm:$0xff]
        %v482 = vld [vmem:[%s433 + $0xd0] sm:$0xff]
        %v483 = vld [vmem:[%s433 + $0xd8] sm:$0xff]
        %v484 = vld [vmem:[%s433 + $0xe0] sm:$0xff]
        %v485 = vld [vmem:[%s433 + $0xe8] sm:$0xff]
        %v486 = vld [vmem:[%s433 + $0xf0] sm:$0xff]
        %v487 = vld [vmem:[%s433 + $0xf8] sm:$0xff]
        %v488 = vld [vmem:[%s4] sm:$0xff]
        %v489 = vld [vmem:[%s4 + $0x8] sm:$0xff]
        %v490 = vld [vmem:[%s4 + $0x10] sm:$0xff]
        %v491 = vld [vmem:[%s4 + $0x18] sm:$0xff]
        %v492 = vperm.slane %v454, 0
        %vm493 = vcmask 261120
        %v495 = vsel %vm493, %v456, 0
        %v498 = vsel %vm493, %v457, 0
        %v501 = vsel %vm493, %v458, 0
        %v504 = vsel %vm493, %v459, 0
        %v507 = vsel %vm493, %v460, 0
        %v510 = vsel %vm493, %v461, 0
        %v513 = vsel %vm493, %v462, 0
        %v516 = vsel %vm493, %v463, 0
        %v519 = vsel %vm493, %v464, 0
        %v522 = vsel %vm493, %v465, 0
        %v525 = vsel %vm493, %v466, 0
        %v528 = vsel %vm493, %v467, 0
        %v531 = vsel %vm493, %v468, 0
        %v534 = vsel %vm493, %v469, 0
        %v537 = vsel %vm493, %v470, 0
        %v540 = vsel %vm493, %v471, 0
        %v543 = vsel %vm493, %v472, 0
        %v546 = vsel %vm493, %v473, 0
        %v549 = vsel %vm493, %v474, 0
        %v552 = vsel %vm493, %v475, 0
        %v555 = vsel %vm493, %v476, 0
        %v558 = vsel %vm493, %v477, 0
        %v561 = vsel %vm493, %v478, 0
        %v564 = vsel %vm493, %v479, 0
        %v567 = vsel %vm493, %v480, 0
        %v570 = vsel %vm493, %v481, 0
        %v573 = vsel %vm493, %v482, 0
        %v576 = vsel %vm493, %v483, 0
        %v579 = vsel %vm493, %v484, 0
        %v582 = vsel %vm493, %v485, 0
        %v585 = vsel %vm493, %v486, 0
        %v588 = vsel %vm493, %v487, 0
        %590 = vmatpush.msra.mxu0 0.0
        %591 = vmatpush.msra.mxu0 0.0
        %592 = vmatpush.msra.mxu0 0.0
        %593 = vmatpush.msra.mxu0 0.0
        %594 = vmatpush.msra.mxu0 0.0
        %595 = vmatpush.msra.mxu0 0.0
        %596 = vmatpush.msra.mxu0 0.0
        %597 = vmatpush.msra.mxu0 0.0
        %598 = vmatpush.msra.mxu0 0.0
        %599 = vmatpush.msra.mxu0 0.0
        %600 = vmatpush.msra.mxu0 0.0
        %601 = vmatpush.msra.mxu0 0.0
        %602 = vmatpush.msra.mxu0 %v491
        %603 = vmatpush.msra.mxu0 %v490
        %604 = vmatpush.msra.mxu0 %v489
        %605 = vmatpush.msra.mxu0 %v488
        %606 = vmatmul.f32.gmra.mxu0 %v495
        %v607 = vpop.f32.mrf.mxu0
        %v608 = vadd.f32 %v492, %v607
        %609 = vmatmul.f32.gmra.mxu0 %v498
        %v610 = vpop.f32.mrf.mxu0
        %v611 = vadd.f32 %v492, %v610
        %612 = vmatmul.f32.gmra.mxu0 %v501
        %v613 = vpop.f32.mrf.mxu0
        %v614 = vadd.f32 %v492, %v613
        %615 = vmatmul.f32.gmra.mxu0 %v504
        %v616 = vpop.f32.mrf.mxu0
        %v617 = vadd.f32 %v492, %v616
        %618 = vmatmul.f32.gmra.mxu0 %v507
        %v619 = vpop.f32.mrf.mxu0
        %v620 = vadd.f32 %v492, %v619
        %621 = vmatmul.f32.gmra.mxu0 %v510
        %v622 = vpop.f32.mrf.mxu0
        %v623 = vadd.f32 %v492, %v622
        %624 = vmatmul.f32.gmra.mxu0 %v513
        %v625 = vpop.f32.mrf.mxu0
        %v626 = vadd.f32 %v492, %v625
        %627 = vmatmul.f32.gmra.mxu0 %v516
        %v628 = vpop.f32.mrf.mxu0
        %v629 = vadd.f32 %v492, %v628
        %630 = vmatmul.f32.gmra.mxu0 %v519
        %v631 = vpop.f32.mrf.mxu0
        %v632 = vadd.f32 %v492, %v631
        %633 = vmatmul.f32.gmra.mxu0 %v522
        %v634 = vpop.f32.mrf.mxu0
        %v635 = vadd.f32 %v492, %v634
        %636 = vmatmul.f32.gmra.mxu0 %v525
        %v637 = vpop.f32.mrf.mxu0
        %v638 = vadd.f32 %v492, %v637
        %639 = vmatmul.f32.gmra.mxu0 %v528
        %v640 = vpop.f32.mrf.mxu0
        %v641 = vadd.f32 %v492, %v640
        %642 = vmatmul.f32.gmra.mxu0 %v531
        %v643 = vpop.f32.mrf.mxu0
        %v644 = vadd.f32 %v492, %v643
        %645 = vmatmul.f32.gmra.mxu0 %v534
        %v646 = vpop.f32.mrf.mxu0
        %v647 = vadd.f32 %v492, %v646
        %648 = vmatmul.f32.gmra.mxu0 %v537
        %v649 = vpop.f32.mrf.mxu0
        %v650 = vadd.f32 %v492, %v649
        %651 = vmatmul.f32.gmra.mxu0 %v540
        %v652 = vpop.f32.mrf.mxu0
        %v653 = vadd.f32 %v492, %v652
        %654 = vmatmul.f32.gmra.mxu0 %v543
        %v655 = vpop.f32.mrf.mxu0
        %v656 = vadd.f32 %v492, %v655
        %657 = vmatmul.f32.gmra.mxu0 %v546
        %v658 = vpop.f32.mrf.mxu0
        %v659 = vadd.f32 %v492, %v658
        %660 = vmatmul.f32.gmra.mxu0 %v549
        %v661 = vpop.f32.mrf.mxu0
        %v662 = vadd.f32 %v492, %v661
        %663 = vmatmul.f32.gmra.mxu0 %v552
        %v664 = vpop.f32.mrf.mxu0
        %v665 = vadd.f32 %v492, %v664
        %666 = vmatmul.f32.gmra.mxu0 %v555
        %v667 = vpop.f32.mrf.mxu0
        %v668 = vadd.f32 %v492, %v667
        %669 = vmatmul.f32.gmra.mxu0 %v558
        %v670 = vpop.f32.mrf.mxu0
        %v671 = vadd.f32 %v492, %v670
        %672 = vmatmul.f32.gmra.mxu0 %v561
        %v673 = vpop.f32.mrf.mxu0
        %v674 = vadd.f32 %v492, %v673
        %675 = vmatmul.f32.gmra.mxu0 %v564
        %v676 = vpop.f32.mrf.mxu0
        %v677 = vadd.f32 %v492, %v676
        %678 = vmatmul.f32.gmra.mxu0 %v567
        %v679 = vpop.f32.mrf.mxu0
        %v680 = vadd.f32 %v492, %v679
        %681 = vmatmul.f32.gmra.mxu0 %v570
        %v682 = vpop.f32.mrf.mxu0
        %v683 = vadd.f32 %v492, %v682
        %684 = vmatmul.f32.gmra.mxu0 %v573
        %v685 = vpop.f32.mrf.mxu0
        %v686 = vadd.f32 %v492, %v685
        %687 = vmatmul.f32.gmra.mxu0 %v576
        %v688 = vpop.f32.mrf.mxu0
        %v689 = vadd.f32 %v492, %v688
        %690 = vmatmul.f32.gmra.mxu0 %v579
        %v691 = vpop.f32.mrf.mxu0
        %v692 = vadd.f32 %v492, %v691
        %693 = vmatmul.f32.gmra.mxu0 %v582
        %v694 = vpop.f32.mrf.mxu0
        %v695 = vadd.f32 %v492, %v694
        %696 = vmatmul.f32.gmra.mxu0 %v585
        %v697 = vpop.f32.mrf.mxu0
        %v698 = vadd.f32 %v492, %v697
        %699 = vmatmul.f32.gmra.mxu0 %v588
        %v700 = vpop.f32.mrf.mxu0
        %v701 = vadd.f32 %v492, %v700
        %702 = vdwg.mxu0
        %v703 = vsel %vm493, %v608, 0.0
        %704 = vadd.xlane.f32.xlu0 %v703
        %v705 = vpop.xlane.xlu0 %704
        %v706 = vsel %vm493, %v611, 0.0
        %707 = vadd.xlane.f32.xlu0 %v706
        %v708 = vpop.xlane.xlu0 %707
        %v709 = vsel %vm493, %v614, 0.0
        %710 = vadd.xlane.f32.xlu0 %v709
        %v711 = vpop.xlane.xlu0 %710
        %v712 = vsel %vm493, %v617, 0.0
        %713 = vadd.xlane.f32.xlu0 %v712
        %v714 = vpop.xlane.xlu0 %713
        %v715 = vsel %vm493, %v620, 0.0
        %716 = vadd.xlane.f32.xlu0 %v715
        %v717 = vpop.xlane.xlu0 %716
        %v718 = vsel %vm493, %v623, 0.0
        %719 = vadd.xlane.f32.xlu0 %v718
        %v720 = vpop.xlane.xlu0 %719
        %v721 = vsel %vm493, %v626, 0.0
        %722 = vadd.xlane.f32.xlu0 %v721
        %v723 = vpop.xlane.xlu0 %722
        %v724 = vsel %vm493, %v629, 0.0
        %725 = vadd.xlane.f32.xlu0 %v724
        %v726 = vpop.xlane.xlu0 %725
        %v727 = vsel %vm493, %v632, 0.0
        %728 = vadd.xlane.f32.xlu0 %v727
        %v729 = vpop.xlane.xlu0 %728
        %v730 = vsel %vm493, %v635, 0.0
        %731 = vadd.xlane.f32.xlu0 %v730
        %v732 = vpop.xlane.xlu0 %731
        %v733 = vsel %vm493, %v638, 0.0
        %734 = vadd.xlane.f32.xlu0 %v733
        %v735 = vpop.xlane.xlu0 %734
        %v736 = vsel %vm493, %v641, 0.0
        %737 = vadd.xlane.f32.xlu0 %v736
        %v738 = vpop.xlane.xlu0 %737
        %v739 = vsel %vm493, %v644, 0.0
        %740 = vadd.xlane.f32.xlu0 %v739
        %v741 = vpop.xlane.xlu0 %740
        %v742 = vsel %vm493, %v647, 0.0
        %743 = vadd.xlane.f32.xlu0 %v742
        %v744 = vpop.xlane.xlu0 %743
        %v745 = vsel %vm493, %v650, 0.0
        %746 = vadd.xlane.f32.xlu0 %v745
        %v747 = vpop.xlane.xlu0 %746
        %v748 = vsel %vm493, %v653, 0.0
        %749 = vadd.xlane.f32.xlu0 %v748
        %v750 = vpop.xlane.xlu0 %749
        %v751 = vsel %vm493, %v656, 0.0
        %752 = vadd.xlane.f32.xlu0 %v751
        %v753 = vpop.xlane.xlu0 %752
        %v754 = vsel %vm493, %v659, 0.0
        %755 = vadd.xlane.f32.xlu0 %v754
        %v756 = vpop.xlane.xlu0 %755
        %v757 = vsel %vm493, %v662, 0.0
        %758 = vadd.xlane.f32.xlu0 %v757
        %v759 = vpop.xlane.xlu0 %758
        %v760 = vsel %vm493, %v665, 0.0
        %761 = vadd.xlane.f32.xlu0 %v760
        %v762 = vpop.xlane.xlu0 %761
        %v763 = vsel %vm493, %v668, 0.0
        %764 = vadd.xlane.f32.xlu0 %v763
        %v765 = vpop.xlane.xlu0 %764
        %v766 = vsel %vm493, %v671, 0.0
        %767 = vadd.xlane.f32.xlu0 %v766
        %v768 = vpop.xlane.xlu0 %767
        %v769 = vsel %vm493, %v674, 0.0
        %770 = vadd.xlane.f32.xlu0 %v769
        %v771 = vpop.xlane.xlu0 %770
        %v772 = vsel %vm493, %v677, 0.0
        %773 = vadd.xlane.f32.xlu0 %v772
        %v774 = vpop.xlane.xlu0 %773
        %v775 = vsel %vm493, %v680, 0.0
        %776 = vadd.xlane.f32.xlu0 %v775
        %v777 = vpop.xlane.xlu0 %776
        %v778 = vsel %vm493, %v683, 0.0
        %779 = vadd.xlane.f32.xlu0 %v778
        %v780 = vpop.xlane.xlu0 %779
        %v781 = vsel %vm493, %v686, 0.0
        %782 = vadd.xlane.f32.xlu0 %v781
        %v783 = vpop.xlane.xlu0 %782
        %v784 = vsel %vm493, %v689, 0.0
        %785 = vadd.xlane.f32.xlu0 %v784
        %v786 = vpop.xlane.xlu0 %785
        %v787 = vsel %vm493, %v692, 0.0
        %788 = vadd.xlane.f32.xlu0 %v787
        %v789 = vpop.xlane.xlu0 %788
        %v790 = vsel %vm493, %v695, 0.0
        %791 = vadd.xlane.f32.xlu0 %v790
        %v792 = vpop.xlane.xlu0 %791
        %v793 = vsel %vm493, %v698, 0.0
        %794 = vadd.xlane.f32.xlu0 %v793
        %v795 = vpop.xlane.xlu0 %794
        %v796 = vsel %vm493, %v701, 0.0
        %797 = vadd.xlane.f32.xlu0 %v796
        %v798 = vpop.xlane.xlu0 %797
        %v799 = vmul.f32 %v608, %v608
        %v800 = vmul.f32 %v611, %v611
        %v801 = vmul.f32 %v614, %v614
        %v802 = vmul.f32 %v617, %v617
        %v803 = vmul.f32 %v620, %v620
        %v804 = vmul.f32 %v623, %v623
        %v805 = vmul.f32 %v626, %v626
        %v806 = vmul.f32 %v629, %v629
        %v807 = vmul.f32 %v632, %v632
        %v808 = vmul.f32 %v635, %v635
        %v809 = vmul.f32 %v638, %v638
        %v810 = vmul.f32 %v641, %v641
        %v811 = vmul.f32 %v644, %v644
        %v812 = vmul.f32 %v647, %v647
        %v813 = vmul.f32 %v650, %v650
        %v814 = vmul.f32 %v653, %v653
        %v815 = vmul.f32 %v656, %v656
        %v816 = vmul.f32 %v659, %v659
        %v817 = vmul.f32 %v662, %v662
        %v818 = vmul.f32 %v665, %v665
        %v819 = vmul.f32 %v668, %v668
        %v820 = vmul.f32 %v671, %v671
        %v821 = vmul.f32 %v674, %v674
        %v822 = vmul.f32 %v677, %v677
        %v823 = vmul.f32 %v680, %v680
        %v824 = vmul.f32 %v683, %v683
        %v825 = vmul.f32 %v686, %v686
        %v826 = vmul.f32 %v689, %v689
        %v827 = vmul.f32 %v692, %v692
        %v828 = vmul.f32 %v695, %v695
        %v829 = vmul.f32 %v698, %v698
        %v830 = vmul.f32 %v701, %v701
        %v831 = vsel %vm493, %v799, 0.0
        %832 = vadd.xlane.f32.xlu0 %v831
        %v833 = vpop.xlane.xlu0 %832
        %v834 = vsel %vm493, %v800, 0.0
        %835 = vadd.xlane.f32.xlu0 %v834
        %v836 = vpop.xlane.xlu0 %835
        %v837 = vsel %vm493, %v801, 0.0
        %838 = vadd.xlane.f32.xlu0 %v837
        %v839 = vpop.xlane.xlu0 %838
        %v840 = vsel %vm493, %v802, 0.0
        %841 = vadd.xlane.f32.xlu0 %v840
        %v842 = vpop.xlane.xlu0 %841
        %v843 = vsel %vm493, %v803, 0.0
        %844 = vadd.xlane.f32.xlu0 %v843
        %v845 = vpop.xlane.xlu0 %844
        %v846 = vsel %vm493, %v804, 0.0
        %847 = vadd.xlane.f32.xlu0 %v846
        %v848 = vpop.xlane.xlu0 %847
        %v849 = vsel %vm493, %v805, 0.0
        %850 = vadd.xlane.f32.xlu0 %v849
        %v851 = vpop.xlane.xlu0 %850
        %v852 = vsel %vm493, %v806, 0.0
        %853 = vadd.xlane.f32.xlu0 %v852
        %v854 = vpop.xlane.xlu0 %853
        %v855 = vsel %vm493, %v807, 0.0
        %856 = vadd.xlane.f32.xlu0 %v855
        %v857 = vpop.xlane.xlu0 %856
        %v858 = vsel %vm493, %v808, 0.0
        %859 = vadd.xlane.f32.xlu0 %v858
        %v860 = vpop.xlane.xlu0 %859
        %v861 = vsel %vm493, %v809, 0.0
        %862 = vadd.xlane.f32.xlu0 %v861
        %v863 = vpop.xlane.xlu0 %862
        %v864 = vsel %vm493, %v810, 0.0
        %865 = vadd.xlane.f32.xlu0 %v864
        %v866 = vpop.xlane.xlu0 %865
        %v867 = vsel %vm493, %v811, 0.0
        %868 = vadd.xlane.f32.xlu0 %v867
        %v869 = vpop.xlane.xlu0 %868
        %v870 = vsel %vm493, %v812, 0.0
        %871 = vadd.xlane.f32.xlu0 %v870
        %v872 = vpop.xlane.xlu0 %871
        %v873 = vsel %vm493, %v813, 0.0
        %874 = vadd.xlane.f32.xlu0 %v873
        %v875 = vpop.xlane.xlu0 %874
        %v876 = vsel %vm493, %v814, 0.0
        %877 = vadd.xlane.f32.xlu0 %v876
        %v878 = vpop.xlane.xlu0 %877
        %v879 = vsel %vm493, %v815, 0.0
        %880 = vadd.xlane.f32.xlu0 %v879
        %v881 = vpop.xlane.xlu0 %880
        %v882 = vsel %vm493, %v816, 0.0
        %883 = vadd.xlane.f32.xlu0 %v882
        %v884 = vpop.xlane.xlu0 %883
        %v885 = vsel %vm493, %v817, 0.0
        %886 = vadd.xlane.f32.xlu0 %v885
        %v887 = vpop.xlane.xlu0 %886
        %v888 = vsel %vm493, %v818, 0.0
        %889 = vadd.xlane.f32.xlu0 %v888
        %v890 = vpop.xlane.xlu0 %889
        %v891 = vsel %vm493, %v819, 0.0
        %892 = vadd.xlane.f32.xlu0 %v891
        %v893 = vpop.xlane.xlu0 %892
        %v894 = vsel %vm493, %v820, 0.0
        %895 = vadd.xlane.f32.xlu0 %v894
        %v896 = vpop.xlane.xlu0 %895
        %v897 = vsel %vm493, %v821, 0.0
        %898 = vadd.xlane.f32.xlu0 %v897
        %v899 = vpop.xlane.xlu0 %898
        %v900 = vsel %vm493, %v822, 0.0
        %901 = vadd.xlane.f32.xlu0 %v900
        %v902 = vpop.xlane.xlu0 %901
        %v903 = vsel %vm493, %v823, 0.0
        %904 = vadd.xlane.f32.xlu0 %v903
        %v905 = vpop.xlane.xlu0 %904
        %v906 = vsel %vm493, %v824, 0.0
        %907 = vadd.xlane.f32.xlu0 %v906
        %v908 = vpop.xlane.xlu0 %907
        %v909 = vsel %vm493, %v825, 0.0
        %910 = vadd.xlane.f32.xlu0 %v909
        %v911 = vpop.xlane.xlu0 %910
        %v912 = vsel %vm493, %v826, 0.0
        %913 = vadd.xlane.f32.xlu0 %v912
        %v914 = vpop.xlane.xlu0 %913
        %v915 = vsel %vm493, %v827, 0.0
        %916 = vadd.xlane.f32.xlu0 %v915
        %v917 = vpop.xlane.xlu0 %916
        %v918 = vsel %vm493, %v828, 0.0
        %919 = vadd.xlane.f32.xlu0 %v918
        %v920 = vpop.xlane.xlu0 %919
        %v921 = vsel %vm493, %v829, 0.0
        %922 = vadd.xlane.f32.xlu0 %v921
        %v923 = vpop.xlane.xlu0 %922
        %v924 = vsel %vm493, %v830, 0.0
        %925 = vadd.xlane.f32.xlu0 %v924
        %v926 = vpop.xlane.xlu0 %925
        %v927 = vmul.f32 %v705, 0.03125
        %v928 = vmul.f32 %v708, 0.03125
        %v929 = vmul.f32 %v711, 0.03125
        %v930 = vmul.f32 %v714, 0.03125
        %v931 = vmul.f32 %v717, 0.03125
        %v932 = vmul.f32 %v720, 0.03125
        %v933 = vmul.f32 %v723, 0.03125
        %v934 = vmul.f32 %v726, 0.03125
        %v935 = vmul.f32 %v729, 0.03125
        %v936 = vmul.f32 %v732, 0.03125
        %v937 = vmul.f32 %v735, 0.03125
        %v938 = vmul.f32 %v738, 0.03125
        %v939 = vmul.f32 %v741, 0.03125
        %v940 = vmul.f32 %v744, 0.03125
        %v941 = vmul.f32 %v747, 0.03125
        %v942 = vmul.f32 %v750, 0.03125
        %v943 = vmul.f32 %v753, 0.03125
        %v944 = vmul.f32 %v756, 0.03125
        %v945 = vmul.f32 %v759, 0.03125
        %v946 = vmul.f32 %v762, 0.03125
        %v947 = vmul.f32 %v765, 0.03125
        %v948 = vmul.f32 %v768, 0.03125
        %v949 = vmul.f32 %v771, 0.03125
        %v950 = vmul.f32 %v774, 0.03125
        %v951 = vmul.f32 %v777, 0.03125
        %v952 = vmul.f32 %v780, 0.03125
        %v953 = vmul.f32 %v783, 0.03125
        %v954 = vmul.f32 %v786, 0.03125
        %v955 = vmul.f32 %v789, 0.03125
        %v956 = vmul.f32 %v792, 0.03125
        %v957 = vmul.f32 %v795, 0.03125
        %v958 = vmul.f32 %v798, 0.03125
        %v959 = vmul.f32 %v833, 0.03125
        %v960 = vmul.f32 %v836, 0.03125
        %v961 = vmul.f32 %v839, 0.03125
        %v962 = vmul.f32 %v842, 0.03125
        %v963 = vmul.f32 %v845, 0.03125
        %v964 = vmul.f32 %v848, 0.03125
        %v965 = vmul.f32 %v851, 0.03125
        %v966 = vmul.f32 %v854, 0.03125
        %v967 = vmul.f32 %v857, 0.03125
        %v968 = vmul.f32 %v860, 0.03125
        %v969 = vmul.f32 %v863, 0.03125
        %v970 = vmul.f32 %v866, 0.03125
        %v971 = vmul.f32 %v869, 0.03125
        %v972 = vmul.f32 %v872, 0.03125
        %v973 = vmul.f32 %v875, 0.03125
        %v974 = vmul.f32 %v878, 0.03125
        %v975 = vmul.f32 %v881, 0.03125
        %v976 = vmul.f32 %v884, 0.03125
        %v977 = vmul.f32 %v887, 0.03125
        %v978 = vmul.f32 %v890, 0.03125
        %v979 = vmul.f32 %v893, 0.03125
        %v980 = vmul.f32 %v896, 0.03125
        %v981 = vmul.f32 %v899, 0.03125
        %v982 = vmul.f32 %v902, 0.03125
        %v983 = vmul.f32 %v905, 0.03125
        %v984 = vmul.f32 %v908, 0.03125
        %v985 = vmul.f32 %v911, 0.03125
        %v986 = vmul.f32 %v914, 0.03125
        %v987 = vmul.f32 %v917, 0.03125
        %v988 = vmul.f32 %v920, 0.03125
        %v989 = vmul.f32 %v923, 0.03125
        %v990 = vmul.f32 %v926, 0.03125
        %v991 = vmul.f32 %v927, %v927
        %v992 = vmul.f32 %v928, %v928
        %v993 = vmul.f32 %v929, %v929
        %v994 = vmul.f32 %v930, %v930
        %v995 = vmul.f32 %v931, %v931
        %v996 = vmul.f32 %v932, %v932
        %v997 = vmul.f32 %v933, %v933
        %v998 = vmul.f32 %v934, %v934
        %v999 = vmul.f32 %v935, %v935
        %v1000 = vmul.f32 %v936, %v936
        %v1001 = vmul.f32 %v937, %v937
        %v1002 = vmul.f32 %v938, %v938
        %v1003 = vmul.f32 %v939, %v939
        %v1004 = vmul.f32 %v940, %v940
        %v1005 = vmul.f32 %v941, %v941
        %v1006 = vmul.f32 %v942, %v942
        %v1007 = vmul.f32 %v943, %v943
        %v1008 = vmul.f32 %v944, %v944
        %v1009 = vmul.f32 %v945, %v945
        %v1010 = vmul.f32 %v946, %v946
        %v1011 = vmul.f32 %v947, %v947
        %v1012 = vmul.f32 %v948, %v948
        %v1013 = vmul.f32 %v949, %v949
        %v1014 = vmul.f32 %v950, %v950
        %v1015 = vmul.f32 %v951, %v951
        %v1016 = vmul.f32 %v952, %v952
        %v1017 = vmul.f32 %v953, %v953
        %v1018 = vmul.f32 %v954, %v954
        %v1019 = vmul.f32 %v955, %v955
        %v1020 = vmul.f32 %v956, %v956
        %v1021 = vmul.f32 %v957, %v957
        %v1022 = vmul.f32 %v958, %v958
        %v1023 = vsub.f32 %v959, %v991
        %v1024 = vsub.f32 %v960, %v992
        %v1025 = vsub.f32 %v961, %v993
        %v1026 = vsub.f32 %v962, %v994
        %v1027 = vsub.f32 %v963, %v995
        %v1028 = vsub.f32 %v964, %v996
        %v1029 = vsub.f32 %v965, %v997
        %v1030 = vsub.f32 %v966, %v998
        %v1031 = vsub.f32 %v967, %v999
        %v1032 = vsub.f32 %v968, %v1000
        %v1033 = vsub.f32 %v969, %v1001
        %v1034 = vsub.f32 %v970, %v1002
        %v1035 = vsub.f32 %v971, %v1003
        %v1036 = vsub.f32 %v972, %v1004
        %v1037 = vsub.f32 %v973, %v1005
        %v1038 = vsub.f32 %v974, %v1006
        %v1039 = vsub.f32 %v975, %v1007
        %v1040 = vsub.f32 %v976, %v1008
        %v1041 = vsub.f32 %v977, %v1009
        %v1042 = vsub.f32 %v978, %v1010
        %v1043 = vsub.f32 %v979, %v1011
        %v1044 = vsub.f32 %v980, %v1012
        %v1045 = vsub.f32 %v981, %v1013
        %v1046 = vsub.f32 %v982, %v1014
        %v1047 = vsub.f32 %v983, %v1015
        %v1048 = vsub.f32 %v984, %v1016
        %v1049 = vsub.f32 %v985, %v1017
        %v1050 = vsub.f32 %v986, %v1018
        %v1051 = vsub.f32 %v987, %v1019
        %v1052 = vsub.f32 %v988, %v1020
        %v1053 = vsub.f32 %v989, %v1021
        %v1054 = vsub.f32 %v990, %v1022
        %v1055 = vmax.f32 %v1023, 0.0
        %v1056 = vmax.f32 %v1024, 0.0
        %v1057 = vmax.f32 %v1025, 0.0
        %v1058 = vmax.f32 %v1026, 0.0
        %v1059 = vmax.f32 %v1027, 0.0
        %v1060 = vmax.f32 %v1028, 0.0
        %v1061 = vmax.f32 %v1029, 0.0
        %v1062 = vmax.f32 %v1030, 0.0
        %v1063 = vmax.f32 %v1031, 0.0
        %v1064 = vmax.f32 %v1032, 0.0
        %v1065 = vmax.f32 %v1033, 0.0
        %v1066 = vmax.f32 %v1034, 0.0
        %v1067 = vmax.f32 %v1035, 0.0
        %v1068 = vmax.f32 %v1036, 0.0
        %v1069 = vmax.f32 %v1037, 0.0
        %v1070 = vmax.f32 %v1038, 0.0
        %v1071 = vmax.f32 %v1039, 0.0
        %v1072 = vmax.f32 %v1040, 0.0
        %v1073 = vmax.f32 %v1041, 0.0
        %v1074 = vmax.f32 %v1042, 0.0
        %v1075 = vmax.f32 %v1043, 0.0
        %v1076 = vmax.f32 %v1044, 0.0
        %v1077 = vmax.f32 %v1045, 0.0
        %v1078 = vmax.f32 %v1046, 0.0
        %v1079 = vmax.f32 %v1047, 0.0
        %v1080 = vmax.f32 %v1048, 0.0
        %v1081 = vmax.f32 %v1049, 0.0
        %v1082 = vmax.f32 %v1050, 0.0
        %v1083 = vmax.f32 %v1051, 0.0
        %v1084 = vmax.f32 %v1052, 0.0
        %v1085 = vmax.f32 %v1053, 0.0
        %v1086 = vmax.f32 %v1054, 0.0
        %v1087 = vsub.f32 %v608, %v927
        %v1088 = vsub.f32 %v611, %v928
        %v1089 = vsub.f32 %v614, %v929
        %v1090 = vsub.f32 %v617, %v930
        %v1091 = vsub.f32 %v620, %v931
        %v1092 = vsub.f32 %v623, %v932
        %v1093 = vsub.f32 %v626, %v933
        %v1094 = vsub.f32 %v629, %v934
        %v1095 = vsub.f32 %v632, %v935
        %v1096 = vsub.f32 %v635, %v936
        %v1097 = vsub.f32 %v638, %v937
        %v1098 = vsub.f32 %v641, %v938
        %v1099 = vsub.f32 %v644, %v939
        %v1100 = vsub.f32 %v647, %v940
        %v1101 = vsub.f32 %v650, %v941
        %v1102 = vsub.f32 %v653, %v942
        %v1103 = vsub.f32 %v656, %v943
        %v1104 = vsub.f32 %v659, %v944
        %v1105 = vsub.f32 %v662, %v945
        %v1106 = vsub.f32 %v665, %v946
        %v1107 = vsub.f32 %v668, %v947
        %v1108 = vsub.f32 %v671, %v948
        %v1109 = vsub.f32 %v674, %v949
        %v1110 = vsub.f32 %v677, %v950
        %v1111 = vsub.f32 %v680, %v951
        %v1112 = vsub.f32 %v683, %v952
        %v1113 = vsub.f32 %v686, %v953
        %v1114 = vsub.f32 %v689, %v954
        %v1115 = vsub.f32 %v692, %v955
        %v1116 = vsub.f32 %v695, %v956
        %v1117 = vsub.f32 %v698, %v957
        %v1118 = vsub.f32 %v701, %v958
        %v1119 = vadd.f32 %v1055, 1e-05
        %v1120 = vadd.f32 %v1056, 1e-05
        %v1121 = vadd.f32 %v1057, 1e-05
        %v1122 = vadd.f32 %v1058, 1e-05
        %v1123 = vadd.f32 %v1059, 1e-05
        %v1124 = vadd.f32 %v1060, 1e-05
        %v1125 = vadd.f32 %v1061, 1e-05
        %v1126 = vadd.f32 %v1062, 1e-05
        %v1127 = vadd.f32 %v1063, 1e-05
        %v1128 = vadd.f32 %v1064, 1e-05
        %v1129 = vadd.f32 %v1065, 1e-05
        %v1130 = vadd.f32 %v1066, 1e-05
        %v1131 = vadd.f32 %v1067, 1e-05
        %v1132 = vadd.f32 %v1068, 1e-05
        %v1133 = vadd.f32 %v1069, 1e-05
        %v1134 = vadd.f32 %v1070, 1e-05
        %v1135 = vadd.f32 %v1071, 1e-05
        %v1136 = vadd.f32 %v1072, 1e-05
        %v1137 = vadd.f32 %v1073, 1e-05
        %v1138 = vadd.f32 %v1074, 1e-05
        %v1139 = vadd.f32 %v1075, 1e-05
        %v1140 = vadd.f32 %v1076, 1e-05
        %v1141 = vadd.f32 %v1077, 1e-05
        %v1142 = vadd.f32 %v1078, 1e-05
        %v1143 = vadd.f32 %v1079, 1e-05
        %v1144 = vadd.f32 %v1080, 1e-05
        %v1145 = vadd.f32 %v1081, 1e-05
        %v1146 = vadd.f32 %v1082, 1e-05
        %v1147 = vadd.f32 %v1083, 1e-05
        %v1148 = vadd.f32 %v1084, 1e-05
        %v1149 = vadd.f32 %v1085, 1e-05
        %v1150 = vadd.f32 %v1086, 1e-05
        %v1151 = vrsqrt.pop %v1119
        %v1152 = vmul.f32 %v1151, %v1119
        %v1153 = vmul.f32 %v1152, %v1151
        %v1154 = vmul.f32 0.5, %v1153
        %v1155 = vsub.f32 1.5, %v1154
        %v1156 = vmul.f32 %v1151, %v1155
        %vm1157 = vweird.f32 %v1119
        %vm1158 = vweird.f32 %v1151
        %vm1159 = vmor %vm1157, %vm1158
        %v1160 = vsel %vm1159, %v1151, %v1156
        %v1161 = vrsqrt.pop %v1120
        %v1162 = vmul.f32 %v1161, %v1120
        %v1163 = vmul.f32 %v1162, %v1161
        %v1164 = vmul.f32 0.5, %v1163
        %v1165 = vsub.f32 1.5, %v1164
        %v1166 = vmul.f32 %v1161, %v1165
        %vm1167 = vweird.f32 %v1120
        %vm1168 = vweird.f32 %v1161
        %vm1169 = vmor %vm1167, %vm1168
        %v1170 = vsel %vm1169, %v1161, %v1166
        %v1171 = vrsqrt.pop %v1121
        %v1172 = vmul.f32 %v1171, %v1121
        %v1173 = vmul.f32 %v1172, %v1171
        %v1174 = vmul.f32 0.5, %v1173
        %v1175 = vsub.f32 1.5, %v1174
        %v1176 = vmul.f32 %v1171, %v1175
        %vm1177 = vweird.f32 %v1121
        %vm1178 = vweird.f32 %v1171
        %vm1179 = vmor %vm1177, %vm1178
        %v1180 = vsel %vm1179, %v1171, %v1176
        %v1181 = vrsqrt.pop %v1122
        %v1182 = vmul.f32 %v1181, %v1122
        %v1183 = vmul.f32 %v1182, %v1181
        %v1184 = vmul.f32 0.5, %v1183
        %v1185 = vsub.f32 1.5, %v1184
        %v1186 = vmul.f32 %v1181, %v1185
        %vm1187 = vweird.f32 %v1122
        %vm1188 = vweird.f32 %v1181
        %vm1189 = vmor %vm1187, %vm1188
        %v1190 = vsel %vm1189, %v1181, %v1186
        %v1191 = vrsqrt.pop %v1123
        %v1192 = vmul.f32 %v1191, %v1123
        %v1193 = vmul.f32 %v1192, %v1191
        %v1194 = vmul.f32 0.5, %v1193
        %v1195 = vsub.f32 1.5, %v1194
        %v1196 = vmul.f32 %v1191, %v1195
        %vm1197 = vweird.f32 %v1123
        %vm1198 = vweird.f32 %v1191
        %vm1199 = vmor %vm1197, %vm1198
        %v1200 = vsel %vm1199, %v1191, %v1196
        %v1201 = vrsqrt.pop %v1124
        %v1202 = vmul.f32 %v1201, %v1124
        %v1203 = vmul.f32 %v1202, %v1201
        %v1204 = vmul.f32 0.5, %v1203
        %v1205 = vsub.f32 1.5, %v1204
        %v1206 = vmul.f32 %v1201, %v1205
        %vm1207 = vweird.f32 %v1124
        %vm1208 = vweird.f32 %v1201
        %vm1209 = vmor %vm1207, %vm1208
        %v1210 = vsel %vm1209, %v1201, %v1206
        %v1211 = vrsqrt.pop %v1125
        %v1212 = vmul.f32 %v1211, %v1125
        %v1213 = vmul.f32 %v1212, %v1211
        %v1214 = vmul.f32 0.5, %v1213
        %v1215 = vsub.f32 1.5, %v1214
        %v1216 = vmul.f32 %v1211, %v1215
        %vm1217 = vweird.f32 %v1125
        %vm1218 = vweird.f32 %v1211
        %vm1219 = vmor %vm1217, %vm1218
        %v1220 = vsel %vm1219, %v1211, %v1216
        %v1221 = vrsqrt.pop %v1126
        %v1222 = vmul.f32 %v1221, %v1126
        %v1223 = vmul.f32 %v1222, %v1221
        %v1224 = vmul.f32 0.5, %v1223
        %v1225 = vsub.f32 1.5, %v1224
        %v1226 = vmul.f32 %v1221, %v1225
        %vm1227 = vweird.f32 %v1126
        %vm1228 = vweird.f32 %v1221
        %vm1229 = vmor %vm1227, %vm1228
        %v1230 = vsel %vm1229, %v1221, %v1226
        %v1231 = vrsqrt.pop %v1127
        %v1232 = vmul.f32 %v1231, %v1127
        %v1233 = vmul.f32 %v1232, %v1231
        %v1234 = vmul.f32 0.5, %v1233
        %v1235 = vsub.f32 1.5, %v1234
        %v1236 = vmul.f32 %v1231, %v1235
        %vm1237 = vweird.f32 %v1127
        %vm1238 = vweird.f32 %v1231
        %vm1239 = vmor %vm1237, %vm1238
        %v1240 = vsel %vm1239, %v1231, %v1236
        %v1241 = vrsqrt.pop %v1128
        %v1242 = vmul.f32 %v1241, %v1128
        %v1243 = vmul.f32 %v1242, %v1241
        %v1244 = vmul.f32 0.5, %v1243
        %v1245 = vsub.f32 1.5, %v1244
        %v1246 = vmul.f32 %v1241, %v1245
        %vm1247 = vweird.f32 %v1128
        %vm1248 = vweird.f32 %v1241
        %vm1249 = vmor %vm1247, %vm1248
        %v1250 = vsel %vm1249, %v1241, %v1246
        %v1251 = vrsqrt.pop %v1129
        %v1252 = vmul.f32 %v1251, %v1129
        %v1253 = vmul.f32 %v1252, %v1251
        %v1254 = vmul.f32 0.5, %v1253
        %v1255 = vsub.f32 1.5, %v1254
        %v1256 = vmul.f32 %v1251, %v1255
        %vm1257 = vweird.f32 %v1129
        %vm1258 = vweird.f32 %v1251
        %vm1259 = vmor %vm1257, %vm1258
        %v1260 = vsel %vm1259, %v1251, %v1256
        %v1261 = vrsqrt.pop %v1130
        %v1262 = vmul.f32 %v1261, %v1130
        %v1263 = vmul.f32 %v1262, %v1261
        %v1264 = vmul.f32 0.5, %v1263
        %v1265 = vsub.f32 1.5, %v1264
        %v1266 = vmul.f32 %v1261, %v1265
        %vm1267 = vweird.f32 %v1130
        %vm1268 = vweird.f32 %v1261
        %vm1269 = vmor %vm1267, %vm1268
        %v1270 = vsel %vm1269, %v1261, %v1266
        %v1271 = vrsqrt.pop %v1131
        %v1272 = vmul.f32 %v1271, %v1131
        %v1273 = vmul.f32 %v1272, %v1271
        %v1274 = vmul.f32 0.5, %v1273
        %v1275 = vsub.f32 1.5, %v1274
        %v1276 = vmul.f32 %v1271, %v1275
        %vm1277 = vweird.f32 %v1131
        %vm1278 = vweird.f32 %v1271
        %vm1279 = vmor %vm1277, %vm1278
        %v1280 = vsel %vm1279, %v1271, %v1276
        %v1281 = vrsqrt.pop %v1132
        %v1282 = vmul.f32 %v1281, %v1132
        %v1283 = vmul.f32 %v1282, %v1281
        %v1284 = vmul.f32 0.5, %v1283
        %v1285 = vsub.f32 1.5, %v1284
        %v1286 = vmul.f32 %v1281, %v1285
        %vm1287 = vweird.f32 %v1132
        %vm1288 = vweird.f32 %v1281
        %vm1289 = vmor %vm1287, %vm1288
        %v1290 = vsel %vm1289, %v1281, %v1286
        %v1291 = vrsqrt.pop %v1133
        %v1292 = vmul.f32 %v1291, %v1133
        %v1293 = vmul.f32 %v1292, %v1291
        %v1294 = vmul.f32 0.5, %v1293
        %v1295 = vsub.f32 1.5, %v1294
        %v1296 = vmul.f32 %v1291, %v1295
        %vm1297 = vweird.f32 %v1133
        %vm1298 = vweird.f32 %v1291
        %vm1299 = vmor %vm1297, %vm1298
        %v1300 = vsel %vm1299, %v1291, %v1296
        %v1301 = vrsqrt.pop %v1134
        %v1302 = vmul.f32 %v1301, %v1134
        %v1303 = vmul.f32 %v1302, %v1301
        %v1304 = vmul.f32 0.5, %v1303
        %v1305 = vsub.f32 1.5, %v1304
        %v1306 = vmul.f32 %v1301, %v1305
        %vm1307 = vweird.f32 %v1134
        %vm1308 = vweird.f32 %v1301
        %vm1309 = vmor %vm1307, %vm1308
        %v1310 = vsel %vm1309, %v1301, %v1306
        %v1311 = vrsqrt.pop %v1135
        %v1312 = vmul.f32 %v1311, %v1135
        %v1313 = vmul.f32 %v1312, %v1311
        %v1314 = vmul.f32 0.5, %v1313
        %v1315 = vsub.f32 1.5, %v1314
        %v1316 = vmul.f32 %v1311, %v1315
        %vm1317 = vweird.f32 %v1135
        %vm1318 = vweird.f32 %v1311
        %vm1319 = vmor %vm1317, %vm1318
        %v1320 = vsel %vm1319, %v1311, %v1316
        %v1321 = vrsqrt.pop %v1136
        %v1322 = vmul.f32 %v1321, %v1136
        %v1323 = vmul.f32 %v1322, %v1321
        %v1324 = vmul.f32 0.5, %v1323
        %v1325 = vsub.f32 1.5, %v1324
        %v1326 = vmul.f32 %v1321, %v1325
        %vm1327 = vweird.f32 %v1136
        %vm1328 = vweird.f32 %v1321
        %vm1329 = vmor %vm1327, %vm1328
        %v1330 = vsel %vm1329, %v1321, %v1326
        %v1331 = vrsqrt.pop %v1137
        %v1332 = vmul.f32 %v1331, %v1137
        %v1333 = vmul.f32 %v1332, %v1331
        %v1334 = vmul.f32 0.5, %v1333
        %v1335 = vsub.f32 1.5, %v1334
        %v1336 = vmul.f32 %v1331, %v1335
        %vm1337 = vweird.f32 %v1137
        %vm1338 = vweird.f32 %v1331
        %vm1339 = vmor %vm1337, %vm1338
        %v1340 = vsel %vm1339, %v1331, %v1336
        %v1341 = vrsqrt.pop %v1138
        %v1342 = vmul.f32 %v1341, %v1138
        %v1343 = vmul.f32 %v1342, %v1341
        %v1344 = vmul.f32 0.5, %v1343
        %v1345 = vsub.f32 1.5, %v1344
        %v1346 = vmul.f32 %v1341, %v1345
        %vm1347 = vweird.f32 %v1138
        %vm1348 = vweird.f32 %v1341
        %vm1349 = vmor %vm1347, %vm1348
        %v1350 = vsel %vm1349, %v1341, %v1346
        %v1351 = vrsqrt.pop %v1139
        %v1352 = vmul.f32 %v1351, %v1139
        %v1353 = vmul.f32 %v1352, %v1351
        %v1354 = vmul.f32 0.5, %v1353
        %v1355 = vsub.f32 1.5, %v1354
        %v1356 = vmul.f32 %v1351, %v1355
        %vm1357 = vweird.f32 %v1139
        %vm1358 = vweird.f32 %v1351
        %vm1359 = vmor %vm1357, %vm1358
        %v1360 = vsel %vm1359, %v1351, %v1356
        %v1361 = vrsqrt.pop %v1140
        %v1362 = vmul.f32 %v1361, %v1140
        %v1363 = vmul.f32 %v1362, %v1361
        %v1364 = vmul.f32 0.5, %v1363
        %v1365 = vsub.f32 1.5, %v1364
        %v1366 = vmul.f32 %v1361, %v1365
        %vm1367 = vweird.f32 %v1140
        %vm1368 = vweird.f32 %v1361
        %vm1369 = vmor %vm1367, %vm1368
        %v1370 = vsel %vm1369, %v1361, %v1366
        %v1371 = vrsqrt.pop %v1141
        %v1372 = vmul.f32 %v1371, %v1141
        %v1373 = vmul.f32 %v1372, %v1371
        %v1374 = vmul.f32 0.5, %v1373
        %v1375 = vsub.f32 1.5, %v1374
        %v1376 = vmul.f32 %v1371, %v1375
        %vm1377 = vweird.f32 %v1141
        %vm1378 = vweird.f32 %v1371
        %vm1379 = vmor %vm1377, %vm1378
        %v1380 = vsel %vm1379, %v1371, %v1376
        %v1381 = vrsqrt.pop %v1142
        %v1382 = vmul.f32 %v1381, %v1142
        %v1383 = vmul.f32 %v1382, %v1381
        %v1384 = vmul.f32 0.5, %v1383
        %v1385 = vsub.f32 1.5, %v1384
        %v1386 = vmul.f32 %v1381, %v1385
        %vm1387 = vweird.f32 %v1142
        %vm1388 = vweird.f32 %v1381
        %vm1389 = vmor %vm1387, %vm1388
        %v1390 = vsel %vm1389, %v1381, %v1386
        %v1391 = vrsqrt.pop %v1143
        %v1392 = vmul.f32 %v1391, %v1143
        %v1393 = vmul.f32 %v1392, %v1391
        %v1394 = vmul.f32 0.5, %v1393
        %v1395 = vsub.f32 1.5, %v1394
        %v1396 = vmul.f32 %v1391, %v1395
        %vm1397 = vweird.f32 %v1143
        %vm1398 = vweird.f32 %v1391
        %vm1399 = vmor %vm1397, %vm1398
        %v1400 = vsel %vm1399, %v1391, %v1396
        %v1401 = vrsqrt.pop %v1144
        %v1402 = vmul.f32 %v1401, %v1144
        %v1403 = vmul.f32 %v1402, %v1401
        %v1404 = vmul.f32 0.5, %v1403
        %v1405 = vsub.f32 1.5, %v1404
        %v1406 = vmul.f32 %v1401, %v1405
        %vm1407 = vweird.f32 %v1144
        %vm1408 = vweird.f32 %v1401
        %vm1409 = vmor %vm1407, %vm1408
        %v1410 = vsel %vm1409, %v1401, %v1406
        %v1411 = vrsqrt.pop %v1145
        %v1412 = vmul.f32 %v1411, %v1145
        %v1413 = vmul.f32 %v1412, %v1411
        %v1414 = vmul.f32 0.5, %v1413
        %v1415 = vsub.f32 1.5, %v1414
        %v1416 = vmul.f32 %v1411, %v1415
        %vm1417 = vweird.f32 %v1145
        %vm1418 = vweird.f32 %v1411
        %vm1419 = vmor %vm1417, %vm1418
        %v1420 = vsel %vm1419, %v1411, %v1416
        %v1421 = vrsqrt.pop %v1146
        %v1422 = vmul.f32 %v1421, %v1146
        %v1423 = vmul.f32 %v1422, %v1421
        %v1424 = vmul.f32 0.5, %v1423
        %v1425 = vsub.f32 1.5, %v1424
        %v1426 = vmul.f32 %v1421, %v1425
        %vm1427 = vweird.f32 %v1146
        %vm1428 = vweird.f32 %v1421
        %vm1429 = vmor %vm1427, %vm1428
        %v1430 = vsel %vm1429, %v1421, %v1426
        %v1431 = vrsqrt.pop %v1147
        %v1432 = vmul.f32 %v1431, %v1147
        %v1433 = vmul.f32 %v1432, %v1431
        %v1434 = vmul.f32 0.5, %v1433
        %v1435 = vsub.f32 1.5, %v1434
        %v1436 = vmul.f32 %v1431, %v1435
        %vm1437 = vweird.f32 %v1147
        %vm1438 = vweird.f32 %v1431
        %vm1439 = vmor %vm1437, %vm1438
        %v1440 = vsel %vm1439, %v1431, %v1436
        %v1441 = vrsqrt.pop %v1148
        %v1442 = vmul.f32 %v1441, %v1148
        %v1443 = vmul.f32 %v1442, %v1441
        %v1444 = vmul.f32 0.5, %v1443
        %v1445 = vsub.f32 1.5, %v1444
        %v1446 = vmul.f32 %v1441, %v1445
        %vm1447 = vweird.f32 %v1148
        %vm1448 = vweird.f32 %v1441
        %vm1449 = vmor %vm1447, %vm1448
        %v1450 = vsel %vm1449, %v1441, %v1446
        %v1451 = vrsqrt.pop %v1149
        %v1452 = vmul.f32 %v1451, %v1149
        %v1453 = vmul.f32 %v1452, %v1451
        %v1454 = vmul.f32 0.5, %v1453
        %v1455 = vsub.f32 1.5, %v1454
        %v1456 = vmul.f32 %v1451, %v1455
        %vm1457 = vweird.f32 %v1149
        %vm1458 = vweird.f32 %v1451
        %vm1459 = vmor %vm1457, %vm1458
        %v1460 = vsel %vm1459, %v1451, %v1456
        %v1461 = vrsqrt.pop %v1150
        %v1462 = vmul.f32 %v1461, %v1150
        %v1463 = vmul.f32 %v1462, %v1461
        %v1464 = vmul.f32 0.5, %v1463
        %v1465 = vsub.f32 1.5, %v1464
        %v1466 = vmul.f32 %v1461, %v1465
        %vm1467 = vweird.f32 %v1150
        %vm1468 = vweird.f32 %v1461
        %vm1469 = vmor %vm1467, %vm1468
        %v1470 = vsel %vm1469, %v1461, %v1466
        %v1471 = vmul.f32 %v1087, %v1160
        %v1472 = vmul.f32 %v1088, %v1170
        %v1473 = vmul.f32 %v1089, %v1180
        %v1474 = vmul.f32 %v1090, %v1190
        %v1475 = vmul.f32 %v1091, %v1200
        %v1476 = vmul.f32 %v1092, %v1210
        %v1477 = vmul.f32 %v1093, %v1220
        %v1478 = vmul.f32 %v1094, %v1230
        %v1479 = vmul.f32 %v1095, %v1240
        %v1480 = vmul.f32 %v1096, %v1250
        %v1481 = vmul.f32 %v1097, %v1260
        %v1482 = vmul.f32 %v1098, %v1270
        %v1483 = vmul.f32 %v1099, %v1280
        %v1484 = vmul.f32 %v1100, %v1290
        %v1485 = vmul.f32 %v1101, %v1300
        %v1486 = vmul.f32 %v1102, %v1310
        %v1487 = vmul.f32 %v1103, %v1320
        %v1488 = vmul.f32 %v1104, %v1330
        %v1489 = vmul.f32 %v1105, %v1340
        %v1490 = vmul.f32 %v1106, %v1350
        %v1491 = vmul.f32 %v1107, %v1360
        %v1492 = vmul.f32 %v1108, %v1370
        %v1493 = vmul.f32 %v1109, %v1380
        %v1494 = vmul.f32 %v1110, %v1390
        %v1495 = vmul.f32 %v1111, %v1400
        %v1496 = vmul.f32 %v1112, %v1410
        %v1497 = vmul.f32 %v1113, %v1420
        %v1498 = vmul.f32 %v1114, %v1430
        %v1499 = vmul.f32 %v1115, %v1440
        %v1500 = vmul.f32 %v1116, %v1450
        %v1501 = vmul.f32 %v1117, %v1460
        %v1502 = vmul.f32 %v1118, %v1470
        %v1503 = vmax.f32 %v1471, 0.0
        %v1504 = vmax.f32 %v1472, 0.0
        %v1505 = vmax.f32 %v1473, 0.0
        %v1506 = vmax.f32 %v1474, 0.0
        %v1507 = vmax.f32 %v1475, 0.0
        %v1508 = vmax.f32 %v1476, 0.0
        %v1509 = vmax.f32 %v1477, 0.0
        %v1510 = vmax.f32 %v1478, 0.0
        %v1511 = vmax.f32 %v1479, 0.0
        %v1512 = vmax.f32 %v1480, 0.0
        %v1513 = vmax.f32 %v1481, 0.0
        %v1514 = vmax.f32 %v1482, 0.0
        %v1515 = vmax.f32 %v1483, 0.0
        %v1516 = vmax.f32 %v1484, 0.0
        %v1517 = vmax.f32 %v1485, 0.0
        %v1518 = vmax.f32 %v1486, 0.0
        %v1519 = vmax.f32 %v1487, 0.0
        %v1520 = vmax.f32 %v1488, 0.0
        %v1521 = vmax.f32 %v1489, 0.0
        %v1522 = vmax.f32 %v1490, 0.0
        %v1523 = vmax.f32 %v1491, 0.0
        %v1524 = vmax.f32 %v1492, 0.0
        %v1525 = vmax.f32 %v1493, 0.0
        %v1526 = vmax.f32 %v1494, 0.0
        %v1527 = vmax.f32 %v1495, 0.0
        %v1528 = vmax.f32 %v1496, 0.0
        %v1529 = vmax.f32 %v1497, 0.0
        %v1530 = vmax.f32 %v1498, 0.0
        %v1531 = vmax.f32 %v1499, 0.0
        %v1532 = vmax.f32 %v1500, 0.0
        %v1533 = vmax.f32 %v1501, 0.0
        %v1534 = vmax.f32 %v1502, 0.0
        %v1535 = vld [vmem:[%s439] sm:$0xff]
        %v1536 = vld [vmem:[%s439 + $0x8] sm:$0xff]
        %v1537 = vld [vmem:[%s439 + $0x10] sm:$0xff]
        %v1538 = vld [vmem:[%s439 + $0x18] sm:$0xff]
        %v1539 = vld [vmem:[%s439 + $0x20] sm:$0xff]
        %v1540 = vld [vmem:[%s439 + $0x28] sm:$0xff]
        %v1541 = vld [vmem:[%s439 + $0x30] sm:$0xff]
        %v1542 = vld [vmem:[%s439 + $0x38] sm:$0xff]
        %v1543 = vld [vmem:[%s439 + $0x40] sm:$0xff]
        %v1544 = vld [vmem:[%s439 + $0x48] sm:$0xff]
        %v1545 = vld [vmem:[%s439 + $0x50] sm:$0xff]
        %v1546 = vld [vmem:[%s439 + $0x58] sm:$0xff]
        %v1547 = vld [vmem:[%s439 + $0x60] sm:$0xff]
        %v1548 = vld [vmem:[%s439 + $0x68] sm:$0xff]
        %v1549 = vld [vmem:[%s439 + $0x70] sm:$0xff]
        %v1550 = vld [vmem:[%s439 + $0x78] sm:$0xff]
        %v1551 = vld [vmem:[%s439 + $0x80] sm:$0xff]
        %v1552 = vld [vmem:[%s439 + $0x88] sm:$0xff]
        %v1553 = vld [vmem:[%s439 + $0x90] sm:$0xff]
        %v1554 = vld [vmem:[%s439 + $0x98] sm:$0xff]
        %v1555 = vld [vmem:[%s439 + $0xa0] sm:$0xff]
        %v1556 = vld [vmem:[%s439 + $0xa8] sm:$0xff]
        %v1557 = vld [vmem:[%s439 + $0xb0] sm:$0xff]
        %v1558 = vld [vmem:[%s439 + $0xb8] sm:$0xff]
        %v1559 = vld [vmem:[%s439 + $0xc0] sm:$0xff]
        %v1560 = vld [vmem:[%s439 + $0xc8] sm:$0xff]
        %v1561 = vld [vmem:[%s439 + $0xd0] sm:$0xff]
        %v1562 = vld [vmem:[%s439 + $0xd8] sm:$0xff]
        %v1563 = vld [vmem:[%s439 + $0xe0] sm:$0xff]
        %v1564 = vld [vmem:[%s439 + $0xe8] sm:$0xff]
        %v1565 = vld [vmem:[%s439 + $0xf0] sm:$0xff]
        %v1566 = vld [vmem:[%s439 + $0xf8] sm:$0xff]
        %v1567 = vsel %vm493, %v1535, 0.0
        %1568 = vadd.xlane.f32.xlu0 %v1567
        %v1569 = vpop.xlane.xlu0 %1568
        %v1570 = vsel %vm493, %v1536, 0.0
        %1571 = vadd.xlane.f32.xlu0 %v1570
        %v1572 = vpop.xlane.xlu0 %1571
        %v1573 = vsel %vm493, %v1537, 0.0
        %1574 = vadd.xlane.f32.xlu0 %v1573
        %v1575 = vpop.xlane.xlu0 %1574
        %v1576 = vsel %vm493, %v1538, 0.0
        %1577 = vadd.xlane.f32.xlu0 %v1576
        %v1578 = vpop.xlane.xlu0 %1577
        %v1579 = vsel %vm493, %v1539, 0.0
        %1580 = vadd.xlane.f32.xlu0 %v1579
        %v1581 = vpop.xlane.xlu0 %1580
        %v1582 = vsel %vm493, %v1540, 0.0
        %1583 = vadd.xlane.f32.xlu0 %v1582
        %v1584 = vpop.xlane.xlu0 %1583
        %v1585 = vsel %vm493, %v1541, 0.0
        %1586 = vadd.xlane.f32.xlu0 %v1585
        %v1587 = vpop.xlane.xlu0 %1586
        %v1588 = vsel %vm493, %v1542, 0.0
        %1589 = vadd.xlane.f32.xlu0 %v1588
        %v1590 = vpop.xlane.xlu0 %1589
        %v1591 = vsel %vm493, %v1543, 0.0
        %1592 = vadd.xlane.f32.xlu0 %v1591
        %v1593 = vpop.xlane.xlu0 %1592
        %v1594 = vsel %vm493, %v1544, 0.0
        %1595 = vadd.xlane.f32.xlu0 %v1594
        %v1596 = vpop.xlane.xlu0 %1595
        %v1597 = vsel %vm493, %v1545, 0.0
        %1598 = vadd.xlane.f32.xlu0 %v1597
        %v1599 = vpop.xlane.xlu0 %1598
        %v1600 = vsel %vm493, %v1546, 0.0
        %1601 = vadd.xlane.f32.xlu0 %v1600
        %v1602 = vpop.xlane.xlu0 %1601
        %v1603 = vsel %vm493, %v1547, 0.0
        %1604 = vadd.xlane.f32.xlu0 %v1603
        %v1605 = vpop.xlane.xlu0 %1604
        %v1606 = vsel %vm493, %v1548, 0.0
        %1607 = vadd.xlane.f32.xlu0 %v1606
        %v1608 = vpop.xlane.xlu0 %1607
        %v1609 = vsel %vm493, %v1549, 0.0
        %1610 = vadd.xlane.f32.xlu0 %v1609
        %v1611 = vpop.xlane.xlu0 %1610
        %v1612 = vsel %vm493, %v1550, 0.0
        %1613 = vadd.xlane.f32.xlu0 %v1612
        %v1614 = vpop.xlane.xlu0 %1613
        %v1615 = vsel %vm493, %v1551, 0.0
        %1616 = vadd.xlane.f32.xlu0 %v1615
        %v1617 = vpop.xlane.xlu0 %1616
        %v1618 = vsel %vm493, %v1552, 0.0
        %1619 = vadd.xlane.f32.xlu0 %v1618
        %v1620 = vpop.xlane.xlu0 %1619
        %v1621 = vsel %vm493, %v1553, 0.0
        %1622 = vadd.xlane.f32.xlu0 %v1621
        %v1623 = vpop.xlane.xlu0 %1622
        %v1624 = vsel %vm493, %v1554, 0.0
        %1625 = vadd.xlane.f32.xlu0 %v1624
        %v1626 = vpop.xlane.xlu0 %1625
        %v1627 = vsel %vm493, %v1555, 0.0
        %1628 = vadd.xlane.f32.xlu0 %v1627
        %v1629 = vpop.xlane.xlu0 %1628
        %v1630 = vsel %vm493, %v1556, 0.0
        %1631 = vadd.xlane.f32.xlu0 %v1630
        %v1632 = vpop.xlane.xlu0 %1631
        %v1633 = vsel %vm493, %v1557, 0.0
        %1634 = vadd.xlane.f32.xlu0 %v1633
        %v1635 = vpop.xlane.xlu0 %1634
        %v1636 = vsel %vm493, %v1558, 0.0
        %1637 = vadd.xlane.f32.xlu0 %v1636
        %v1638 = vpop.xlane.xlu0 %1637
        %v1639 = vsel %vm493, %v1559, 0.0
        %1640 = vadd.xlane.f32.xlu0 %v1639
        %v1641 = vpop.xlane.xlu0 %1640
        %v1642 = vsel %vm493, %v1560, 0.0
        %1643 = vadd.xlane.f32.xlu0 %v1642
        %v1644 = vpop.xlane.xlu0 %1643
        %v1645 = vsel %vm493, %v1561, 0.0
        %1646 = vadd.xlane.f32.xlu0 %v1645
        %v1647 = vpop.xlane.xlu0 %1646
        %v1648 = vsel %vm493, %v1562, 0.0
        %1649 = vadd.xlane.f32.xlu0 %v1648
        %v1650 = vpop.xlane.xlu0 %1649
        %v1651 = vsel %vm493, %v1563, 0.0
        %1652 = vadd.xlane.f32.xlu0 %v1651
        %v1653 = vpop.xlane.xlu0 %1652
        %v1654 = vsel %vm493, %v1564, 0.0
        %1655 = vadd.xlane.f32.xlu0 %v1654
        %v1656 = vpop.xlane.xlu0 %1655
        %v1657 = vsel %vm493, %v1565, 0.0
        %1658 = vadd.xlane.f32.xlu0 %v1657
        %v1659 = vpop.xlane.xlu0 %1658
        %v1660 = vsel %vm493, %v1566, 0.0
        %1661 = vadd.xlane.f32.xlu0 %v1660
        %v1662 = vpop.xlane.xlu0 %1661
        %v1663 = vmul.f32 %v1535, %v1535
        %v1664 = vmul.f32 %v1536, %v1536
        %v1665 = vmul.f32 %v1537, %v1537
        %v1666 = vmul.f32 %v1538, %v1538
        %v1667 = vmul.f32 %v1539, %v1539
        %v1668 = vmul.f32 %v1540, %v1540
        %v1669 = vmul.f32 %v1541, %v1541
        %v1670 = vmul.f32 %v1542, %v1542
        %v1671 = vmul.f32 %v1543, %v1543
        %v1672 = vmul.f32 %v1544, %v1544
        %v1673 = vmul.f32 %v1545, %v1545
        %v1674 = vmul.f32 %v1546, %v1546
        %v1675 = vmul.f32 %v1547, %v1547
        %v1676 = vmul.f32 %v1548, %v1548
        %v1677 = vmul.f32 %v1549, %v1549
        %v1678 = vmul.f32 %v1550, %v1550
        %v1679 = vmul.f32 %v1551, %v1551
        %v1680 = vmul.f32 %v1552, %v1552
        %v1681 = vmul.f32 %v1553, %v1553
        %v1682 = vmul.f32 %v1554, %v1554
        %v1683 = vmul.f32 %v1555, %v1555
        %v1684 = vmul.f32 %v1556, %v1556
        %v1685 = vmul.f32 %v1557, %v1557
        %v1686 = vmul.f32 %v1558, %v1558
        %v1687 = vmul.f32 %v1559, %v1559
        %v1688 = vmul.f32 %v1560, %v1560
        %v1689 = vmul.f32 %v1561, %v1561
        %v1690 = vmul.f32 %v1562, %v1562
        %v1691 = vmul.f32 %v1563, %v1563
        %v1692 = vmul.f32 %v1564, %v1564
        %v1693 = vmul.f32 %v1565, %v1565
        %v1694 = vmul.f32 %v1566, %v1566
        %v1695 = vsel %vm493, %v1663, 0.0
        %1696 = vadd.xlane.f32.xlu0 %v1695
        %v1697 = vpop.xlane.xlu0 %1696
        %v1698 = vsel %vm493, %v1664, 0.0
        %1699 = vadd.xlane.f32.xlu0 %v1698
        %v1700 = vpop.xlane.xlu0 %1699
        %v1701 = vsel %vm493, %v1665, 0.0
        %1702 = vadd.xlane.f32.xlu0 %v1701
        %v1703 = vpop.xlane.xlu0 %1702
        %v1704 = vsel %vm493, %v1666, 0.0
        %1705 = vadd.xlane.f32.xlu0 %v1704
        %v1706 = vpop.xlane.xlu0 %1705
        %v1707 = vsel %vm493, %v1667, 0.0
        %1708 = vadd.xlane.f32.xlu0 %v1707
        %v1709 = vpop.xlane.xlu0 %1708
        %v1710 = vsel %vm493, %v1668, 0.0
        %1711 = vadd.xlane.f32.xlu0 %v1710
        %v1712 = vpop.xlane.xlu0 %1711
        %v1713 = vsel %vm493, %v1669, 0.0
        %1714 = vadd.xlane.f32.xlu0 %v1713
        %v1715 = vpop.xlane.xlu0 %1714
        %v1716 = vsel %vm493, %v1670, 0.0
        %1717 = vadd.xlane.f32.xlu0 %v1716
        %v1718 = vpop.xlane.xlu0 %1717
        %v1719 = vsel %vm493, %v1671, 0.0
        %1720 = vadd.xlane.f32.xlu0 %v1719
        %v1721 = vpop.xlane.xlu0 %1720
        %v1722 = vsel %vm493, %v1672, 0.0
        %1723 = vadd.xlane.f32.xlu0 %v1722
        %v1724 = vpop.xlane.xlu0 %1723
        %v1725 = vsel %vm493, %v1673, 0.0
        %1726 = vadd.xlane.f32.xlu0 %v1725
        %v1727 = vpop.xlane.xlu0 %1726
        %v1728 = vsel %vm493, %v1674, 0.0
        %1729 = vadd.xlane.f32.xlu0 %v1728
        %v1730 = vpop.xlane.xlu0 %1729
        %v1731 = vsel %vm493, %v1675, 0.0
        %1732 = vadd.xlane.f32.xlu0 %v1731
        %v1733 = vpop.xlane.xlu0 %1732
        %v1734 = vsel %vm493, %v1676, 0.0
        %1735 = vadd.xlane.f32.xlu0 %v1734
        %v1736 = vpop.xlane.xlu0 %1735
        %v1737 = vsel %vm493, %v1677, 0.0
        %1738 = vadd.xlane.f32.xlu0 %v1737
        %v1739 = vpop.xlane.xlu0 %1738
        %v1740 = vsel %vm493, %v1678, 0.0
        %1741 = vadd.xlane.f32.xlu0 %v1740
        %v1742 = vpop.xlane.xlu0 %1741
        %v1743 = vsel %vm493, %v1679, 0.0
        %1744 = vadd.xlane.f32.xlu0 %v1743
        %v1745 = vpop.xlane.xlu0 %1744
        %v1746 = vsel %vm493, %v1680, 0.0
        %1747 = vadd.xlane.f32.xlu0 %v1746
        %v1748 = vpop.xlane.xlu0 %1747
        %v1749 = vsel %vm493, %v1681, 0.0
        %1750 = vadd.xlane.f32.xlu0 %v1749
        %v1751 = vpop.xlane.xlu0 %1750
        %v1752 = vsel %vm493, %v1682, 0.0
        %1753 = vadd.xlane.f32.xlu0 %v1752
        %v1754 = vpop.xlane.xlu0 %1753
        %v1755 = vsel %vm493, %v1683, 0.0
        %1756 = vadd.xlane.f32.xlu0 %v1755
        %v1757 = vpop.xlane.xlu0 %1756
        %v1758 = vsel %vm493, %v1684, 0.0
        %1759 = vadd.xlane.f32.xlu0 %v1758
        %v1760 = vpop.xlane.xlu0 %1759
        %v1761 = vsel %vm493, %v1685, 0.0
        %1762 = vadd.xlane.f32.xlu0 %v1761
        %v1763 = vpop.xlane.xlu0 %1762
        %v1764 = vsel %vm493, %v1686, 0.0
        %1765 = vadd.xlane.f32.xlu0 %v1764
        %v1766 = vpop.xlane.xlu0 %1765
        %v1767 = vsel %vm493, %v1687, 0.0
        %1768 = vadd.xlane.f32.xlu0 %v1767
        %v1769 = vpop.xlane.xlu0 %1768
        %v1770 = vsel %vm493, %v1688, 0.0
        %1771 = vadd.xlane.f32.xlu0 %v1770
        %v1772 = vpop.xlane.xlu0 %1771
        %v1773 = vsel %vm493, %v1689, 0.0
        %1774 = vadd.xlane.f32.xlu0 %v1773
        %v1775 = vpop.xlane.xlu0 %1774
        %v1776 = vsel %vm493, %v1690, 0.0
        %1777 = vadd.xlane.f32.xlu0 %v1776
        %v1778 = vpop.xlane.xlu0 %1777
        %v1779 = vsel %vm493, %v1691, 0.0
        %1780 = vadd.xlane.f32.xlu0 %v1779
        %v1781 = vpop.xlane.xlu0 %1780
        %v1782 = vsel %vm493, %v1692, 0.0
        %1783 = vadd.xlane.f32.xlu0 %v1782
        %v1784 = vpop.xlane.xlu0 %1783
        %v1785 = vsel %vm493, %v1693, 0.0
        %1786 = vadd.xlane.f32.xlu0 %v1785
        %v1787 = vpop.xlane.xlu0 %1786
        %v1788 = vsel %vm493, %v1694, 0.0
        %1789 = vadd.xlane.f32.xlu0 %v1788
        %v1790 = vpop.xlane.xlu0 %1789
        %v1791 = vmul.f32 %v1569, 0.03125
        %v1792 = vmul.f32 %v1572, 0.03125
        %v1793 = vmul.f32 %v1575, 0.03125
        %v1794 = vmul.f32 %v1578, 0.03125
        %v1795 = vmul.f32 %v1581, 0.03125
        %v1796 = vmul.f32 %v1584, 0.03125
        %v1797 = vmul.f32 %v1587, 0.03125
        %v1798 = vmul.f32 %v1590, 0.03125
        %v1799 = vmul.f32 %v1593, 0.03125
        %v1800 = vmul.f32 %v1596, 0.03125
        %v1801 = vmul.f32 %v1599, 0.03125
        %v1802 = vmul.f32 %v1602, 0.03125
        %v1803 = vmul.f32 %v1605, 0.03125
        %v1804 = vmul.f32 %v1608, 0.03125
        %v1805 = vmul.f32 %v1611, 0.03125
        %v1806 = vmul.f32 %v1614, 0.03125
        %v1807 = vmul.f32 %v1617, 0.03125
        %v1808 = vmul.f32 %v1620, 0.03125
        %v1809 = vmul.f32 %v1623, 0.03125
        %v1810 = vmul.f32 %v1626, 0.03125
        %v1811 = vmul.f32 %v1629, 0.03125
        %v1812 = vmul.f32 %v1632, 0.03125
        %v1813 = vmul.f32 %v1635, 0.03125
        %v1814 = vmul.f32 %v1638, 0.03125
        %v1815 = vmul.f32 %v1641, 0.03125
        %v1816 = vmul.f32 %v1644, 0.03125
        %v1817 = vmul.f32 %v1647, 0.03125
        %v1818 = vmul.f32 %v1650, 0.03125
        %v1819 = vmul.f32 %v1653, 0.03125
        %v1820 = vmul.f32 %v1656, 0.03125
        %v1821 = vmul.f32 %v1659, 0.03125
        %v1822 = vmul.f32 %v1662, 0.03125
        %v1823 = vmul.f32 %v1697, 0.03125
        %v1824 = vmul.f32 %v1700, 0.03125
        %v1825 = vmul.f32 %v1703, 0.03125
        %v1826 = vmul.f32 %v1706, 0.03125
        %v1827 = vmul.f32 %v1709, 0.03125
        %v1828 = vmul.f32 %v1712, 0.03125
        %v1829 = vmul.f32 %v1715, 0.03125
        %v1830 = vmul.f32 %v1718, 0.03125
        %v1831 = vmul.f32 %v1721, 0.03125
        %v1832 = vmul.f32 %v1724, 0.03125
        %v1833 = vmul.f32 %v1727, 0.03125
        %v1834 = vmul.f32 %v1730, 0.03125
        %v1835 = vmul.f32 %v1733, 0.03125
        %v1836 = vmul.f32 %v1736, 0.03125
        %v1837 = vmul.f32 %v1739, 0.03125
        %v1838 = vmul.f32 %v1742, 0.03125
        %v1839 = vmul.f32 %v1745, 0.03125
        %v1840 = vmul.f32 %v1748, 0.03125
        %v1841 = vmul.f32 %v1751, 0.03125
        %v1842 = vmul.f32 %v1754, 0.03125
        %v1843 = vmul.f32 %v1757, 0.03125
        %v1844 = vmul.f32 %v1760, 0.03125
        %v1845 = vmul.f32 %v1763, 0.03125
        %v1846 = vmul.f32 %v1766, 0.03125
        %v1847 = vmul.f32 %v1769, 0.03125
        %v1848 = vmul.f32 %v1772, 0.03125
        %v1849 = vmul.f32 %v1775, 0.03125
        %v1850 = vmul.f32 %v1778, 0.03125
        %v1851 = vmul.f32 %v1781, 0.03125
        %v1852 = vmul.f32 %v1784, 0.03125
        %v1853 = vmul.f32 %v1787, 0.03125
        %v1854 = vmul.f32 %v1790, 0.03125
        %v1855 = vmul.f32 %v1791, %v1791
        %v1856 = vmul.f32 %v1792, %v1792
        %v1857 = vmul.f32 %v1793, %v1793
        %v1858 = vmul.f32 %v1794, %v1794
        %v1859 = vmul.f32 %v1795, %v1795
        %v1860 = vmul.f32 %v1796, %v1796
        %v1861 = vmul.f32 %v1797, %v1797
        %v1862 = vmul.f32 %v1798, %v1798
        %v1863 = vmul.f32 %v1799, %v1799
        %v1864 = vmul.f32 %v1800, %v1800
        %v1865 = vmul.f32 %v1801, %v1801
        %v1866 = vmul.f32 %v1802, %v1802
        %v1867 = vmul.f32 %v1803, %v1803
        %v1868 = vmul.f32 %v1804, %v1804
        %v1869 = vmul.f32 %v1805, %v1805
        %v1870 = vmul.f32 %v1806, %v1806
        %v1871 = vmul.f32 %v1807, %v1807
        %v1872 = vmul.f32 %v1808, %v1808
        %v1873 = vmul.f32 %v1809, %v1809
        %v1874 = vmul.f32 %v1810, %v1810
        %v1875 = vmul.f32 %v1811, %v1811
        %v1876 = vmul.f32 %v1812, %v1812
        %v1877 = vmul.f32 %v1813, %v1813
        %v1878 = vmul.f32 %v1814, %v1814
        %v1879 = vmul.f32 %v1815, %v1815
        %v1880 = vmul.f32 %v1816, %v1816
        %v1881 = vmul.f32 %v1817, %v1817
        %v1882 = vmul.f32 %v1818, %v1818
        %v1883 = vmul.f32 %v1819, %v1819
        %v1884 = vmul.f32 %v1820, %v1820
        %v1885 = vmul.f32 %v1821, %v1821
        %v1886 = vmul.f32 %v1822, %v1822
        %v1887 = vsub.f32 %v1823, %v1855
        %v1888 = vsub.f32 %v1824, %v1856
        %v1889 = vsub.f32 %v1825, %v1857
        %v1890 = vsub.f32 %v1826, %v1858
        %v1891 = vsub.f32 %v1827, %v1859
        %v1892 = vsub.f32 %v1828, %v1860
        %v1893 = vsub.f32 %v1829, %v1861
        %v1894 = vsub.f32 %v1830, %v1862
        %v1895 = vsub.f32 %v1831, %v1863
        %v1896 = vsub.f32 %v1832, %v1864
        %v1897 = vsub.f32 %v1833, %v1865
        %v1898 = vsub.f32 %v1834, %v1866
        %v1899 = vsub.f32 %v1835, %v1867
        %v1900 = vsub.f32 %v1836, %v1868
        %v1901 = vsub.f32 %v1837, %v1869
        %v1902 = vsub.f32 %v1838, %v1870
        %v1903 = vsub.f32 %v1839, %v1871
        %v1904 = vsub.f32 %v1840, %v1872
        %v1905 = vsub.f32 %v1841, %v1873
        %v1906 = vsub.f32 %v1842, %v1874
        %v1907 = vsub.f32 %v1843, %v1875
        %v1908 = vsub.f32 %v1844, %v1876
        %v1909 = vsub.f32 %v1845, %v1877
        %v1910 = vsub.f32 %v1846, %v1878
        %v1911 = vsub.f32 %v1847, %v1879
        %v1912 = vsub.f32 %v1848, %v1880
        %v1913 = vsub.f32 %v1849, %v1881
        %v1914 = vsub.f32 %v1850, %v1882
        %v1915 = vsub.f32 %v1851, %v1883
        %v1916 = vsub.f32 %v1852, %v1884
        %v1917 = vsub.f32 %v1853, %v1885
        %v1918 = vsub.f32 %v1854, %v1886
        %v1919 = vmax.f32 %v1887, 0.0
        %v1920 = vmax.f32 %v1888, 0.0
        %v1921 = vmax.f32 %v1889, 0.0
        %v1922 = vmax.f32 %v1890, 0.0
        %v1923 = vmax.f32 %v1891, 0.0
        %v1924 = vmax.f32 %v1892, 0.0
        %v1925 = vmax.f32 %v1893, 0.0
        %v1926 = vmax.f32 %v1894, 0.0
        %v1927 = vmax.f32 %v1895, 0.0
        %v1928 = vmax.f32 %v1896, 0.0
        %v1929 = vmax.f32 %v1897, 0.0
        %v1930 = vmax.f32 %v1898, 0.0
        %v1931 = vmax.f32 %v1899, 0.0
        %v1932 = vmax.f32 %v1900, 0.0
        %v1933 = vmax.f32 %v1901, 0.0
        %v1934 = vmax.f32 %v1902, 0.0
        %v1935 = vmax.f32 %v1903, 0.0
        %v1936 = vmax.f32 %v1904, 0.0
        %v1937 = vmax.f32 %v1905, 0.0
        %v1938 = vmax.f32 %v1906, 0.0
        %v1939 = vmax.f32 %v1907, 0.0
        %v1940 = vmax.f32 %v1908, 0.0
        %v1941 = vmax.f32 %v1909, 0.0
        %v1942 = vmax.f32 %v1910, 0.0
        %v1943 = vmax.f32 %v1911, 0.0
        %v1944 = vmax.f32 %v1912, 0.0
        %v1945 = vmax.f32 %v1913, 0.0
        %v1946 = vmax.f32 %v1914, 0.0
        %v1947 = vmax.f32 %v1915, 0.0
        %v1948 = vmax.f32 %v1916, 0.0
        %v1949 = vmax.f32 %v1917, 0.0
        %v1950 = vmax.f32 %v1918, 0.0
        %v1951 = vsub.f32 %v1535, %v1791
        %v1952 = vsub.f32 %v1536, %v1792
        %v1953 = vsub.f32 %v1537, %v1793
        %v1954 = vsub.f32 %v1538, %v1794
        %v1955 = vsub.f32 %v1539, %v1795
        %v1956 = vsub.f32 %v1540, %v1796
        %v1957 = vsub.f32 %v1541, %v1797
        %v1958 = vsub.f32 %v1542, %v1798
        %v1959 = vsub.f32 %v1543, %v1799
        %v1960 = vsub.f32 %v1544, %v1800
        %v1961 = vsub.f32 %v1545, %v1801
        %v1962 = vsub.f32 %v1546, %v1802
        %v1963 = vsub.f32 %v1547, %v1803
        %v1964 = vsub.f32 %v1548, %v1804
        %v1965 = vsub.f32 %v1549, %v1805
        %v1966 = vsub.f32 %v1550, %v1806
        %v1967 = vsub.f32 %v1551, %v1807
        %v1968 = vsub.f32 %v1552, %v1808
        %v1969 = vsub.f32 %v1553, %v1809
        %v1970 = vsub.f32 %v1554, %v1810
        %v1971 = vsub.f32 %v1555, %v1811
        %v1972 = vsub.f32 %v1556, %v1812
        %v1973 = vsub.f32 %v1557, %v1813
        %v1974 = vsub.f32 %v1558, %v1814
        %v1975 = vsub.f32 %v1559, %v1815
        %v1976 = vsub.f32 %v1560, %v1816
        %v1977 = vsub.f32 %v1561, %v1817
        %v1978 = vsub.f32 %v1562, %v1818
        %v1979 = vsub.f32 %v1563, %v1819
        %v1980 = vsub.f32 %v1564, %v1820
        %v1981 = vsub.f32 %v1565, %v1821
        %v1982 = vsub.f32 %v1566, %v1822
        %v1983 = vadd.f32 %v1919, 1e-05
        %v1984 = vadd.f32 %v1920, 1e-05
        %v1985 = vadd.f32 %v1921, 1e-05
        %v1986 = vadd.f32 %v1922, 1e-05
        %v1987 = vadd.f32 %v1923, 1e-05
        %v1988 = vadd.f32 %v1924, 1e-05
        %v1989 = vadd.f32 %v1925, 1e-05
        %v1990 = vadd.f32 %v1926, 1e-05
        %v1991 = vadd.f32 %v1927, 1e-05
        %v1992 = vadd.f32 %v1928, 1e-05
        %v1993 = vadd.f32 %v1929, 1e-05
        %v1994 = vadd.f32 %v1930, 1e-05
        %v1995 = vadd.f32 %v1931, 1e-05
        %v1996 = vadd.f32 %v1932, 1e-05
        %v1997 = vadd.f32 %v1933, 1e-05
        %v1998 = vadd.f32 %v1934, 1e-05
        %v1999 = vadd.f32 %v1935, 1e-05
        %v2000 = vadd.f32 %v1936, 1e-05
        %v2001 = vadd.f32 %v1937, 1e-05
        %v2002 = vadd.f32 %v1938, 1e-05
        %v2003 = vadd.f32 %v1939, 1e-05
        %v2004 = vadd.f32 %v1940, 1e-05
        %v2005 = vadd.f32 %v1941, 1e-05
        %v2006 = vadd.f32 %v1942, 1e-05
        %v2007 = vadd.f32 %v1943, 1e-05
        %v2008 = vadd.f32 %v1944, 1e-05
        %v2009 = vadd.f32 %v1945, 1e-05
        %v2010 = vadd.f32 %v1946, 1e-05
        %v2011 = vadd.f32 %v1947, 1e-05
        %v2012 = vadd.f32 %v1948, 1e-05
        %v2013 = vadd.f32 %v1949, 1e-05
        %v2014 = vadd.f32 %v1950, 1e-05
        %v2015 = vrsqrt.pop %v1983
        %v2016 = vmul.f32 %v2015, %v1983
        %v2017 = vmul.f32 %v2016, %v2015
        %v2018 = vmul.f32 0.5, %v2017
        %v2019 = vsub.f32 1.5, %v2018
        %v2020 = vmul.f32 %v2015, %v2019
        %vm2021 = vweird.f32 %v1983
        %vm2022 = vweird.f32 %v2015
        %vm2023 = vmor %vm2021, %vm2022
        %v2024 = vsel %vm2023, %v2015, %v2020
        %v2025 = vrsqrt.pop %v1984
        %v2026 = vmul.f32 %v2025, %v1984
        %v2027 = vmul.f32 %v2026, %v2025
        %v2028 = vmul.f32 0.5, %v2027
        %v2029 = vsub.f32 1.5, %v2028
        %v2030 = vmul.f32 %v2025, %v2029
        %vm2031 = vweird.f32 %v1984
        %vm2032 = vweird.f32 %v2025
        %vm2033 = vmor %vm2031, %vm2032
        %v2034 = vsel %vm2033, %v2025, %v2030
        %v2035 = vrsqrt.pop %v1985
        %v2036 = vmul.f32 %v2035, %v1985
        %v2037 = vmul.f32 %v2036, %v2035
        %v2038 = vmul.f32 0.5, %v2037
        %v2039 = vsub.f32 1.5, %v2038
        %v2040 = vmul.f32 %v2035, %v2039
        %vm2041 = vweird.f32 %v1985
        %vm2042 = vweird.f32 %v2035
        %vm2043 = vmor %vm2041, %vm2042
        %v2044 = vsel %vm2043, %v2035, %v2040
        %v2045 = vrsqrt.pop %v1986
        %v2046 = vmul.f32 %v2045, %v1986
        %v2047 = vmul.f32 %v2046, %v2045
        %v2048 = vmul.f32 0.5, %v2047
        %v2049 = vsub.f32 1.5, %v2048
        %v2050 = vmul.f32 %v2045, %v2049
        %vm2051 = vweird.f32 %v1986
        %vm2052 = vweird.f32 %v2045
        %vm2053 = vmor %vm2051, %vm2052
        %v2054 = vsel %vm2053, %v2045, %v2050
        %v2055 = vrsqrt.pop %v1987
        %v2056 = vmul.f32 %v2055, %v1987
        %v2057 = vmul.f32 %v2056, %v2055
        %v2058 = vmul.f32 0.5, %v2057
        %v2059 = vsub.f32 1.5, %v2058
        %v2060 = vmul.f32 %v2055, %v2059
        %vm2061 = vweird.f32 %v1987
        %vm2062 = vweird.f32 %v2055
        %vm2063 = vmor %vm2061, %vm2062
        %v2064 = vsel %vm2063, %v2055, %v2060
        %v2065 = vrsqrt.pop %v1988
        %v2066 = vmul.f32 %v2065, %v1988
        %v2067 = vmul.f32 %v2066, %v2065
        %v2068 = vmul.f32 0.5, %v2067
        %v2069 = vsub.f32 1.5, %v2068
        %v2070 = vmul.f32 %v2065, %v2069
        %vm2071 = vweird.f32 %v1988
        %vm2072 = vweird.f32 %v2065
        %vm2073 = vmor %vm2071, %vm2072
        %v2074 = vsel %vm2073, %v2065, %v2070
        %v2075 = vrsqrt.pop %v1989
        %v2076 = vmul.f32 %v2075, %v1989
        %v2077 = vmul.f32 %v2076, %v2075
        %v2078 = vmul.f32 0.5, %v2077
        %v2079 = vsub.f32 1.5, %v2078
        %v2080 = vmul.f32 %v2075, %v2079
        %vm2081 = vweird.f32 %v1989
        %vm2082 = vweird.f32 %v2075
        %vm2083 = vmor %vm2081, %vm2082
        %v2084 = vsel %vm2083, %v2075, %v2080
        %v2085 = vrsqrt.pop %v1990
        %v2086 = vmul.f32 %v2085, %v1990
        %v2087 = vmul.f32 %v2086, %v2085
        %v2088 = vmul.f32 0.5, %v2087
        %v2089 = vsub.f32 1.5, %v2088
        %v2090 = vmul.f32 %v2085, %v2089
        %vm2091 = vweird.f32 %v1990
        %vm2092 = vweird.f32 %v2085
        %vm2093 = vmor %vm2091, %vm2092
        %v2094 = vsel %vm2093, %v2085, %v2090
        %v2095 = vrsqrt.pop %v1991
        %v2096 = vmul.f32 %v2095, %v1991
        %v2097 = vmul.f32 %v2096, %v2095
        %v2098 = vmul.f32 0.5, %v2097
        %v2099 = vsub.f32 1.5, %v2098
        %v2100 = vmul.f32 %v2095, %v2099
        %vm2101 = vweird.f32 %v1991
        %vm2102 = vweird.f32 %v2095
        %vm2103 = vmor %vm2101, %vm2102
        %v2104 = vsel %vm2103, %v2095, %v2100
        %v2105 = vrsqrt.pop %v1992
        %v2106 = vmul.f32 %v2105, %v1992
        %v2107 = vmul.f32 %v2106, %v2105
        %v2108 = vmul.f32 0.5, %v2107
        %v2109 = vsub.f32 1.5, %v2108
        %v2110 = vmul.f32 %v2105, %v2109
        %vm2111 = vweird.f32 %v1992
        %vm2112 = vweird.f32 %v2105
        %vm2113 = vmor %vm2111, %vm2112
        %v2114 = vsel %vm2113, %v2105, %v2110
        %v2115 = vrsqrt.pop %v1993
        %v2116 = vmul.f32 %v2115, %v1993
        %v2117 = vmul.f32 %v2116, %v2115
        %v2118 = vmul.f32 0.5, %v2117
        %v2119 = vsub.f32 1.5, %v2118
        %v2120 = vmul.f32 %v2115, %v2119
        %vm2121 = vweird.f32 %v1993
        %vm2122 = vweird.f32 %v2115
        %vm2123 = vmor %vm2121, %vm2122
        %v2124 = vsel %vm2123, %v2115, %v2120
        %v2125 = vrsqrt.pop %v1994
        %v2126 = vmul.f32 %v2125, %v1994
        %v2127 = vmul.f32 %v2126, %v2125
        %v2128 = vmul.f32 0.5, %v2127
        %v2129 = vsub.f32 1.5, %v2128
        %v2130 = vmul.f32 %v2125, %v2129
        %vm2131 = vweird.f32 %v1994
        %vm2132 = vweird.f32 %v2125
        %vm2133 = vmor %vm2131, %vm2132
        %v2134 = vsel %vm2133, %v2125, %v2130
        %v2135 = vrsqrt.pop %v1995
        %v2136 = vmul.f32 %v2135, %v1995
        %v2137 = vmul.f32 %v2136, %v2135
        %v2138 = vmul.f32 0.5, %v2137
        %v2139 = vsub.f32 1.5, %v2138
        %v2140 = vmul.f32 %v2135, %v2139
        %vm2141 = vweird.f32 %v1995
        %vm2142 = vweird.f32 %v2135
        %vm2143 = vmor %vm2141, %vm2142
        %v2144 = vsel %vm2143, %v2135, %v2140
        %v2145 = vrsqrt.pop %v1996
        %v2146 = vmul.f32 %v2145, %v1996
        %v2147 = vmul.f32 %v2146, %v2145
        %v2148 = vmul.f32 0.5, %v2147
        %v2149 = vsub.f32 1.5, %v2148
        %v2150 = vmul.f32 %v2145, %v2149
        %vm2151 = vweird.f32 %v1996
        %vm2152 = vweird.f32 %v2145
        %vm2153 = vmor %vm2151, %vm2152
        %v2154 = vsel %vm2153, %v2145, %v2150
        %v2155 = vrsqrt.pop %v1997
        %v2156 = vmul.f32 %v2155, %v1997
        %v2157 = vmul.f32 %v2156, %v2155
        %v2158 = vmul.f32 0.5, %v2157
        %v2159 = vsub.f32 1.5, %v2158
        %v2160 = vmul.f32 %v2155, %v2159
        %vm2161 = vweird.f32 %v1997
        %vm2162 = vweird.f32 %v2155
        %vm2163 = vmor %vm2161, %vm2162
        %v2164 = vsel %vm2163, %v2155, %v2160
        %v2165 = vrsqrt.pop %v1998
        %v2166 = vmul.f32 %v2165, %v1998
        %v2167 = vmul.f32 %v2166, %v2165
        %v2168 = vmul.f32 0.5, %v2167
        %v2169 = vsub.f32 1.5, %v2168
        %v2170 = vmul.f32 %v2165, %v2169
        %vm2171 = vweird.f32 %v1998
        %vm2172 = vweird.f32 %v2165
        %vm2173 = vmor %vm2171, %vm2172
        %v2174 = vsel %vm2173, %v2165, %v2170
        %v2175 = vrsqrt.pop %v1999
        %v2176 = vmul.f32 %v2175, %v1999
        %v2177 = vmul.f32 %v2176, %v2175
        %v2178 = vmul.f32 0.5, %v2177
        %v2179 = vsub.f32 1.5, %v2178
        %v2180 = vmul.f32 %v2175, %v2179
        %vm2181 = vweird.f32 %v1999
        %vm2182 = vweird.f32 %v2175
        %vm2183 = vmor %vm2181, %vm2182
        %v2184 = vsel %vm2183, %v2175, %v2180
        %v2185 = vrsqrt.pop %v2000
        %v2186 = vmul.f32 %v2185, %v2000
        %v2187 = vmul.f32 %v2186, %v2185
        %v2188 = vmul.f32 0.5, %v2187
        %v2189 = vsub.f32 1.5, %v2188
        %v2190 = vmul.f32 %v2185, %v2189
        %vm2191 = vweird.f32 %v2000
        %vm2192 = vweird.f32 %v2185
        %vm2193 = vmor %vm2191, %vm2192
        %v2194 = vsel %vm2193, %v2185, %v2190
        %v2195 = vrsqrt.pop %v2001
        %v2196 = vmul.f32 %v2195, %v2001
        %v2197 = vmul.f32 %v2196, %v2195
        %v2198 = vmul.f32 0.5, %v2197
        %v2199 = vsub.f32 1.5, %v2198
        %v2200 = vmul.f32 %v2195, %v2199
        %vm2201 = vweird.f32 %v2001
        %vm2202 = vweird.f32 %v2195
        %vm2203 = vmor %vm2201, %vm2202
        %v2204 = vsel %vm2203, %v2195, %v2200
        %v2205 = vrsqrt.pop %v2002
        %v2206 = vmul.f32 %v2205, %v2002
        %v2207 = vmul.f32 %v2206, %v2205
        %v2208 = vmul.f32 0.5, %v2207
        %v2209 = vsub.f32 1.5, %v2208
        %v2210 = vmul.f32 %v2205, %v2209
        %vm2211 = vweird.f32 %v2002
        %vm2212 = vweird.f32 %v2205
        %vm2213 = vmor %vm2211, %vm2212
        %v2214 = vsel %vm2213, %v2205, %v2210
        %v2215 = vrsqrt.pop %v2003
        %v2216 = vmul.f32 %v2215, %v2003
        %v2217 = vmul.f32 %v2216, %v2215
        %v2218 = vmul.f32 0.5, %v2217
        %v2219 = vsub.f32 1.5, %v2218
        %v2220 = vmul.f32 %v2215, %v2219
        %vm2221 = vweird.f32 %v2003
        %vm2222 = vweird.f32 %v2215
        %vm2223 = vmor %vm2221, %vm2222
        %v2224 = vsel %vm2223, %v2215, %v2220
        %v2225 = vrsqrt.pop %v2004
        %v2226 = vmul.f32 %v2225, %v2004
        %v2227 = vmul.f32 %v2226, %v2225
        %v2228 = vmul.f32 0.5, %v2227
        %v2229 = vsub.f32 1.5, %v2228
        %v2230 = vmul.f32 %v2225, %v2229
        %vm2231 = vweird.f32 %v2004
        %vm2232 = vweird.f32 %v2225
        %vm2233 = vmor %vm2231, %vm2232
        %v2234 = vsel %vm2233, %v2225, %v2230
        %v2235 = vrsqrt.pop %v2005
        %v2236 = vmul.f32 %v2235, %v2005
        %v2237 = vmul.f32 %v2236, %v2235
        %v2238 = vmul.f32 0.5, %v2237
        %v2239 = vsub.f32 1.5, %v2238
        %v2240 = vmul.f32 %v2235, %v2239
        %vm2241 = vweird.f32 %v2005
        %vm2242 = vweird.f32 %v2235
        %vm2243 = vmor %vm2241, %vm2242
        %v2244 = vsel %vm2243, %v2235, %v2240
        %v2245 = vrsqrt.pop %v2006
        %v2246 = vmul.f32 %v2245, %v2006
        %v2247 = vmul.f32 %v2246, %v2245
        %v2248 = vmul.f32 0.5, %v2247
        %v2249 = vsub.f32 1.5, %v2248
        %v2250 = vmul.f32 %v2245, %v2249
        %vm2251 = vweird.f32 %v2006
        %vm2252 = vweird.f32 %v2245
        %vm2253 = vmor %vm2251, %vm2252
        %v2254 = vsel %vm2253, %v2245, %v2250
        %v2255 = vrsqrt.pop %v2007
        %v2256 = vmul.f32 %v2255, %v2007
        %v2257 = vmul.f32 %v2256, %v2255
        %v2258 = vmul.f32 0.5, %v2257
        %v2259 = vsub.f32 1.5, %v2258
        %v2260 = vmul.f32 %v2255, %v2259
        %vm2261 = vweird.f32 %v2007
        %vm2262 = vweird.f32 %v2255
        %vm2263 = vmor %vm2261, %vm2262
        %v2264 = vsel %vm2263, %v2255, %v2260
        %v2265 = vrsqrt.pop %v2008
        %v2266 = vmul.f32 %v2265, %v2008
        %v2267 = vmul.f32 %v2266, %v2265
        %v2268 = vmul.f32 0.5, %v2267
        %v2269 = vsub.f32 1.5, %v2268
        %v2270 = vmul.f32 %v2265, %v2269
        %vm2271 = vweird.f32 %v2008
        %vm2272 = vweird.f32 %v2265
        %vm2273 = vmor %vm2271, %vm2272
        %v2274 = vsel %vm2273, %v2265, %v2270
        %v2275 = vrsqrt.pop %v2009
        %v2276 = vmul.f32 %v2275, %v2009
        %v2277 = vmul.f32 %v2276, %v2275
        %v2278 = vmul.f32 0.5, %v2277
        %v2279 = vsub.f32 1.5, %v2278
        %v2280 = vmul.f32 %v2275, %v2279
        %vm2281 = vweird.f32 %v2009
        %vm2282 = vweird.f32 %v2275
        %vm2283 = vmor %vm2281, %vm2282
        %v2284 = vsel %vm2283, %v2275, %v2280
        %v2285 = vrsqrt.pop %v2010
        %v2286 = vmul.f32 %v2285, %v2010
        %v2287 = vmul.f32 %v2286, %v2285
        %v2288 = vmul.f32 0.5, %v2287
        %v2289 = vsub.f32 1.5, %v2288
        %v2290 = vmul.f32 %v2285, %v2289
        %vm2291 = vweird.f32 %v2010
        %vm2292 = vweird.f32 %v2285
        %vm2293 = vmor %vm2291, %vm2292
        %v2294 = vsel %vm2293, %v2285, %v2290
        %v2295 = vrsqrt.pop %v2011
        %v2296 = vmul.f32 %v2295, %v2011
        %v2297 = vmul.f32 %v2296, %v2295
        %v2298 = vmul.f32 0.5, %v2297
        %v2299 = vsub.f32 1.5, %v2298
        %v2300 = vmul.f32 %v2295, %v2299
        %vm2301 = vweird.f32 %v2011
        %vm2302 = vweird.f32 %v2295
        %vm2303 = vmor %vm2301, %vm2302
        %v2304 = vsel %vm2303, %v2295, %v2300
        %v2305 = vrsqrt.pop %v2012
        %v2306 = vmul.f32 %v2305, %v2012
        %v2307 = vmul.f32 %v2306, %v2305
        %v2308 = vmul.f32 0.5, %v2307
        %v2309 = vsub.f32 1.5, %v2308
        %v2310 = vmul.f32 %v2305, %v2309
        %vm2311 = vweird.f32 %v2012
        %vm2312 = vweird.f32 %v2305
        %vm2313 = vmor %vm2311, %vm2312
        %v2314 = vsel %vm2313, %v2305, %v2310
        %v2315 = vrsqrt.pop %v2013
        %v2316 = vmul.f32 %v2315, %v2013
        %v2317 = vmul.f32 %v2316, %v2315
        %v2318 = vmul.f32 0.5, %v2317
        %v2319 = vsub.f32 1.5, %v2318
        %v2320 = vmul.f32 %v2315, %v2319
        %vm2321 = vweird.f32 %v2013
        %vm2322 = vweird.f32 %v2315
        %vm2323 = vmor %vm2321, %vm2322
        %v2324 = vsel %vm2323, %v2315, %v2320
        %v2325 = vrsqrt.pop %v2014
        %v2326 = vmul.f32 %v2325, %v2014
        %v2327 = vmul.f32 %v2326, %v2325
        %v2328 = vmul.f32 0.5, %v2327
        %v2329 = vsub.f32 1.5, %v2328
        %v2330 = vmul.f32 %v2325, %v2329
        %vm2331 = vweird.f32 %v2014
        %vm2332 = vweird.f32 %v2325
        %vm2333 = vmor %vm2331, %vm2332
        %v2334 = vsel %vm2333, %v2325, %v2330
        %v2335 = vmul.f32 %v1951, %v2024
        %v2336 = vmul.f32 %v1952, %v2034
        %v2337 = vmul.f32 %v1953, %v2044
        %v2338 = vmul.f32 %v1954, %v2054
        %v2339 = vmul.f32 %v1955, %v2064
        %v2340 = vmul.f32 %v1956, %v2074
        %v2341 = vmul.f32 %v1957, %v2084
        %v2342 = vmul.f32 %v1958, %v2094
        %v2343 = vmul.f32 %v1959, %v2104
        %v2344 = vmul.f32 %v1960, %v2114
        %v2345 = vmul.f32 %v1961, %v2124
        %v2346 = vmul.f32 %v1962, %v2134
        %v2347 = vmul.f32 %v1963, %v2144
        %v2348 = vmul.f32 %v1964, %v2154
        %v2349 = vmul.f32 %v1965, %v2164
        %v2350 = vmul.f32 %v1966, %v2174
        %v2351 = vmul.f32 %v1967, %v2184
        %v2352 = vmul.f32 %v1968, %v2194
        %v2353 = vmul.f32 %v1969, %v2204
        %v2354 = vmul.f32 %v1970, %v2214
        %v2355 = vmul.f32 %v1971, %v2224
        %v2356 = vmul.f32 %v1972, %v2234
        %v2357 = vmul.f32 %v1973, %v2244
        %v2358 = vmul.f32 %v1974, %v2254
        %v2359 = vmul.f32 %v1975, %v2264
        %v2360 = vmul.f32 %v1976, %v2274
        %v2361 = vmul.f32 %v1977, %v2284
        %v2362 = vmul.f32 %v1978, %v2294
        %v2363 = vmul.f32 %v1979, %v2304
        %v2364 = vmul.f32 %v1980, %v2314
        %v2365 = vmul.f32 %v1981, %v2324
        %v2366 = vmul.f32 %v1982, %v2334
        %v2367 = vmax.f32 %v2335, 0.0
        %v2368 = vmax.f32 %v2336, 0.0
        %v2369 = vmax.f32 %v2337, 0.0
        %v2370 = vmax.f32 %v2338, 0.0
        %v2371 = vmax.f32 %v2339, 0.0
        %v2372 = vmax.f32 %v2340, 0.0
        %v2373 = vmax.f32 %v2341, 0.0
        %v2374 = vmax.f32 %v2342, 0.0
        %v2375 = vmax.f32 %v2343, 0.0
        %v2376 = vmax.f32 %v2344, 0.0
        %v2377 = vmax.f32 %v2345, 0.0
        %v2378 = vmax.f32 %v2346, 0.0
        %v2379 = vmax.f32 %v2347, 0.0
        %v2380 = vmax.f32 %v2348, 0.0
        %v2381 = vmax.f32 %v2349, 0.0
        %v2382 = vmax.f32 %v2350, 0.0
        %v2383 = vmax.f32 %v2351, 0.0
        %v2384 = vmax.f32 %v2352, 0.0
        %v2385 = vmax.f32 %v2353, 0.0
        %v2386 = vmax.f32 %v2354, 0.0
        %v2387 = vmax.f32 %v2355, 0.0
        %v2388 = vmax.f32 %v2356, 0.0
        %v2389 = vmax.f32 %v2357, 0.0
        %v2390 = vmax.f32 %v2358, 0.0
        %v2391 = vmax.f32 %v2359, 0.0
        %v2392 = vmax.f32 %v2360, 0.0
        %v2393 = vmax.f32 %v2361, 0.0
        %v2394 = vmax.f32 %v2362, 0.0
        %v2395 = vmax.f32 %v2363, 0.0
        %v2396 = vmax.f32 %v2364, 0.0
        %v2397 = vmax.f32 %v2365, 0.0
        %v2398 = vmax.f32 %v2366, 0.0
        %2431 = vrot.lane.b32.xlu0 %v2367, 32
        %v2432 = vpop.permute.xlu0 %2431
        %2433 = vrot.lane.b32.xlu0 %v2368, 32
        %v2434 = vpop.permute.xlu0 %2433
        %2435 = vrot.lane.b32.xlu0 %v2369, 32
        %v2436 = vpop.permute.xlu0 %2435
        %2437 = vrot.lane.b32.xlu0 %v2370, 32
        %v2438 = vpop.permute.xlu0 %2437
        %2439 = vrot.lane.b32.xlu0 %v2371, 32
        %v2440 = vpop.permute.xlu0 %2439
        %2441 = vrot.lane.b32.xlu0 %v2372, 32
        %v2442 = vpop.permute.xlu0 %2441
        %2443 = vrot.lane.b32.xlu0 %v2373, 32
        %v2444 = vpop.permute.xlu0 %2443
        %2445 = vrot.lane.b32.xlu0 %v2374, 32
        %v2446 = vpop.permute.xlu0 %2445
        %2447 = vrot.lane.b32.xlu0 %v2375, 32
        %v2448 = vpop.permute.xlu0 %2447
        %2449 = vrot.lane.b32.xlu0 %v2376, 32
        %v2450 = vpop.permute.xlu0 %2449
        %2451 = vrot.lane.b32.xlu0 %v2377, 32
        %v2452 = vpop.permute.xlu0 %2451
        %2453 = vrot.lane.b32.xlu0 %v2378, 32
        %v2454 = vpop.permute.xlu0 %2453
        %2455 = vrot.lane.b32.xlu0 %v2379, 32
        %v2456 = vpop.permute.xlu0 %2455
        %2457 = vrot.lane.b32.xlu0 %v2380, 32
        %v2458 = vpop.permute.xlu0 %2457
        %2459 = vrot.lane.b32.xlu0 %v2381, 32
        %v2460 = vpop.permute.xlu0 %2459
        %2461 = vrot.lane.b32.xlu0 %v2382, 32
        %v2462 = vpop.permute.xlu0 %2461
        %2463 = vrot.lane.b32.xlu0 %v2383, 32
        %v2464 = vpop.permute.xlu0 %2463
        %2465 = vrot.lane.b32.xlu0 %v2384, 32
        %v2466 = vpop.permute.xlu0 %2465
        %2467 = vrot.lane.b32.xlu0 %v2385, 32
        %v2468 = vpop.permute.xlu0 %2467
        %2469 = vrot.lane.b32.xlu0 %v2386, 32
        %v2470 = vpop.permute.xlu0 %2469
        %2471 = vrot.lane.b32.xlu0 %v2387, 32
        %v2472 = vpop.permute.xlu0 %2471
        %2473 = vrot.lane.b32.xlu0 %v2388, 32
        %v2474 = vpop.permute.xlu0 %2473
        %2475 = vrot.lane.b32.xlu0 %v2389, 32
        %v2476 = vpop.permute.xlu0 %2475
        %2477 = vrot.lane.b32.xlu0 %v2390, 32
        %v2478 = vpop.permute.xlu0 %2477
        %2479 = vrot.lane.b32.xlu0 %v2391, 32
        %v2480 = vpop.permute.xlu0 %2479
        %2481 = vrot.lane.b32.xlu0 %v2392, 32
        %v2482 = vpop.permute.xlu0 %2481
        %2483 = vrot.lane.b32.xlu0 %v2393, 32
        %v2484 = vpop.permute.xlu0 %2483
        %2485 = vrot.lane.b32.xlu0 %v2394, 32
        %v2486 = vpop.permute.xlu0 %2485
        %2487 = vrot.lane.b32.xlu0 %v2395, 32
        %v2488 = vpop.permute.xlu0 %2487
        %2489 = vrot.lane.b32.xlu0 %v2396, 32
        %v2490 = vpop.permute.xlu0 %2489
        %2491 = vrot.lane.b32.xlu0 %v2397, 32
        %v2492 = vpop.permute.xlu0 %2491
        %2493 = vrot.lane.b32.xlu0 %v2398, 32
        %v2494 = vpop.permute.xlu0 %2493
        %v2527 = vsel %vm493, %v1503, %v2432
        %v2528 = vsel %vm493, %v1504, %v2434
        %v2529 = vsel %vm493, %v1505, %v2436
        %v2530 = vsel %vm493, %v1506, %v2438
        %v2531 = vsel %vm493, %v1507, %v2440
        %v2532 = vsel %vm493, %v1508, %v2442
        %v2533 = vsel %vm493, %v1509, %v2444
        %v2534 = vsel %vm493, %v1510, %v2446
        %v2535 = vsel %vm493, %v1511, %v2448
        %v2536 = vsel %vm493, %v1512, %v2450
        %v2537 = vsel %vm493, %v1513, %v2452
        %v2538 = vsel %vm493, %v1514, %v2454
        %v2539 = vsel %vm493, %v1515, %v2456
        %v2540 = vsel %vm493, %v1516, %v2458
        %v2541 = vsel %vm493, %v1517, %v2460
        %v2542 = vsel %vm493, %v1518, %v2462
        %v2543 = vsel %vm493, %v1519, %v2464
        %v2544 = vsel %vm493, %v1520, %v2466
        %v2545 = vsel %vm493, %v1521, %v2468
        %v2546 = vsel %vm493, %v1522, %v2470
        %v2547 = vsel %vm493, %v1523, %v2472
        %v2548 = vsel %vm493, %v1524, %v2474
        %v2549 = vsel %vm493, %v1525, %v2476
        %v2550 = vsel %vm493, %v1526, %v2478
        %v2551 = vsel %vm493, %v1527, %v2480
        %v2552 = vsel %vm493, %v1528, %v2482
        %v2553 = vsel %vm493, %v1529, %v2484
        %v2554 = vsel %vm493, %v1530, %v2486
        %v2555 = vsel %vm493, %v1531, %v2488
        %v2556 = vsel %vm493, %v1532, %v2490
        %v2557 = vsel %vm493, %v1533, %v2492
        %v2558 = vsel %vm493, %v1534, %v2494
        %v2559 = vld [vmem:[%s5] sm:$0xff]
        %v2560 = vld [vmem:[%s5 + $0x8] sm:$0xff]
        %v2561 = vld [vmem:[%s5 + $0x10] sm:$0xff]
        %v2562 = vld [vmem:[%s5 + $0x18] sm:$0xff]
        %v2563 = vld [vmem:[%s5 + $0x20] sm:$0xff]
        %v2564 = vld [vmem:[%s5 + $0x28] sm:$0xff]
        %v2565 = vld [vmem:[%s5 + $0x30] sm:$0xff]
        %v2566 = vld [vmem:[%s5 + $0x38] sm:$0xff]
        %v2567 = vperm.slane %v454, 1
        %vm2568 = vcmask 523264
        %v2570 = vsel %vm2568, %v2527, 0
        %v2573 = vsel %vm2568, %v2528, 0
        %v2576 = vsel %vm2568, %v2529, 0
        %v2579 = vsel %vm2568, %v2530, 0
        %v2582 = vsel %vm2568, %v2531, 0
        %v2585 = vsel %vm2568, %v2532, 0
        %v2588 = vsel %vm2568, %v2533, 0
        %v2591 = vsel %vm2568, %v2534, 0
        %v2594 = vsel %vm2568, %v2535, 0
        %v2597 = vsel %vm2568, %v2536, 0
        %v2600 = vsel %vm2568, %v2537, 0
        %v2603 = vsel %vm2568, %v2538, 0
        %v2606 = vsel %vm2568, %v2539, 0
        %v2609 = vsel %vm2568, %v2540, 0
        %v2612 = vsel %vm2568, %v2541, 0
        %v2615 = vsel %vm2568, %v2542, 0
        %v2618 = vsel %vm2568, %v2543, 0
        %v2621 = vsel %vm2568, %v2544, 0
        %v2624 = vsel %vm2568, %v2545, 0
        %v2627 = vsel %vm2568, %v2546, 0
        %v2630 = vsel %vm2568, %v2547, 0
        %v2633 = vsel %vm2568, %v2548, 0
        %v2636 = vsel %vm2568, %v2549, 0
        %v2639 = vsel %vm2568, %v2550, 0
        %v2642 = vsel %vm2568, %v2551, 0
        %v2645 = vsel %vm2568, %v2552, 0
        %v2648 = vsel %vm2568, %v2553, 0
        %v2651 = vsel %vm2568, %v2554, 0
        %v2654 = vsel %vm2568, %v2555, 0
        %v2657 = vsel %vm2568, %v2556, 0
        %v2660 = vsel %vm2568, %v2557, 0
        %v2663 = vsel %vm2568, %v2558, 0
        %2665 = vmatpush.msra.mxu0 0.0
        %2666 = vmatpush.msra.mxu0 0.0
        %2667 = vmatpush.msra.mxu0 0.0
        %2668 = vmatpush.msra.mxu0 0.0
        %2669 = vmatpush.msra.mxu0 0.0
        %2670 = vmatpush.msra.mxu0 0.0
        %2671 = vmatpush.msra.mxu0 0.0
        %2672 = vmatpush.msra.mxu0 0.0
        %2673 = vmatpush.msra.mxu0 %v2566
        %2674 = vmatpush.msra.mxu0 %v2565
        %2675 = vmatpush.msra.mxu0 %v2564
        %2676 = vmatpush.msra.mxu0 %v2563
        %2677 = vmatpush.msra.mxu0 %v2562
        %2678 = vmatpush.msra.mxu0 %v2561
        %2679 = vmatpush.msra.mxu0 %v2560
        %2680 = vmatpush.msra.mxu0 %v2559
        %2681 = vmatmul.f32.gmra.mxu0 %v2570
        %v2682 = vpop.f32.mrf.mxu0
        %v2683 = vadd.f32 %v2567, %v2682
        %2684 = vmatmul.f32.gmra.mxu0 %v2573
        %v2685 = vpop.f32.mrf.mxu0
        %v2686 = vadd.f32 %v2567, %v2685
        %2687 = vmatmul.f32.gmra.mxu0 %v2576
        %v2688 = vpop.f32.mrf.mxu0
        %v2689 = vadd.f32 %v2567, %v2688
        %2690 = vmatmul.f32.gmra.mxu0 %v2579
        %v2691 = vpop.f32.mrf.mxu0
        %v2692 = vadd.f32 %v2567, %v2691
        %2693 = vmatmul.f32.gmra.mxu0 %v2582
        %v2694 = vpop.f32.mrf.mxu0
        %v2695 = vadd.f32 %v2567, %v2694
        %2696 = vmatmul.f32.gmra.mxu0 %v2585
        %v2697 = vpop.f32.mrf.mxu0
        %v2698 = vadd.f32 %v2567, %v2697
        %2699 = vmatmul.f32.gmra.mxu0 %v2588
        %v2700 = vpop.f32.mrf.mxu0
        %v2701 = vadd.f32 %v2567, %v2700
        %2702 = vmatmul.f32.gmra.mxu0 %v2591
        %v2703 = vpop.f32.mrf.mxu0
        %v2704 = vadd.f32 %v2567, %v2703
        %2705 = vmatmul.f32.gmra.mxu0 %v2594
        %v2706 = vpop.f32.mrf.mxu0
        %v2707 = vadd.f32 %v2567, %v2706
        %2708 = vmatmul.f32.gmra.mxu0 %v2597
        %v2709 = vpop.f32.mrf.mxu0
        %v2710 = vadd.f32 %v2567, %v2709
        %2711 = vmatmul.f32.gmra.mxu0 %v2600
        %v2712 = vpop.f32.mrf.mxu0
        %v2713 = vadd.f32 %v2567, %v2712
        %2714 = vmatmul.f32.gmra.mxu0 %v2603
        %v2715 = vpop.f32.mrf.mxu0
        %v2716 = vadd.f32 %v2567, %v2715
        %2717 = vmatmul.f32.gmra.mxu0 %v2606
        %v2718 = vpop.f32.mrf.mxu0
        %v2719 = vadd.f32 %v2567, %v2718
        %2720 = vmatmul.f32.gmra.mxu0 %v2609
        %v2721 = vpop.f32.mrf.mxu0
        %v2722 = vadd.f32 %v2567, %v2721
        %2723 = vmatmul.f32.gmra.mxu0 %v2612
        %v2724 = vpop.f32.mrf.mxu0
        %v2725 = vadd.f32 %v2567, %v2724
        %2726 = vmatmul.f32.gmra.mxu0 %v2615
        %v2727 = vpop.f32.mrf.mxu0
        %v2728 = vadd.f32 %v2567, %v2727
        %2729 = vmatmul.f32.gmra.mxu0 %v2618
        %v2730 = vpop.f32.mrf.mxu0
        %v2731 = vadd.f32 %v2567, %v2730
        %2732 = vmatmul.f32.gmra.mxu0 %v2621
        %v2733 = vpop.f32.mrf.mxu0
        %v2734 = vadd.f32 %v2567, %v2733
        %2735 = vmatmul.f32.gmra.mxu0 %v2624
        %v2736 = vpop.f32.mrf.mxu0
        %v2737 = vadd.f32 %v2567, %v2736
        %2738 = vmatmul.f32.gmra.mxu0 %v2627
        %v2739 = vpop.f32.mrf.mxu0
        %v2740 = vadd.f32 %v2567, %v2739
        %2741 = vmatmul.f32.gmra.mxu0 %v2630
        %v2742 = vpop.f32.mrf.mxu0
        %v2743 = vadd.f32 %v2567, %v2742
        %2744 = vmatmul.f32.gmra.mxu0 %v2633
        %v2745 = vpop.f32.mrf.mxu0
        %v2746 = vadd.f32 %v2567, %v2745
        %2747 = vmatmul.f32.gmra.mxu0 %v2636
        %v2748 = vpop.f32.mrf.mxu0
        %v2749 = vadd.f32 %v2567, %v2748
        %2750 = vmatmul.f32.gmra.mxu0 %v2639
        %v2751 = vpop.f32.mrf.mxu0
        %v2752 = vadd.f32 %v2567, %v2751
        %2753 = vmatmul.f32.gmra.mxu0 %v2642
        %v2754 = vpop.f32.mrf.mxu0
        %v2755 = vadd.f32 %v2567, %v2754
        %2756 = vmatmul.f32.gmra.mxu0 %v2645
        %v2757 = vpop.f32.mrf.mxu0
        %v2758 = vadd.f32 %v2567, %v2757
        %2759 = vmatmul.f32.gmra.mxu0 %v2648
        %v2760 = vpop.f32.mrf.mxu0
        %v2761 = vadd.f32 %v2567, %v2760
        %2762 = vmatmul.f32.gmra.mxu0 %v2651
        %v2763 = vpop.f32.mrf.mxu0
        %v2764 = vadd.f32 %v2567, %v2763
        %2765 = vmatmul.f32.gmra.mxu0 %v2654
        %v2766 = vpop.f32.mrf.mxu0
        %v2767 = vadd.f32 %v2567, %v2766
        %2768 = vmatmul.f32.gmra.mxu0 %v2657
        %v2769 = vpop.f32.mrf.mxu0
        %v2770 = vadd.f32 %v2567, %v2769
        %2771 = vmatmul.f32.gmra.mxu0 %v2660
        %v2772 = vpop.f32.mrf.mxu0
        %v2773 = vadd.f32 %v2567, %v2772
        %2774 = vmatmul.f32.gmra.mxu0 %v2663
        %v2775 = vpop.f32.mrf.mxu0
        %v2776 = vadd.f32 %v2567, %v2775
        %2777 = vdwg.mxu0
        %v2778 = vld [vmem:[%s6] sm:$0xff]
        %v2779 = vld [vmem:[%s6 + $0x8] sm:$0xff]
        %v2780 = vld [vmem:[%s6 + $0x10] sm:$0xff]
        %v2781 = vld [vmem:[%s6 + $0x18] sm:$0xff]
        %v2783 = vsel %vm493, %v2683, 0
        %v2786 = vsel %vm493, %v2686, 0
        %v2789 = vsel %vm493, %v2689, 0
        %v2792 = vsel %vm493, %v2692, 0
        %v2795 = vsel %vm493, %v2695, 0
        %v2798 = vsel %vm493, %v2698, 0
        %v2801 = vsel %vm493, %v2701, 0
        %v2804 = vsel %vm493, %v2704, 0
        %v2807 = vsel %vm493, %v2707, 0
        %v2810 = vsel %vm493, %v2710, 0
        %v2813 = vsel %vm493, %v2713, 0
        %v2816 = vsel %vm493, %v2716, 0
        %v2819 = vsel %vm493, %v2719, 0
        %v2822 = vsel %vm493, %v2722, 0
        %v2825 = vsel %vm493, %v2725, 0
        %v2828 = vsel %vm493, %v2728, 0
        %v2831 = vsel %vm493, %v2731, 0
        %v2834 = vsel %vm493, %v2734, 0
        %v2837 = vsel %vm493, %v2737, 0
        %v2840 = vsel %vm493, %v2740, 0
        %v2843 = vsel %vm493, %v2743, 0
        %v2846 = vsel %vm493, %v2746, 0
        %v2849 = vsel %vm493, %v2749, 0
        %v2852 = vsel %vm493, %v2752, 0
        %v2855 = vsel %vm493, %v2755, 0
        %v2858 = vsel %vm493, %v2758, 0
        %v2861 = vsel %vm493, %v2761, 0
        %v2864 = vsel %vm493, %v2764, 0
        %v2867 = vsel %vm493, %v2767, 0
        %v2870 = vsel %vm493, %v2770, 0
        %v2873 = vsel %vm493, %v2773, 0
        %v2876 = vsel %vm493, %v2776, 0
        %2878 = vmatpush.msra.mxu0 0.0
        %2879 = vmatpush.msra.mxu0 0.0
        %2880 = vmatpush.msra.mxu0 0.0
        %2881 = vmatpush.msra.mxu0 0.0
        %2882 = vmatpush.msra.mxu0 0.0
        %2883 = vmatpush.msra.mxu0 0.0
        %2884 = vmatpush.msra.mxu0 0.0
        %2885 = vmatpush.msra.mxu0 0.0
        %2886 = vmatpush.msra.mxu0 0.0
        %2887 = vmatpush.msra.mxu0 0.0
        %2888 = vmatpush.msra.mxu0 0.0
        %2889 = vmatpush.msra.mxu0 0.0
        %2890 = vmatpush.msra.mxu0 %v2781
        %2891 = vmatpush.msra.mxu0 %v2780
        %2892 = vmatpush.msra.mxu0 %v2779
        %2893 = vmatpush.msra.mxu0 %v2778
        %2894 = vmatmul.f32.gmra.mxu0 %v2783
        %v2895 = vpop.f32.mrf.mxu0
        %v2896 = vadd.f32 0.0, %v2895
        %2897 = vmatmul.f32.gmra.mxu0 %v2786
        %v2898 = vpop.f32.mrf.mxu0
        %v2899 = vadd.f32 0.0, %v2898
        %2900 = vmatmul.f32.gmra.mxu0 %v2789
        %v2901 = vpop.f32.mrf.mxu0
        %v2902 = vadd.f32 0.0, %v2901
        %2903 = vmatmul.f32.gmra.mxu0 %v2792
        %v2904 = vpop.f32.mrf.mxu0
        %v2905 = vadd.f32 0.0, %v2904
        %2906 = vmatmul.f32.gmra.mxu0 %v2795
        %v2907 = vpop.f32.mrf.mxu0
        %v2908 = vadd.f32 0.0, %v2907
        %2909 = vmatmul.f32.gmra.mxu0 %v2798
        %v2910 = vpop.f32.mrf.mxu0
        %v2911 = vadd.f32 0.0, %v2910
        %2912 = vmatmul.f32.gmra.mxu0 %v2801
        %v2913 = vpop.f32.mrf.mxu0
        %v2914 = vadd.f32 0.0, %v2913
        %2915 = vmatmul.f32.gmra.mxu0 %v2804
        %v2916 = vpop.f32.mrf.mxu0
        %v2917 = vadd.f32 0.0, %v2916
        %2918 = vmatmul.f32.gmra.mxu0 %v2807
        %v2919 = vpop.f32.mrf.mxu0
        %v2920 = vadd.f32 0.0, %v2919
        %2921 = vmatmul.f32.gmra.mxu0 %v2810
        %v2922 = vpop.f32.mrf.mxu0
        %v2923 = vadd.f32 0.0, %v2922
        %2924 = vmatmul.f32.gmra.mxu0 %v2813
        %v2925 = vpop.f32.mrf.mxu0
        %v2926 = vadd.f32 0.0, %v2925
        %2927 = vmatmul.f32.gmra.mxu0 %v2816
        %v2928 = vpop.f32.mrf.mxu0
        %v2929 = vadd.f32 0.0, %v2928
        %2930 = vmatmul.f32.gmra.mxu0 %v2819
        %v2931 = vpop.f32.mrf.mxu0
        %v2932 = vadd.f32 0.0, %v2931
        %2933 = vmatmul.f32.gmra.mxu0 %v2822
        %v2934 = vpop.f32.mrf.mxu0
        %v2935 = vadd.f32 0.0, %v2934
        %2936 = vmatmul.f32.gmra.mxu0 %v2825
        %v2937 = vpop.f32.mrf.mxu0
        %v2938 = vadd.f32 0.0, %v2937
        %2939 = vmatmul.f32.gmra.mxu0 %v2828
        %v2940 = vpop.f32.mrf.mxu0
        %v2941 = vadd.f32 0.0, %v2940
        %2942 = vmatmul.f32.gmra.mxu0 %v2831
        %v2943 = vpop.f32.mrf.mxu0
        %v2944 = vadd.f32 0.0, %v2943
        %2945 = vmatmul.f32.gmra.mxu0 %v2834
        %v2946 = vpop.f32.mrf.mxu0
        %v2947 = vadd.f32 0.0, %v2946
        %2948 = vmatmul.f32.gmra.mxu0 %v2837
        %v2949 = vpop.f32.mrf.mxu0
        %v2950 = vadd.f32 0.0, %v2949
        %2951 = vmatmul.f32.gmra.mxu0 %v2840
        %v2952 = vpop.f32.mrf.mxu0
        %v2953 = vadd.f32 0.0, %v2952
        %2954 = vmatmul.f32.gmra.mxu0 %v2843
        %v2955 = vpop.f32.mrf.mxu0
        %v2956 = vadd.f32 0.0, %v2955
        %2957 = vmatmul.f32.gmra.mxu0 %v2846
        %v2958 = vpop.f32.mrf.mxu0
        %v2959 = vadd.f32 0.0, %v2958
        %2960 = vmatmul.f32.gmra.mxu0 %v2849
        %v2961 = vpop.f32.mrf.mxu0
        %v2962 = vadd.f32 0.0, %v2961
        %2963 = vmatmul.f32.gmra.mxu0 %v2852
        %v2964 = vpop.f32.mrf.mxu0
        %v2965 = vadd.f32 0.0, %v2964
        %2966 = vmatmul.f32.gmra.mxu0 %v2855
        %v2967 = vpop.f32.mrf.mxu0
        %v2968 = vadd.f32 0.0, %v2967
        %2969 = vmatmul.f32.gmra.mxu0 %v2858
        %v2970 = vpop.f32.mrf.mxu0
        %v2971 = vadd.f32 0.0, %v2970
        %2972 = vmatmul.f32.gmra.mxu0 %v2861
        %v2973 = vpop.f32.mrf.mxu0
        %v2974 = vadd.f32 0.0, %v2973
        %2975 = vmatmul.f32.gmra.mxu0 %v2864
        %v2976 = vpop.f32.mrf.mxu0
        %v2977 = vadd.f32 0.0, %v2976
        %2978 = vmatmul.f32.gmra.mxu0 %v2867
        %v2979 = vpop.f32.mrf.mxu0
        %v2980 = vadd.f32 0.0, %v2979
        %2981 = vmatmul.f32.gmra.mxu0 %v2870
        %v2982 = vpop.f32.mrf.mxu0
        %v2983 = vadd.f32 0.0, %v2982
        %2984 = vmatmul.f32.gmra.mxu0 %v2873
        %v2985 = vpop.f32.mrf.mxu0
        %v2986 = vadd.f32 0.0, %v2985
        %2987 = vmatmul.f32.gmra.mxu0 %v2876
        %v2988 = vpop.f32.mrf.mxu0
        %v2989 = vadd.f32 0.0, %v2988
        %2990 = vdwg.mxu0
        %v2991 = vperm.slane %v454, 2
        %v2992 = vadd.f32 %v2896, %v2991
        %v2993 = vadd.f32 %v2899, %v2991
        %v2994 = vadd.f32 %v2902, %v2991
        %v2995 = vadd.f32 %v2905, %v2991
        %v2996 = vadd.f32 %v2908, %v2991
        %v2997 = vadd.f32 %v2911, %v2991
        %v2998 = vadd.f32 %v2914, %v2991
        %v2999 = vadd.f32 %v2917, %v2991
        %v3000 = vadd.f32 %v2920, %v2991
        %v3001 = vadd.f32 %v2923, %v2991
        %v3002 = vadd.f32 %v2926, %v2991
        %v3003 = vadd.f32 %v2929, %v2991
        %v3004 = vadd.f32 %v2932, %v2991
        %v3005 = vadd.f32 %v2935, %v2991
        %v3006 = vadd.f32 %v2938, %v2991
        %v3007 = vadd.f32 %v2941, %v2991
        %v3008 = vadd.f32 %v2944, %v2991
        %v3009 = vadd.f32 %v2947, %v2991
        %v3010 = vadd.f32 %v2950, %v2991
        %v3011 = vadd.f32 %v2953, %v2991
        %v3012 = vadd.f32 %v2956, %v2991
        %v3013 = vadd.f32 %v2959, %v2991
        %v3014 = vadd.f32 %v2962, %v2991
        %v3015 = vadd.f32 %v2965, %v2991
        %v3016 = vadd.f32 %v2968, %v2991
        %v3017 = vadd.f32 %v2971, %v2991
        %v3018 = vadd.f32 %v2974, %v2991
        %v3019 = vadd.f32 %v2977, %v2991
        %v3020 = vadd.f32 %v2980, %v2991
        %v3021 = vadd.f32 %v2983, %v2991
        %v3022 = vadd.f32 %v2986, %v2991
        %v3023 = vadd.f32 %v2989, %v2991
        %v3024 = vperm.slane %v454, 3
        %3026 = vrot.lane.b32.xlu0 %v3024, 32
        %v3027 = vpop.permute.xlu0 %3026
        %v3029 = vadd.f32 %v2896, %v3027
        %v3030 = vadd.f32 %v2899, %v3027
        %v3031 = vadd.f32 %v2902, %v3027
        %v3032 = vadd.f32 %v2905, %v3027
        %v3033 = vadd.f32 %v2908, %v3027
        %v3034 = vadd.f32 %v2911, %v3027
        %v3035 = vadd.f32 %v2914, %v3027
        %v3036 = vadd.f32 %v2917, %v3027
        %v3037 = vadd.f32 %v2920, %v3027
        %v3038 = vadd.f32 %v2923, %v3027
        %v3039 = vadd.f32 %v2926, %v3027
        %v3040 = vadd.f32 %v2929, %v3027
        %v3041 = vadd.f32 %v2932, %v3027
        %v3042 = vadd.f32 %v2935, %v3027
        %v3043 = vadd.f32 %v2938, %v3027
        %v3044 = vadd.f32 %v2941, %v3027
        %v3045 = vadd.f32 %v2944, %v3027
        %v3046 = vadd.f32 %v2947, %v3027
        %v3047 = vadd.f32 %v2950, %v3027
        %v3048 = vadd.f32 %v2953, %v3027
        %v3049 = vadd.f32 %v2956, %v3027
        %v3050 = vadd.f32 %v2959, %v3027
        %v3051 = vadd.f32 %v2962, %v3027
        %v3052 = vadd.f32 %v2965, %v3027
        %v3053 = vadd.f32 %v2968, %v3027
        %v3054 = vadd.f32 %v2971, %v3027
        %v3055 = vadd.f32 %v2974, %v3027
        %v3056 = vadd.f32 %v2977, %v3027
        %v3057 = vadd.f32 %v2980, %v3027
        %v3058 = vadd.f32 %v2983, %v3027
        %v3059 = vadd.f32 %v2986, %v3027
        %v3060 = vadd.f32 %v2989, %v3027
        %v3061 = vperm.slane %v454, 4
        %3063 = vrot.lane.b32.xlu0 %v3061, 64
        %v3064 = vpop.permute.xlu0 %3063
        %v3066 = vadd.f32 %v2896, %v3064
        %v3067 = vadd.f32 %v2899, %v3064
        %v3068 = vadd.f32 %v2902, %v3064
        %v3069 = vadd.f32 %v2905, %v3064
        %v3070 = vadd.f32 %v2908, %v3064
        %v3071 = vadd.f32 %v2911, %v3064
        %v3072 = vadd.f32 %v2914, %v3064
        %v3073 = vadd.f32 %v2917, %v3064
        %v3074 = vadd.f32 %v2920, %v3064
        %v3075 = vadd.f32 %v2923, %v3064
        %v3076 = vadd.f32 %v2926, %v3064
        %v3077 = vadd.f32 %v2929, %v3064
        %v3078 = vadd.f32 %v2932, %v3064
        %v3079 = vadd.f32 %v2935, %v3064
        %v3080 = vadd.f32 %v2938, %v3064
        %v3081 = vadd.f32 %v2941, %v3064
        %v3082 = vadd.f32 %v2944, %v3064
        %v3083 = vadd.f32 %v2947, %v3064
        %v3084 = vadd.f32 %v2950, %v3064
        %v3085 = vadd.f32 %v2953, %v3064
        %v3086 = vadd.f32 %v2956, %v3064
        %v3087 = vadd.f32 %v2959, %v3064
        %v3088 = vadd.f32 %v2962, %v3064
        %v3089 = vadd.f32 %v2965, %v3064
        %v3090 = vadd.f32 %v2968, %v3064
        %v3091 = vadd.f32 %v2971, %v3064
        %v3092 = vadd.f32 %v2974, %v3064
        %v3093 = vadd.f32 %v2977, %v3064
        %v3094 = vadd.f32 %v2980, %v3064
        %v3095 = vadd.f32 %v2983, %v3064
        %v3096 = vadd.f32 %v2986, %v3064
        %v3097 = vadd.f32 %v2989, %v3064
        %3130 = vrot.lane.b32.xlu0 %v2992, 112
        %v3131 = vpop.permute.xlu0 %3130
        %3132 = vrot.lane.b32.xlu0 %v2993, 112
        %v3133 = vpop.permute.xlu0 %3132
        %3134 = vrot.lane.b32.xlu0 %v2994, 112
        %v3135 = vpop.permute.xlu0 %3134
        %3136 = vrot.lane.b32.xlu0 %v2995, 112
        %v3137 = vpop.permute.xlu0 %3136
        %3138 = vrot.lane.b32.xlu0 %v2996, 112
        %v3139 = vpop.permute.xlu0 %3138
        %3140 = vrot.lane.b32.xlu0 %v2997, 112
        %v3141 = vpop.permute.xlu0 %3140
        %3142 = vrot.lane.b32.xlu0 %v2998, 112
        %v3143 = vpop.permute.xlu0 %3142
        %3144 = vrot.lane.b32.xlu0 %v2999, 112
        %v3145 = vpop.permute.xlu0 %3144
        %3146 = vrot.lane.b32.xlu0 %v3000, 112
        %v3147 = vpop.permute.xlu0 %3146
        %3148 = vrot.lane.b32.xlu0 %v3001, 112
        %v3149 = vpop.permute.xlu0 %3148
        %3150 = vrot.lane.b32.xlu0 %v3002, 112
        %v3151 = vpop.permute.xlu0 %3150
        %3152 = vrot.lane.b32.xlu0 %v3003, 112
        %v3153 = vpop.permute.xlu0 %3152
        %3154 = vrot.lane.b32.xlu0 %v3004, 112
        %v3155 = vpop.permute.xlu0 %3154
        %3156 = vrot.lane.b32.xlu0 %v3005, 112
        %v3157 = vpop.permute.xlu0 %3156
        %3158 = vrot.lane.b32.xlu0 %v3006, 112
        %v3159 = vpop.permute.xlu0 %3158
        %3160 = vrot.lane.b32.xlu0 %v3007, 112
        %v3161 = vpop.permute.xlu0 %3160
        %3162 = vrot.lane.b32.xlu0 %v3008, 112
        %v3163 = vpop.permute.xlu0 %3162
        %3164 = vrot.lane.b32.xlu0 %v3009, 112
        %v3165 = vpop.permute.xlu0 %3164
        %3166 = vrot.lane.b32.xlu0 %v3010, 112
        %v3167 = vpop.permute.xlu0 %3166
        %3168 = vrot.lane.b32.xlu0 %v3011, 112
        %v3169 = vpop.permute.xlu0 %3168
        %3170 = vrot.lane.b32.xlu0 %v3012, 112
        %v3171 = vpop.permute.xlu0 %3170
        %3172 = vrot.lane.b32.xlu0 %v3013, 112
        %v3173 = vpop.permute.xlu0 %3172
        %3174 = vrot.lane.b32.xlu0 %v3014, 112
        %v3175 = vpop.permute.xlu0 %3174
        %3176 = vrot.lane.b32.xlu0 %v3015, 112
        %v3177 = vpop.permute.xlu0 %3176
        %3178 = vrot.lane.b32.xlu0 %v3016, 112
        %v3179 = vpop.permute.xlu0 %3178
        %3180 = vrot.lane.b32.xlu0 %v3017, 112
        %v3181 = vpop.permute.xlu0 %3180
        %3182 = vrot.lane.b32.xlu0 %v3018, 112
        %v3183 = vpop.permute.xlu0 %3182
        %3184 = vrot.lane.b32.xlu0 %v3019, 112
        %v3185 = vpop.permute.xlu0 %3184
        %3186 = vrot.lane.b32.xlu0 %v3020, 112
        %v3187 = vpop.permute.xlu0 %3186
        %3188 = vrot.lane.b32.xlu0 %v3021, 112
        %v3189 = vpop.permute.xlu0 %3188
        %3190 = vrot.lane.b32.xlu0 %v3022, 112
        %v3191 = vpop.permute.xlu0 %3190
        %3192 = vrot.lane.b32.xlu0 %v3023, 112
        %v3193 = vpop.permute.xlu0 %3192
        %3226 = vrot.lane.b32.xlu0 %v3029, 112
        %v3227 = vpop.permute.xlu0 %3226
        %3228 = vrot.lane.b32.xlu0 %v3030, 112
        %v3229 = vpop.permute.xlu0 %3228
        %3230 = vrot.lane.b32.xlu0 %v3031, 112
        %v3231 = vpop.permute.xlu0 %3230
        %3232 = vrot.lane.b32.xlu0 %v3032, 112
        %v3233 = vpop.permute.xlu0 %3232
        %3234 = vrot.lane.b32.xlu0 %v3033, 112
        %v3235 = vpop.permute.xlu0 %3234
        %3236 = vrot.lane.b32.xlu0 %v3034, 112
        %v3237 = vpop.permute.xlu0 %3236
        %3238 = vrot.lane.b32.xlu0 %v3035, 112
        %v3239 = vpop.permute.xlu0 %3238
        %3240 = vrot.lane.b32.xlu0 %v3036, 112
        %v3241 = vpop.permute.xlu0 %3240
        %3242 = vrot.lane.b32.xlu0 %v3037, 112
        %v3243 = vpop.permute.xlu0 %3242
        %3244 = vrot.lane.b32.xlu0 %v3038, 112
        %v3245 = vpop.permute.xlu0 %3244
        %3246 = vrot.lane.b32.xlu0 %v3039, 112
        %v3247 = vpop.permute.xlu0 %3246
        %3248 = vrot.lane.b32.xlu0 %v3040, 112
        %v3249 = vpop.permute.xlu0 %3248
        %3250 = vrot.lane.b32.xlu0 %v3041, 112
        %v3251 = vpop.permute.xlu0 %3250
        %3252 = vrot.lane.b32.xlu0 %v3042, 112
        %v3253 = vpop.permute.xlu0 %3252
        %3254 = vrot.lane.b32.xlu0 %v3043, 112
        %v3255 = vpop.permute.xlu0 %3254
        %3256 = vrot.lane.b32.xlu0 %v3044, 112
        %v3257 = vpop.permute.xlu0 %3256
        %3258 = vrot.lane.b32.xlu0 %v3045, 112
        %v3259 = vpop.permute.xlu0 %3258
        %3260 = vrot.lane.b32.xlu0 %v3046, 112
        %v3261 = vpop.permute.xlu0 %3260
        %3262 = vrot.lane.b32.xlu0 %v3047, 112
        %v3263 = vpop.permute.xlu0 %3262
        %3264 = vrot.lane.b32.xlu0 %v3048, 112
        %v3265 = vpop.permute.xlu0 %3264
        %3266 = vrot.lane.b32.xlu0 %v3049, 112
        %v3267 = vpop.permute.xlu0 %3266
        %3268 = vrot.lane.b32.xlu0 %v3050, 112
        %v3269 = vpop.permute.xlu0 %3268
        %3270 = vrot.lane.b32.xlu0 %v3051, 112
        %v3271 = vpop.permute.xlu0 %3270
        %3272 = vrot.lane.b32.xlu0 %v3052, 112
        %v3273 = vpop.permute.xlu0 %3272
        %3274 = vrot.lane.b32.xlu0 %v3053, 112
        %v3275 = vpop.permute.xlu0 %3274
        %3276 = vrot.lane.b32.xlu0 %v3054, 112
        %v3277 = vpop.permute.xlu0 %3276
        %3278 = vrot.lane.b32.xlu0 %v3055, 112
        %v3279 = vpop.permute.xlu0 %3278
        %3280 = vrot.lane.b32.xlu0 %v3056, 112
        %v3281 = vpop.permute.xlu0 %3280
        %3282 = vrot.lane.b32.xlu0 %v3057, 112
        %v3283 = vpop.permute.xlu0 %3282
        %3284 = vrot.lane.b32.xlu0 %v3058, 112
        %v3285 = vpop.permute.xlu0 %3284
        %3286 = vrot.lane.b32.xlu0 %v3059, 112
        %v3287 = vpop.permute.xlu0 %3286
        %3288 = vrot.lane.b32.xlu0 %v3060, 112
        %v3289 = vpop.permute.xlu0 %3288
        %3322 = vrot.lane.b32.xlu0 %v3066, 112
        %v3323 = vpop.permute.xlu0 %3322
        %3324 = vrot.lane.b32.xlu0 %v3067, 112
        %v3325 = vpop.permute.xlu0 %3324
        %3326 = vrot.lane.b32.xlu0 %v3068, 112
        %v3327 = vpop.permute.xlu0 %3326
        %3328 = vrot.lane.b32.xlu0 %v3069, 112
        %v3329 = vpop.permute.xlu0 %3328
        %3330 = vrot.lane.b32.xlu0 %v3070, 112
        %v3331 = vpop.permute.xlu0 %3330
        %3332 = vrot.lane.b32.xlu0 %v3071, 112
        %v3333 = vpop.permute.xlu0 %3332
        %3334 = vrot.lane.b32.xlu0 %v3072, 112
        %v3335 = vpop.permute.xlu0 %3334
        %3336 = vrot.lane.b32.xlu0 %v3073, 112
        %v3337 = vpop.permute.xlu0 %3336
        %3338 = vrot.lane.b32.xlu0 %v3074, 112
        %v3339 = vpop.permute.xlu0 %3338
        %3340 = vrot.lane.b32.xlu0 %v3075, 112
        %v3341 = vpop.permute.xlu0 %3340
        %3342 = vrot.lane.b32.xlu0 %v3076, 112
        %v3343 = vpop.permute.xlu0 %3342
        %3344 = vrot.lane.b32.xlu0 %v3077, 112
        %v3345 = vpop.permute.xlu0 %3344
        %3346 = vrot.lane.b32.xlu0 %v3078, 112
        %v3347 = vpop.permute.xlu0 %3346
        %3348 = vrot.lane.b32.xlu0 %v3079, 112
        %v3349 = vpop.permute.xlu0 %3348
        %3350 = vrot.lane.b32.xlu0 %v3080, 112
        %v3351 = vpop.permute.xlu0 %3350
        %3352 = vrot.lane.b32.xlu0 %v3081, 112
        %v3353 = vpop.permute.xlu0 %3352
        %3354 = vrot.lane.b32.xlu0 %v3082, 112
        %v3355 = vpop.permute.xlu0 %3354
        %3356 = vrot.lane.b32.xlu0 %v3083, 112
        %v3357 = vpop.permute.xlu0 %3356
        %3358 = vrot.lane.b32.xlu0 %v3084, 112
        %v3359 = vpop.permute.xlu0 %3358
        %3360 = vrot.lane.b32.xlu0 %v3085, 112
        %v3361 = vpop.permute.xlu0 %3360
        %3362 = vrot.lane.b32.xlu0 %v3086, 112
        %v3363 = vpop.permute.xlu0 %3362
        %3364 = vrot.lane.b32.xlu0 %v3087, 112
        %v3365 = vpop.permute.xlu0 %3364
        %3366 = vrot.lane.b32.xlu0 %v3088, 112
        %v3367 = vpop.permute.xlu0 %3366
        %3368 = vrot.lane.b32.xlu0 %v3089, 112
        %v3369 = vpop.permute.xlu0 %3368
        %3370 = vrot.lane.b32.xlu0 %v3090, 112
        %v3371 = vpop.permute.xlu0 %3370
        %3372 = vrot.lane.b32.xlu0 %v3091, 112
        %v3373 = vpop.permute.xlu0 %3372
        %3374 = vrot.lane.b32.xlu0 %v3092, 112
        %v3375 = vpop.permute.xlu0 %3374
        %3376 = vrot.lane.b32.xlu0 %v3093, 112
        %v3377 = vpop.permute.xlu0 %3376
        %3378 = vrot.lane.b32.xlu0 %v3094, 112
        %v3379 = vpop.permute.xlu0 %3378
        %3380 = vrot.lane.b32.xlu0 %v3095, 112
        %v3381 = vpop.permute.xlu0 %3380
        %3382 = vrot.lane.b32.xlu0 %v3096, 112
        %v3383 = vpop.permute.xlu0 %3382
        %3384 = vrot.lane.b32.xlu0 %v3097, 112
        %v3385 = vpop.permute.xlu0 %3384
        %v3386 = vlaneseq
        %v3387 = vand.u32 %v3386, 127
        %vm3388 = vcmp.lt.s32.totalorder %v3387, 10
        %3389 = vrot.lane.b32.xlu0 %v3029, 96
        %v3390 = vpop.permute.xlu0 %3389
        %3391 = vrot.lane.b32.xlu0 %v3030, 96
        %v3392 = vpop.permute.xlu0 %3391
        %vm3393 = vcmask 130048
        %v3394 = vsel %vm3393, %v2992, 0
        %v3396 = vsel %vm3393, %v2993, 0
        %v3398 = vsel %vm3393, %v3390, 0
        %v3400 = vsel %vm3393, %v3392, 0
        %3402 = vmatpush.xpose.msra.mxu0 0.0
        %3403 = vmatpush.xpose.msra.mxu0 0.0
        %3404 = vmatpush.xpose.msra.mxu0 0.0
        %3405 = vmatpush.xpose.msra.mxu0 0.0
        %3406 = vmatpush.xpose.msra.mxu0 0.0
        %3407 = vmatpush.xpose.msra.mxu0 0.0
        %3408 = vmatpush.xpose.msra.mxu0 0.0
        %3409 = vmatpush.xpose.msra.mxu0 0.0
        %3410 = vmatpush.xpose.msra.mxu0 0.0
        %3411 = vmatpush.xpose.msra.mxu0 0.0
        %3412 = vmatpush.xpose.msra.mxu0 0.0
        %3413 = vmatpush.xpose.msra.mxu0 0.0
        %3414 = vmatpush.xpose.msra.mxu0 0.0
        %3415 = vmatpush.xpose.msra.mxu0 0.0
        %3416 = vmatpush.xpose.msra.mxu0 %v3400
        %3417 = vmatpush.xpose.msra.mxu0 %v3398
        %3418 = vmatmul.f32.gmra.mxu0 %v3394
        %v3419 = vpop.f32.mrf.mxu0
        %v3420 = vadd.f32 0.0, %v3419
        %3421 = vmatmul.f32.gmra.mxu0 %v3396
        %v3422 = vpop.f32.mrf.mxu0
        %v3423 = vadd.f32 0.0, %v3422
        %3424 = vdwg.mxu0
        %3425 = vrot.lane.b32.xlu0 %v3031, 96
        %v3426 = vpop.permute.xlu0 %3425
        %3427 = vrot.lane.b32.xlu0 %v3032, 96
        %v3428 = vpop.permute.xlu0 %3427
        %v3429 = vsel %vm3393, %v2994, 0
        %v3431 = vsel %vm3393, %v2995, 0
        %v3433 = vsel %vm3393, %v3426, 0
        %v3435 = vsel %vm3393, %v3428, 0
        %3437 = vmatpush.xpose.msra.mxu0 0.0
        %3438 = vmatpush.xpose.msra.mxu0 0.0
        %3439 = vmatpush.xpose.msra.mxu0 0.0
        %3440 = vmatpush.xpose.msra.mxu0 0.0
        %3441 = vmatpush.xpose.msra.mxu0 0.0
        %3442 = vmatpush.xpose.msra.mxu0 0.0
        %3443 = vmatpush.xpose.msra.mxu0 0.0
        %3444 = vmatpush.xpose.msra.mxu0 0.0
        %3445 = vmatpush.xpose.msra.mxu0 0.0
        %3446 = vmatpush.xpose.msra.mxu0 0.0
        %3447 = vmatpush.xpose.msra.mxu0 0.0
        %3448 = vmatpush.xpose.msra.mxu0 0.0
        %3449 = vmatpush.xpose.msra.mxu0 0.0
        %3450 = vmatpush.xpose.msra.mxu0 0.0
        %3451 = vmatpush.xpose.msra.mxu0 %v3435
        %3452 = vmatpush.xpose.msra.mxu0 %v3433
        %3453 = vmatmul.f32.gmra.mxu0 %v3429
        %v3454 = vpop.f32.mrf.mxu0
        %v3455 = vadd.f32 0.0, %v3454
        %3456 = vmatmul.f32.gmra.mxu0 %v3431
        %v3457 = vpop.f32.mrf.mxu0
        %v3458 = vadd.f32 0.0, %v3457
        %3459 = vdwg.mxu0
        %3460 = vrot.lane.b32.xlu0 %v3033, 96
        %v3461 = vpop.permute.xlu0 %3460
        %3462 = vrot.lane.b32.xlu0 %v3034, 96
        %v3463 = vpop.permute.xlu0 %3462
        %v3464 = vsel %vm3393, %v2996, 0
        %v3466 = vsel %vm3393, %v2997, 0
        %v3468 = vsel %vm3393, %v3461, 0
        %v3470 = vsel %vm3393, %v3463, 0
        %3472 = vmatpush.xpose.msra.mxu0 0.0
        %3473 = vmatpush.xpose.msra.mxu0 0.0
        %3474 = vmatpush.xpose.msra.mxu0 0.0
        %3475 = vmatpush.xpose.msra.mxu0 0.0
        %3476 = vmatpush.xpose.msra.mxu0 0.0
        %3477 = vmatpush.xpose.msra.mxu0 0.0
        %3478 = vmatpush.xpose.msra.mxu0 0.0
        %3479 = vmatpush.xpose.msra.mxu0 0.0
        %3480 = vmatpush.xpose.msra.mxu0 0.0
        %3481 = vmatpush.xpose.msra.mxu0 0.0
        %3482 = vmatpush.xpose.msra.mxu0 0.0
        %3483 = vmatpush.xpose.msra.mxu0 0.0
        %3484 = vmatpush.xpose.msra.mxu0 0.0
        %3485 = vmatpush.xpose.msra.mxu0 0.0
        %3486 = vmatpush.xpose.msra.mxu0 %v3470
        %3487 = vmatpush.xpose.msra.mxu0 %v3468
        %3488 = vmatmul.f32.gmra.mxu0 %v3464
        %v3489 = vpop.f32.mrf.mxu0
        %v3490 = vadd.f32 0.0, %v3489
        %3491 = vmatmul.f32.gmra.mxu0 %v3466
        %v3492 = vpop.f32.mrf.mxu0
        %v3493 = vadd.f32 0.0, %v3492
        %3494 = vdwg.mxu0
        %3495 = vrot.lane.b32.xlu0 %v3035, 96
        %v3496 = vpop.permute.xlu0 %3495
        %3497 = vrot.lane.b32.xlu0 %v3036, 96
        %v3498 = vpop.permute.xlu0 %3497
        %v3499 = vsel %vm3393, %v2998, 0
        %v3501 = vsel %vm3393, %v2999, 0
        %v3503 = vsel %vm3393, %v3496, 0
        %v3505 = vsel %vm3393, %v3498, 0
        %3507 = vmatpush.xpose.msra.mxu0 0.0
        %3508 = vmatpush.xpose.msra.mxu0 0.0
        %3509 = vmatpush.xpose.msra.mxu0 0.0
        %3510 = vmatpush.xpose.msra.mxu0 0.0
        %3511 = vmatpush.xpose.msra.mxu0 0.0
        %3512 = vmatpush.xpose.msra.mxu0 0.0
        %3513 = vmatpush.xpose.msra.mxu0 0.0
        %3514 = vmatpush.xpose.msra.mxu0 0.0
        %3515 = vmatpush.xpose.msra.mxu0 0.0
        %3516 = vmatpush.xpose.msra.mxu0 0.0
        %3517 = vmatpush.xpose.msra.mxu0 0.0
        %3518 = vmatpush.xpose.msra.mxu0 0.0
        %3519 = vmatpush.xpose.msra.mxu0 0.0
        %3520 = vmatpush.xpose.msra.mxu0 0.0
        %3521 = vmatpush.xpose.msra.mxu0 %v3505
        %3522 = vmatpush.xpose.msra.mxu0 %v3503
        %3523 = vmatmul.f32.gmra.mxu0 %v3499
        %v3524 = vpop.f32.mrf.mxu0
        %v3525 = vadd.f32 0.0, %v3524
        %3526 = vmatmul.f32.gmra.mxu0 %v3501
        %v3527 = vpop.f32.mrf.mxu0
        %v3528 = vadd.f32 0.0, %v3527
        %3529 = vdwg.mxu0
        %3530 = vrot.lane.b32.xlu0 %v3037, 96
        %v3531 = vpop.permute.xlu0 %3530
        %3532 = vrot.lane.b32.xlu0 %v3038, 96
        %v3533 = vpop.permute.xlu0 %3532
        %v3534 = vsel %vm3393, %v3000, 0
        %v3536 = vsel %vm3393, %v3001, 0
        %v3538 = vsel %vm3393, %v3531, 0
        %v3540 = vsel %vm3393, %v3533, 0
        %3542 = vmatpush.xpose.msra.mxu0 0.0
        %3543 = vmatpush.xpose.msra.mxu0 0.0
        %3544 = vmatpush.xpose.msra.mxu0 0.0
        %3545 = vmatpush.xpose.msra.mxu0 0.0
        %3546 = vmatpush.xpose.msra.mxu0 0.0
        %3547 = vmatpush.xpose.msra.mxu0 0.0
        %3548 = vmatpush.xpose.msra.mxu0 0.0
        %3549 = vmatpush.xpose.msra.mxu0 0.0
        %3550 = vmatpush.xpose.msra.mxu0 0.0
        %3551 = vmatpush.xpose.msra.mxu0 0.0
        %3552 = vmatpush.xpose.msra.mxu0 0.0
        %3553 = vmatpush.xpose.msra.mxu0 0.0
        %3554 = vmatpush.xpose.msra.mxu0 0.0
        %3555 = vmatpush.xpose.msra.mxu0 0.0
        %3556 = vmatpush.xpose.msra.mxu0 %v3540
        %3557 = vmatpush.xpose.msra.mxu0 %v3538
        %3558 = vmatmul.f32.gmra.mxu0 %v3534
        %v3559 = vpop.f32.mrf.mxu0
        %v3560 = vadd.f32 0.0, %v3559
        %3561 = vmatmul.f32.gmra.mxu0 %v3536
        %v3562 = vpop.f32.mrf.mxu0
        %v3563 = vadd.f32 0.0, %v3562
        %3564 = vdwg.mxu0
        %3565 = vrot.lane.b32.xlu0 %v3039, 96
        %v3566 = vpop.permute.xlu0 %3565
        %3567 = vrot.lane.b32.xlu0 %v3040, 96
        %v3568 = vpop.permute.xlu0 %3567
        %v3569 = vsel %vm3393, %v3002, 0
        %v3571 = vsel %vm3393, %v3003, 0
        %v3573 = vsel %vm3393, %v3566, 0
        %v3575 = vsel %vm3393, %v3568, 0
        %3577 = vmatpush.xpose.msra.mxu0 0.0
        %3578 = vmatpush.xpose.msra.mxu0 0.0
        %3579 = vmatpush.xpose.msra.mxu0 0.0
        %3580 = vmatpush.xpose.msra.mxu0 0.0
        %3581 = vmatpush.xpose.msra.mxu0 0.0
        %3582 = vmatpush.xpose.msra.mxu0 0.0
        %3583 = vmatpush.xpose.msra.mxu0 0.0
        %3584 = vmatpush.xpose.msra.mxu0 0.0
        %3585 = vmatpush.xpose.msra.mxu0 0.0
        %3586 = vmatpush.xpose.msra.mxu0 0.0
        %3587 = vmatpush.xpose.msra.mxu0 0.0
        %3588 = vmatpush.xpose.msra.mxu0 0.0
        %3589 = vmatpush.xpose.msra.mxu0 0.0
        %3590 = vmatpush.xpose.msra.mxu0 0.0
        %3591 = vmatpush.xpose.msra.mxu0 %v3575
        %3592 = vmatpush.xpose.msra.mxu0 %v3573
        %3593 = vmatmul.f32.gmra.mxu0 %v3569
        %v3594 = vpop.f32.mrf.mxu0
        %v3595 = vadd.f32 0.0, %v3594
        %3596 = vmatmul.f32.gmra.mxu0 %v3571
        %v3597 = vpop.f32.mrf.mxu0
        %v3598 = vadd.f32 0.0, %v3597
        %3599 = vdwg.mxu0
        %3600 = vrot.lane.b32.xlu0 %v3041, 96
        %v3601 = vpop.permute.xlu0 %3600
        %3602 = vrot.lane.b32.xlu0 %v3042, 96
        %v3603 = vpop.permute.xlu0 %3602
        %v3604 = vsel %vm3393, %v3004, 0
        %v3606 = vsel %vm3393, %v3005, 0
        %v3608 = vsel %vm3393, %v3601, 0
        %v3610 = vsel %vm3393, %v3603, 0
        %3612 = vmatpush.xpose.msra.mxu0 0.0
        %3613 = vmatpush.xpose.msra.mxu0 0.0
        %3614 = vmatpush.xpose.msra.mxu0 0.0
        %3615 = vmatpush.xpose.msra.mxu0 0.0
        %3616 = vmatpush.xpose.msra.mxu0 0.0
        %3617 = vmatpush.xpose.msra.mxu0 0.0
        %3618 = vmatpush.xpose.msra.mxu0 0.0
        %3619 = vmatpush.xpose.msra.mxu0 0.0
        %3620 = vmatpush.xpose.msra.mxu0 0.0
        %3621 = vmatpush.xpose.msra.mxu0 0.0
        %3622 = vmatpush.xpose.msra.mxu0 0.0
        %3623 = vmatpush.xpose.msra.mxu0 0.0
        %3624 = vmatpush.xpose.msra.mxu0 0.0
        %3625 = vmatpush.xpose.msra.mxu0 0.0
        %3626 = vmatpush.xpose.msra.mxu0 %v3610
        %3627 = vmatpush.xpose.msra.mxu0 %v3608
        %3628 = vmatmul.f32.gmra.mxu0 %v3604
        %v3629 = vpop.f32.mrf.mxu0
        %v3630 = vadd.f32 0.0, %v3629
        %3631 = vmatmul.f32.gmra.mxu0 %v3606
        %v3632 = vpop.f32.mrf.mxu0
        %v3633 = vadd.f32 0.0, %v3632
        %3634 = vdwg.mxu0
        %3635 = vrot.lane.b32.xlu0 %v3043, 96
        %v3636 = vpop.permute.xlu0 %3635
        %3637 = vrot.lane.b32.xlu0 %v3044, 96
        %v3638 = vpop.permute.xlu0 %3637
        %v3639 = vsel %vm3393, %v3006, 0
        %v3641 = vsel %vm3393, %v3007, 0
        %v3643 = vsel %vm3393, %v3636, 0
        %v3645 = vsel %vm3393, %v3638, 0
        %3647 = vmatpush.xpose.msra.mxu0 0.0
        %3648 = vmatpush.xpose.msra.mxu0 0.0
        %3649 = vmatpush.xpose.msra.mxu0 0.0
        %3650 = vmatpush.xpose.msra.mxu0 0.0
        %3651 = vmatpush.xpose.msra.mxu0 0.0
        %3652 = vmatpush.xpose.msra.mxu0 0.0
        %3653 = vmatpush.xpose.msra.mxu0 0.0
        %3654 = vmatpush.xpose.msra.mxu0 0.0
        %3655 = vmatpush.xpose.msra.mxu0 0.0
        %3656 = vmatpush.xpose.msra.mxu0 0.0
        %3657 = vmatpush.xpose.msra.mxu0 0.0
        %3658 = vmatpush.xpose.msra.mxu0 0.0
        %3659 = vmatpush.xpose.msra.mxu0 0.0
        %3660 = vmatpush.xpose.msra.mxu0 0.0
        %3661 = vmatpush.xpose.msra.mxu0 %v3645
        %3662 = vmatpush.xpose.msra.mxu0 %v3643
        %3663 = vmatmul.f32.gmra.mxu0 %v3639
        %v3664 = vpop.f32.mrf.mxu0
        %v3665 = vadd.f32 0.0, %v3664
        %3666 = vmatmul.f32.gmra.mxu0 %v3641
        %v3667 = vpop.f32.mrf.mxu0
        %v3668 = vadd.f32 0.0, %v3667
        %3669 = vdwg.mxu0
        %3670 = vrot.lane.b32.xlu0 %v3045, 96
        %v3671 = vpop.permute.xlu0 %3670
        %3672 = vrot.lane.b32.xlu0 %v3046, 96
        %v3673 = vpop.permute.xlu0 %3672
        %v3674 = vsel %vm3393, %v3008, 0
        %v3676 = vsel %vm3393, %v3009, 0
        %v3678 = vsel %vm3393, %v3671, 0
        %v3680 = vsel %vm3393, %v3673, 0
        %3682 = vmatpush.xpose.msra.mxu0 0.0
        %3683 = vmatpush.xpose.msra.mxu0 0.0
        %3684 = vmatpush.xpose.msra.mxu0 0.0
        %3685 = vmatpush.xpose.msra.mxu0 0.0
        %3686 = vmatpush.xpose.msra.mxu0 0.0
        %3687 = vmatpush.xpose.msra.mxu0 0.0
        %3688 = vmatpush.xpose.msra.mxu0 0.0
        %3689 = vmatpush.xpose.msra.mxu0 0.0
        %3690 = vmatpush.xpose.msra.mxu0 0.0
        %3691 = vmatpush.xpose.msra.mxu0 0.0
        %3692 = vmatpush.xpose.msra.mxu0 0.0
        %3693 = vmatpush.xpose.msra.mxu0 0.0
        %3694 = vmatpush.xpose.msra.mxu0 0.0
        %3695 = vmatpush.xpose.msra.mxu0 0.0
        %3696 = vmatpush.xpose.msra.mxu0 %v3680
        %3697 = vmatpush.xpose.msra.mxu0 %v3678
        %3698 = vmatmul.f32.gmra.mxu0 %v3674
        %v3699 = vpop.f32.mrf.mxu0
        %v3700 = vadd.f32 0.0, %v3699
        %3701 = vmatmul.f32.gmra.mxu0 %v3676
        %v3702 = vpop.f32.mrf.mxu0
        %v3703 = vadd.f32 0.0, %v3702
        %3704 = vdwg.mxu0
        %3705 = vrot.lane.b32.xlu0 %v3047, 96
        %v3706 = vpop.permute.xlu0 %3705
        %3707 = vrot.lane.b32.xlu0 %v3048, 96
        %v3708 = vpop.permute.xlu0 %3707
        %v3709 = vsel %vm3393, %v3010, 0
        %v3711 = vsel %vm3393, %v3011, 0
        %v3713 = vsel %vm3393, %v3706, 0
        %v3715 = vsel %vm3393, %v3708, 0
        %3717 = vmatpush.xpose.msra.mxu0 0.0
        %3718 = vmatpush.xpose.msra.mxu0 0.0
        %3719 = vmatpush.xpose.msra.mxu0 0.0
        %3720 = vmatpush.xpose.msra.mxu0 0.0
        %3721 = vmatpush.xpose.msra.mxu0 0.0
        %3722 = vmatpush.xpose.msra.mxu0 0.0
        %3723 = vmatpush.xpose.msra.mxu0 0.0
        %3724 = vmatpush.xpose.msra.mxu0 0.0
        %3725 = vmatpush.xpose.msra.mxu0 0.0
        %3726 = vmatpush.xpose.msra.mxu0 0.0
        %3727 = vmatpush.xpose.msra.mxu0 0.0
        %3728 = vmatpush.xpose.msra.mxu0 0.0
        %3729 = vmatpush.xpose.msra.mxu0 0.0
        %3730 = vmatpush.xpose.msra.mxu0 0.0
        %3731 = vmatpush.xpose.msra.mxu0 %v3715
        %3732 = vmatpush.xpose.msra.mxu0 %v3713
        %3733 = vmatmul.f32.gmra.mxu0 %v3709
        %v3734 = vpop.f32.mrf.mxu0
        %v3735 = vadd.f32 0.0, %v3734
        %3736 = vmatmul.f32.gmra.mxu0 %v3711
        %v3737 = vpop.f32.mrf.mxu0
        %v3738 = vadd.f32 0.0, %v3737
        %3739 = vdwg.mxu0
        %3740 = vrot.lane.b32.xlu0 %v3049, 96
        %v3741 = vpop.permute.xlu0 %3740
        %3742 = vrot.lane.b32.xlu0 %v3050, 96
        %v3743 = vpop.permute.xlu0 %3742
        %v3744 = vsel %vm3393, %v3012, 0
        %v3746 = vsel %vm3393, %v3013, 0
        %v3748 = vsel %vm3393, %v3741, 0
        %v3750 = vsel %vm3393, %v3743, 0
        %3752 = vmatpush.xpose.msra.mxu0 0.0
        %3753 = vmatpush.xpose.msra.mxu0 0.0
        %3754 = vmatpush.xpose.msra.mxu0 0.0
        %3755 = vmatpush.xpose.msra.mxu0 0.0
        %3756 = vmatpush.xpose.msra.mxu0 0.0
        %3757 = vmatpush.xpose.msra.mxu0 0.0
        %3758 = vmatpush.xpose.msra.mxu0 0.0
        %3759 = vmatpush.xpose.msra.mxu0 0.0
        %3760 = vmatpush.xpose.msra.mxu0 0.0
        %3761 = vmatpush.xpose.msra.mxu0 0.0
        %3762 = vmatpush.xpose.msra.mxu0 0.0
        %3763 = vmatpush.xpose.msra.mxu0 0.0
        %3764 = vmatpush.xpose.msra.mxu0 0.0
        %3765 = vmatpush.xpose.msra.mxu0 0.0
        %3766 = vmatpush.xpose.msra.mxu0 %v3750
        %3767 = vmatpush.xpose.msra.mxu0 %v3748
        %3768 = vmatmul.f32.gmra.mxu0 %v3744
        %v3769 = vpop.f32.mrf.mxu0
        %v3770 = vadd.f32 0.0, %v3769
        %3771 = vmatmul.f32.gmra.mxu0 %v3746
        %v3772 = vpop.f32.mrf.mxu0
        %v3773 = vadd.f32 0.0, %v3772
        %3774 = vdwg.mxu0
        %3775 = vrot.lane.b32.xlu0 %v3051, 96
        %v3776 = vpop.permute.xlu0 %3775
        %3777 = vrot.lane.b32.xlu0 %v3052, 96
        %v3778 = vpop.permute.xlu0 %3777
        %v3779 = vsel %vm3393, %v3014, 0
        %v3781 = vsel %vm3393, %v3015, 0
        %v3783 = vsel %vm3393, %v3776, 0
        %v3785 = vsel %vm3393, %v3778, 0
        %3787 = vmatpush.xpose.msra.mxu0 0.0
        %3788 = vmatpush.xpose.msra.mxu0 0.0
        %3789 = vmatpush.xpose.msra.mxu0 0.0
        %3790 = vmatpush.xpose.msra.mxu0 0.0
        %3791 = vmatpush.xpose.msra.mxu0 0.0
        %3792 = vmatpush.xpose.msra.mxu0 0.0
        %3793 = vmatpush.xpose.msra.mxu0 0.0
        %3794 = vmatpush.xpose.msra.mxu0 0.0
        %3795 = vmatpush.xpose.msra.mxu0 0.0
        %3796 = vmatpush.xpose.msra.mxu0 0.0
        %3797 = vmatpush.xpose.msra.mxu0 0.0
        %3798 = vmatpush.xpose.msra.mxu0 0.0
        %3799 = vmatpush.xpose.msra.mxu0 0.0
        %3800 = vmatpush.xpose.msra.mxu0 0.0
        %3801 = vmatpush.xpose.msra.mxu0 %v3785
        %3802 = vmatpush.xpose.msra.mxu0 %v3783
        %3803 = vmatmul.f32.gmra.mxu0 %v3779
        %v3804 = vpop.f32.mrf.mxu0
        %v3805 = vadd.f32 0.0, %v3804
        %3806 = vmatmul.f32.gmra.mxu0 %v3781
        %v3807 = vpop.f32.mrf.mxu0
        %v3808 = vadd.f32 0.0, %v3807
        %3809 = vdwg.mxu0
        %3810 = vrot.lane.b32.xlu0 %v3053, 96
        %v3811 = vpop.permute.xlu0 %3810
        %3812 = vrot.lane.b32.xlu0 %v3054, 96
        %v3813 = vpop.permute.xlu0 %3812
        %v3814 = vsel %vm3393, %v3016, 0
        %v3816 = vsel %vm3393, %v3017, 0
        %v3818 = vsel %vm3393, %v3811, 0
        %v3820 = vsel %vm3393, %v3813, 0
        %3822 = vmatpush.xpose.msra.mxu0 0.0
        %3823 = vmatpush.xpose.msra.mxu0 0.0
        %3824 = vmatpush.xpose.msra.mxu0 0.0
        %3825 = vmatpush.xpose.msra.mxu0 0.0
        %3826 = vmatpush.xpose.msra.mxu0 0.0
        %3827 = vmatpush.xpose.msra.mxu0 0.0
        %3828 = vmatpush.xpose.msra.mxu0 0.0
        %3829 = vmatpush.xpose.msra.mxu0 0.0
        %3830 = vmatpush.xpose.msra.mxu0 0.0
        %3831 = vmatpush.xpose.msra.mxu0 0.0
        %3832 = vmatpush.xpose.msra.mxu0 0.0
        %3833 = vmatpush.xpose.msra.mxu0 0.0
        %3834 = vmatpush.xpose.msra.mxu0 0.0
        %3835 = vmatpush.xpose.msra.mxu0 0.0
        %3836 = vmatpush.xpose.msra.mxu0 %v3820
        %3837 = vmatpush.xpose.msra.mxu0 %v3818
        %3838 = vmatmul.f32.gmra.mxu0 %v3814
        %v3839 = vpop.f32.mrf.mxu0
        %v3840 = vadd.f32 0.0, %v3839
        %3841 = vmatmul.f32.gmra.mxu0 %v3816
        %v3842 = vpop.f32.mrf.mxu0
        %v3843 = vadd.f32 0.0, %v3842
        %3844 = vdwg.mxu0
        %3845 = vrot.lane.b32.xlu0 %v3055, 96
        %v3846 = vpop.permute.xlu0 %3845
        %3847 = vrot.lane.b32.xlu0 %v3056, 96
        %v3848 = vpop.permute.xlu0 %3847
        %v3849 = vsel %vm3393, %v3018, 0
        %v3851 = vsel %vm3393, %v3019, 0
        %v3853 = vsel %vm3393, %v3846, 0
        %v3855 = vsel %vm3393, %v3848, 0
        %3857 = vmatpush.xpose.msra.mxu0 0.0
        %3858 = vmatpush.xpose.msra.mxu0 0.0
        %3859 = vmatpush.xpose.msra.mxu0 0.0
        %3860 = vmatpush.xpose.msra.mxu0 0.0
        %3861 = vmatpush.xpose.msra.mxu0 0.0
        %3862 = vmatpush.xpose.msra.mxu0 0.0
        %3863 = vmatpush.xpose.msra.mxu0 0.0
        %3864 = vmatpush.xpose.msra.mxu0 0.0
        %3865 = vmatpush.xpose.msra.mxu0 0.0
        %3866 = vmatpush.xpose.msra.mxu0 0.0
        %3867 = vmatpush.xpose.msra.mxu0 0.0
        %3868 = vmatpush.xpose.msra.mxu0 0.0
        %3869 = vmatpush.xpose.msra.mxu0 0.0
        %3870 = vmatpush.xpose.msra.mxu0 0.0
        %3871 = vmatpush.xpose.msra.mxu0 %v3855
        %3872 = vmatpush.xpose.msra.mxu0 %v3853
        %3873 = vmatmul.f32.gmra.mxu0 %v3849
        %v3874 = vpop.f32.mrf.mxu0
        %v3875 = vadd.f32 0.0, %v3874
        %3876 = vmatmul.f32.gmra.mxu0 %v3851
        %v3877 = vpop.f32.mrf.mxu0
        %v3878 = vadd.f32 0.0, %v3877
        %3879 = vdwg.mxu0
        %3880 = vrot.lane.b32.xlu0 %v3057, 96
        %v3881 = vpop.permute.xlu0 %3880
        %3882 = vrot.lane.b32.xlu0 %v3058, 96
        %v3883 = vpop.permute.xlu0 %3882
        %v3884 = vsel %vm3393, %v3020, 0
        %v3886 = vsel %vm3393, %v3021, 0
        %v3888 = vsel %vm3393, %v3881, 0
        %v3890 = vsel %vm3393, %v3883, 0
        %3892 = vmatpush.xpose.msra.mxu0 0.0
        %3893 = vmatpush.xpose.msra.mxu0 0.0
        %3894 = vmatpush.xpose.msra.mxu0 0.0
        %3895 = vmatpush.xpose.msra.mxu0 0.0
        %3896 = vmatpush.xpose.msra.mxu0 0.0
        %3897 = vmatpush.xpose.msra.mxu0 0.0
        %3898 = vmatpush.xpose.msra.mxu0 0.0
        %3899 = vmatpush.xpose.msra.mxu0 0.0
        %3900 = vmatpush.xpose.msra.mxu0 0.0
        %3901 = vmatpush.xpose.msra.mxu0 0.0
        %3902 = vmatpush.xpose.msra.mxu0 0.0
        %3903 = vmatpush.xpose.msra.mxu0 0.0
        %3904 = vmatpush.xpose.msra.mxu0 0.0
        %3905 = vmatpush.xpose.msra.mxu0 0.0
        %3906 = vmatpush.xpose.msra.mxu0 %v3890
        %3907 = vmatpush.xpose.msra.mxu0 %v3888
        %3908 = vmatmul.f32.gmra.mxu0 %v3884
        %v3909 = vpop.f32.mrf.mxu0
        %v3910 = vadd.f32 0.0, %v3909
        %3911 = vmatmul.f32.gmra.mxu0 %v3886
        %v3912 = vpop.f32.mrf.mxu0
        %v3913 = vadd.f32 0.0, %v3912
        %3914 = vdwg.mxu0
        %3915 = vrot.lane.b32.xlu0 %v3059, 96
        %v3916 = vpop.permute.xlu0 %3915
        %3917 = vrot.lane.b32.xlu0 %v3060, 96
        %v3918 = vpop.permute.xlu0 %3917
        %v3919 = vsel %vm3393, %v3022, 0
        %v3921 = vsel %vm3393, %v3023, 0
        %v3923 = vsel %vm3393, %v3916, 0
        %v3925 = vsel %vm3393, %v3918, 0
        %3927 = vmatpush.xpose.msra.mxu0 0.0
        %3928 = vmatpush.xpose.msra.mxu0 0.0
        %3929 = vmatpush.xpose.msra.mxu0 0.0
        %3930 = vmatpush.xpose.msra.mxu0 0.0
        %3931 = vmatpush.xpose.msra.mxu0 0.0
        %3932 = vmatpush.xpose.msra.mxu0 0.0
        %3933 = vmatpush.xpose.msra.mxu0 0.0
        %3934 = vmatpush.xpose.msra.mxu0 0.0
        %3935 = vmatpush.xpose.msra.mxu0 0.0
        %3936 = vmatpush.xpose.msra.mxu0 0.0
        %3937 = vmatpush.xpose.msra.mxu0 0.0
        %3938 = vmatpush.xpose.msra.mxu0 0.0
        %3939 = vmatpush.xpose.msra.mxu0 0.0
        %3940 = vmatpush.xpose.msra.mxu0 0.0
        %3941 = vmatpush.xpose.msra.mxu0 %v3925
        %3942 = vmatpush.xpose.msra.mxu0 %v3923
        %3943 = vmatmul.f32.gmra.mxu0 %v3919
        %v3944 = vpop.f32.mrf.mxu0
        %v3945 = vadd.f32 0.0, %v3944
        %3946 = vmatmul.f32.gmra.mxu0 %v3921
        %v3947 = vpop.f32.mrf.mxu0
        %v3948 = vadd.f32 0.0, %v3947
        %3949 = vdwg.mxu0
        %3950 = vrot.lane.b32.xlu0 %v3227, 96
        %v3951 = vpop.permute.xlu0 %3950
        %3952 = vrot.lane.b32.xlu0 %v3229, 96
        %v3953 = vpop.permute.xlu0 %3952
        %v3954 = vsel %vm3393, %v3131, 0
        %v3956 = vsel %vm3393, %v3133, 0
        %v3958 = vsel %vm3393, %v3951, 0
        %v3960 = vsel %vm3393, %v3953, 0
        %3962 = vmatpush.xpose.msra.mxu0 0.0
        %3963 = vmatpush.xpose.msra.mxu0 0.0
        %3964 = vmatpush.xpose.msra.mxu0 0.0
        %3965 = vmatpush.xpose.msra.mxu0 0.0
        %3966 = vmatpush.xpose.msra.mxu0 0.0
        %3967 = vmatpush.xpose.msra.mxu0 0.0
        %3968 = vmatpush.xpose.msra.mxu0 0.0
        %3969 = vmatpush.xpose.msra.mxu0 0.0
        %3970 = vmatpush.xpose.msra.mxu0 0.0
        %3971 = vmatpush.xpose.msra.mxu0 0.0
        %3972 = vmatpush.xpose.msra.mxu0 0.0
        %3973 = vmatpush.xpose.msra.mxu0 0.0
        %3974 = vmatpush.xpose.msra.mxu0 0.0
        %3975 = vmatpush.xpose.msra.mxu0 0.0
        %3976 = vmatpush.xpose.msra.mxu0 %v3960
        %3977 = vmatpush.xpose.msra.mxu0 %v3958
        %3978 = vmatmul.f32.gmra.mxu0 %v3954
        %v3979 = vpop.f32.mrf.mxu0
        %v3980 = vadd.f32 0.0, %v3979
        %3981 = vmatmul.f32.gmra.mxu0 %v3956
        %v3982 = vpop.f32.mrf.mxu0
        %v3983 = vadd.f32 0.0, %v3982
        %3984 = vdwg.mxu0
        %3985 = vrot.lane.b32.xlu0 %v3231, 96
        %v3986 = vpop.permute.xlu0 %3985
        %3987 = vrot.lane.b32.xlu0 %v3233, 96
        %v3988 = vpop.permute.xlu0 %3987
        %v3989 = vsel %vm3393, %v3135, 0
        %v3991 = vsel %vm3393, %v3137, 0
        %v3993 = vsel %vm3393, %v3986, 0
        %v3995 = vsel %vm3393, %v3988, 0
        %3997 = vmatpush.xpose.msra.mxu0 0.0
        %3998 = vmatpush.xpose.msra.mxu0 0.0
        %3999 = vmatpush.xpose.msra.mxu0 0.0
        %4000 = vmatpush.xpose.msra.mxu0 0.0
        %4001 = vmatpush.xpose.msra.mxu0 0.0
        %4002 = vmatpush.xpose.msra.mxu0 0.0
        %4003 = vmatpush.xpose.msra.mxu0 0.0
        %4004 = vmatpush.xpose.msra.mxu0 0.0
        %4005 = vmatpush.xpose.msra.mxu0 0.0
        %4006 = vmatpush.xpose.msra.mxu0 0.0
        %4007 = vmatpush.xpose.msra.mxu0 0.0
        %4008 = vmatpush.xpose.msra.mxu0 0.0
        %4009 = vmatpush.xpose.msra.mxu0 0.0
        %4010 = vmatpush.xpose.msra.mxu0 0.0
        %4011 = vmatpush.xpose.msra.mxu0 %v3995
        %4012 = vmatpush.xpose.msra.mxu0 %v3993
        %4013 = vmatmul.f32.gmra.mxu0 %v3989
        %v4014 = vpop.f32.mrf.mxu0
        %v4015 = vadd.f32 0.0, %v4014
        %4016 = vmatmul.f32.gmra.mxu0 %v3991
        %v4017 = vpop.f32.mrf.mxu0
        %v4018 = vadd.f32 0.0, %v4017
        %4019 = vdwg.mxu0
        %4020 = vrot.lane.b32.xlu0 %v3235, 96
        %v4021 = vpop.permute.xlu0 %4020
        %4022 = vrot.lane.b32.xlu0 %v3237, 96
        %v4023 = vpop.permute.xlu0 %4022
        %v4024 = vsel %vm3393, %v3139, 0
        %v4026 = vsel %vm3393, %v3141, 0
        %v4028 = vsel %vm3393, %v4021, 0
        %v4030 = vsel %vm3393, %v4023, 0
        %4032 = vmatpush.xpose.msra.mxu0 0.0
        %4033 = vmatpush.xpose.msra.mxu0 0.0
        %4034 = vmatpush.xpose.msra.mxu0 0.0
        %4035 = vmatpush.xpose.msra.mxu0 0.0
        %4036 = vmatpush.xpose.msra.mxu0 0.0
        %4037 = vmatpush.xpose.msra.mxu0 0.0
        %4038 = vmatpush.xpose.msra.mxu0 0.0
        %4039 = vmatpush.xpose.msra.mxu0 0.0
        %4040 = vmatpush.xpose.msra.mxu0 0.0
        %4041 = vmatpush.xpose.msra.mxu0 0.0
        %4042 = vmatpush.xpose.msra.mxu0 0.0
        %4043 = vmatpush.xpose.msra.mxu0 0.0
        %4044 = vmatpush.xpose.msra.mxu0 0.0
        %4045 = vmatpush.xpose.msra.mxu0 0.0
        %4046 = vmatpush.xpose.msra.mxu0 %v4030
        %4047 = vmatpush.xpose.msra.mxu0 %v4028
        %4048 = vmatmul.f32.gmra.mxu0 %v4024
        %v4049 = vpop.f32.mrf.mxu0
        %v4050 = vadd.f32 0.0, %v4049
        %4051 = vmatmul.f32.gmra.mxu0 %v4026
        %v4052 = vpop.f32.mrf.mxu0
        %v4053 = vadd.f32 0.0, %v4052
        %4054 = vdwg.mxu0
        %4055 = vrot.lane.b32.xlu0 %v3239, 96
        %v4056 = vpop.permute.xlu0 %4055
        %4057 = vrot.lane.b32.xlu0 %v3241, 96
        %v4058 = vpop.permute.xlu0 %4057
        %v4059 = vsel %vm3393, %v3143, 0
        %v4061 = vsel %vm3393, %v3145, 0
        %v4063 = vsel %vm3393, %v4056, 0
        %v4065 = vsel %vm3393, %v4058, 0
        %4067 = vmatpush.xpose.msra.mxu0 0.0
        %4068 = vmatpush.xpose.msra.mxu0 0.0
        %4069 = vmatpush.xpose.msra.mxu0 0.0
        %4070 = vmatpush.xpose.msra.mxu0 0.0
        %4071 = vmatpush.xpose.msra.mxu0 0.0
        %4072 = vmatpush.xpose.msra.mxu0 0.0
        %4073 = vmatpush.xpose.msra.mxu0 0.0
        %4074 = vmatpush.xpose.msra.mxu0 0.0
        %4075 = vmatpush.xpose.msra.mxu0 0.0
        %4076 = vmatpush.xpose.msra.mxu0 0.0
        %4077 = vmatpush.xpose.msra.mxu0 0.0
        %4078 = vmatpush.xpose.msra.mxu0 0.0
        %4079 = vmatpush.xpose.msra.mxu0 0.0
        %4080 = vmatpush.xpose.msra.mxu0 0.0
        %4081 = vmatpush.xpose.msra.mxu0 %v4065
        %4082 = vmatpush.xpose.msra.mxu0 %v4063
        %4083 = vmatmul.f32.gmra.mxu0 %v4059
        %v4084 = vpop.f32.mrf.mxu0
        %v4085 = vadd.f32 0.0, %v4084
        %4086 = vmatmul.f32.gmra.mxu0 %v4061
        %v4087 = vpop.f32.mrf.mxu0
        %v4088 = vadd.f32 0.0, %v4087
        %4089 = vdwg.mxu0
        %4090 = vrot.lane.b32.xlu0 %v3243, 96
        %v4091 = vpop.permute.xlu0 %4090
        %4092 = vrot.lane.b32.xlu0 %v3245, 96
        %v4093 = vpop.permute.xlu0 %4092
        %v4094 = vsel %vm3393, %v3147, 0
        %v4096 = vsel %vm3393, %v3149, 0
        %v4098 = vsel %vm3393, %v4091, 0
        %v4100 = vsel %vm3393, %v4093, 0
        %4102 = vmatpush.xpose.msra.mxu0 0.0
        %4103 = vmatpush.xpose.msra.mxu0 0.0
        %4104 = vmatpush.xpose.msra.mxu0 0.0
        %4105 = vmatpush.xpose.msra.mxu0 0.0
        %4106 = vmatpush.xpose.msra.mxu0 0.0
        %4107 = vmatpush.xpose.msra.mxu0 0.0
        %4108 = vmatpush.xpose.msra.mxu0 0.0
        %4109 = vmatpush.xpose.msra.mxu0 0.0
        %4110 = vmatpush.xpose.msra.mxu0 0.0
        %4111 = vmatpush.xpose.msra.mxu0 0.0
        %4112 = vmatpush.xpose.msra.mxu0 0.0
        %4113 = vmatpush.xpose.msra.mxu0 0.0
        %4114 = vmatpush.xpose.msra.mxu0 0.0
        %4115 = vmatpush.xpose.msra.mxu0 0.0
        %4116 = vmatpush.xpose.msra.mxu0 %v4100
        %4117 = vmatpush.xpose.msra.mxu0 %v4098
        %4118 = vmatmul.f32.gmra.mxu0 %v4094
        %v4119 = vpop.f32.mrf.mxu0
        %v4120 = vadd.f32 0.0, %v4119
        %4121 = vmatmul.f32.gmra.mxu0 %v4096
        %v4122 = vpop.f32.mrf.mxu0
        %v4123 = vadd.f32 0.0, %v4122
        %4124 = vdwg.mxu0
        %4125 = vrot.lane.b32.xlu0 %v3247, 96
        %v4126 = vpop.permute.xlu0 %4125
        %4127 = vrot.lane.b32.xlu0 %v3249, 96
        %v4128 = vpop.permute.xlu0 %4127
        %v4129 = vsel %vm3393, %v3151, 0
        %v4131 = vsel %vm3393, %v3153, 0
        %v4133 = vsel %vm3393, %v4126, 0
        %v4135 = vsel %vm3393, %v4128, 0
        %4137 = vmatpush.xpose.msra.mxu0 0.0
        %4138 = vmatpush.xpose.msra.mxu0 0.0
        %4139 = vmatpush.xpose.msra.mxu0 0.0
        %4140 = vmatpush.xpose.msra.mxu0 0.0
        %4141 = vmatpush.xpose.msra.mxu0 0.0
        %4142 = vmatpush.xpose.msra.mxu0 0.0
        %4143 = vmatpush.xpose.msra.mxu0 0.0
        %4144 = vmatpush.xpose.msra.mxu0 0.0
        %4145 = vmatpush.xpose.msra.mxu0 0.0
        %4146 = vmatpush.xpose.msra.mxu0 0.0
        %4147 = vmatpush.xpose.msra.mxu0 0.0
        %4148 = vmatpush.xpose.msra.mxu0 0.0
        %4149 = vmatpush.xpose.msra.mxu0 0.0
        %4150 = vmatpush.xpose.msra.mxu0 0.0
        %4151 = vmatpush.xpose.msra.mxu0 %v4135
        %4152 = vmatpush.xpose.msra.mxu0 %v4133
        %4153 = vmatmul.f32.gmra.mxu0 %v4129
        %v4154 = vpop.f32.mrf.mxu0
        %v4155 = vadd.f32 0.0, %v4154
        %4156 = vmatmul.f32.gmra.mxu0 %v4131
        %v4157 = vpop.f32.mrf.mxu0
        %v4158 = vadd.f32 0.0, %v4157
        %4159 = vdwg.mxu0
        %4160 = vrot.lane.b32.xlu0 %v3251, 96
        %v4161 = vpop.permute.xlu0 %4160
        %4162 = vrot.lane.b32.xlu0 %v3253, 96
        %v4163 = vpop.permute.xlu0 %4162
        %v4164 = vsel %vm3393, %v3155, 0
        %v4166 = vsel %vm3393, %v3157, 0
        %v4168 = vsel %vm3393, %v4161, 0
        %v4170 = vsel %vm3393, %v4163, 0
        %4172 = vmatpush.xpose.msra.mxu0 0.0
        %4173 = vmatpush.xpose.msra.mxu0 0.0
        %4174 = vmatpush.xpose.msra.mxu0 0.0
        %4175 = vmatpush.xpose.msra.mxu0 0.0
        %4176 = vmatpush.xpose.msra.mxu0 0.0
        %4177 = vmatpush.xpose.msra.mxu0 0.0
        %4178 = vmatpush.xpose.msra.mxu0 0.0
        %4179 = vmatpush.xpose.msra.mxu0 0.0
        %4180 = vmatpush.xpose.msra.mxu0 0.0
        %4181 = vmatpush.xpose.msra.mxu0 0.0
        %4182 = vmatpush.xpose.msra.mxu0 0.0
        %4183 = vmatpush.xpose.msra.mxu0 0.0
        %4184 = vmatpush.xpose.msra.mxu0 0.0
        %4185 = vmatpush.xpose.msra.mxu0 0.0
        %4186 = vmatpush.xpose.msra.mxu0 %v4170
        %4187 = vmatpush.xpose.msra.mxu0 %v4168
        %4188 = vmatmul.f32.gmra.mxu0 %v4164
        %v4189 = vpop.f32.mrf.mxu0
        %v4190 = vadd.f32 0.0, %v4189
        %4191 = vmatmul.f32.gmra.mxu0 %v4166
        %v4192 = vpop.f32.mrf.mxu0
        %v4193 = vadd.f32 0.0, %v4192
        %4194 = vdwg.mxu0
        %4195 = vrot.lane.b32.xlu0 %v3255, 96
        %v4196 = vpop.permute.xlu0 %4195
        %4197 = vrot.lane.b32.xlu0 %v3257, 96
        %v4198 = vpop.permute.xlu0 %4197
        %v4199 = vsel %vm3393, %v3159, 0
        %v4201 = vsel %vm3393, %v3161, 0
        %v4203 = vsel %vm3393, %v4196, 0
        %v4205 = vsel %vm3393, %v4198, 0
        %4207 = vmatpush.xpose.msra.mxu0 0.0
        %4208 = vmatpush.xpose.msra.mxu0 0.0
        %4209 = vmatpush.xpose.msra.mxu0 0.0
        %4210 = vmatpush.xpose.msra.mxu0 0.0
        %4211 = vmatpush.xpose.msra.mxu0 0.0
        %4212 = vmatpush.xpose.msra.mxu0 0.0
        %4213 = vmatpush.xpose.msra.mxu0 0.0
        %4214 = vmatpush.xpose.msra.mxu0 0.0
        %4215 = vmatpush.xpose.msra.mxu0 0.0
        %4216 = vmatpush.xpose.msra.mxu0 0.0
        %4217 = vmatpush.xpose.msra.mxu0 0.0
        %4218 = vmatpush.xpose.msra.mxu0 0.0
        %4219 = vmatpush.xpose.msra.mxu0 0.0
        %4220 = vmatpush.xpose.msra.mxu0 0.0
        %4221 = vmatpush.xpose.msra.mxu0 %v4205
        %4222 = vmatpush.xpose.msra.mxu0 %v4203
        %4223 = vmatmul.f32.gmra.mxu0 %v4199
        %v4224 = vpop.f32.mrf.mxu0
        %v4225 = vadd.f32 0.0, %v4224
        %4226 = vmatmul.f32.gmra.mxu0 %v4201
        %v4227 = vpop.f32.mrf.mxu0
        %v4228 = vadd.f32 0.0, %v4227
        %4229 = vdwg.mxu0
        %4230 = vrot.lane.b32.xlu0 %v3259, 96
        %v4231 = vpop.permute.xlu0 %4230
        %4232 = vrot.lane.b32.xlu0 %v3261, 96
        %v4233 = vpop.permute.xlu0 %4232
        %v4234 = vsel %vm3393, %v3163, 0
        %v4236 = vsel %vm3393, %v3165, 0
        %v4238 = vsel %vm3393, %v4231, 0
        %v4240 = vsel %vm3393, %v4233, 0
        %4242 = vmatpush.xpose.msra.mxu0 0.0
        %4243 = vmatpush.xpose.msra.mxu0 0.0
        %4244 = vmatpush.xpose.msra.mxu0 0.0
        %4245 = vmatpush.xpose.msra.mxu0 0.0
        %4246 = vmatpush.xpose.msra.mxu0 0.0
        %4247 = vmatpush.xpose.msra.mxu0 0.0
        %4248 = vmatpush.xpose.msra.mxu0 0.0
        %4249 = vmatpush.xpose.msra.mxu0 0.0
        %4250 = vmatpush.xpose.msra.mxu0 0.0
        %4251 = vmatpush.xpose.msra.mxu0 0.0
        %4252 = vmatpush.xpose.msra.mxu0 0.0
        %4253 = vmatpush.xpose.msra.mxu0 0.0
        %4254 = vmatpush.xpose.msra.mxu0 0.0
        %4255 = vmatpush.xpose.msra.mxu0 0.0
        %4256 = vmatpush.xpose.msra.mxu0 %v4240
        %4257 = vmatpush.xpose.msra.mxu0 %v4238
        %4258 = vmatmul.f32.gmra.mxu0 %v4234
        %v4259 = vpop.f32.mrf.mxu0
        %v4260 = vadd.f32 0.0, %v4259
        %4261 = vmatmul.f32.gmra.mxu0 %v4236
        %v4262 = vpop.f32.mrf.mxu0
        %v4263 = vadd.f32 0.0, %v4262
        %4264 = vdwg.mxu0
        %4265 = vrot.lane.b32.xlu0 %v3263, 96
        %v4266 = vpop.permute.xlu0 %4265
        %4267 = vrot.lane.b32.xlu0 %v3265, 96
        %v4268 = vpop.permute.xlu0 %4267
        %v4269 = vsel %vm3393, %v3167, 0
        %v4271 = vsel %vm3393, %v3169, 0
        %v4273 = vsel %vm3393, %v4266, 0
        %v4275 = vsel %vm3393, %v4268, 0
        %4277 = vmatpush.xpose.msra.mxu0 0.0
        %4278 = vmatpush.xpose.msra.mxu0 0.0
        %4279 = vmatpush.xpose.msra.mxu0 0.0
        %4280 = vmatpush.xpose.msra.mxu0 0.0
        %4281 = vmatpush.xpose.msra.mxu0 0.0
        %4282 = vmatpush.xpose.msra.mxu0 0.0
        %4283 = vmatpush.xpose.msra.mxu0 0.0
        %4284 = vmatpush.xpose.msra.mxu0 0.0
        %4285 = vmatpush.xpose.msra.mxu0 0.0
        %4286 = vmatpush.xpose.msra.mxu0 0.0
        %4287 = vmatpush.xpose.msra.mxu0 0.0
        %4288 = vmatpush.xpose.msra.mxu0 0.0
        %4289 = vmatpush.xpose.msra.mxu0 0.0
        %4290 = vmatpush.xpose.msra.mxu0 0.0
        %4291 = vmatpush.xpose.msra.mxu0 %v4275
        %4292 = vmatpush.xpose.msra.mxu0 %v4273
        %4293 = vmatmul.f32.gmra.mxu0 %v4269
        %v4294 = vpop.f32.mrf.mxu0
        %v4295 = vadd.f32 0.0, %v4294
        %4296 = vmatmul.f32.gmra.mxu0 %v4271
        %v4297 = vpop.f32.mrf.mxu0
        %v4298 = vadd.f32 0.0, %v4297
        %4299 = vdwg.mxu0
        %4300 = vrot.lane.b32.xlu0 %v3267, 96
        %v4301 = vpop.permute.xlu0 %4300
        %4302 = vrot.lane.b32.xlu0 %v3269, 96
        %v4303 = vpop.permute.xlu0 %4302
        %v4304 = vsel %vm3393, %v3171, 0
        %v4306 = vsel %vm3393, %v3173, 0
        %v4308 = vsel %vm3393, %v4301, 0
        %v4310 = vsel %vm3393, %v4303, 0
        %4312 = vmatpush.xpose.msra.mxu0 0.0
        %4313 = vmatpush.xpose.msra.mxu0 0.0
        %4314 = vmatpush.xpose.msra.mxu0 0.0
        %4315 = vmatpush.xpose.msra.mxu0 0.0
        %4316 = vmatpush.xpose.msra.mxu0 0.0
        %4317 = vmatpush.xpose.msra.mxu0 0.0
        %4318 = vmatpush.xpose.msra.mxu0 0.0
        %4319 = vmatpush.xpose.msra.mxu0 0.0
        %4320 = vmatpush.xpose.msra.mxu0 0.0
        %4321 = vmatpush.xpose.msra.mxu0 0.0
        %4322 = vmatpush.xpose.msra.mxu0 0.0
        %4323 = vmatpush.xpose.msra.mxu0 0.0
        %4324 = vmatpush.xpose.msra.mxu0 0.0
        %4325 = vmatpush.xpose.msra.mxu0 0.0
        %4326 = vmatpush.xpose.msra.mxu0 %v4310
        %4327 = vmatpush.xpose.msra.mxu0 %v4308
        %4328 = vmatmul.f32.gmra.mxu0 %v4304
        %v4329 = vpop.f32.mrf.mxu0
        %v4330 = vadd.f32 0.0, %v4329
        %4331 = vmatmul.f32.gmra.mxu0 %v4306
        %v4332 = vpop.f32.mrf.mxu0
        %v4333 = vadd.f32 0.0, %v4332
        %4334 = vdwg.mxu0
        %4335 = vrot.lane.b32.xlu0 %v3271, 96
        %v4336 = vpop.permute.xlu0 %4335
        %4337 = vrot.lane.b32.xlu0 %v3273, 96
        %v4338 = vpop.permute.xlu0 %4337
        %v4339 = vsel %vm3393, %v3175, 0
        %v4341 = vsel %vm3393, %v3177, 0
        %v4343 = vsel %vm3393, %v4336, 0
        %v4345 = vsel %vm3393, %v4338, 0
        %4347 = vmatpush.xpose.msra.mxu0 0.0
        %4348 = vmatpush.xpose.msra.mxu0 0.0
        %4349 = vmatpush.xpose.msra.mxu0 0.0
        %4350 = vmatpush.xpose.msra.mxu0 0.0
        %4351 = vmatpush.xpose.msra.mxu0 0.0
        %4352 = vmatpush.xpose.msra.mxu0 0.0
        %4353 = vmatpush.xpose.msra.mxu0 0.0
        %4354 = vmatpush.xpose.msra.mxu0 0.0
        %4355 = vmatpush.xpose.msra.mxu0 0.0
        %4356 = vmatpush.xpose.msra.mxu0 0.0
        %4357 = vmatpush.xpose.msra.mxu0 0.0
        %4358 = vmatpush.xpose.msra.mxu0 0.0
        %4359 = vmatpush.xpose.msra.mxu0 0.0
        %4360 = vmatpush.xpose.msra.mxu0 0.0
        %4361 = vmatpush.xpose.msra.mxu0 %v4345
        %4362 = vmatpush.xpose.msra.mxu0 %v4343
        %4363 = vmatmul.f32.gmra.mxu0 %v4339
        %v4364 = vpop.f32.mrf.mxu0
        %v4365 = vadd.f32 0.0, %v4364
        %4366 = vmatmul.f32.gmra.mxu0 %v4341
        %v4367 = vpop.f32.mrf.mxu0
        %v4368 = vadd.f32 0.0, %v4367
        %4369 = vdwg.mxu0
        %4370 = vrot.lane.b32.xlu0 %v3275, 96
        %v4371 = vpop.permute.xlu0 %4370
        %4372 = vrot.lane.b32.xlu0 %v3277, 96
        %v4373 = vpop.permute.xlu0 %4372
        %v4374 = vsel %vm3393, %v3179, 0
        %v4376 = vsel %vm3393, %v3181, 0
        %v4378 = vsel %vm3393, %v4371, 0
        %v4380 = vsel %vm3393, %v4373, 0
        %4382 = vmatpush.xpose.msra.mxu0 0.0
        %4383 = vmatpush.xpose.msra.mxu0 0.0
        %4384 = vmatpush.xpose.msra.mxu0 0.0
        %4385 = vmatpush.xpose.msra.mxu0 0.0
        %4386 = vmatpush.xpose.msra.mxu0 0.0
        %4387 = vmatpush.xpose.msra.mxu0 0.0
        %4388 = vmatpush.xpose.msra.mxu0 0.0
        %4389 = vmatpush.xpose.msra.mxu0 0.0
        %4390 = vmatpush.xpose.msra.mxu0 0.0
        %4391 = vmatpush.xpose.msra.mxu0 0.0
        %4392 = vmatpush.xpose.msra.mxu0 0.0
        %4393 = vmatpush.xpose.msra.mxu0 0.0
        %4394 = vmatpush.xpose.msra.mxu0 0.0
        %4395 = vmatpush.xpose.msra.mxu0 0.0
        %4396 = vmatpush.xpose.msra.mxu0 %v4380
        %4397 = vmatpush.xpose.msra.mxu0 %v4378
        %4398 = vmatmul.f32.gmra.mxu0 %v4374
        %v4399 = vpop.f32.mrf.mxu0
        %v4400 = vadd.f32 0.0, %v4399
        %4401 = vmatmul.f32.gmra.mxu0 %v4376
        %v4402 = vpop.f32.mrf.mxu0
        %v4403 = vadd.f32 0.0, %v4402
        %4404 = vdwg.mxu0
        %4405 = vrot.lane.b32.xlu0 %v3279, 96
        %v4406 = vpop.permute.xlu0 %4405
        %4407 = vrot.lane.b32.xlu0 %v3281, 96
        %v4408 = vpop.permute.xlu0 %4407
        %v4409 = vsel %vm3393, %v3183, 0
        %v4411 = vsel %vm3393, %v3185, 0
        %v4413 = vsel %vm3393, %v4406, 0
        %v4415 = vsel %vm3393, %v4408, 0
        %4417 = vmatpush.xpose.msra.mxu0 0.0
        %4418 = vmatpush.xpose.msra.mxu0 0.0
        %4419 = vmatpush.xpose.msra.mxu0 0.0
        %4420 = vmatpush.xpose.msra.mxu0 0.0
        %4421 = vmatpush.xpose.msra.mxu0 0.0
        %4422 = vmatpush.xpose.msra.mxu0 0.0
        %4423 = vmatpush.xpose.msra.mxu0 0.0
        %4424 = vmatpush.xpose.msra.mxu0 0.0
        %4425 = vmatpush.xpose.msra.mxu0 0.0
        %4426 = vmatpush.xpose.msra.mxu0 0.0
        %4427 = vmatpush.xpose.msra.mxu0 0.0
        %4428 = vmatpush.xpose.msra.mxu0 0.0
        %4429 = vmatpush.xpose.msra.mxu0 0.0
        %4430 = vmatpush.xpose.msra.mxu0 0.0
        %4431 = vmatpush.xpose.msra.mxu0 %v4415
        %4432 = vmatpush.xpose.msra.mxu0 %v4413
        %4433 = vmatmul.f32.gmra.mxu0 %v4409
        %v4434 = vpop.f32.mrf.mxu0
        %v4435 = vadd.f32 0.0, %v4434
        %4436 = vmatmul.f32.gmra.mxu0 %v4411
        %v4437 = vpop.f32.mrf.mxu0
        %v4438 = vadd.f32 0.0, %v4437
        %4439 = vdwg.mxu0
        %4440 = vrot.lane.b32.xlu0 %v3283, 96
        %v4441 = vpop.permute.xlu0 %4440
        %4442 = vrot.lane.b32.xlu0 %v3285, 96
        %v4443 = vpop.permute.xlu0 %4442
        %v4444 = vsel %vm3393, %v3187, 0
        %v4446 = vsel %vm3393, %v3189, 0
        %v4448 = vsel %vm3393, %v4441, 0
        %v4450 = vsel %vm3393, %v4443, 0
        %4452 = vmatpush.xpose.msra.mxu0 0.0
        %4453 = vmatpush.xpose.msra.mxu0 0.0
        %4454 = vmatpush.xpose.msra.mxu0 0.0
        %4455 = vmatpush.xpose.msra.mxu0 0.0
        %4456 = vmatpush.xpose.msra.mxu0 0.0
        %4457 = vmatpush.xpose.msra.mxu0 0.0
        %4458 = vmatpush.xpose.msra.mxu0 0.0
        %4459 = vmatpush.xpose.msra.mxu0 0.0
        %4460 = vmatpush.xpose.msra.mxu0 0.0
        %4461 = vmatpush.xpose.msra.mxu0 0.0
        %4462 = vmatpush.xpose.msra.mxu0 0.0
        %4463 = vmatpush.xpose.msra.mxu0 0.0
        %4464 = vmatpush.xpose.msra.mxu0 0.0
        %4465 = vmatpush.xpose.msra.mxu0 0.0
        %4466 = vmatpush.xpose.msra.mxu0 %v4450
        %4467 = vmatpush.xpose.msra.mxu0 %v4448
        %4468 = vmatmul.f32.gmra.mxu0 %v4444
        %v4469 = vpop.f32.mrf.mxu0
        %v4470 = vadd.f32 0.0, %v4469
        %4471 = vmatmul.f32.gmra.mxu0 %v4446
        %v4472 = vpop.f32.mrf.mxu0
        %v4473 = vadd.f32 0.0, %v4472
        %4474 = vdwg.mxu0
        %4475 = vrot.lane.b32.xlu0 %v3287, 96
        %v4476 = vpop.permute.xlu0 %4475
        %4477 = vrot.lane.b32.xlu0 %v3289, 96
        %v4478 = vpop.permute.xlu0 %4477
        %v4479 = vsel %vm3393, %v3191, 0
        %v4481 = vsel %vm3393, %v3193, 0
        %v4483 = vsel %vm3393, %v4476, 0
        %v4485 = vsel %vm3393, %v4478, 0
        %4487 = vmatpush.xpose.msra.mxu0 0.0
        %4488 = vmatpush.xpose.msra.mxu0 0.0
        %4489 = vmatpush.xpose.msra.mxu0 0.0
        %4490 = vmatpush.xpose.msra.mxu0 0.0
        %4491 = vmatpush.xpose.msra.mxu0 0.0
        %4492 = vmatpush.xpose.msra.mxu0 0.0
        %4493 = vmatpush.xpose.msra.mxu0 0.0
        %4494 = vmatpush.xpose.msra.mxu0 0.0
        %4495 = vmatpush.xpose.msra.mxu0 0.0
        %4496 = vmatpush.xpose.msra.mxu0 0.0
        %4497 = vmatpush.xpose.msra.mxu0 0.0
        %4498 = vmatpush.xpose.msra.mxu0 0.0
        %4499 = vmatpush.xpose.msra.mxu0 0.0
        %4500 = vmatpush.xpose.msra.mxu0 0.0
        %4501 = vmatpush.xpose.msra.mxu0 %v4485
        %4502 = vmatpush.xpose.msra.mxu0 %v4483
        %4503 = vmatmul.f32.gmra.mxu0 %v4479
        %v4504 = vpop.f32.mrf.mxu0
        %v4505 = vadd.f32 0.0, %v4504
        %4506 = vmatmul.f32.gmra.mxu0 %v4481
        %v4507 = vpop.f32.mrf.mxu0
        %v4508 = vadd.f32 0.0, %v4507
        %4509 = vdwg.mxu0
        %v4510 = vsel %vm3388, 1, 0
        %vm4511 = vcmp.eq.s32.totalorder %v4510, 1
        %v4512 = vsel %vm4511, %v3420, -1e+30
        %v4513 = vsel %vm4511, %v3423, -1e+30
        %v4514 = vsel %vm4511, %v3455, -1e+30
        %v4515 = vsel %vm4511, %v3458, -1e+30
        %v4516 = vsel %vm4511, %v3490, -1e+30
        %v4517 = vsel %vm4511, %v3493, -1e+30
        %v4518 = vsel %vm4511, %v3525, -1e+30
        %v4519 = vsel %vm4511, %v3528, -1e+30
        %v4520 = vsel %vm4511, %v3560, -1e+30
        %v4521 = vsel %vm4511, %v3563, -1e+30
        %v4522 = vsel %vm4511, %v3595, -1e+30
        %v4523 = vsel %vm4511, %v3598, -1e+30
        %v4524 = vsel %vm4511, %v3630, -1e+30
        %v4525 = vsel %vm4511, %v3633, -1e+30
        %v4526 = vsel %vm4511, %v3665, -1e+30
        %v4527 = vsel %vm4511, %v3668, -1e+30
        %v4528 = vsel %vm4511, %v3700, -1e+30
        %v4529 = vsel %vm4511, %v3703, -1e+30
        %v4530 = vsel %vm4511, %v3735, -1e+30
        %v4531 = vsel %vm4511, %v3738, -1e+30
        %v4532 = vsel %vm4511, %v3770, -1e+30
        %v4533 = vsel %vm4511, %v3773, -1e+30
        %v4534 = vsel %vm4511, %v3805, -1e+30
        %v4535 = vsel %vm4511, %v3808, -1e+30
        %v4536 = vsel %vm4511, %v3840, -1e+30
        %v4537 = vsel %vm4511, %v3843, -1e+30
        %v4538 = vsel %vm4511, %v3875, -1e+30
        %v4539 = vsel %vm4511, %v3878, -1e+30
        %v4540 = vsel %vm4511, %v3910, -1e+30
        %v4541 = vsel %vm4511, %v3913, -1e+30
        %v4542 = vsel %vm4511, %v3945, -1e+30
        %v4543 = vsel %vm4511, %v3948, -1e+30
        %v4544 = vsel %vm4511, %v3980, -1e+30
        %v4545 = vsel %vm4511, %v3983, -1e+30
        %v4546 = vsel %vm4511, %v4015, -1e+30
        %v4547 = vsel %vm4511, %v4018, -1e+30
        %v4548 = vsel %vm4511, %v4050, -1e+30
        %v4549 = vsel %vm4511, %v4053, -1e+30
        %v4550 = vsel %vm4511, %v4085, -1e+30
        %v4551 = vsel %vm4511, %v4088, -1e+30
        %v4552 = vsel %vm4511, %v4120, -1e+30
        %v4553 = vsel %vm4511, %v4123, -1e+30
        %v4554 = vsel %vm4511, %v4155, -1e+30
        %v4555 = vsel %vm4511, %v4158, -1e+30
        %v4556 = vsel %vm4511, %v4190, -1e+30
        %v4557 = vsel %vm4511, %v4193, -1e+30
        %v4558 = vsel %vm4511, %v4225, -1e+30
        %v4559 = vsel %vm4511, %v4228, -1e+30
        %v4560 = vsel %vm4511, %v4260, -1e+30
        %v4561 = vsel %vm4511, %v4263, -1e+30
        %v4562 = vsel %vm4511, %v4295, -1e+30
        %v4563 = vsel %vm4511, %v4298, -1e+30
        %v4564 = vsel %vm4511, %v4330, -1e+30
        %v4565 = vsel %vm4511, %v4333, -1e+30
        %v4566 = vsel %vm4511, %v4365, -1e+30
        %v4567 = vsel %vm4511, %v4368, -1e+30
        %v4568 = vsel %vm4511, %v4400, -1e+30
        %v4569 = vsel %vm4511, %v4403, -1e+30
        %v4570 = vsel %vm4511, %v4435, -1e+30
        %v4571 = vsel %vm4511, %v4438, -1e+30
        %v4572 = vsel %vm4511, %v4470, -1e+30
        %v4573 = vsel %vm4511, %v4473, -1e+30
        %v4574 = vsel %vm4511, %v4505, -1e+30
        %v4575 = vsel %vm4511, %v4508, -1e+30
        %v4576 = vsel %vm3393, %v4512, -inf
        %4577 = vmax.xlane.f32.xlu0 %v4576
        %v4578 = vpop.xlane.xlu0 %4577
        %v4579 = vsel %vm3393, %v4513, -inf
        %4580 = vmax.xlane.f32.xlu0 %v4579
        %v4581 = vpop.xlane.xlu0 %4580
        %v4582 = vsel %vm3393, %v4514, -inf
        %4583 = vmax.xlane.f32.xlu0 %v4582
        %v4584 = vpop.xlane.xlu0 %4583
        %v4585 = vsel %vm3393, %v4515, -inf
        %4586 = vmax.xlane.f32.xlu0 %v4585
        %v4587 = vpop.xlane.xlu0 %4586
        %v4588 = vsel %vm3393, %v4516, -inf
        %4589 = vmax.xlane.f32.xlu0 %v4588
        %v4590 = vpop.xlane.xlu0 %4589
        %v4591 = vsel %vm3393, %v4517, -inf
        %4592 = vmax.xlane.f32.xlu0 %v4591
        %v4593 = vpop.xlane.xlu0 %4592
        %v4594 = vsel %vm3393, %v4518, -inf
        %4595 = vmax.xlane.f32.xlu0 %v4594
        %v4596 = vpop.xlane.xlu0 %4595
        %v4597 = vsel %vm3393, %v4519, -inf
        %4598 = vmax.xlane.f32.xlu0 %v4597
        %v4599 = vpop.xlane.xlu0 %4598
        %v4600 = vsel %vm3393, %v4520, -inf
        %4601 = vmax.xlane.f32.xlu0 %v4600
        %v4602 = vpop.xlane.xlu0 %4601
        %v4603 = vsel %vm3393, %v4521, -inf
        %4604 = vmax.xlane.f32.xlu0 %v4603
        %v4605 = vpop.xlane.xlu0 %4604
        %v4606 = vsel %vm3393, %v4522, -inf
        %4607 = vmax.xlane.f32.xlu0 %v4606
        %v4608 = vpop.xlane.xlu0 %4607
        %v4609 = vsel %vm3393, %v4523, -inf
        %4610 = vmax.xlane.f32.xlu0 %v4609
        %v4611 = vpop.xlane.xlu0 %4610
        %v4612 = vsel %vm3393, %v4524, -inf
        %4613 = vmax.xlane.f32.xlu0 %v4612
        %v4614 = vpop.xlane.xlu0 %4613
        %v4615 = vsel %vm3393, %v4525, -inf
        %4616 = vmax.xlane.f32.xlu0 %v4615
        %v4617 = vpop.xlane.xlu0 %4616
        %v4618 = vsel %vm3393, %v4526, -inf
        %4619 = vmax.xlane.f32.xlu0 %v4618
        %v4620 = vpop.xlane.xlu0 %4619
        %v4621 = vsel %vm3393, %v4527, -inf
        %4622 = vmax.xlane.f32.xlu0 %v4621
        %v4623 = vpop.xlane.xlu0 %4622
        %v4624 = vsel %vm3393, %v4528, -inf
        %4625 = vmax.xlane.f32.xlu0 %v4624
        %v4626 = vpop.xlane.xlu0 %4625
        %v4627 = vsel %vm3393, %v4529, -inf
        %4628 = vmax.xlane.f32.xlu0 %v4627
        %v4629 = vpop.xlane.xlu0 %4628
        %v4630 = vsel %vm3393, %v4530, -inf
        %4631 = vmax.xlane.f32.xlu0 %v4630
        %v4632 = vpop.xlane.xlu0 %4631
        %v4633 = vsel %vm3393, %v4531, -inf
        %4634 = vmax.xlane.f32.xlu0 %v4633
        %v4635 = vpop.xlane.xlu0 %4634
        %v4636 = vsel %vm3393, %v4532, -inf
        %4637 = vmax.xlane.f32.xlu0 %v4636
        %v4638 = vpop.xlane.xlu0 %4637
        %v4639 = vsel %vm3393, %v4533, -inf
        %4640 = vmax.xlane.f32.xlu0 %v4639
        %v4641 = vpop.xlane.xlu0 %4640
        %v4642 = vsel %vm3393, %v4534, -inf
        %4643 = vmax.xlane.f32.xlu0 %v4642
        %v4644 = vpop.xlane.xlu0 %4643
        %v4645 = vsel %vm3393, %v4535, -inf
        %4646 = vmax.xlane.f32.xlu0 %v4645
        %v4647 = vpop.xlane.xlu0 %4646
        %v4648 = vsel %vm3393, %v4536, -inf
        %4649 = vmax.xlane.f32.xlu0 %v4648
        %v4650 = vpop.xlane.xlu0 %4649
        %v4651 = vsel %vm3393, %v4537, -inf
        %4652 = vmax.xlane.f32.xlu0 %v4651
        %v4653 = vpop.xlane.xlu0 %4652
        %v4654 = vsel %vm3393, %v4538, -inf
        %4655 = vmax.xlane.f32.xlu0 %v4654
        %v4656 = vpop.xlane.xlu0 %4655
        %v4657 = vsel %vm3393, %v4539, -inf
        %4658 = vmax.xlane.f32.xlu0 %v4657
        %v4659 = vpop.xlane.xlu0 %4658
        %v4660 = vsel %vm3393, %v4540, -inf
        %4661 = vmax.xlane.f32.xlu0 %v4660
        %v4662 = vpop.xlane.xlu0 %4661
        %v4663 = vsel %vm3393, %v4541, -inf
        %4664 = vmax.xlane.f32.xlu0 %v4663
        %v4665 = vpop.xlane.xlu0 %4664
        %v4666 = vsel %vm3393, %v4542, -inf
        %4667 = vmax.xlane.f32.xlu0 %v4666
        %v4668 = vpop.xlane.xlu0 %4667
        %v4669 = vsel %vm3393, %v4543, -inf
        %4670 = vmax.xlane.f32.xlu0 %v4669
        %v4671 = vpop.xlane.xlu0 %4670
        %v4672 = vsel %vm3393, %v4544, -inf
        %4673 = vmax.xlane.f32.xlu0 %v4672
        %v4674 = vpop.xlane.xlu0 %4673
        %v4675 = vsel %vm3393, %v4545, -inf
        %4676 = vmax.xlane.f32.xlu0 %v4675
        %v4677 = vpop.xlane.xlu0 %4676
        %v4678 = vsel %vm3393, %v4546, -inf
        %4679 = vmax.xlane.f32.xlu0 %v4678
        %v4680 = vpop.xlane.xlu0 %4679
        %v4681 = vsel %vm3393, %v4547, -inf
        %4682 = vmax.xlane.f32.xlu0 %v4681
        %v4683 = vpop.xlane.xlu0 %4682
        %v4684 = vsel %vm3393, %v4548, -inf
        %4685 = vmax.xlane.f32.xlu0 %v4684
        %v4686 = vpop.xlane.xlu0 %4685
        %v4687 = vsel %vm3393, %v4549, -inf
        %4688 = vmax.xlane.f32.xlu0 %v4687
        %v4689 = vpop.xlane.xlu0 %4688
        %v4690 = vsel %vm3393, %v4550, -inf
        %4691 = vmax.xlane.f32.xlu0 %v4690
        %v4692 = vpop.xlane.xlu0 %4691
        %v4693 = vsel %vm3393, %v4551, -inf
        %4694 = vmax.xlane.f32.xlu0 %v4693
        %v4695 = vpop.xlane.xlu0 %4694
        %v4696 = vsel %vm3393, %v4552, -inf
        %4697 = vmax.xlane.f32.xlu0 %v4696
        %v4698 = vpop.xlane.xlu0 %4697
        %v4699 = vsel %vm3393, %v4553, -inf
        %4700 = vmax.xlane.f32.xlu0 %v4699
        %v4701 = vpop.xlane.xlu0 %4700
        %v4702 = vsel %vm3393, %v4554, -inf
        %4703 = vmax.xlane.f32.xlu0 %v4702
        %v4704 = vpop.xlane.xlu0 %4703
        %v4705 = vsel %vm3393, %v4555, -inf
        %4706 = vmax.xlane.f32.xlu0 %v4705
        %v4707 = vpop.xlane.xlu0 %4706
        %v4708 = vsel %vm3393, %v4556, -inf
        %4709 = vmax.xlane.f32.xlu0 %v4708
        %v4710 = vpop.xlane.xlu0 %4709
        %v4711 = vsel %vm3393, %v4557, -inf
        %4712 = vmax.xlane.f32.xlu0 %v4711
        %v4713 = vpop.xlane.xlu0 %4712
        %v4714 = vsel %vm3393, %v4558, -inf
        %4715 = vmax.xlane.f32.xlu0 %v4714
        %v4716 = vpop.xlane.xlu0 %4715
        %v4717 = vsel %vm3393, %v4559, -inf
        %4718 = vmax.xlane.f32.xlu0 %v4717
        %v4719 = vpop.xlane.xlu0 %4718
        %v4720 = vsel %vm3393, %v4560, -inf
        %4721 = vmax.xlane.f32.xlu0 %v4720
        %v4722 = vpop.xlane.xlu0 %4721
        %v4723 = vsel %vm3393, %v4561, -inf
        %4724 = vmax.xlane.f32.xlu0 %v4723
        %v4725 = vpop.xlane.xlu0 %4724
        %v4726 = vsel %vm3393, %v4562, -inf
        %4727 = vmax.xlane.f32.xlu0 %v4726
        %v4728 = vpop.xlane.xlu0 %4727
        %v4729 = vsel %vm3393, %v4563, -inf
        %4730 = vmax.xlane.f32.xlu0 %v4729
        %v4731 = vpop.xlane.xlu0 %4730
        %v4732 = vsel %vm3393, %v4564, -inf
        %4733 = vmax.xlane.f32.xlu0 %v4732
        %v4734 = vpop.xlane.xlu0 %4733
        %v4735 = vsel %vm3393, %v4565, -inf
        %4736 = vmax.xlane.f32.xlu0 %v4735
        %v4737 = vpop.xlane.xlu0 %4736
        %v4738 = vsel %vm3393, %v4566, -inf
        %4739 = vmax.xlane.f32.xlu0 %v4738
        %v4740 = vpop.xlane.xlu0 %4739
        %v4741 = vsel %vm3393, %v4567, -inf
        %4742 = vmax.xlane.f32.xlu0 %v4741
        %v4743 = vpop.xlane.xlu0 %4742
        %v4744 = vsel %vm3393, %v4568, -inf
        %4745 = vmax.xlane.f32.xlu0 %v4744
        %v4746 = vpop.xlane.xlu0 %4745
        %v4747 = vsel %vm3393, %v4569, -inf
        %4748 = vmax.xlane.f32.xlu0 %v4747
        %v4749 = vpop.xlane.xlu0 %4748
        %v4750 = vsel %vm3393, %v4570, -inf
        %4751 = vmax.xlane.f32.xlu0 %v4750
        %v4752 = vpop.xlane.xlu0 %4751
        %v4753 = vsel %vm3393, %v4571, -inf
        %4754 = vmax.xlane.f32.xlu0 %v4753
        %v4755 = vpop.xlane.xlu0 %4754
        %v4756 = vsel %vm3393, %v4572, -inf
        %4757 = vmax.xlane.f32.xlu0 %v4756
        %v4758 = vpop.xlane.xlu0 %4757
        %v4759 = vsel %vm3393, %v4573, -inf
        %4760 = vmax.xlane.f32.xlu0 %v4759
        %v4761 = vpop.xlane.xlu0 %4760
        %v4762 = vsel %vm3393, %v4574, -inf
        %4763 = vmax.xlane.f32.xlu0 %v4762
        %v4764 = vpop.xlane.xlu0 %4763
        %v4765 = vsel %vm3393, %v4575, -inf
        %4766 = vmax.xlane.f32.xlu0 %v4765
        %v4767 = vpop.xlane.xlu0 %4766
        %v4768 = vsub.f32 %v4512, %v4578
        %v4769 = vsub.f32 %v4513, %v4581
        %v4770 = vsub.f32 %v4514, %v4584
        %v4771 = vsub.f32 %v4515, %v4587
        %v4772 = vsub.f32 %v4516, %v4590
        %v4773 = vsub.f32 %v4517, %v4593
        %v4774 = vsub.f32 %v4518, %v4596
        %v4775 = vsub.f32 %v4519, %v4599
        %v4776 = vsub.f32 %v4520, %v4602
        %v4777 = vsub.f32 %v4521, %v4605
        %v4778 = vsub.f32 %v4522, %v4608
        %v4779 = vsub.f32 %v4523, %v4611
        %v4780 = vsub.f32 %v4524, %v4614
        %v4781 = vsub.f32 %v4525, %v4617
        %v4782 = vsub.f32 %v4526, %v4620
        %v4783 = vsub.f32 %v4527, %v4623
        %v4784 = vsub.f32 %v4528, %v4626
        %v4785 = vsub.f32 %v4529, %v4629
        %v4786 = vsub.f32 %v4530, %v4632
        %v4787 = vsub.f32 %v4531, %v4635
        %v4788 = vsub.f32 %v4532, %v4638
        %v4789 = vsub.f32 %v4533, %v4641
        %v4790 = vsub.f32 %v4534, %v4644
        %v4791 = vsub.f32 %v4535, %v4647
        %v4792 = vsub.f32 %v4536, %v4650
        %v4793 = vsub.f32 %v4537, %v4653
        %v4794 = vsub.f32 %v4538, %v4656
        %v4795 = vsub.f32 %v4539, %v4659
        %v4796 = vsub.f32 %v4540, %v4662
        %v4797 = vsub.f32 %v4541, %v4665
        %v4798 = vsub.f32 %v4542, %v4668
        %v4799 = vsub.f32 %v4543, %v4671
        %v4800 = vsub.f32 %v4544, %v4674
        %v4801 = vsub.f32 %v4545, %v4677
        %v4802 = vsub.f32 %v4546, %v4680
        %v4803 = vsub.f32 %v4547, %v4683
        %v4804 = vsub.f32 %v4548, %v4686
        %v4805 = vsub.f32 %v4549, %v4689
        %v4806 = vsub.f32 %v4550, %v4692
        %v4807 = vsub.f32 %v4551, %v4695
        %v4808 = vsub.f32 %v4552, %v4698
        %v4809 = vsub.f32 %v4553, %v4701
        %v4810 = vsub.f32 %v4554, %v4704
        %v4811 = vsub.f32 %v4555, %v4707
        %v4812 = vsub.f32 %v4556, %v4710
        %v4813 = vsub.f32 %v4557, %v4713
        %v4814 = vsub.f32 %v4558, %v4716
        %v4815 = vsub.f32 %v4559, %v4719
        %v4816 = vsub.f32 %v4560, %v4722
        %v4817 = vsub.f32 %v4561, %v4725
        %v4818 = vsub.f32 %v4562, %v4728
        %v4819 = vsub.f32 %v4563, %v4731
        %v4820 = vsub.f32 %v4564, %v4734
        %v4821 = vsub.f32 %v4565, %v4737
        %v4822 = vsub.f32 %v4566, %v4740
        %v4823 = vsub.f32 %v4567, %v4743
        %v4824 = vsub.f32 %v4568, %v4746
        %v4825 = vsub.f32 %v4569, %v4749
        %v4826 = vsub.f32 %v4570, %v4752
        %v4827 = vsub.f32 %v4571, %v4755
        %v4828 = vsub.f32 %v4572, %v4758
        %v4829 = vsub.f32 %v4573, %v4761
        %v4830 = vsub.f32 %v4574, %v4764
        %v4831 = vsub.f32 %v4575, %v4767
        %v4832 = vmul.f32 %v4768, 1.442695
        %v4833 = vpow.pop %v4832
        %v4834 = vmul.f32 %v4769, 1.442695
        %v4835 = vpow.pop %v4834
        %v4836 = vmul.f32 %v4770, 1.442695
        %v4837 = vpow.pop %v4836
        %v4838 = vmul.f32 %v4771, 1.442695
        %v4839 = vpow.pop %v4838
        %v4840 = vmul.f32 %v4772, 1.442695
        %v4841 = vpow.pop %v4840
        %v4842 = vmul.f32 %v4773, 1.442695
        %v4843 = vpow.pop %v4842
        %v4844 = vmul.f32 %v4774, 1.442695
        %v4845 = vpow.pop %v4844
        %v4846 = vmul.f32 %v4775, 1.442695
        %v4847 = vpow.pop %v4846
        %v4848 = vmul.f32 %v4776, 1.442695
        %v4849 = vpow.pop %v4848
        %v4850 = vmul.f32 %v4777, 1.442695
        %v4851 = vpow.pop %v4850
        %v4852 = vmul.f32 %v4778, 1.442695
        %v4853 = vpow.pop %v4852
        %v4854 = vmul.f32 %v4779, 1.442695
        %v4855 = vpow.pop %v4854
        %v4856 = vmul.f32 %v4780, 1.442695
        %v4857 = vpow.pop %v4856
        %v4858 = vmul.f32 %v4781, 1.442695
        %v4859 = vpow.pop %v4858
        %v4860 = vmul.f32 %v4782, 1.442695
        %v4861 = vpow.pop %v4860
        %v4862 = vmul.f32 %v4783, 1.442695
        %v4863 = vpow.pop %v4862
        %v4864 = vmul.f32 %v4784, 1.442695
        %v4865 = vpow.pop %v4864
        %v4866 = vmul.f32 %v4785, 1.442695
        %v4867 = vpow.pop %v4866
        %v4868 = vmul.f32 %v4786, 1.442695
        %v4869 = vpow.pop %v4868
        %v4870 = vmul.f32 %v4787, 1.442695
        %v4871 = vpow.pop %v4870
        %v4872 = vmul.f32 %v4788, 1.442695
        %v4873 = vpow.pop %v4872
        %v4874 = vmul.f32 %v4789, 1.442695
        %v4875 = vpow.pop %v4874
        %v4876 = vmul.f32 %v4790, 1.442695
        %v4877 = vpow.pop %v4876
        %v4878 = vmul.f32 %v4791, 1.442695
        %v4879 = vpow.pop %v4878
        %v4880 = vmul.f32 %v4792, 1.442695
        %v4881 = vpow.pop %v4880
        %v4882 = vmul.f32 %v4793, 1.442695
        %v4883 = vpow.pop %v4882
        %v4884 = vmul.f32 %v4794, 1.442695
        %v4885 = vpow.pop %v4884
        %v4886 = vmul.f32 %v4795, 1.442695
        %v4887 = vpow.pop %v4886
        %v4888 = vmul.f32 %v4796, 1.442695
        %v4889 = vpow.pop %v4888
        %v4890 = vmul.f32 %v4797, 1.442695
        %v4891 = vpow.pop %v4890
        %v4892 = vmul.f32 %v4798, 1.442695
        %v4893 = vpow.pop %v4892
        %v4894 = vmul.f32 %v4799, 1.442695
        %v4895 = vpow.pop %v4894
        %v4896 = vmul.f32 %v4800, 1.442695
        %v4897 = vpow.pop %v4896
        %v4898 = vmul.f32 %v4801, 1.442695
        %v4899 = vpow.pop %v4898
        %v4900 = vmul.f32 %v4802, 1.442695
        %v4901 = vpow.pop %v4900
        %v4902 = vmul.f32 %v4803, 1.442695
        %v4903 = vpow.pop %v4902
        %v4904 = vmul.f32 %v4804, 1.442695
        %v4905 = vpow.pop %v4904
        %v4906 = vmul.f32 %v4805, 1.442695
        %v4907 = vpow.pop %v4906
        %v4908 = vmul.f32 %v4806, 1.442695
        %v4909 = vpow.pop %v4908
        %v4910 = vmul.f32 %v4807, 1.442695
        %v4911 = vpow.pop %v4910
        %v4912 = vmul.f32 %v4808, 1.442695
        %v4913 = vpow.pop %v4912
        %v4914 = vmul.f32 %v4809, 1.442695
        %v4915 = vpow.pop %v4914
        %v4916 = vmul.f32 %v4810, 1.442695
        %v4917 = vpow.pop %v4916
        %v4918 = vmul.f32 %v4811, 1.442695
        %v4919 = vpow.pop %v4918
        %v4920 = vmul.f32 %v4812, 1.442695
        %v4921 = vpow.pop %v4920
        %v4922 = vmul.f32 %v4813, 1.442695
        %v4923 = vpow.pop %v4922
        %v4924 = vmul.f32 %v4814, 1.442695
        %v4925 = vpow.pop %v4924
        %v4926 = vmul.f32 %v4815, 1.442695
        %v4927 = vpow.pop %v4926
        %v4928 = vmul.f32 %v4816, 1.442695
        %v4929 = vpow.pop %v4928
        %v4930 = vmul.f32 %v4817, 1.442695
        %v4931 = vpow.pop %v4930
        %v4932 = vmul.f32 %v4818, 1.442695
        %v4933 = vpow.pop %v4932
        %v4934 = vmul.f32 %v4819, 1.442695
        %v4935 = vpow.pop %v4934
        %v4936 = vmul.f32 %v4820, 1.442695
        %v4937 = vpow.pop %v4936
        %v4938 = vmul.f32 %v4821, 1.442695
        %v4939 = vpow.pop %v4938
        %v4940 = vmul.f32 %v4822, 1.442695
        %v4941 = vpow.pop %v4940
        %v4942 = vmul.f32 %v4823, 1.442695
        %v4943 = vpow.pop %v4942
        %v4944 = vmul.f32 %v4824, 1.442695
        %v4945 = vpow.pop %v4944
        %v4946 = vmul.f32 %v4825, 1.442695
        %v4947 = vpow.pop %v4946
        %v4948 = vmul.f32 %v4826, 1.442695
        %v4949 = vpow.pop %v4948
        %v4950 = vmul.f32 %v4827, 1.442695
        %v4951 = vpow.pop %v4950
        %v4952 = vmul.f32 %v4828, 1.442695
        %v4953 = vpow.pop %v4952
        %v4954 = vmul.f32 %v4829, 1.442695
        %v4955 = vpow.pop %v4954
        %v4956 = vmul.f32 %v4830, 1.442695
        %v4957 = vpow.pop %v4956
        %v4958 = vmul.f32 %v4831, 1.442695
        %v4959 = vpow.pop %v4958
        %v4960 = vsel %vm3393, %v4833, 0.0
        %4961 = vadd.xlane.f32.xlu0 %v4960
        %v4962 = vpop.xlane.xlu0 %4961
        %v4963 = vsel %vm3393, %v4835, 0.0
        %4964 = vadd.xlane.f32.xlu0 %v4963
        %v4965 = vpop.xlane.xlu0 %4964
        %v4966 = vsel %vm3393, %v4837, 0.0
        %4967 = vadd.xlane.f32.xlu0 %v4966
        %v4968 = vpop.xlane.xlu0 %4967
        %v4969 = vsel %vm3393, %v4839, 0.0
        %4970 = vadd.xlane.f32.xlu0 %v4969
        %v4971 = vpop.xlane.xlu0 %4970
        %v4972 = vsel %vm3393, %v4841, 0.0
        %4973 = vadd.xlane.f32.xlu0 %v4972
        %v4974 = vpop.xlane.xlu0 %4973
        %v4975 = vsel %vm3393, %v4843, 0.0
        %4976 = vadd.xlane.f32.xlu0 %v4975
        %v4977 = vpop.xlane.xlu0 %4976
        %v4978 = vsel %vm3393, %v4845, 0.0
        %4979 = vadd.xlane.f32.xlu0 %v4978
        %v4980 = vpop.xlane.xlu0 %4979
        %v4981 = vsel %vm3393, %v4847, 0.0
        %4982 = vadd.xlane.f32.xlu0 %v4981
        %v4983 = vpop.xlane.xlu0 %4982
        %v4984 = vsel %vm3393, %v4849, 0.0
        %4985 = vadd.xlane.f32.xlu0 %v4984
        %v4986 = vpop.xlane.xlu0 %4985
        %v4987 = vsel %vm3393, %v4851, 0.0
        %4988 = vadd.xlane.f32.xlu0 %v4987
        %v4989 = vpop.xlane.xlu0 %4988
        %v4990 = vsel %vm3393, %v4853, 0.0
        %4991 = vadd.xlane.f32.xlu0 %v4990
        %v4992 = vpop.xlane.xlu0 %4991
        %v4993 = vsel %vm3393, %v4855, 0.0
        %4994 = vadd.xlane.f32.xlu0 %v4993
        %v4995 = vpop.xlane.xlu0 %4994
        %v4996 = vsel %vm3393, %v4857, 0.0
        %4997 = vadd.xlane.f32.xlu0 %v4996
        %v4998 = vpop.xlane.xlu0 %4997
        %v4999 = vsel %vm3393, %v4859, 0.0
        %5000 = vadd.xlane.f32.xlu0 %v4999
        %v5001 = vpop.xlane.xlu0 %5000
        %v5002 = vsel %vm3393, %v4861, 0.0
        %5003 = vadd.xlane.f32.xlu0 %v5002
        %v5004 = vpop.xlane.xlu0 %5003
        %v5005 = vsel %vm3393, %v4863, 0.0
        %5006 = vadd.xlane.f32.xlu0 %v5005
        %v5007 = vpop.xlane.xlu0 %5006
        %v5008 = vsel %vm3393, %v4865, 0.0
        %5009 = vadd.xlane.f32.xlu0 %v5008
        %v5010 = vpop.xlane.xlu0 %5009
        %v5011 = vsel %vm3393, %v4867, 0.0
        %5012 = vadd.xlane.f32.xlu0 %v5011
        %v5013 = vpop.xlane.xlu0 %5012
        %v5014 = vsel %vm3393, %v4869, 0.0
        %5015 = vadd.xlane.f32.xlu0 %v5014
        %v5016 = vpop.xlane.xlu0 %5015
        %v5017 = vsel %vm3393, %v4871, 0.0
        %5018 = vadd.xlane.f32.xlu0 %v5017
        %v5019 = vpop.xlane.xlu0 %5018
        %v5020 = vsel %vm3393, %v4873, 0.0
        %5021 = vadd.xlane.f32.xlu0 %v5020
        %v5022 = vpop.xlane.xlu0 %5021
        %v5023 = vsel %vm3393, %v4875, 0.0
        %5024 = vadd.xlane.f32.xlu0 %v5023
        %v5025 = vpop.xlane.xlu0 %5024
        %v5026 = vsel %vm3393, %v4877, 0.0
        %5027 = vadd.xlane.f32.xlu0 %v5026
        %v5028 = vpop.xlane.xlu0 %5027
        %v5029 = vsel %vm3393, %v4879, 0.0
        %5030 = vadd.xlane.f32.xlu0 %v5029
        %v5031 = vpop.xlane.xlu0 %5030
        %v5032 = vsel %vm3393, %v4881, 0.0
        %5033 = vadd.xlane.f32.xlu0 %v5032
        %v5034 = vpop.xlane.xlu0 %5033
        %v5035 = vsel %vm3393, %v4883, 0.0
        %5036 = vadd.xlane.f32.xlu0 %v5035
        %v5037 = vpop.xlane.xlu0 %5036
        %v5038 = vsel %vm3393, %v4885, 0.0
        %5039 = vadd.xlane.f32.xlu0 %v5038
        %v5040 = vpop.xlane.xlu0 %5039
        %v5041 = vsel %vm3393, %v4887, 0.0
        %5042 = vadd.xlane.f32.xlu0 %v5041
        %v5043 = vpop.xlane.xlu0 %5042
        %v5044 = vsel %vm3393, %v4889, 0.0
        %5045 = vadd.xlane.f32.xlu0 %v5044
        %v5046 = vpop.xlane.xlu0 %5045
        %v5047 = vsel %vm3393, %v4891, 0.0
        %5048 = vadd.xlane.f32.xlu0 %v5047
        %v5049 = vpop.xlane.xlu0 %5048
        %v5050 = vsel %vm3393, %v4893, 0.0
        %5051 = vadd.xlane.f32.xlu0 %v5050
        %v5052 = vpop.xlane.xlu0 %5051
        %v5053 = vsel %vm3393, %v4895, 0.0
        %5054 = vadd.xlane.f32.xlu0 %v5053
        %v5055 = vpop.xlane.xlu0 %5054
        %v5056 = vsel %vm3393, %v4897, 0.0
        %5057 = vadd.xlane.f32.xlu0 %v5056
        %v5058 = vpop.xlane.xlu0 %5057
        %v5059 = vsel %vm3393, %v4899, 0.0
        %5060 = vadd.xlane.f32.xlu0 %v5059
        %v5061 = vpop.xlane.xlu0 %5060
        %v5062 = vsel %vm3393, %v4901, 0.0
        %5063 = vadd.xlane.f32.xlu0 %v5062
        %v5064 = vpop.xlane.xlu0 %5063
        %v5065 = vsel %vm3393, %v4903, 0.0
        %5066 = vadd.xlane.f32.xlu0 %v5065
        %v5067 = vpop.xlane.xlu0 %5066
        %v5068 = vsel %vm3393, %v4905, 0.0
        %5069 = vadd.xlane.f32.xlu0 %v5068
        %v5070 = vpop.xlane.xlu0 %5069
        %v5071 = vsel %vm3393, %v4907, 0.0
        %5072 = vadd.xlane.f32.xlu0 %v5071
        %v5073 = vpop.xlane.xlu0 %5072
        %v5074 = vsel %vm3393, %v4909, 0.0
        %5075 = vadd.xlane.f32.xlu0 %v5074
        %v5076 = vpop.xlane.xlu0 %5075
        %v5077 = vsel %vm3393, %v4911, 0.0
        %5078 = vadd.xlane.f32.xlu0 %v5077
        %v5079 = vpop.xlane.xlu0 %5078
        %v5080 = vsel %vm3393, %v4913, 0.0
        %5081 = vadd.xlane.f32.xlu0 %v5080
        %v5082 = vpop.xlane.xlu0 %5081
        %v5083 = vsel %vm3393, %v4915, 0.0
        %5084 = vadd.xlane.f32.xlu0 %v5083
        %v5085 = vpop.xlane.xlu0 %5084
        %v5086 = vsel %vm3393, %v4917, 0.0
        %5087 = vadd.xlane.f32.xlu0 %v5086
        %v5088 = vpop.xlane.xlu0 %5087
        %v5089 = vsel %vm3393, %v4919, 0.0
        %5090 = vadd.xlane.f32.xlu0 %v5089
        %v5091 = vpop.xlane.xlu0 %5090
        %v5092 = vsel %vm3393, %v4921, 0.0
        %5093 = vadd.xlane.f32.xlu0 %v5092
        %v5094 = vpop.xlane.xlu0 %5093
        %v5095 = vsel %vm3393, %v4923, 0.0
        %5096 = vadd.xlane.f32.xlu0 %v5095
        %v5097 = vpop.xlane.xlu0 %5096
        %v5098 = vsel %vm3393, %v4925, 0.0
        %5099 = vadd.xlane.f32.xlu0 %v5098
        %v5100 = vpop.xlane.xlu0 %5099
        %v5101 = vsel %vm3393, %v4927, 0.0
        %5102 = vadd.xlane.f32.xlu0 %v5101
        %v5103 = vpop.xlane.xlu0 %5102
        %v5104 = vsel %vm3393, %v4929, 0.0
        %5105 = vadd.xlane.f32.xlu0 %v5104
        %v5106 = vpop.xlane.xlu0 %5105
        %v5107 = vsel %vm3393, %v4931, 0.0
        %5108 = vadd.xlane.f32.xlu0 %v5107
        %v5109 = vpop.xlane.xlu0 %5108
        %v5110 = vsel %vm3393, %v4933, 0.0
        %5111 = vadd.xlane.f32.xlu0 %v5110
        %v5112 = vpop.xlane.xlu0 %5111
        %v5113 = vsel %vm3393, %v4935, 0.0
        %5114 = vadd.xlane.f32.xlu0 %v5113
        %v5115 = vpop.xlane.xlu0 %5114
        %v5116 = vsel %vm3393, %v4937, 0.0
        %5117 = vadd.xlane.f32.xlu0 %v5116
        %v5118 = vpop.xlane.xlu0 %5117
        %v5119 = vsel %vm3393, %v4939, 0.0
        %5120 = vadd.xlane.f32.xlu0 %v5119
        %v5121 = vpop.xlane.xlu0 %5120
        %v5122 = vsel %vm3393, %v4941, 0.0
        %5123 = vadd.xlane.f32.xlu0 %v5122
        %v5124 = vpop.xlane.xlu0 %5123
        %v5125 = vsel %vm3393, %v4943, 0.0
        %5126 = vadd.xlane.f32.xlu0 %v5125
        %v5127 = vpop.xlane.xlu0 %5126
        %v5128 = vsel %vm3393, %v4945, 0.0
        %5129 = vadd.xlane.f32.xlu0 %v5128
        %v5130 = vpop.xlane.xlu0 %5129
        %v5131 = vsel %vm3393, %v4947, 0.0
        %5132 = vadd.xlane.f32.xlu0 %v5131
        %v5133 = vpop.xlane.xlu0 %5132
        %v5134 = vsel %vm3393, %v4949, 0.0
        %5135 = vadd.xlane.f32.xlu0 %v5134
        %v5136 = vpop.xlane.xlu0 %5135
        %v5137 = vsel %vm3393, %v4951, 0.0
        %5138 = vadd.xlane.f32.xlu0 %v5137
        %v5139 = vpop.xlane.xlu0 %5138
        %v5140 = vsel %vm3393, %v4953, 0.0
        %5141 = vadd.xlane.f32.xlu0 %v5140
        %v5142 = vpop.xlane.xlu0 %5141
        %v5143 = vsel %vm3393, %v4955, 0.0
        %5144 = vadd.xlane.f32.xlu0 %v5143
        %v5145 = vpop.xlane.xlu0 %5144
        %v5146 = vsel %vm3393, %v4957, 0.0
        %5147 = vadd.xlane.f32.xlu0 %v5146
        %v5148 = vpop.xlane.xlu0 %5147
        %v5149 = vsel %vm3393, %v4959, 0.0
        %5150 = vadd.xlane.f32.xlu0 %v5149
        %v5151 = vpop.xlane.xlu0 %5150
        %v5152 = vrcp.pop %v4962
        %v5153 = vmul.f32 %v4962, %v5152
        %v5154 = vsub.f32 1.0, %v5153
        %v5155 = vmul.f32 %v5152, %v5154
        %v5156 = vadd.f32 %v5152, %v5155
        %vm5157 = vweird.f32 %v4962
        %vm5158 = vweird.f32 %v5152
        %vm5159 = vmor %vm5157, %vm5158
        %v5160 = vsel %vm5159, %v5152, %v5156
        %v5161 = vand.u32 2147483647, %v4962
        %vm5162 = vcmp.eq.f32.partialorder %v5161, 8.507059e+37
        %v5163 = vand.u32 %v4962, 2147483648
        %v5164 = vor.u32 1.1754944e-38, %v5163
        %v5165 = vsel %vm5162, %v5164, %v5160
        %v5166 = vmul.f32 %v4833, %v5165
        %v5167 = vrcp.pop %v4965
        %v5168 = vmul.f32 %v4965, %v5167
        %v5169 = vsub.f32 1.0, %v5168
        %v5170 = vmul.f32 %v5167, %v5169
        %v5171 = vadd.f32 %v5167, %v5170
        %vm5172 = vweird.f32 %v4965
        %vm5173 = vweird.f32 %v5167
        %vm5174 = vmor %vm5172, %vm5173
        %v5175 = vsel %vm5174, %v5167, %v5171
        %v5176 = vand.u32 2147483647, %v4965
        %vm5177 = vcmp.eq.f32.partialorder %v5176, 8.507059e+37
        %v5178 = vand.u32 %v4965, 2147483648
        %v5179 = vor.u32 1.1754944e-38, %v5178
        %v5180 = vsel %vm5177, %v5179, %v5175
        %v5181 = vmul.f32 %v4835, %v5180
        %v5182 = vrcp.pop %v4968
        %v5183 = vmul.f32 %v4968, %v5182
        %v5184 = vsub.f32 1.0, %v5183
        %v5185 = vmul.f32 %v5182, %v5184
        %v5186 = vadd.f32 %v5182, %v5185
        %vm5187 = vweird.f32 %v4968
        %vm5188 = vweird.f32 %v5182
        %vm5189 = vmor %vm5187, %vm5188
        %v5190 = vsel %vm5189, %v5182, %v5186
        %v5191 = vand.u32 2147483647, %v4968
        %vm5192 = vcmp.eq.f32.partialorder %v5191, 8.507059e+37
        %v5193 = vand.u32 %v4968, 2147483648
        %v5194 = vor.u32 1.1754944e-38, %v5193
        %v5195 = vsel %vm5192, %v5194, %v5190
        %v5196 = vmul.f32 %v4837, %v5195
        %v5197 = vrcp.pop %v4971
        %v5198 = vmul.f32 %v4971, %v5197
        %v5199 = vsub.f32 1.0, %v5198
        %v5200 = vmul.f32 %v5197, %v5199
        %v5201 = vadd.f32 %v5197, %v5200
        %vm5202 = vweird.f32 %v4971
        %vm5203 = vweird.f32 %v5197
        %vm5204 = vmor %vm5202, %vm5203
        %v5205 = vsel %vm5204, %v5197, %v5201
        %v5206 = vand.u32 2147483647, %v4971
        %vm5207 = vcmp.eq.f32.partialorder %v5206, 8.507059e+37
        %v5208 = vand.u32 %v4971, 2147483648
        %v5209 = vor.u32 1.1754944e-38, %v5208
        %v5210 = vsel %vm5207, %v5209, %v5205
        %v5211 = vmul.f32 %v4839, %v5210
        %v5212 = vrcp.pop %v4974
        %v5213 = vmul.f32 %v4974, %v5212
        %v5214 = vsub.f32 1.0, %v5213
        %v5215 = vmul.f32 %v5212, %v5214
        %v5216 = vadd.f32 %v5212, %v5215
        %vm5217 = vweird.f32 %v4974
        %vm5218 = vweird.f32 %v5212
        %vm5219 = vmor %vm5217, %vm5218
        %v5220 = vsel %vm5219, %v5212, %v5216
        %v5221 = vand.u32 2147483647, %v4974
        %vm5222 = vcmp.eq.f32.partialorder %v5221, 8.507059e+37
        %v5223 = vand.u32 %v4974, 2147483648
        %v5224 = vor.u32 1.1754944e-38, %v5223
        %v5225 = vsel %vm5222, %v5224, %v5220
        %v5226 = vmul.f32 %v4841, %v5225
        %v5227 = vrcp.pop %v4977
        %v5228 = vmul.f32 %v4977, %v5227
        %v5229 = vsub.f32 1.0, %v5228
        %v5230 = vmul.f32 %v5227, %v5229
        %v5231 = vadd.f32 %v5227, %v5230
        %vm5232 = vweird.f32 %v4977
        %vm5233 = vweird.f32 %v5227
        %vm5234 = vmor %vm5232, %vm5233
        %v5235 = vsel %vm5234, %v5227, %v5231
        %v5236 = vand.u32 2147483647, %v4977
        %vm5237 = vcmp.eq.f32.partialorder %v5236, 8.507059e+37
        %v5238 = vand.u32 %v4977, 2147483648
        %v5239 = vor.u32 1.1754944e-38, %v5238
        %v5240 = vsel %vm5237, %v5239, %v5235
        %v5241 = vmul.f32 %v4843, %v5240
        %v5242 = vrcp.pop %v4980
        %v5243 = vmul.f32 %v4980, %v5242
        %v5244 = vsub.f32 1.0, %v5243
        %v5245 = vmul.f32 %v5242, %v5244
        %v5246 = vadd.f32 %v5242, %v5245
        %vm5247 = vweird.f32 %v4980
        %vm5248 = vweird.f32 %v5242
        %vm5249 = vmor %vm5247, %vm5248
        %v5250 = vsel %vm5249, %v5242, %v5246
        %v5251 = vand.u32 2147483647, %v4980
        %vm5252 = vcmp.eq.f32.partialorder %v5251, 8.507059e+37
        %v5253 = vand.u32 %v4980, 2147483648
        %v5254 = vor.u32 1.1754944e-38, %v5253
        %v5255 = vsel %vm5252, %v5254, %v5250
        %v5256 = vmul.f32 %v4845, %v5255
        %v5257 = vrcp.pop %v4983
        %v5258 = vmul.f32 %v4983, %v5257
        %v5259 = vsub.f32 1.0, %v5258
        %v5260 = vmul.f32 %v5257, %v5259
        %v5261 = vadd.f32 %v5257, %v5260
        %vm5262 = vweird.f32 %v4983
        %vm5263 = vweird.f32 %v5257
        %vm5264 = vmor %vm5262, %vm5263
        %v5265 = vsel %vm5264, %v5257, %v5261
        %v5266 = vand.u32 2147483647, %v4983
        %vm5267 = vcmp.eq.f32.partialorder %v5266, 8.507059e+37
        %v5268 = vand.u32 %v4983, 2147483648
        %v5269 = vor.u32 1.1754944e-38, %v5268
        %v5270 = vsel %vm5267, %v5269, %v5265
        %v5271 = vmul.f32 %v4847, %v5270
        %v5272 = vrcp.pop %v4986
        %v5273 = vmul.f32 %v4986, %v5272
        %v5274 = vsub.f32 1.0, %v5273
        %v5275 = vmul.f32 %v5272, %v5274
        %v5276 = vadd.f32 %v5272, %v5275
        %vm5277 = vweird.f32 %v4986
        %vm5278 = vweird.f32 %v5272
        %vm5279 = vmor %vm5277, %vm5278
        %v5280 = vsel %vm5279, %v5272, %v5276
        %v5281 = vand.u32 2147483647, %v4986
        %vm5282 = vcmp.eq.f32.partialorder %v5281, 8.507059e+37
        %v5283 = vand.u32 %v4986, 2147483648
        %v5284 = vor.u32 1.1754944e-38, %v5283
        %v5285 = vsel %vm5282, %v5284, %v5280
        %v5286 = vmul.f32 %v4849, %v5285
        %v5287 = vrcp.pop %v4989
        %v5288 = vmul.f32 %v4989, %v5287
        %v5289 = vsub.f32 1.0, %v5288
        %v5290 = vmul.f32 %v5287, %v5289
        %v5291 = vadd.f32 %v5287, %v5290
        %vm5292 = vweird.f32 %v4989
        %vm5293 = vweird.f32 %v5287
        %vm5294 = vmor %vm5292, %vm5293
        %v5295 = vsel %vm5294, %v5287, %v5291
        %v5296 = vand.u32 2147483647, %v4989
        %vm5297 = vcmp.eq.f32.partialorder %v5296, 8.507059e+37
        %v5298 = vand.u32 %v4989, 2147483648
        %v5299 = vor.u32 1.1754944e-38, %v5298
        %v5300 = vsel %vm5297, %v5299, %v5295
        %v5301 = vmul.f32 %v4851, %v5300
        %v5302 = vrcp.pop %v4992
        %v5303 = vmul.f32 %v4992, %v5302
        %v5304 = vsub.f32 1.0, %v5303
        %v5305 = vmul.f32 %v5302, %v5304
        %v5306 = vadd.f32 %v5302, %v5305
        %vm5307 = vweird.f32 %v4992
        %vm5308 = vweird.f32 %v5302
        %vm5309 = vmor %vm5307, %vm5308
        %v5310 = vsel %vm5309, %v5302, %v5306
        %v5311 = vand.u32 2147483647, %v4992
        %vm5312 = vcmp.eq.f32.partialorder %v5311, 8.507059e+37
        %v5313 = vand.u32 %v4992, 2147483648
        %v5314 = vor.u32 1.1754944e-38, %v5313
        %v5315 = vsel %vm5312, %v5314, %v5310
        %v5316 = vmul.f32 %v4853, %v5315
        %v5317 = vrcp.pop %v4995
        %v5318 = vmul.f32 %v4995, %v5317
        %v5319 = vsub.f32 1.0, %v5318
        %v5320 = vmul.f32 %v5317, %v5319
        %v5321 = vadd.f32 %v5317, %v5320
        %vm5322 = vweird.f32 %v4995
        %vm5323 = vweird.f32 %v5317
        %vm5324 = vmor %vm5322, %vm5323
        %v5325 = vsel %vm5324, %v5317, %v5321
        %v5326 = vand.u32 2147483647, %v4995
        %vm5327 = vcmp.eq.f32.partialorder %v5326, 8.507059e+37
        %v5328 = vand.u32 %v4995, 2147483648
        %v5329 = vor.u32 1.1754944e-38, %v5328
        %v5330 = vsel %vm5327, %v5329, %v5325
        %v5331 = vmul.f32 %v4855, %v5330
        %v5332 = vrcp.pop %v4998
        %v5333 = vmul.f32 %v4998, %v5332
        %v5334 = vsub.f32 1.0, %v5333
        %v5335 = vmul.f32 %v5332, %v5334
        %v5336 = vadd.f32 %v5332, %v5335
        %vm5337 = vweird.f32 %v4998
        %vm5338 = vweird.f32 %v5332
        %vm5339 = vmor %vm5337, %vm5338
        %v5340 = vsel %vm5339, %v5332, %v5336
        %v5341 = vand.u32 2147483647, %v4998
        %vm5342 = vcmp.eq.f32.partialorder %v5341, 8.507059e+37
        %v5343 = vand.u32 %v4998, 2147483648
        %v5344 = vor.u32 1.1754944e-38, %v5343
        %v5345 = vsel %vm5342, %v5344, %v5340
        %v5346 = vmul.f32 %v4857, %v5345
        %v5347 = vrcp.pop %v5001
        %v5348 = vmul.f32 %v5001, %v5347
        %v5349 = vsub.f32 1.0, %v5348
        %v5350 = vmul.f32 %v5347, %v5349
        %v5351 = vadd.f32 %v5347, %v5350
        %vm5352 = vweird.f32 %v5001
        %vm5353 = vweird.f32 %v5347
        %vm5354 = vmor %vm5352, %vm5353
        %v5355 = vsel %vm5354, %v5347, %v5351
        %v5356 = vand.u32 2147483647, %v5001
        %vm5357 = vcmp.eq.f32.partialorder %v5356, 8.507059e+37
        %v5358 = vand.u32 %v5001, 2147483648
        %v5359 = vor.u32 1.1754944e-38, %v5358
        %v5360 = vsel %vm5357, %v5359, %v5355
        %v5361 = vmul.f32 %v4859, %v5360
        %v5362 = vrcp.pop %v5004
        %v5363 = vmul.f32 %v5004, %v5362
        %v5364 = vsub.f32 1.0, %v5363
        %v5365 = vmul.f32 %v5362, %v5364
        %v5366 = vadd.f32 %v5362, %v5365
        %vm5367 = vweird.f32 %v5004
        %vm5368 = vweird.f32 %v5362
        %vm5369 = vmor %vm5367, %vm5368
        %v5370 = vsel %vm5369, %v5362, %v5366
        %v5371 = vand.u32 2147483647, %v5004
        %vm5372 = vcmp.eq.f32.partialorder %v5371, 8.507059e+37
        %v5373 = vand.u32 %v5004, 2147483648
        %v5374 = vor.u32 1.1754944e-38, %v5373
        %v5375 = vsel %vm5372, %v5374, %v5370
        %v5376 = vmul.f32 %v4861, %v5375
        %v5377 = vrcp.pop %v5007
        %v5378 = vmul.f32 %v5007, %v5377
        %v5379 = vsub.f32 1.0, %v5378
        %v5380 = vmul.f32 %v5377, %v5379
        %v5381 = vadd.f32 %v5377, %v5380
        %vm5382 = vweird.f32 %v5007
        %vm5383 = vweird.f32 %v5377
        %vm5384 = vmor %vm5382, %vm5383
        %v5385 = vsel %vm5384, %v5377, %v5381
        %v5386 = vand.u32 2147483647, %v5007
        %vm5387 = vcmp.eq.f32.partialorder %v5386, 8.507059e+37
        %v5388 = vand.u32 %v5007, 2147483648
        %v5389 = vor.u32 1.1754944e-38, %v5388
        %v5390 = vsel %vm5387, %v5389, %v5385
        %v5391 = vmul.f32 %v4863, %v5390
        %v5392 = vrcp.pop %v5010
        %v5393 = vmul.f32 %v5010, %v5392
        %v5394 = vsub.f32 1.0, %v5393
        %v5395 = vmul.f32 %v5392, %v5394
        %v5396 = vadd.f32 %v5392, %v5395
        %vm5397 = vweird.f32 %v5010
        %vm5398 = vweird.f32 %v5392
        %vm5399 = vmor %vm5397, %vm5398
        %v5400 = vsel %vm5399, %v5392, %v5396
        %v5401 = vand.u32 2147483647, %v5010
        %vm5402 = vcmp.eq.f32.partialorder %v5401, 8.507059e+37
        %v5403 = vand.u32 %v5010, 2147483648
        %v5404 = vor.u32 1.1754944e-38, %v5403
        %v5405 = vsel %vm5402, %v5404, %v5400
        %v5406 = vmul.f32 %v4865, %v5405
        %v5407 = vrcp.pop %v5013
        %v5408 = vmul.f32 %v5013, %v5407
        %v5409 = vsub.f32 1.0, %v5408
        %v5410 = vmul.f32 %v5407, %v5409
        %v5411 = vadd.f32 %v5407, %v5410
        %vm5412 = vweird.f32 %v5013
        %vm5413 = vweird.f32 %v5407
        %vm5414 = vmor %vm5412, %vm5413
        %v5415 = vsel %vm5414, %v5407, %v5411
        %v5416 = vand.u32 2147483647, %v5013
        %vm5417 = vcmp.eq.f32.partialorder %v5416, 8.507059e+37
        %v5418 = vand.u32 %v5013, 2147483648
        %v5419 = vor.u32 1.1754944e-38, %v5418
        %v5420 = vsel %vm5417, %v5419, %v5415
        %v5421 = vmul.f32 %v4867, %v5420
        %v5422 = vrcp.pop %v5016
        %v5423 = vmul.f32 %v5016, %v5422
        %v5424 = vsub.f32 1.0, %v5423
        %v5425 = vmul.f32 %v5422, %v5424
        %v5426 = vadd.f32 %v5422, %v5425
        %vm5427 = vweird.f32 %v5016
        %vm5428 = vweird.f32 %v5422
        %vm5429 = vmor %vm5427, %vm5428
        %v5430 = vsel %vm5429, %v5422, %v5426
        %v5431 = vand.u32 2147483647, %v5016
        %vm5432 = vcmp.eq.f32.partialorder %v5431, 8.507059e+37
        %v5433 = vand.u32 %v5016, 2147483648
        %v5434 = vor.u32 1.1754944e-38, %v5433
        %v5435 = vsel %vm5432, %v5434, %v5430
        %v5436 = vmul.f32 %v4869, %v5435
        %v5437 = vrcp.pop %v5019
        %v5438 = vmul.f32 %v5019, %v5437
        %v5439 = vsub.f32 1.0, %v5438
        %v5440 = vmul.f32 %v5437, %v5439
        %v5441 = vadd.f32 %v5437, %v5440
        %vm5442 = vweird.f32 %v5019
        %vm5443 = vweird.f32 %v5437
        %vm5444 = vmor %vm5442, %vm5443
        %v5445 = vsel %vm5444, %v5437, %v5441
        %v5446 = vand.u32 2147483647, %v5019
        %vm5447 = vcmp.eq.f32.partialorder %v5446, 8.507059e+37
        %v5448 = vand.u32 %v5019, 2147483648
        %v5449 = vor.u32 1.1754944e-38, %v5448
        %v5450 = vsel %vm5447, %v5449, %v5445
        %v5451 = vmul.f32 %v4871, %v5450
        %v5452 = vrcp.pop %v5022
        %v5453 = vmul.f32 %v5022, %v5452
        %v5454 = vsub.f32 1.0, %v5453
        %v5455 = vmul.f32 %v5452, %v5454
        %v5456 = vadd.f32 %v5452, %v5455
        %vm5457 = vweird.f32 %v5022
        %vm5458 = vweird.f32 %v5452
        %vm5459 = vmor %vm5457, %vm5458
        %v5460 = vsel %vm5459, %v5452, %v5456
        %v5461 = vand.u32 2147483647, %v5022
        %vm5462 = vcmp.eq.f32.partialorder %v5461, 8.507059e+37
        %v5463 = vand.u32 %v5022, 2147483648
        %v5464 = vor.u32 1.1754944e-38, %v5463
        %v5465 = vsel %vm5462, %v5464, %v5460
        %v5466 = vmul.f32 %v4873, %v5465
        %v5467 = vrcp.pop %v5025
        %v5468 = vmul.f32 %v5025, %v5467
        %v5469 = vsub.f32 1.0, %v5468
        %v5470 = vmul.f32 %v5467, %v5469
        %v5471 = vadd.f32 %v5467, %v5470
        %vm5472 = vweird.f32 %v5025
        %vm5473 = vweird.f32 %v5467
        %vm5474 = vmor %vm5472, %vm5473
        %v5475 = vsel %vm5474, %v5467, %v5471
        %v5476 = vand.u32 2147483647, %v5025
        %vm5477 = vcmp.eq.f32.partialorder %v5476, 8.507059e+37
        %v5478 = vand.u32 %v5025, 2147483648
        %v5479 = vor.u32 1.1754944e-38, %v5478
        %v5480 = vsel %vm5477, %v5479, %v5475
        %v5481 = vmul.f32 %v4875, %v5480
        %v5482 = vrcp.pop %v5028
        %v5483 = vmul.f32 %v5028, %v5482
        %v5484 = vsub.f32 1.0, %v5483
        %v5485 = vmul.f32 %v5482, %v5484
        %v5486 = vadd.f32 %v5482, %v5485
        %vm5487 = vweird.f32 %v5028
        %vm5488 = vweird.f32 %v5482
        %vm5489 = vmor %vm5487, %vm5488
        %v5490 = vsel %vm5489, %v5482, %v5486
        %v5491 = vand.u32 2147483647, %v5028
        %vm5492 = vcmp.eq.f32.partialorder %v5491, 8.507059e+37
        %v5493 = vand.u32 %v5028, 2147483648
        %v5494 = vor.u32 1.1754944e-38, %v5493
        %v5495 = vsel %vm5492, %v5494, %v5490
        %v5496 = vmul.f32 %v4877, %v5495
        %v5497 = vrcp.pop %v5031
        %v5498 = vmul.f32 %v5031, %v5497
        %v5499 = vsub.f32 1.0, %v5498
        %v5500 = vmul.f32 %v5497, %v5499
        %v5501 = vadd.f32 %v5497, %v5500
        %vm5502 = vweird.f32 %v5031
        %vm5503 = vweird.f32 %v5497
        %vm5504 = vmor %vm5502, %vm5503
        %v5505 = vsel %vm5504, %v5497, %v5501
        %v5506 = vand.u32 2147483647, %v5031
        %vm5507 = vcmp.eq.f32.partialorder %v5506, 8.507059e+37
        %v5508 = vand.u32 %v5031, 2147483648
        %v5509 = vor.u32 1.1754944e-38, %v5508
        %v5510 = vsel %vm5507, %v5509, %v5505
        %v5511 = vmul.f32 %v4879, %v5510
        %v5512 = vrcp.pop %v5034
        %v5513 = vmul.f32 %v5034, %v5512
        %v5514 = vsub.f32 1.0, %v5513
        %v5515 = vmul.f32 %v5512, %v5514
        %v5516 = vadd.f32 %v5512, %v5515
        %vm5517 = vweird.f32 %v5034
        %vm5518 = vweird.f32 %v5512
        %vm5519 = vmor %vm5517, %vm5518
        %v5520 = vsel %vm5519, %v5512, %v5516
        %v5521 = vand.u32 2147483647, %v5034
        %vm5522 = vcmp.eq.f32.partialorder %v5521, 8.507059e+37
        %v5523 = vand.u32 %v5034, 2147483648
        %v5524 = vor.u32 1.1754944e-38, %v5523
        %v5525 = vsel %vm5522, %v5524, %v5520
        %v5526 = vmul.f32 %v4881, %v5525
        %v5527 = vrcp.pop %v5037
        %v5528 = vmul.f32 %v5037, %v5527
        %v5529 = vsub.f32 1.0, %v5528
        %v5530 = vmul.f32 %v5527, %v5529
        %v5531 = vadd.f32 %v5527, %v5530
        %vm5532 = vweird.f32 %v5037
        %vm5533 = vweird.f32 %v5527
        %vm5534 = vmor %vm5532, %vm5533
        %v5535 = vsel %vm5534, %v5527, %v5531
        %v5536 = vand.u32 2147483647, %v5037
        %vm5537 = vcmp.eq.f32.partialorder %v5536, 8.507059e+37
        %v5538 = vand.u32 %v5037, 2147483648
        %v5539 = vor.u32 1.1754944e-38, %v5538
        %v5540 = vsel %vm5537, %v5539, %v5535
        %v5541 = vmul.f32 %v4883, %v5540
        %v5542 = vrcp.pop %v5040
        %v5543 = vmul.f32 %v5040, %v5542
        %v5544 = vsub.f32 1.0, %v5543
        %v5545 = vmul.f32 %v5542, %v5544
        %v5546 = vadd.f32 %v5542, %v5545
        %vm5547 = vweird.f32 %v5040
        %vm5548 = vweird.f32 %v5542
        %vm5549 = vmor %vm5547, %vm5548
        %v5550 = vsel %vm5549, %v5542, %v5546
        %v5551 = vand.u32 2147483647, %v5040
        %vm5552 = vcmp.eq.f32.partialorder %v5551, 8.507059e+37
        %v5553 = vand.u32 %v5040, 2147483648
        %v5554 = vor.u32 1.1754944e-38, %v5553
        %v5555 = vsel %vm5552, %v5554, %v5550
        %v5556 = vmul.f32 %v4885, %v5555
        %v5557 = vrcp.pop %v5043
        %v5558 = vmul.f32 %v5043, %v5557
        %v5559 = vsub.f32 1.0, %v5558
        %v5560 = vmul.f32 %v5557, %v5559
        %v5561 = vadd.f32 %v5557, %v5560
        %vm5562 = vweird.f32 %v5043
        %vm5563 = vweird.f32 %v5557
        %vm5564 = vmor %vm5562, %vm5563
        %v5565 = vsel %vm5564, %v5557, %v5561
        %v5566 = vand.u32 2147483647, %v5043
        %vm5567 = vcmp.eq.f32.partialorder %v5566, 8.507059e+37
        %v5568 = vand.u32 %v5043, 2147483648
        %v5569 = vor.u32 1.1754944e-38, %v5568
        %v5570 = vsel %vm5567, %v5569, %v5565
        %v5571 = vmul.f32 %v4887, %v5570
        %v5572 = vrcp.pop %v5046
        %v5573 = vmul.f32 %v5046, %v5572
        %v5574 = vsub.f32 1.0, %v5573
        %v5575 = vmul.f32 %v5572, %v5574
        %v5576 = vadd.f32 %v5572, %v5575
        %vm5577 = vweird.f32 %v5046
        %vm5578 = vweird.f32 %v5572
        %vm5579 = vmor %vm5577, %vm5578
        %v5580 = vsel %vm5579, %v5572, %v5576
        %v5581 = vand.u32 2147483647, %v5046
        %vm5582 = vcmp.eq.f32.partialorder %v5581, 8.507059e+37
        %v5583 = vand.u32 %v5046, 2147483648
        %v5584 = vor.u32 1.1754944e-38, %v5583
        %v5585 = vsel %vm5582, %v5584, %v5580
        %v5586 = vmul.f32 %v4889, %v5585
        %v5587 = vrcp.pop %v5049
        %v5588 = vmul.f32 %v5049, %v5587
        %v5589 = vsub.f32 1.0, %v5588
        %v5590 = vmul.f32 %v5587, %v5589
        %v5591 = vadd.f32 %v5587, %v5590
        %vm5592 = vweird.f32 %v5049
        %vm5593 = vweird.f32 %v5587
        %vm5594 = vmor %vm5592, %vm5593
        %v5595 = vsel %vm5594, %v5587, %v5591
        %v5596 = vand.u32 2147483647, %v5049
        %vm5597 = vcmp.eq.f32.partialorder %v5596, 8.507059e+37
        %v5598 = vand.u32 %v5049, 2147483648
        %v5599 = vor.u32 1.1754944e-38, %v5598
        %v5600 = vsel %vm5597, %v5599, %v5595
        %v5601 = vmul.f32 %v4891, %v5600
        %v5602 = vrcp.pop %v5052
        %v5603 = vmul.f32 %v5052, %v5602
        %v5604 = vsub.f32 1.0, %v5603
        %v5605 = vmul.f32 %v5602, %v5604
        %v5606 = vadd.f32 %v5602, %v5605
        %vm5607 = vweird.f32 %v5052
        %vm5608 = vweird.f32 %v5602
        %vm5609 = vmor %vm5607, %vm5608
        %v5610 = vsel %vm5609, %v5602, %v5606
        %v5611 = vand.u32 2147483647, %v5052
        %vm5612 = vcmp.eq.f32.partialorder %v5611, 8.507059e+37
        %v5613 = vand.u32 %v5052, 2147483648
        %v5614 = vor.u32 1.1754944e-38, %v5613
        %v5615 = vsel %vm5612, %v5614, %v5610
        %v5616 = vmul.f32 %v4893, %v5615
        %v5617 = vrcp.pop %v5055
        %v5618 = vmul.f32 %v5055, %v5617
        %v5619 = vsub.f32 1.0, %v5618
        %v5620 = vmul.f32 %v5617, %v5619
        %v5621 = vadd.f32 %v5617, %v5620
        %vm5622 = vweird.f32 %v5055
        %vm5623 = vweird.f32 %v5617
        %vm5624 = vmor %vm5622, %vm5623
        %v5625 = vsel %vm5624, %v5617, %v5621
        %v5626 = vand.u32 2147483647, %v5055
        %vm5627 = vcmp.eq.f32.partialorder %v5626, 8.507059e+37
        %v5628 = vand.u32 %v5055, 2147483648
        %v5629 = vor.u32 1.1754944e-38, %v5628
        %v5630 = vsel %vm5627, %v5629, %v5625
        %v5631 = vmul.f32 %v4895, %v5630
        %v5632 = vrcp.pop %v5058
        %v5633 = vmul.f32 %v5058, %v5632
        %v5634 = vsub.f32 1.0, %v5633
        %v5635 = vmul.f32 %v5632, %v5634
        %v5636 = vadd.f32 %v5632, %v5635
        %vm5637 = vweird.f32 %v5058
        %vm5638 = vweird.f32 %v5632
        %vm5639 = vmor %vm5637, %vm5638
        %v5640 = vsel %vm5639, %v5632, %v5636
        %v5641 = vand.u32 2147483647, %v5058
        %vm5642 = vcmp.eq.f32.partialorder %v5641, 8.507059e+37
        %v5643 = vand.u32 %v5058, 2147483648
        %v5644 = vor.u32 1.1754944e-38, %v5643
        %v5645 = vsel %vm5642, %v5644, %v5640
        %v5646 = vmul.f32 %v4897, %v5645
        %v5647 = vrcp.pop %v5061
        %v5648 = vmul.f32 %v5061, %v5647
        %v5649 = vsub.f32 1.0, %v5648
        %v5650 = vmul.f32 %v5647, %v5649
        %v5651 = vadd.f32 %v5647, %v5650
        %vm5652 = vweird.f32 %v5061
        %vm5653 = vweird.f32 %v5647
        %vm5654 = vmor %vm5652, %vm5653
        %v5655 = vsel %vm5654, %v5647, %v5651
        %v5656 = vand.u32 2147483647, %v5061
        %vm5657 = vcmp.eq.f32.partialorder %v5656, 8.507059e+37
        %v5658 = vand.u32 %v5061, 2147483648
        %v5659 = vor.u32 1.1754944e-38, %v5658
        %v5660 = vsel %vm5657, %v5659, %v5655
        %v5661 = vmul.f32 %v4899, %v5660
        %v5662 = vrcp.pop %v5064
        %v5663 = vmul.f32 %v5064, %v5662
        %v5664 = vsub.f32 1.0, %v5663
        %v5665 = vmul.f32 %v5662, %v5664
        %v5666 = vadd.f32 %v5662, %v5665
        %vm5667 = vweird.f32 %v5064
        %vm5668 = vweird.f32 %v5662
        %vm5669 = vmor %vm5667, %vm5668
        %v5670 = vsel %vm5669, %v5662, %v5666
        %v5671 = vand.u32 2147483647, %v5064
        %vm5672 = vcmp.eq.f32.partialorder %v5671, 8.507059e+37
        %v5673 = vand.u32 %v5064, 2147483648
        %v5674 = vor.u32 1.1754944e-38, %v5673
        %v5675 = vsel %vm5672, %v5674, %v5670
        %v5676 = vmul.f32 %v4901, %v5675
        %v5677 = vrcp.pop %v5067
        %v5678 = vmul.f32 %v5067, %v5677
        %v5679 = vsub.f32 1.0, %v5678
        %v5680 = vmul.f32 %v5677, %v5679
        %v5681 = vadd.f32 %v5677, %v5680
        %vm5682 = vweird.f32 %v5067
        %vm5683 = vweird.f32 %v5677
        %vm5684 = vmor %vm5682, %vm5683
        %v5685 = vsel %vm5684, %v5677, %v5681
        %v5686 = vand.u32 2147483647, %v5067
        %vm5687 = vcmp.eq.f32.partialorder %v5686, 8.507059e+37
        %v5688 = vand.u32 %v5067, 2147483648
        %v5689 = vor.u32 1.1754944e-38, %v5688
        %v5690 = vsel %vm5687, %v5689, %v5685
        %v5691 = vmul.f32 %v4903, %v5690
        %v5692 = vrcp.pop %v5070
        %v5693 = vmul.f32 %v5070, %v5692
        %v5694 = vsub.f32 1.0, %v5693
        %v5695 = vmul.f32 %v5692, %v5694
        %v5696 = vadd.f32 %v5692, %v5695
        %vm5697 = vweird.f32 %v5070
        %vm5698 = vweird.f32 %v5692
        %vm5699 = vmor %vm5697, %vm5698
        %v5700 = vsel %vm5699, %v5692, %v5696
        %v5701 = vand.u32 2147483647, %v5070
        %vm5702 = vcmp.eq.f32.partialorder %v5701, 8.507059e+37
        %v5703 = vand.u32 %v5070, 2147483648
        %v5704 = vor.u32 1.1754944e-38, %v5703
        %v5705 = vsel %vm5702, %v5704, %v5700
        %v5706 = vmul.f32 %v4905, %v5705
        %v5707 = vrcp.pop %v5073
        %v5708 = vmul.f32 %v5073, %v5707
        %v5709 = vsub.f32 1.0, %v5708
        %v5710 = vmul.f32 %v5707, %v5709
        %v5711 = vadd.f32 %v5707, %v5710
        %vm5712 = vweird.f32 %v5073
        %vm5713 = vweird.f32 %v5707
        %vm5714 = vmor %vm5712, %vm5713
        %v5715 = vsel %vm5714, %v5707, %v5711
        %v5716 = vand.u32 2147483647, %v5073
        %vm5717 = vcmp.eq.f32.partialorder %v5716, 8.507059e+37
        %v5718 = vand.u32 %v5073, 2147483648
        %v5719 = vor.u32 1.1754944e-38, %v5718
        %v5720 = vsel %vm5717, %v5719, %v5715
        %v5721 = vmul.f32 %v4907, %v5720
        %v5722 = vrcp.pop %v5076
        %v5723 = vmul.f32 %v5076, %v5722
        %v5724 = vsub.f32 1.0, %v5723
        %v5725 = vmul.f32 %v5722, %v5724
        %v5726 = vadd.f32 %v5722, %v5725
        %vm5727 = vweird.f32 %v5076
        %vm5728 = vweird.f32 %v5722
        %vm5729 = vmor %vm5727, %vm5728
        %v5730 = vsel %vm5729, %v5722, %v5726
        %v5731 = vand.u32 2147483647, %v5076
        %vm5732 = vcmp.eq.f32.partialorder %v5731, 8.507059e+37
        %v5733 = vand.u32 %v5076, 2147483648
        %v5734 = vor.u32 1.1754944e-38, %v5733
        %v5735 = vsel %vm5732, %v5734, %v5730
        %v5736 = vmul.f32 %v4909, %v5735
        %v5737 = vrcp.pop %v5079
        %v5738 = vmul.f32 %v5079, %v5737
        %v5739 = vsub.f32 1.0, %v5738
        %v5740 = vmul.f32 %v5737, %v5739
        %v5741 = vadd.f32 %v5737, %v5740
        %vm5742 = vweird.f32 %v5079
        %vm5743 = vweird.f32 %v5737
        %vm5744 = vmor %vm5742, %vm5743
        %v5745 = vsel %vm5744, %v5737, %v5741
        %v5746 = vand.u32 2147483647, %v5079
        %vm5747 = vcmp.eq.f32.partialorder %v5746, 8.507059e+37
        %v5748 = vand.u32 %v5079, 2147483648
        %v5749 = vor.u32 1.1754944e-38, %v5748
        %v5750 = vsel %vm5747, %v5749, %v5745
        %v5751 = vmul.f32 %v4911, %v5750
        %v5752 = vrcp.pop %v5082
        %v5753 = vmul.f32 %v5082, %v5752
        %v5754 = vsub.f32 1.0, %v5753
        %v5755 = vmul.f32 %v5752, %v5754
        %v5756 = vadd.f32 %v5752, %v5755
        %vm5757 = vweird.f32 %v5082
        %vm5758 = vweird.f32 %v5752
        %vm5759 = vmor %vm5757, %vm5758
        %v5760 = vsel %vm5759, %v5752, %v5756
        %v5761 = vand.u32 2147483647, %v5082
        %vm5762 = vcmp.eq.f32.partialorder %v5761, 8.507059e+37
        %v5763 = vand.u32 %v5082, 2147483648
        %v5764 = vor.u32 1.1754944e-38, %v5763
        %v5765 = vsel %vm5762, %v5764, %v5760
        %v5766 = vmul.f32 %v4913, %v5765
        %v5767 = vrcp.pop %v5085
        %v5768 = vmul.f32 %v5085, %v5767
        %v5769 = vsub.f32 1.0, %v5768
        %v5770 = vmul.f32 %v5767, %v5769
        %v5771 = vadd.f32 %v5767, %v5770
        %vm5772 = vweird.f32 %v5085
        %vm5773 = vweird.f32 %v5767
        %vm5774 = vmor %vm5772, %vm5773
        %v5775 = vsel %vm5774, %v5767, %v5771
        %v5776 = vand.u32 2147483647, %v5085
        %vm5777 = vcmp.eq.f32.partialorder %v5776, 8.507059e+37
        %v5778 = vand.u32 %v5085, 2147483648
        %v5779 = vor.u32 1.1754944e-38, %v5778
        %v5780 = vsel %vm5777, %v5779, %v5775
        %v5781 = vmul.f32 %v4915, %v5780
        %v5782 = vrcp.pop %v5088
        %v5783 = vmul.f32 %v5088, %v5782
        %v5784 = vsub.f32 1.0, %v5783
        %v5785 = vmul.f32 %v5782, %v5784
        %v5786 = vadd.f32 %v5782, %v5785
        %vm5787 = vweird.f32 %v5088
        %vm5788 = vweird.f32 %v5782
        %vm5789 = vmor %vm5787, %vm5788
        %v5790 = vsel %vm5789, %v5782, %v5786
        %v5791 = vand.u32 2147483647, %v5088
        %vm5792 = vcmp.eq.f32.partialorder %v5791, 8.507059e+37
        %v5793 = vand.u32 %v5088, 2147483648
        %v5794 = vor.u32 1.1754944e-38, %v5793
        %v5795 = vsel %vm5792, %v5794, %v5790
        %v5796 = vmul.f32 %v4917, %v5795
        %v5797 = vrcp.pop %v5091
        %v5798 = vmul.f32 %v5091, %v5797
        %v5799 = vsub.f32 1.0, %v5798
        %v5800 = vmul.f32 %v5797, %v5799
        %v5801 = vadd.f32 %v5797, %v5800
        %vm5802 = vweird.f32 %v5091
        %vm5803 = vweird.f32 %v5797
        %vm5804 = vmor %vm5802, %vm5803
        %v5805 = vsel %vm5804, %v5797, %v5801
        %v5806 = vand.u32 2147483647, %v5091
        %vm5807 = vcmp.eq.f32.partialorder %v5806, 8.507059e+37
        %v5808 = vand.u32 %v5091, 2147483648
        %v5809 = vor.u32 1.1754944e-38, %v5808
        %v5810 = vsel %vm5807, %v5809, %v5805
        %v5811 = vmul.f32 %v4919, %v5810
        %v5812 = vrcp.pop %v5094
        %v5813 = vmul.f32 %v5094, %v5812
        %v5814 = vsub.f32 1.0, %v5813
        %v5815 = vmul.f32 %v5812, %v5814
        %v5816 = vadd.f32 %v5812, %v5815
        %vm5817 = vweird.f32 %v5094
        %vm5818 = vweird.f32 %v5812
        %vm5819 = vmor %vm5817, %vm5818
        %v5820 = vsel %vm5819, %v5812, %v5816
        %v5821 = vand.u32 2147483647, %v5094
        %vm5822 = vcmp.eq.f32.partialorder %v5821, 8.507059e+37
        %v5823 = vand.u32 %v5094, 2147483648
        %v5824 = vor.u32 1.1754944e-38, %v5823
        %v5825 = vsel %vm5822, %v5824, %v5820
        %v5826 = vmul.f32 %v4921, %v5825
        %v5827 = vrcp.pop %v5097
        %v5828 = vmul.f32 %v5097, %v5827
        %v5829 = vsub.f32 1.0, %v5828
        %v5830 = vmul.f32 %v5827, %v5829
        %v5831 = vadd.f32 %v5827, %v5830
        %vm5832 = vweird.f32 %v5097
        %vm5833 = vweird.f32 %v5827
        %vm5834 = vmor %vm5832, %vm5833
        %v5835 = vsel %vm5834, %v5827, %v5831
        %v5836 = vand.u32 2147483647, %v5097
        %vm5837 = vcmp.eq.f32.partialorder %v5836, 8.507059e+37
        %v5838 = vand.u32 %v5097, 2147483648
        %v5839 = vor.u32 1.1754944e-38, %v5838
        %v5840 = vsel %vm5837, %v5839, %v5835
        %v5841 = vmul.f32 %v4923, %v5840
        %v5842 = vrcp.pop %v5100
        %v5843 = vmul.f32 %v5100, %v5842
        %v5844 = vsub.f32 1.0, %v5843
        %v5845 = vmul.f32 %v5842, %v5844
        %v5846 = vadd.f32 %v5842, %v5845
        %vm5847 = vweird.f32 %v5100
        %vm5848 = vweird.f32 %v5842
        %vm5849 = vmor %vm5847, %vm5848
        %v5850 = vsel %vm5849, %v5842, %v5846
        %v5851 = vand.u32 2147483647, %v5100
        %vm5852 = vcmp.eq.f32.partialorder %v5851, 8.507059e+37
        %v5853 = vand.u32 %v5100, 2147483648
        %v5854 = vor.u32 1.1754944e-38, %v5853
        %v5855 = vsel %vm5852, %v5854, %v5850
        %v5856 = vmul.f32 %v4925, %v5855
        %v5857 = vrcp.pop %v5103
        %v5858 = vmul.f32 %v5103, %v5857
        %v5859 = vsub.f32 1.0, %v5858
        %v5860 = vmul.f32 %v5857, %v5859
        %v5861 = vadd.f32 %v5857, %v5860
        %vm5862 = vweird.f32 %v5103
        %vm5863 = vweird.f32 %v5857
        %vm5864 = vmor %vm5862, %vm5863
        %v5865 = vsel %vm5864, %v5857, %v5861
        %v5866 = vand.u32 2147483647, %v5103
        %vm5867 = vcmp.eq.f32.partialorder %v5866, 8.507059e+37
        %v5868 = vand.u32 %v5103, 2147483648
        %v5869 = vor.u32 1.1754944e-38, %v5868
        %v5870 = vsel %vm5867, %v5869, %v5865
        %v5871 = vmul.f32 %v4927, %v5870
        %v5872 = vrcp.pop %v5106
        %v5873 = vmul.f32 %v5106, %v5872
        %v5874 = vsub.f32 1.0, %v5873
        %v5875 = vmul.f32 %v5872, %v5874
        %v5876 = vadd.f32 %v5872, %v5875
        %vm5877 = vweird.f32 %v5106
        %vm5878 = vweird.f32 %v5872
        %vm5879 = vmor %vm5877, %vm5878
        %v5880 = vsel %vm5879, %v5872, %v5876
        %v5881 = vand.u32 2147483647, %v5106
        %vm5882 = vcmp.eq.f32.partialorder %v5881, 8.507059e+37
        %v5883 = vand.u32 %v5106, 2147483648
        %v5884 = vor.u32 1.1754944e-38, %v5883
        %v5885 = vsel %vm5882, %v5884, %v5880
        %v5886 = vmul.f32 %v4929, %v5885
        %v5887 = vrcp.pop %v5109
        %v5888 = vmul.f32 %v5109, %v5887
        %v5889 = vsub.f32 1.0, %v5888
        %v5890 = vmul.f32 %v5887, %v5889
        %v5891 = vadd.f32 %v5887, %v5890
        %vm5892 = vweird.f32 %v5109
        %vm5893 = vweird.f32 %v5887
        %vm5894 = vmor %vm5892, %vm5893
        %v5895 = vsel %vm5894, %v5887, %v5891
        %v5896 = vand.u32 2147483647, %v5109
        %vm5897 = vcmp.eq.f32.partialorder %v5896, 8.507059e+37
        %v5898 = vand.u32 %v5109, 2147483648
        %v5899 = vor.u32 1.1754944e-38, %v5898
        %v5900 = vsel %vm5897, %v5899, %v5895
        %v5901 = vmul.f32 %v4931, %v5900
        %v5902 = vrcp.pop %v5112
        %v5903 = vmul.f32 %v5112, %v5902
        %v5904 = vsub.f32 1.0, %v5903
        %v5905 = vmul.f32 %v5902, %v5904
        %v5906 = vadd.f32 %v5902, %v5905
        %vm5907 = vweird.f32 %v5112
        %vm5908 = vweird.f32 %v5902
        %vm5909 = vmor %vm5907, %vm5908
        %v5910 = vsel %vm5909, %v5902, %v5906
        %v5911 = vand.u32 2147483647, %v5112
        %vm5912 = vcmp.eq.f32.partialorder %v5911, 8.507059e+37
        %v5913 = vand.u32 %v5112, 2147483648
        %v5914 = vor.u32 1.1754944e-38, %v5913
        %v5915 = vsel %vm5912, %v5914, %v5910
        %v5916 = vmul.f32 %v4933, %v5915
        %v5917 = vrcp.pop %v5115
        %v5918 = vmul.f32 %v5115, %v5917
        %v5919 = vsub.f32 1.0, %v5918
        %v5920 = vmul.f32 %v5917, %v5919
        %v5921 = vadd.f32 %v5917, %v5920
        %vm5922 = vweird.f32 %v5115
        %vm5923 = vweird.f32 %v5917
        %vm5924 = vmor %vm5922, %vm5923
        %v5925 = vsel %vm5924, %v5917, %v5921
        %v5926 = vand.u32 2147483647, %v5115
        %vm5927 = vcmp.eq.f32.partialorder %v5926, 8.507059e+37
        %v5928 = vand.u32 %v5115, 2147483648
        %v5929 = vor.u32 1.1754944e-38, %v5928
        %v5930 = vsel %vm5927, %v5929, %v5925
        %v5931 = vmul.f32 %v4935, %v5930
        %v5932 = vrcp.pop %v5118
        %v5933 = vmul.f32 %v5118, %v5932
        %v5934 = vsub.f32 1.0, %v5933
        %v5935 = vmul.f32 %v5932, %v5934
        %v5936 = vadd.f32 %v5932, %v5935
        %vm5937 = vweird.f32 %v5118
        %vm5938 = vweird.f32 %v5932
        %vm5939 = vmor %vm5937, %vm5938
        %v5940 = vsel %vm5939, %v5932, %v5936
        %v5941 = vand.u32 2147483647, %v5118
        %vm5942 = vcmp.eq.f32.partialorder %v5941, 8.507059e+37
        %v5943 = vand.u32 %v5118, 2147483648
        %v5944 = vor.u32 1.1754944e-38, %v5943
        %v5945 = vsel %vm5942, %v5944, %v5940
        %v5946 = vmul.f32 %v4937, %v5945
        %v5947 = vrcp.pop %v5121
        %v5948 = vmul.f32 %v5121, %v5947
        %v5949 = vsub.f32 1.0, %v5948
        %v5950 = vmul.f32 %v5947, %v5949
        %v5951 = vadd.f32 %v5947, %v5950
        %vm5952 = vweird.f32 %v5121
        %vm5953 = vweird.f32 %v5947
        %vm5954 = vmor %vm5952, %vm5953
        %v5955 = vsel %vm5954, %v5947, %v5951
        %v5956 = vand.u32 2147483647, %v5121
        %vm5957 = vcmp.eq.f32.partialorder %v5956, 8.507059e+37
        %v5958 = vand.u32 %v5121, 2147483648
        %v5959 = vor.u32 1.1754944e-38, %v5958
        %v5960 = vsel %vm5957, %v5959, %v5955
        %v5961 = vmul.f32 %v4939, %v5960
        %v5962 = vrcp.pop %v5124
        %v5963 = vmul.f32 %v5124, %v5962
        %v5964 = vsub.f32 1.0, %v5963
        %v5965 = vmul.f32 %v5962, %v5964
        %v5966 = vadd.f32 %v5962, %v5965
        %vm5967 = vweird.f32 %v5124
        %vm5968 = vweird.f32 %v5962
        %vm5969 = vmor %vm5967, %vm5968
        %v5970 = vsel %vm5969, %v5962, %v5966
        %v5971 = vand.u32 2147483647, %v5124
        %vm5972 = vcmp.eq.f32.partialorder %v5971, 8.507059e+37
        %v5973 = vand.u32 %v5124, 2147483648
        %v5974 = vor.u32 1.1754944e-38, %v5973
        %v5975 = vsel %vm5972, %v5974, %v5970
        %v5976 = vmul.f32 %v4941, %v5975
        %v5977 = vrcp.pop %v5127
        %v5978 = vmul.f32 %v5127, %v5977
        %v5979 = vsub.f32 1.0, %v5978
        %v5980 = vmul.f32 %v5977, %v5979
        %v5981 = vadd.f32 %v5977, %v5980
        %vm5982 = vweird.f32 %v5127
        %vm5983 = vweird.f32 %v5977
        %vm5984 = vmor %vm5982, %vm5983
        %v5985 = vsel %vm5984, %v5977, %v5981
        %v5986 = vand.u32 2147483647, %v5127
        %vm5987 = vcmp.eq.f32.partialorder %v5986, 8.507059e+37
        %v5988 = vand.u32 %v5127, 2147483648
        %v5989 = vor.u32 1.1754944e-38, %v5988
        %v5990 = vsel %vm5987, %v5989, %v5985
        %v5991 = vmul.f32 %v4943, %v5990
        %v5992 = vrcp.pop %v5130
        %v5993 = vmul.f32 %v5130, %v5992
        %v5994 = vsub.f32 1.0, %v5993
        %v5995 = vmul.f32 %v5992, %v5994
        %v5996 = vadd.f32 %v5992, %v5995
        %vm5997 = vweird.f32 %v5130
        %vm5998 = vweird.f32 %v5992
        %vm5999 = vmor %vm5997, %vm5998
        %v6000 = vsel %vm5999, %v5992, %v5996
        %v6001 = vand.u32 2147483647, %v5130
        %vm6002 = vcmp.eq.f32.partialorder %v6001, 8.507059e+37
        %v6003 = vand.u32 %v5130, 2147483648
        %v6004 = vor.u32 1.1754944e-38, %v6003
        %v6005 = vsel %vm6002, %v6004, %v6000
        %v6006 = vmul.f32 %v4945, %v6005
        %v6007 = vrcp.pop %v5133
        %v6008 = vmul.f32 %v5133, %v6007
        %v6009 = vsub.f32 1.0, %v6008
        %v6010 = vmul.f32 %v6007, %v6009
        %v6011 = vadd.f32 %v6007, %v6010
        %vm6012 = vweird.f32 %v5133
        %vm6013 = vweird.f32 %v6007
        %vm6014 = vmor %vm6012, %vm6013
        %v6015 = vsel %vm6014, %v6007, %v6011
        %v6016 = vand.u32 2147483647, %v5133
        %vm6017 = vcmp.eq.f32.partialorder %v6016, 8.507059e+37
        %v6018 = vand.u32 %v5133, 2147483648
        %v6019 = vor.u32 1.1754944e-38, %v6018
        %v6020 = vsel %vm6017, %v6019, %v6015
        %v6021 = vmul.f32 %v4947, %v6020
        %v6022 = vrcp.pop %v5136
        %v6023 = vmul.f32 %v5136, %v6022
        %v6024 = vsub.f32 1.0, %v6023
        %v6025 = vmul.f32 %v6022, %v6024
        %v6026 = vadd.f32 %v6022, %v6025
        %vm6027 = vweird.f32 %v5136
        %vm6028 = vweird.f32 %v6022
        %vm6029 = vmor %vm6027, %vm6028
        %v6030 = vsel %vm6029, %v6022, %v6026
        %v6031 = vand.u32 2147483647, %v5136
        %vm6032 = vcmp.eq.f32.partialorder %v6031, 8.507059e+37
        %v6033 = vand.u32 %v5136, 2147483648
        %v6034 = vor.u32 1.1754944e-38, %v6033
        %v6035 = vsel %vm6032, %v6034, %v6030
        %v6036 = vmul.f32 %v4949, %v6035
        %v6037 = vrcp.pop %v5139
        %v6038 = vmul.f32 %v5139, %v6037
        %v6039 = vsub.f32 1.0, %v6038
        %v6040 = vmul.f32 %v6037, %v6039
        %v6041 = vadd.f32 %v6037, %v6040
        %vm6042 = vweird.f32 %v5139
        %vm6043 = vweird.f32 %v6037
        %vm6044 = vmor %vm6042, %vm6043
        %v6045 = vsel %vm6044, %v6037, %v6041
        %v6046 = vand.u32 2147483647, %v5139
        %vm6047 = vcmp.eq.f32.partialorder %v6046, 8.507059e+37
        %v6048 = vand.u32 %v5139, 2147483648
        %v6049 = vor.u32 1.1754944e-38, %v6048
        %v6050 = vsel %vm6047, %v6049, %v6045
        %v6051 = vmul.f32 %v4951, %v6050
        %v6052 = vrcp.pop %v5142
        %v6053 = vmul.f32 %v5142, %v6052
        %v6054 = vsub.f32 1.0, %v6053
        %v6055 = vmul.f32 %v6052, %v6054
        %v6056 = vadd.f32 %v6052, %v6055
        %vm6057 = vweird.f32 %v5142
        %vm6058 = vweird.f32 %v6052
        %vm6059 = vmor %vm6057, %vm6058
        %v6060 = vsel %vm6059, %v6052, %v6056
        %v6061 = vand.u32 2147483647, %v5142
        %vm6062 = vcmp.eq.f32.partialorder %v6061, 8.507059e+37
        %v6063 = vand.u32 %v5142, 2147483648
        %v6064 = vor.u32 1.1754944e-38, %v6063
        %v6065 = vsel %vm6062, %v6064, %v6060
        %v6066 = vmul.f32 %v4953, %v6065
        %v6067 = vrcp.pop %v5145
        %v6068 = vmul.f32 %v5145, %v6067
        %v6069 = vsub.f32 1.0, %v6068
        %v6070 = vmul.f32 %v6067, %v6069
        %v6071 = vadd.f32 %v6067, %v6070
        %vm6072 = vweird.f32 %v5145
        %vm6073 = vweird.f32 %v6067
        %vm6074 = vmor %vm6072, %vm6073
        %v6075 = vsel %vm6074, %v6067, %v6071
        %v6076 = vand.u32 2147483647, %v5145
        %vm6077 = vcmp.eq.f32.partialorder %v6076, 8.507059e+37
        %v6078 = vand.u32 %v5145, 2147483648
        %v6079 = vor.u32 1.1754944e-38, %v6078
        %v6080 = vsel %vm6077, %v6079, %v6075
        %v6081 = vmul.f32 %v4955, %v6080
        %v6082 = vrcp.pop %v5148
        %v6083 = vmul.f32 %v5148, %v6082
        %v6084 = vsub.f32 1.0, %v6083
        %v6085 = vmul.f32 %v6082, %v6084
        %v6086 = vadd.f32 %v6082, %v6085
        %vm6087 = vweird.f32 %v5148
        %vm6088 = vweird.f32 %v6082
        %vm6089 = vmor %vm6087, %vm6088
        %v6090 = vsel %vm6089, %v6082, %v6086
        %v6091 = vand.u32 2147483647, %v5148
        %vm6092 = vcmp.eq.f32.partialorder %v6091, 8.507059e+37
        %v6093 = vand.u32 %v5148, 2147483648
        %v6094 = vor.u32 1.1754944e-38, %v6093
        %v6095 = vsel %vm6092, %v6094, %v6090
        %v6096 = vmul.f32 %v4957, %v6095
        %v6097 = vrcp.pop %v5151
        %v6098 = vmul.f32 %v5151, %v6097
        %v6099 = vsub.f32 1.0, %v6098
        %v6100 = vmul.f32 %v6097, %v6099
        %v6101 = vadd.f32 %v6097, %v6100
        %vm6102 = vweird.f32 %v5151
        %vm6103 = vweird.f32 %v6097
        %vm6104 = vmor %vm6102, %vm6103
        %v6105 = vsel %vm6104, %v6097, %v6101
        %v6106 = vand.u32 2147483647, %v5151
        %vm6107 = vcmp.eq.f32.partialorder %v6106, 8.507059e+37
        %v6108 = vand.u32 %v5151, 2147483648
        %v6109 = vor.u32 1.1754944e-38, %v6108
        %v6110 = vsel %vm6107, %v6109, %v6105
        %v6111 = vmul.f32 %v4959, %v6110
        %6112 = vrot.lane.b32.xlu0 %v3066, 64
        %v6113 = vpop.permute.xlu0 %6112
        %6114 = vrot.lane.b32.xlu0 %v3067, 64
        %v6115 = vpop.permute.xlu0 %6114
        %v6119 = vsel %vm3393, %v5166, 0
        %v6122 = vsel %vm3393, %v5181, 0
        %6124 = vmatpush.msra.mxu0 0.0
        %6125 = vmatpush.msra.mxu0 0.0
        %6126 = vmatpush.msra.mxu0 0.0
        %6127 = vmatpush.msra.mxu0 0.0
        %6128 = vmatpush.msra.mxu0 0.0
        %6129 = vmatpush.msra.mxu0 0.0
        %6130 = vmatpush.msra.mxu0 0.0
        %6131 = vmatpush.msra.mxu0 0.0
        %6132 = vmatpush.msra.mxu0 0.0
        %6133 = vmatpush.msra.mxu0 0.0
        %6134 = vmatpush.msra.mxu0 0.0
        %6135 = vmatpush.msra.mxu0 0.0
        %6136 = vmatpush.msra.mxu0 0.0
        %6137 = vmatpush.msra.mxu0 0.0
        %6138 = vmatpush.msra.mxu0 %v6115
        %6139 = vmatpush.msra.mxu0 %v6113
        %6140 = vmatmul.f32.gmra.mxu0 %v6119
        %v6141 = vpop.f32.mrf.mxu0
        %v6142 = vadd.f32 0.0, %v6141
        %6143 = vmatmul.f32.gmra.mxu0 %v6122
        %v6144 = vpop.f32.mrf.mxu0
        %v6145 = vadd.f32 0.0, %v6144
        %6146 = vdwg.mxu0
        %6147 = vrot.lane.b32.xlu0 %v3068, 64
        %v6148 = vpop.permute.xlu0 %6147
        %6149 = vrot.lane.b32.xlu0 %v3069, 64
        %v6150 = vpop.permute.xlu0 %6149
        %v6154 = vsel %vm3393, %v5196, 0
        %v6157 = vsel %vm3393, %v5211, 0
        %6159 = vmatpush.msra.mxu0 0.0
        %6160 = vmatpush.msra.mxu0 0.0
        %6161 = vmatpush.msra.mxu0 0.0
        %6162 = vmatpush.msra.mxu0 0.0
        %6163 = vmatpush.msra.mxu0 0.0
        %6164 = vmatpush.msra.mxu0 0.0
        %6165 = vmatpush.msra.mxu0 0.0
        %6166 = vmatpush.msra.mxu0 0.0
        %6167 = vmatpush.msra.mxu0 0.0
        %6168 = vmatpush.msra.mxu0 0.0
        %6169 = vmatpush.msra.mxu0 0.0
        %6170 = vmatpush.msra.mxu0 0.0
        %6171 = vmatpush.msra.mxu0 0.0
        %6172 = vmatpush.msra.mxu0 0.0
        %6173 = vmatpush.msra.mxu0 %v6150
        %6174 = vmatpush.msra.mxu0 %v6148
        %6175 = vmatmul.f32.gmra.mxu0 %v6154
        %v6176 = vpop.f32.mrf.mxu0
        %v6177 = vadd.f32 0.0, %v6176
        %6178 = vmatmul.f32.gmra.mxu0 %v6157
        %v6179 = vpop.f32.mrf.mxu0
        %v6180 = vadd.f32 0.0, %v6179
        %6181 = vdwg.mxu0
        %6182 = vrot.lane.b32.xlu0 %v3070, 64
        %v6183 = vpop.permute.xlu0 %6182
        %6184 = vrot.lane.b32.xlu0 %v3071, 64
        %v6185 = vpop.permute.xlu0 %6184
        %v6189 = vsel %vm3393, %v5226, 0
        %v6192 = vsel %vm3393, %v5241, 0
        %6194 = vmatpush.msra.mxu0 0.0
        %6195 = vmatpush.msra.mxu0 0.0
        %6196 = vmatpush.msra.mxu0 0.0
        %6197 = vmatpush.msra.mxu0 0.0
        %6198 = vmatpush.msra.mxu0 0.0
        %6199 = vmatpush.msra.mxu0 0.0
        %6200 = vmatpush.msra.mxu0 0.0
        %6201 = vmatpush.msra.mxu0 0.0
        %6202 = vmatpush.msra.mxu0 0.0
        %6203 = vmatpush.msra.mxu0 0.0
        %6204 = vmatpush.msra.mxu0 0.0
        %6205 = vmatpush.msra.mxu0 0.0
        %6206 = vmatpush.msra.mxu0 0.0
        %6207 = vmatpush.msra.mxu0 0.0
        %6208 = vmatpush.msra.mxu0 %v6185
        %6209 = vmatpush.msra.mxu0 %v6183
        %6210 = vmatmul.f32.gmra.mxu0 %v6189
        %v6211 = vpop.f32.mrf.mxu0
        %v6212 = vadd.f32 0.0, %v6211
        %6213 = vmatmul.f32.gmra.mxu0 %v6192
        %v6214 = vpop.f32.mrf.mxu0
        %v6215 = vadd.f32 0.0, %v6214
        %6216 = vdwg.mxu0
        %6217 = vrot.lane.b32.xlu0 %v3072, 64
        %v6218 = vpop.permute.xlu0 %6217
        %6219 = vrot.lane.b32.xlu0 %v3073, 64
        %v6220 = vpop.permute.xlu0 %6219
        %v6224 = vsel %vm3393, %v5256, 0
        %v6227 = vsel %vm3393, %v5271, 0
        %6229 = vmatpush.msra.mxu0 0.0
        %6230 = vmatpush.msra.mxu0 0.0
        %6231 = vmatpush.msra.mxu0 0.0
        %6232 = vmatpush.msra.mxu0 0.0
        %6233 = vmatpush.msra.mxu0 0.0
        %6234 = vmatpush.msra.mxu0 0.0
        %6235 = vmatpush.msra.mxu0 0.0
        %6236 = vmatpush.msra.mxu0 0.0
        %6237 = vmatpush.msra.mxu0 0.0
        %6238 = vmatpush.msra.mxu0 0.0
        %6239 = vmatpush.msra.mxu0 0.0
        %6240 = vmatpush.msra.mxu0 0.0
        %6241 = vmatpush.msra.mxu0 0.0
        %6242 = vmatpush.msra.mxu0 0.0
        %6243 = vmatpush.msra.mxu0 %v6220
        %6244 = vmatpush.msra.mxu0 %v6218
        %6245 = vmatmul.f32.gmra.mxu0 %v6224
        %v6246 = vpop.f32.mrf.mxu0
        %v6247 = vadd.f32 0.0, %v6246
        %6248 = vmatmul.f32.gmra.mxu0 %v6227
        %v6249 = vpop.f32.mrf.mxu0
        %v6250 = vadd.f32 0.0, %v6249
        %6251 = vdwg.mxu0
        %6252 = vrot.lane.b32.xlu0 %v3074, 64
        %v6253 = vpop.permute.xlu0 %6252
        %6254 = vrot.lane.b32.xlu0 %v3075, 64
        %v6255 = vpop.permute.xlu0 %6254
        %v6259 = vsel %vm3393, %v5286, 0
        %v6262 = vsel %vm3393, %v5301, 0
        %6264 = vmatpush.msra.mxu0 0.0
        %6265 = vmatpush.msra.mxu0 0.0
        %6266 = vmatpush.msra.mxu0 0.0
        %6267 = vmatpush.msra.mxu0 0.0
        %6268 = vmatpush.msra.mxu0 0.0
        %6269 = vmatpush.msra.mxu0 0.0
        %6270 = vmatpush.msra.mxu0 0.0
        %6271 = vmatpush.msra.mxu0 0.0
        %6272 = vmatpush.msra.mxu0 0.0
        %6273 = vmatpush.msra.mxu0 0.0
        %6274 = vmatpush.msra.mxu0 0.0
        %6275 = vmatpush.msra.mxu0 0.0
        %6276 = vmatpush.msra.mxu0 0.0
        %6277 = vmatpush.msra.mxu0 0.0
        %6278 = vmatpush.msra.mxu0 %v6255
        %6279 = vmatpush.msra.mxu0 %v6253
        %6280 = vmatmul.f32.gmra.mxu0 %v6259
        %v6281 = vpop.f32.mrf.mxu0
        %v6282 = vadd.f32 0.0, %v6281
        %6283 = vmatmul.f32.gmra.mxu0 %v6262
        %v6284 = vpop.f32.mrf.mxu0
        %v6285 = vadd.f32 0.0, %v6284
        %6286 = vdwg.mxu0
        %6287 = vrot.lane.b32.xlu0 %v3076, 64
        %v6288 = vpop.permute.xlu0 %6287
        %6289 = vrot.lane.b32.xlu0 %v3077, 64
        %v6290 = vpop.permute.xlu0 %6289
        %v6294 = vsel %vm3393, %v5316, 0
        %v6297 = vsel %vm3393, %v5331, 0
        %6299 = vmatpush.msra.mxu0 0.0
        %6300 = vmatpush.msra.mxu0 0.0
        %6301 = vmatpush.msra.mxu0 0.0
        %6302 = vmatpush.msra.mxu0 0.0
        %6303 = vmatpush.msra.mxu0 0.0
        %6304 = vmatpush.msra.mxu0 0.0
        %6305 = vmatpush.msra.mxu0 0.0
        %6306 = vmatpush.msra.mxu0 0.0
        %6307 = vmatpush.msra.mxu0 0.0
        %6308 = vmatpush.msra.mxu0 0.0
        %6309 = vmatpush.msra.mxu0 0.0
        %6310 = vmatpush.msra.mxu0 0.0
        %6311 = vmatpush.msra.mxu0 0.0
        %6312 = vmatpush.msra.mxu0 0.0
        %6313 = vmatpush.msra.mxu0 %v6290
        %6314 = vmatpush.msra.mxu0 %v6288
        %6315 = vmatmul.f32.gmra.mxu0 %v6294
        %v6316 = vpop.f32.mrf.mxu0
        %v6317 = vadd.f32 0.0, %v6316
        %6318 = vmatmul.f32.gmra.mxu0 %v6297
        %v6319 = vpop.f32.mrf.mxu0
        %v6320 = vadd.f32 0.0, %v6319
        %6321 = vdwg.mxu0
        %6322 = vrot.lane.b32.xlu0 %v3078, 64
        %v6323 = vpop.permute.xlu0 %6322
        %6324 = vrot.lane.b32.xlu0 %v3079, 64
        %v6325 = vpop.permute.xlu0 %6324
        %v6329 = vsel %vm3393, %v5346, 0
        %v6332 = vsel %vm3393, %v5361, 0
        %6334 = vmatpush.msra.mxu0 0.0
        %6335 = vmatpush.msra.mxu0 0.0
        %6336 = vmatpush.msra.mxu0 0.0
        %6337 = vmatpush.msra.mxu0 0.0
        %6338 = vmatpush.msra.mxu0 0.0
        %6339 = vmatpush.msra.mxu0 0.0
        %6340 = vmatpush.msra.mxu0 0.0
        %6341 = vmatpush.msra.mxu0 0.0
        %6342 = vmatpush.msra.mxu0 0.0
        %6343 = vmatpush.msra.mxu0 0.0
        %6344 = vmatpush.msra.mxu0 0.0
        %6345 = vmatpush.msra.mxu0 0.0
        %6346 = vmatpush.msra.mxu0 0.0
        %6347 = vmatpush.msra.mxu0 0.0
        %6348 = vmatpush.msra.mxu0 %v6325
        %6349 = vmatpush.msra.mxu0 %v6323
        %6350 = vmatmul.f32.gmra.mxu0 %v6329
        %v6351 = vpop.f32.mrf.mxu0
        %v6352 = vadd.f32 0.0, %v6351
        %6353 = vmatmul.f32.gmra.mxu0 %v6332
        %v6354 = vpop.f32.mrf.mxu0
        %v6355 = vadd.f32 0.0, %v6354
        %6356 = vdwg.mxu0
        %6357 = vrot.lane.b32.xlu0 %v3080, 64
        %v6358 = vpop.permute.xlu0 %6357
        %6359 = vrot.lane.b32.xlu0 %v3081, 64
        %v6360 = vpop.permute.xlu0 %6359
        %v6364 = vsel %vm3393, %v5376, 0
        %v6367 = vsel %vm3393, %v5391, 0
        %6369 = vmatpush.msra.mxu0 0.0
        %6370 = vmatpush.msra.mxu0 0.0
        %6371 = vmatpush.msra.mxu0 0.0
        %6372 = vmatpush.msra.mxu0 0.0
        %6373 = vmatpush.msra.mxu0 0.0
        %6374 = vmatpush.msra.mxu0 0.0
        %6375 = vmatpush.msra.mxu0 0.0
        %6376 = vmatpush.msra.mxu0 0.0
        %6377 = vmatpush.msra.mxu0 0.0
        %6378 = vmatpush.msra.mxu0 0.0
        %6379 = vmatpush.msra.mxu0 0.0
        %6380 = vmatpush.msra.mxu0 0.0
        %6381 = vmatpush.msra.mxu0 0.0
        %6382 = vmatpush.msra.mxu0 0.0
        %6383 = vmatpush.msra.mxu0 %v6360
        %6384 = vmatpush.msra.mxu0 %v6358
        %6385 = vmatmul.f32.gmra.mxu0 %v6364
        %v6386 = vpop.f32.mrf.mxu0
        %v6387 = vadd.f32 0.0, %v6386
        %6388 = vmatmul.f32.gmra.mxu0 %v6367
        %v6389 = vpop.f32.mrf.mxu0
        %v6390 = vadd.f32 0.0, %v6389
        %6391 = vdwg.mxu0
        %6392 = vrot.lane.b32.xlu0 %v3082, 64
        %v6393 = vpop.permute.xlu0 %6392
        %6394 = vrot.lane.b32.xlu0 %v3083, 64
        %v6395 = vpop.permute.xlu0 %6394
        %v6399 = vsel %vm3393, %v5406, 0
        %v6402 = vsel %vm3393, %v5421, 0
        %6404 = vmatpush.msra.mxu0 0.0
        %6405 = vmatpush.msra.mxu0 0.0
        %6406 = vmatpush.msra.mxu0 0.0
        %6407 = vmatpush.msra.mxu0 0.0
        %6408 = vmatpush.msra.mxu0 0.0
        %6409 = vmatpush.msra.mxu0 0.0
        %6410 = vmatpush.msra.mxu0 0.0
        %6411 = vmatpush.msra.mxu0 0.0
        %6412 = vmatpush.msra.mxu0 0.0
        %6413 = vmatpush.msra.mxu0 0.0
        %6414 = vmatpush.msra.mxu0 0.0
        %6415 = vmatpush.msra.mxu0 0.0
        %6416 = vmatpush.msra.mxu0 0.0
        %6417 = vmatpush.msra.mxu0 0.0
        %6418 = vmatpush.msra.mxu0 %v6395
        %6419 = vmatpush.msra.mxu0 %v6393
        %6420 = vmatmul.f32.gmra.mxu0 %v6399
        %v6421 = vpop.f32.mrf.mxu0
        %v6422 = vadd.f32 0.0, %v6421
        %6423 = vmatmul.f32.gmra.mxu0 %v6402
        %v6424 = vpop.f32.mrf.mxu0
        %v6425 = vadd.f32 0.0, %v6424
        %6426 = vdwg.mxu0
        %6427 = vrot.lane.b32.xlu0 %v3084, 64
        %v6428 = vpop.permute.xlu0 %6427
        %6429 = vrot.lane.b32.xlu0 %v3085, 64
        %v6430 = vpop.permute.xlu0 %6429
        %v6434 = vsel %vm3393, %v5436, 0
        %v6437 = vsel %vm3393, %v5451, 0
        %6439 = vmatpush.msra.mxu0 0.0
        %6440 = vmatpush.msra.mxu0 0.0
        %6441 = vmatpush.msra.mxu0 0.0
        %6442 = vmatpush.msra.mxu0 0.0
        %6443 = vmatpush.msra.mxu0 0.0
        %6444 = vmatpush.msra.mxu0 0.0
        %6445 = vmatpush.msra.mxu0 0.0
        %6446 = vmatpush.msra.mxu0 0.0
        %6447 = vmatpush.msra.mxu0 0.0
        %6448 = vmatpush.msra.mxu0 0.0
        %6449 = vmatpush.msra.mxu0 0.0
        %6450 = vmatpush.msra.mxu0 0.0
        %6451 = vmatpush.msra.mxu0 0.0
        %6452 = vmatpush.msra.mxu0 0.0
        %6453 = vmatpush.msra.mxu0 %v6430
        %6454 = vmatpush.msra.mxu0 %v6428
        %6455 = vmatmul.f32.gmra.mxu0 %v6434
        %v6456 = vpop.f32.mrf.mxu0
        %v6457 = vadd.f32 0.0, %v6456
        %6458 = vmatmul.f32.gmra.mxu0 %v6437
        %v6459 = vpop.f32.mrf.mxu0
        %v6460 = vadd.f32 0.0, %v6459
        %6461 = vdwg.mxu0
        %6462 = vrot.lane.b32.xlu0 %v3086, 64
        %v6463 = vpop.permute.xlu0 %6462
        %6464 = vrot.lane.b32.xlu0 %v3087, 64
        %v6465 = vpop.permute.xlu0 %6464
        %v6469 = vsel %vm3393, %v5466, 0
        %v6472 = vsel %vm3393, %v5481, 0
        %6474 = vmatpush.msra.mxu0 0.0
        %6475 = vmatpush.msra.mxu0 0.0
        %6476 = vmatpush.msra.mxu0 0.0
        %6477 = vmatpush.msra.mxu0 0.0
        %6478 = vmatpush.msra.mxu0 0.0
        %6479 = vmatpush.msra.mxu0 0.0
        %6480 = vmatpush.msra.mxu0 0.0
        %6481 = vmatpush.msra.mxu0 0.0
        %6482 = vmatpush.msra.mxu0 0.0
        %6483 = vmatpush.msra.mxu0 0.0
        %6484 = vmatpush.msra.mxu0 0.0
        %6485 = vmatpush.msra.mxu0 0.0
        %6486 = vmatpush.msra.mxu0 0.0
        %6487 = vmatpush.msra.mxu0 0.0
        %6488 = vmatpush.msra.mxu0 %v6465
        %6489 = vmatpush.msra.mxu0 %v6463
        %6490 = vmatmul.f32.gmra.mxu0 %v6469
        %v6491 = vpop.f32.mrf.mxu0
        %v6492 = vadd.f32 0.0, %v6491
        %6493 = vmatmul.f32.gmra.mxu0 %v6472
        %v6494 = vpop.f32.mrf.mxu0
        %v6495 = vadd.f32 0.0, %v6494
        %6496 = vdwg.mxu0
        %6497 = vrot.lane.b32.xlu0 %v3088, 64
        %v6498 = vpop.permute.xlu0 %6497
        %6499 = vrot.lane.b32.xlu0 %v3089, 64
        %v6500 = vpop.permute.xlu0 %6499
        %v6504 = vsel %vm3393, %v5496, 0
        %v6507 = vsel %vm3393, %v5511, 0
        %6509 = vmatpush.msra.mxu0 0.0
        %6510 = vmatpush.msra.mxu0 0.0
        %6511 = vmatpush.msra.mxu0 0.0
        %6512 = vmatpush.msra.mxu0 0.0
        %6513 = vmatpush.msra.mxu0 0.0
        %6514 = vmatpush.msra.mxu0 0.0
        %6515 = vmatpush.msra.mxu0 0.0
        %6516 = vmatpush.msra.mxu0 0.0
        %6517 = vmatpush.msra.mxu0 0.0
        %6518 = vmatpush.msra.mxu0 0.0
        %6519 = vmatpush.msra.mxu0 0.0
        %6520 = vmatpush.msra.mxu0 0.0
        %6521 = vmatpush.msra.mxu0 0.0
        %6522 = vmatpush.msra.mxu0 0.0
        %6523 = vmatpush.msra.mxu0 %v6500
        %6524 = vmatpush.msra.mxu0 %v6498
        %6525 = vmatmul.f32.gmra.mxu0 %v6504
        %v6526 = vpop.f32.mrf.mxu0
        %v6527 = vadd.f32 0.0, %v6526
        %6528 = vmatmul.f32.gmra.mxu0 %v6507
        %v6529 = vpop.f32.mrf.mxu0
        %v6530 = vadd.f32 0.0, %v6529
        %6531 = vdwg.mxu0
        %6532 = vrot.lane.b32.xlu0 %v3090, 64
        %v6533 = vpop.permute.xlu0 %6532
        %6534 = vrot.lane.b32.xlu0 %v3091, 64
        %v6535 = vpop.permute.xlu0 %6534
        %v6539 = vsel %vm3393, %v5526, 0
        %v6542 = vsel %vm3393, %v5541, 0
        %6544 = vmatpush.msra.mxu0 0.0
        %6545 = vmatpush.msra.mxu0 0.0
        %6546 = vmatpush.msra.mxu0 0.0
        %6547 = vmatpush.msra.mxu0 0.0
        %6548 = vmatpush.msra.mxu0 0.0
        %6549 = vmatpush.msra.mxu0 0.0
        %6550 = vmatpush.msra.mxu0 0.0
        %6551 = vmatpush.msra.mxu0 0.0
        %6552 = vmatpush.msra.mxu0 0.0
        %6553 = vmatpush.msra.mxu0 0.0
        %6554 = vmatpush.msra.mxu0 0.0
        %6555 = vmatpush.msra.mxu0 0.0
        %6556 = vmatpush.msra.mxu0 0.0
        %6557 = vmatpush.msra.mxu0 0.0
        %6558 = vmatpush.msra.mxu0 %v6535
        %6559 = vmatpush.msra.mxu0 %v6533
        %6560 = vmatmul.f32.gmra.mxu0 %v6539
        %v6561 = vpop.f32.mrf.mxu0
        %v6562 = vadd.f32 0.0, %v6561
        %6563 = vmatmul.f32.gmra.mxu0 %v6542
        %v6564 = vpop.f32.mrf.mxu0
        %v6565 = vadd.f32 0.0, %v6564
        %6566 = vdwg.mxu0
        %6567 = vrot.lane.b32.xlu0 %v3092, 64
        %v6568 = vpop.permute.xlu0 %6567
        %6569 = vrot.lane.b32.xlu0 %v3093, 64
        %v6570 = vpop.permute.xlu0 %6569
        %v6574 = vsel %vm3393, %v5556, 0
        %v6577 = vsel %vm3393, %v5571, 0
        %6579 = vmatpush.msra.mxu0 0.0
        %6580 = vmatpush.msra.mxu0 0.0
        %6581 = vmatpush.msra.mxu0 0.0
        %6582 = vmatpush.msra.mxu0 0.0
        %6583 = vmatpush.msra.mxu0 0.0
        %6584 = vmatpush.msra.mxu0 0.0
        %6585 = vmatpush.msra.mxu0 0.0
        %6586 = vmatpush.msra.mxu0 0.0
        %6587 = vmatpush.msra.mxu0 0.0
        %6588 = vmatpush.msra.mxu0 0.0
        %6589 = vmatpush.msra.mxu0 0.0
        %6590 = vmatpush.msra.mxu0 0.0
        %6591 = vmatpush.msra.mxu0 0.0
        %6592 = vmatpush.msra.mxu0 0.0
        %6593 = vmatpush.msra.mxu0 %v6570
        %6594 = vmatpush.msra.mxu0 %v6568
        %6595 = vmatmul.f32.gmra.mxu0 %v6574
        %v6596 = vpop.f32.mrf.mxu0
        %v6597 = vadd.f32 0.0, %v6596
        %6598 = vmatmul.f32.gmra.mxu0 %v6577
        %v6599 = vpop.f32.mrf.mxu0
        %v6600 = vadd.f32 0.0, %v6599
        %6601 = vdwg.mxu0
        %6602 = vrot.lane.b32.xlu0 %v3094, 64
        %v6603 = vpop.permute.xlu0 %6602
        %6604 = vrot.lane.b32.xlu0 %v3095, 64
        %v6605 = vpop.permute.xlu0 %6604
        %v6609 = vsel %vm3393, %v5586, 0
        %v6612 = vsel %vm3393, %v5601, 0
        %6614 = vmatpush.msra.mxu0 0.0
        %6615 = vmatpush.msra.mxu0 0.0
        %6616 = vmatpush.msra.mxu0 0.0
        %6617 = vmatpush.msra.mxu0 0.0
        %6618 = vmatpush.msra.mxu0 0.0
        %6619 = vmatpush.msra.mxu0 0.0
        %6620 = vmatpush.msra.mxu0 0.0
        %6621 = vmatpush.msra.mxu0 0.0
        %6622 = vmatpush.msra.mxu0 0.0
        %6623 = vmatpush.msra.mxu0 0.0
        %6624 = vmatpush.msra.mxu0 0.0
        %6625 = vmatpush.msra.mxu0 0.0
        %6626 = vmatpush.msra.mxu0 0.0
        %6627 = vmatpush.msra.mxu0 0.0
        %6628 = vmatpush.msra.mxu0 %v6605
        %6629 = vmatpush.msra.mxu0 %v6603
        %6630 = vmatmul.f32.gmra.mxu0 %v6609
        %v6631 = vpop.f32.mrf.mxu0
        %v6632 = vadd.f32 0.0, %v6631
        %6633 = vmatmul.f32.gmra.mxu0 %v6612
        %v6634 = vpop.f32.mrf.mxu0
        %v6635 = vadd.f32 0.0, %v6634
        %6636 = vdwg.mxu0
        %6637 = vrot.lane.b32.xlu0 %v3096, 64
        %v6638 = vpop.permute.xlu0 %6637
        %6639 = vrot.lane.b32.xlu0 %v3097, 64
        %v6640 = vpop.permute.xlu0 %6639
        %v6644 = vsel %vm3393, %v5616, 0
        %v6647 = vsel %vm3393, %v5631, 0
        %6649 = vmatpush.msra.mxu0 0.0
        %6650 = vmatpush.msra.mxu0 0.0
        %6651 = vmatpush.msra.mxu0 0.0
        %6652 = vmatpush.msra.mxu0 0.0
        %6653 = vmatpush.msra.mxu0 0.0
        %6654 = vmatpush.msra.mxu0 0.0
        %6655 = vmatpush.msra.mxu0 0.0
        %6656 = vmatpush.msra.mxu0 0.0
        %6657 = vmatpush.msra.mxu0 0.0
        %6658 = vmatpush.msra.mxu0 0.0
        %6659 = vmatpush.msra.mxu0 0.0
        %6660 = vmatpush.msra.mxu0 0.0
        %6661 = vmatpush.msra.mxu0 0.0
        %6662 = vmatpush.msra.mxu0 0.0
        %6663 = vmatpush.msra.mxu0 %v6640
        %6664 = vmatpush.msra.mxu0 %v6638
        %6665 = vmatmul.f32.gmra.mxu0 %v6644
        %v6666 = vpop.f32.mrf.mxu0
        %v6667 = vadd.f32 0.0, %v6666
        %6668 = vmatmul.f32.gmra.mxu0 %v6647
        %v6669 = vpop.f32.mrf.mxu0
        %v6670 = vadd.f32 0.0, %v6669
        %6671 = vdwg.mxu0
        %6672 = vrot.lane.b32.xlu0 %v3323, 64
        %v6673 = vpop.permute.xlu0 %6672
        %6674 = vrot.lane.b32.xlu0 %v3325, 64
        %v6675 = vpop.permute.xlu0 %6674
        %v6679 = vsel %vm3393, %v5646, 0
        %v6682 = vsel %vm3393, %v5661, 0
        %6684 = vmatpush.msra.mxu0 0.0
        %6685 = vmatpush.msra.mxu0 0.0
        %6686 = vmatpush.msra.mxu0 0.0
        %6687 = vmatpush.msra.mxu0 0.0
        %6688 = vmatpush.msra.mxu0 0.0
        %6689 = vmatpush.msra.mxu0 0.0
        %6690 = vmatpush.msra.mxu0 0.0
        %6691 = vmatpush.msra.mxu0 0.0
        %6692 = vmatpush.msra.mxu0 0.0
        %6693 = vmatpush.msra.mxu0 0.0
        %6694 = vmatpush.msra.mxu0 0.0
        %6695 = vmatpush.msra.mxu0 0.0
        %6696 = vmatpush.msra.mxu0 0.0
        %6697 = vmatpush.msra.mxu0 0.0
        %6698 = vmatpush.msra.mxu0 %v6675
        %6699 = vmatpush.msra.mxu0 %v6673
        %6700 = vmatmul.f32.gmra.mxu0 %v6679
        %v6701 = vpop.f32.mrf.mxu0
        %v6702 = vadd.f32 0.0, %v6701
        %6703 = vmatmul.f32.gmra.mxu0 %v6682
        %v6704 = vpop.f32.mrf.mxu0
        %v6705 = vadd.f32 0.0, %v6704
        %6706 = vdwg.mxu0
        %6707 = vrot.lane.b32.xlu0 %v3327, 64
        %v6708 = vpop.permute.xlu0 %6707
        %6709 = vrot.lane.b32.xlu0 %v3329, 64
        %v6710 = vpop.permute.xlu0 %6709
        %v6714 = vsel %vm3393, %v5676, 0
        %v6717 = vsel %vm3393, %v5691, 0
        %6719 = vmatpush.msra.mxu0 0.0
        %6720 = vmatpush.msra.mxu0 0.0
        %6721 = vmatpush.msra.mxu0 0.0
        %6722 = vmatpush.msra.mxu0 0.0
        %6723 = vmatpush.msra.mxu0 0.0
        %6724 = vmatpush.msra.mxu0 0.0
        %6725 = vmatpush.msra.mxu0 0.0
        %6726 = vmatpush.msra.mxu0 0.0
        %6727 = vmatpush.msra.mxu0 0.0
        %6728 = vmatpush.msra.mxu0 0.0
        %6729 = vmatpush.msra.mxu0 0.0
        %6730 = vmatpush.msra.mxu0 0.0
        %6731 = vmatpush.msra.mxu0 0.0
        %6732 = vmatpush.msra.mxu0 0.0
        %6733 = vmatpush.msra.mxu0 %v6710
        %6734 = vmatpush.msra.mxu0 %v6708
        %6735 = vmatmul.f32.gmra.mxu0 %v6714
        %v6736 = vpop.f32.mrf.mxu0
        %v6737 = vadd.f32 0.0, %v6736
        %6738 = vmatmul.f32.gmra.mxu0 %v6717
        %v6739 = vpop.f32.mrf.mxu0
        %v6740 = vadd.f32 0.0, %v6739
        %6741 = vdwg.mxu0
        %6742 = vrot.lane.b32.xlu0 %v3331, 64
        %v6743 = vpop.permute.xlu0 %6742
        %6744 = vrot.lane.b32.xlu0 %v3333, 64
        %v6745 = vpop.permute.xlu0 %6744
        %v6749 = vsel %vm3393, %v5706, 0
        %v6752 = vsel %vm3393, %v5721, 0
        %6754 = vmatpush.msra.mxu0 0.0
        %6755 = vmatpush.msra.mxu0 0.0
        %6756 = vmatpush.msra.mxu0 0.0
        %6757 = vmatpush.msra.mxu0 0.0
        %6758 = vmatpush.msra.mxu0 0.0
        %6759 = vmatpush.msra.mxu0 0.0
        %6760 = vmatpush.msra.mxu0 0.0
        %6761 = vmatpush.msra.mxu0 0.0
        %6762 = vmatpush.msra.mxu0 0.0
        %6763 = vmatpush.msra.mxu0 0.0
        %6764 = vmatpush.msra.mxu0 0.0
        %6765 = vmatpush.msra.mxu0 0.0
        %6766 = vmatpush.msra.mxu0 0.0
        %6767 = vmatpush.msra.mxu0 0.0
        %6768 = vmatpush.msra.mxu0 %v6745
        %6769 = vmatpush.msra.mxu0 %v6743
        %6770 = vmatmul.f32.gmra.mxu0 %v6749
        %v6771 = vpop.f32.mrf.mxu0
        %v6772 = vadd.f32 0.0, %v6771
        %6773 = vmatmul.f32.gmra.mxu0 %v6752
        %v6774 = vpop.f32.mrf.mxu0
        %v6775 = vadd.f32 0.0, %v6774
        %6776 = vdwg.mxu0
        %6777 = vrot.lane.b32.xlu0 %v3335, 64
        %v6778 = vpop.permute.xlu0 %6777
        %6779 = vrot.lane.b32.xlu0 %v3337, 64
        %v6780 = vpop.permute.xlu0 %6779
        %v6784 = vsel %vm3393, %v5736, 0
        %v6787 = vsel %vm3393, %v5751, 0
        %6789 = vmatpush.msra.mxu0 0.0
        %6790 = vmatpush.msra.mxu0 0.0
        %6791 = vmatpush.msra.mxu0 0.0
        %6792 = vmatpush.msra.mxu0 0.0
        %6793 = vmatpush.msra.mxu0 0.0
        %6794 = vmatpush.msra.mxu0 0.0
        %6795 = vmatpush.msra.mxu0 0.0
        %6796 = vmatpush.msra.mxu0 0.0
        %6797 = vmatpush.msra.mxu0 0.0
        %6798 = vmatpush.msra.mxu0 0.0
        %6799 = vmatpush.msra.mxu0 0.0
        %6800 = vmatpush.msra.mxu0 0.0
        %6801 = vmatpush.msra.mxu0 0.0
        %6802 = vmatpush.msra.mxu0 0.0
        %6803 = vmatpush.msra.mxu0 %v6780
        %6804 = vmatpush.msra.mxu0 %v6778
        %6805 = vmatmul.f32.gmra.mxu0 %v6784
        %v6806 = vpop.f32.mrf.mxu0
        %v6807 = vadd.f32 0.0, %v6806
        %6808 = vmatmul.f32.gmra.mxu0 %v6787
        %v6809 = vpop.f32.mrf.mxu0
        %v6810 = vadd.f32 0.0, %v6809
        %6811 = vdwg.mxu0
        %6812 = vrot.lane.b32.xlu0 %v3339, 64
        %v6813 = vpop.permute.xlu0 %6812
        %6814 = vrot.lane.b32.xlu0 %v3341, 64
        %v6815 = vpop.permute.xlu0 %6814
        %v6819 = vsel %vm3393, %v5766, 0
        %v6822 = vsel %vm3393, %v5781, 0
        %6824 = vmatpush.msra.mxu0 0.0
        %6825 = vmatpush.msra.mxu0 0.0
        %6826 = vmatpush.msra.mxu0 0.0
        %6827 = vmatpush.msra.mxu0 0.0
        %6828 = vmatpush.msra.mxu0 0.0
        %6829 = vmatpush.msra.mxu0 0.0
        %6830 = vmatpush.msra.mxu0 0.0
        %6831 = vmatpush.msra.mxu0 0.0
        %6832 = vmatpush.msra.mxu0 0.0
        %6833 = vmatpush.msra.mxu0 0.0
        %6834 = vmatpush.msra.mxu0 0.0
        %6835 = vmatpush.msra.mxu0 0.0
        %6836 = vmatpush.msra.mxu0 0.0
        %6837 = vmatpush.msra.mxu0 0.0
        %6838 = vmatpush.msra.mxu0 %v6815
        %6839 = vmatpush.msra.mxu0 %v6813
        %6840 = vmatmul.f32.gmra.mxu0 %v6819
        %v6841 = vpop.f32.mrf.mxu0
        %v6842 = vadd.f32 0.0, %v6841
        %6843 = vmatmul.f32.gmra.mxu0 %v6822
        %v6844 = vpop.f32.mrf.mxu0
        %v6845 = vadd.f32 0.0, %v6844
        %6846 = vdwg.mxu0
        %6847 = vrot.lane.b32.xlu0 %v3343, 64
        %v6848 = vpop.permute.xlu0 %6847
        %6849 = vrot.lane.b32.xlu0 %v3345, 64
        %v6850 = vpop.permute.xlu0 %6849
        %v6854 = vsel %vm3393, %v5796, 0
        %v6857 = vsel %vm3393, %v5811, 0
        %6859 = vmatpush.msra.mxu0 0.0
        %6860 = vmatpush.msra.mxu0 0.0
        %6861 = vmatpush.msra.mxu0 0.0
        %6862 = vmatpush.msra.mxu0 0.0
        %6863 = vmatpush.msra.mxu0 0.0
        %6864 = vmatpush.msra.mxu0 0.0
        %6865 = vmatpush.msra.mxu0 0.0
        %6866 = vmatpush.msra.mxu0 0.0
        %6867 = vmatpush.msra.mxu0 0.0
        %6868 = vmatpush.msra.mxu0 0.0
        %6869 = vmatpush.msra.mxu0 0.0
        %6870 = vmatpush.msra.mxu0 0.0
        %6871 = vmatpush.msra.mxu0 0.0
        %6872 = vmatpush.msra.mxu0 0.0
        %6873 = vmatpush.msra.mxu0 %v6850
        %6874 = vmatpush.msra.mxu0 %v6848
        %6875 = vmatmul.f32.gmra.mxu0 %v6854
        %v6876 = vpop.f32.mrf.mxu0
        %v6877 = vadd.f32 0.0, %v6876
        %6878 = vmatmul.f32.gmra.mxu0 %v6857
        %v6879 = vpop.f32.mrf.mxu0
        %v6880 = vadd.f32 0.0, %v6879
        %6881 = vdwg.mxu0
        %6882 = vrot.lane.b32.xlu0 %v3347, 64
        %v6883 = vpop.permute.xlu0 %6882
        %6884 = vrot.lane.b32.xlu0 %v3349, 64
        %v6885 = vpop.permute.xlu0 %6884
        %v6889 = vsel %vm3393, %v5826, 0
        %v6892 = vsel %vm3393, %v5841, 0
        %6894 = vmatpush.msra.mxu0 0.0
        %6895 = vmatpush.msra.mxu0 0.0
        %6896 = vmatpush.msra.mxu0 0.0
        %6897 = vmatpush.msra.mxu0 0.0
        %6898 = vmatpush.msra.mxu0 0.0
        %6899 = vmatpush.msra.mxu0 0.0
        %6900 = vmatpush.msra.mxu0 0.0
        %6901 = vmatpush.msra.mxu0 0.0
        %6902 = vmatpush.msra.mxu0 0.0
        %6903 = vmatpush.msra.mxu0 0.0
        %6904 = vmatpush.msra.mxu0 0.0
        %6905 = vmatpush.msra.mxu0 0.0
        %6906 = vmatpush.msra.mxu0 0.0
        %6907 = vmatpush.msra.mxu0 0.0
        %6908 = vmatpush.msra.mxu0 %v6885
        %6909 = vmatpush.msra.mxu0 %v6883
        %6910 = vmatmul.f32.gmra.mxu0 %v6889
        %v6911 = vpop.f32.mrf.mxu0
        %v6912 = vadd.f32 0.0, %v6911
        %6913 = vmatmul.f32.gmra.mxu0 %v6892
        %v6914 = vpop.f32.mrf.mxu0
        %v6915 = vadd.f32 0.0, %v6914
        %6916 = vdwg.mxu0
        %6917 = vrot.lane.b32.xlu0 %v3351, 64
        %v6918 = vpop.permute.xlu0 %6917
        %6919 = vrot.lane.b32.xlu0 %v3353, 64
        %v6920 = vpop.permute.xlu0 %6919
        %v6924 = vsel %vm3393, %v5856, 0
        %v6927 = vsel %vm3393, %v5871, 0
        %6929 = vmatpush.msra.mxu0 0.0
        %6930 = vmatpush.msra.mxu0 0.0
        %6931 = vmatpush.msra.mxu0 0.0
        %6932 = vmatpush.msra.mxu0 0.0
        %6933 = vmatpush.msra.mxu0 0.0
        %6934 = vmatpush.msra.mxu0 0.0
        %6935 = vmatpush.msra.mxu0 0.0
        %6936 = vmatpush.msra.mxu0 0.0
        %6937 = vmatpush.msra.mxu0 0.0
        %6938 = vmatpush.msra.mxu0 0.0
        %6939 = vmatpush.msra.mxu0 0.0
        %6940 = vmatpush.msra.mxu0 0.0
        %6941 = vmatpush.msra.mxu0 0.0
        %6942 = vmatpush.msra.mxu0 0.0
        %6943 = vmatpush.msra.mxu0 %v6920
        %6944 = vmatpush.msra.mxu0 %v6918
        %6945 = vmatmul.f32.gmra.mxu0 %v6924
        %v6946 = vpop.f32.mrf.mxu0
        %v6947 = vadd.f32 0.0, %v6946
        %6948 = vmatmul.f32.gmra.mxu0 %v6927
        %v6949 = vpop.f32.mrf.mxu0
        %v6950 = vadd.f32 0.0, %v6949
        %6951 = vdwg.mxu0
        %6952 = vrot.lane.b32.xlu0 %v3355, 64
        %v6953 = vpop.permute.xlu0 %6952
        %6954 = vrot.lane.b32.xlu0 %v3357, 64
        %v6955 = vpop.permute.xlu0 %6954
        %v6959 = vsel %vm3393, %v5886, 0
        %v6962 = vsel %vm3393, %v5901, 0
        %6964 = vmatpush.msra.mxu0 0.0
        %6965 = vmatpush.msra.mxu0 0.0
        %6966 = vmatpush.msra.mxu0 0.0
        %6967 = vmatpush.msra.mxu0 0.0
        %6968 = vmatpush.msra.mxu0 0.0
        %6969 = vmatpush.msra.mxu0 0.0
        %6970 = vmatpush.msra.mxu0 0.0
        %6971 = vmatpush.msra.mxu0 0.0
        %6972 = vmatpush.msra.mxu0 0.0
        %6973 = vmatpush.msra.mxu0 0.0
        %6974 = vmatpush.msra.mxu0 0.0
        %6975 = vmatpush.msra.mxu0 0.0
        %6976 = vmatpush.msra.mxu0 0.0
        %6977 = vmatpush.msra.mxu0 0.0
        %6978 = vmatpush.msra.mxu0 %v6955
        %6979 = vmatpush.msra.mxu0 %v6953
        %6980 = vmatmul.f32.gmra.mxu0 %v6959
        %v6981 = vpop.f32.mrf.mxu0
        %v6982 = vadd.f32 0.0, %v6981
        %6983 = vmatmul.f32.gmra.mxu0 %v6962
        %v6984 = vpop.f32.mrf.mxu0
        %v6985 = vadd.f32 0.0, %v6984
        %6986 = vdwg.mxu0
        %6987 = vrot.lane.b32.xlu0 %v3359, 64
        %v6988 = vpop.permute.xlu0 %6987
        %6989 = vrot.lane.b32.xlu0 %v3361, 64
        %v6990 = vpop.permute.xlu0 %6989
        %v6994 = vsel %vm3393, %v5916, 0
        %v6997 = vsel %vm3393, %v5931, 0
        %6999 = vmatpush.msra.mxu0 0.0
        %7000 = vmatpush.msra.mxu0 0.0
        %7001 = vmatpush.msra.mxu0 0.0
        %7002 = vmatpush.msra.mxu0 0.0
        %7003 = vmatpush.msra.mxu0 0.0
        %7004 = vmatpush.msra.mxu0 0.0
        %7005 = vmatpush.msra.mxu0 0.0
        %7006 = vmatpush.msra.mxu0 0.0
        %7007 = vmatpush.msra.mxu0 0.0
        %7008 = vmatpush.msra.mxu0 0.0
        %7009 = vmatpush.msra.mxu0 0.0
        %7010 = vmatpush.msra.mxu0 0.0
        %7011 = vmatpush.msra.mxu0 0.0
        %7012 = vmatpush.msra.mxu0 0.0
        %7013 = vmatpush.msra.mxu0 %v6990
        %7014 = vmatpush.msra.mxu0 %v6988
        %7015 = vmatmul.f32.gmra.mxu0 %v6994
        %v7016 = vpop.f32.mrf.mxu0
        %v7017 = vadd.f32 0.0, %v7016
        %7018 = vmatmul.f32.gmra.mxu0 %v6997
        %v7019 = vpop.f32.mrf.mxu0
        %v7020 = vadd.f32 0.0, %v7019
        %7021 = vdwg.mxu0
        %7022 = vrot.lane.b32.xlu0 %v3363, 64
        %v7023 = vpop.permute.xlu0 %7022
        %7024 = vrot.lane.b32.xlu0 %v3365, 64
        %v7025 = vpop.permute.xlu0 %7024
        %v7029 = vsel %vm3393, %v5946, 0
        %v7032 = vsel %vm3393, %v5961, 0
        %7034 = vmatpush.msra.mxu0 0.0
        %7035 = vmatpush.msra.mxu0 0.0
        %7036 = vmatpush.msra.mxu0 0.0
        %7037 = vmatpush.msra.mxu0 0.0
        %7038 = vmatpush.msra.mxu0 0.0
        %7039 = vmatpush.msra.mxu0 0.0
        %7040 = vmatpush.msra.mxu0 0.0
        %7041 = vmatpush.msra.mxu0 0.0
        %7042 = vmatpush.msra.mxu0 0.0
        %7043 = vmatpush.msra.mxu0 0.0
        %7044 = vmatpush.msra.mxu0 0.0
        %7045 = vmatpush.msra.mxu0 0.0
        %7046 = vmatpush.msra.mxu0 0.0
        %7047 = vmatpush.msra.mxu0 0.0
        %7048 = vmatpush.msra.mxu0 %v7025
        %7049 = vmatpush.msra.mxu0 %v7023
        %7050 = vmatmul.f32.gmra.mxu0 %v7029
        %v7051 = vpop.f32.mrf.mxu0
        %v7052 = vadd.f32 0.0, %v7051
        %7053 = vmatmul.f32.gmra.mxu0 %v7032
        %v7054 = vpop.f32.mrf.mxu0
        %v7055 = vadd.f32 0.0, %v7054
        %7056 = vdwg.mxu0
        %7057 = vrot.lane.b32.xlu0 %v3367, 64
        %v7058 = vpop.permute.xlu0 %7057
        %7059 = vrot.lane.b32.xlu0 %v3369, 64
        %v7060 = vpop.permute.xlu0 %7059
        %v7064 = vsel %vm3393, %v5976, 0
        %v7067 = vsel %vm3393, %v5991, 0
        %7069 = vmatpush.msra.mxu0 0.0
        %7070 = vmatpush.msra.mxu0 0.0
        %7071 = vmatpush.msra.mxu0 0.0
        %7072 = vmatpush.msra.mxu0 0.0
        %7073 = vmatpush.msra.mxu0 0.0
        %7074 = vmatpush.msra.mxu0 0.0
        %7075 = vmatpush.msra.mxu0 0.0
        %7076 = vmatpush.msra.mxu0 0.0
        %7077 = vmatpush.msra.mxu0 0.0
        %7078 = vmatpush.msra.mxu0 0.0
        %7079 = vmatpush.msra.mxu0 0.0
        %7080 = vmatpush.msra.mxu0 0.0
        %7081 = vmatpush.msra.mxu0 0.0
        %7082 = vmatpush.msra.mxu0 0.0
        %7083 = vmatpush.msra.mxu0 %v7060
        %7084 = vmatpush.msra.mxu0 %v7058
        %7085 = vmatmul.f32.gmra.mxu0 %v7064
        %v7086 = vpop.f32.mrf.mxu0
        %v7087 = vadd.f32 0.0, %v7086
        %7088 = vmatmul.f32.gmra.mxu0 %v7067
        %v7089 = vpop.f32.mrf.mxu0
        %v7090 = vadd.f32 0.0, %v7089
        %7091 = vdwg.mxu0
        %7092 = vrot.lane.b32.xlu0 %v3371, 64
        %v7093 = vpop.permute.xlu0 %7092
        %7094 = vrot.lane.b32.xlu0 %v3373, 64
        %v7095 = vpop.permute.xlu0 %7094
        %v7099 = vsel %vm3393, %v6006, 0
        %v7102 = vsel %vm3393, %v6021, 0
        %7104 = vmatpush.msra.mxu0 0.0
        %7105 = vmatpush.msra.mxu0 0.0
        %7106 = vmatpush.msra.mxu0 0.0
        %7107 = vmatpush.msra.mxu0 0.0
        %7108 = vmatpush.msra.mxu0 0.0
        %7109 = vmatpush.msra.mxu0 0.0
        %7110 = vmatpush.msra.mxu0 0.0
        %7111 = vmatpush.msra.mxu0 0.0
        %7112 = vmatpush.msra.mxu0 0.0
        %7113 = vmatpush.msra.mxu0 0.0
        %7114 = vmatpush.msra.mxu0 0.0
        %7115 = vmatpush.msra.mxu0 0.0
        %7116 = vmatpush.msra.mxu0 0.0
        %7117 = vmatpush.msra.mxu0 0.0
        %7118 = vmatpush.msra.mxu0 %v7095
        %7119 = vmatpush.msra.mxu0 %v7093
        %7120 = vmatmul.f32.gmra.mxu0 %v7099
        %v7121 = vpop.f32.mrf.mxu0
        %v7122 = vadd.f32 0.0, %v7121
        %7123 = vmatmul.f32.gmra.mxu0 %v7102
        %v7124 = vpop.f32.mrf.mxu0
        %v7125 = vadd.f32 0.0, %v7124
        %7126 = vdwg.mxu0
        %7127 = vrot.lane.b32.xlu0 %v3375, 64
        %v7128 = vpop.permute.xlu0 %7127
        %7129 = vrot.lane.b32.xlu0 %v3377, 64
        %v7130 = vpop.permute.xlu0 %7129
        %v7134 = vsel %vm3393, %v6036, 0
        %v7137 = vsel %vm3393, %v6051, 0
        %7139 = vmatpush.msra.mxu0 0.0
        %7140 = vmatpush.msra.mxu0 0.0
        %7141 = vmatpush.msra.mxu0 0.0
        %7142 = vmatpush.msra.mxu0 0.0
        %7143 = vmatpush.msra.mxu0 0.0
        %7144 = vmatpush.msra.mxu0 0.0
        %7145 = vmatpush.msra.mxu0 0.0
        %7146 = vmatpush.msra.mxu0 0.0
        %7147 = vmatpush.msra.mxu0 0.0
        %7148 = vmatpush.msra.mxu0 0.0
        %7149 = vmatpush.msra.mxu0 0.0
        %7150 = vmatpush.msra.mxu0 0.0
        %7151 = vmatpush.msra.mxu0 0.0
        %7152 = vmatpush.msra.mxu0 0.0
        %7153 = vmatpush.msra.mxu0 %v7130
        %7154 = vmatpush.msra.mxu0 %v7128
        %7155 = vmatmul.f32.gmra.mxu0 %v7134
        %v7156 = vpop.f32.mrf.mxu0
        %v7157 = vadd.f32 0.0, %v7156
        %7158 = vmatmul.f32.gmra.mxu0 %v7137
        %v7159 = vpop.f32.mrf.mxu0
        %v7160 = vadd.f32 0.0, %v7159
        %7161 = vdwg.mxu0
        %7162 = vrot.lane.b32.xlu0 %v3379, 64
        %v7163 = vpop.permute.xlu0 %7162
        %7164 = vrot.lane.b32.xlu0 %v3381, 64
        %v7165 = vpop.permute.xlu0 %7164
        %v7169 = vsel %vm3393, %v6066, 0
        %v7172 = vsel %vm3393, %v6081, 0
        %7174 = vmatpush.msra.mxu0 0.0
        %7175 = vmatpush.msra.mxu0 0.0
        %7176 = vmatpush.msra.mxu0 0.0
        %7177 = vmatpush.msra.mxu0 0.0
        %7178 = vmatpush.msra.mxu0 0.0
        %7179 = vmatpush.msra.mxu0 0.0
        %7180 = vmatpush.msra.mxu0 0.0
        %7181 = vmatpush.msra.mxu0 0.0
        %7182 = vmatpush.msra.mxu0 0.0
        %7183 = vmatpush.msra.mxu0 0.0
        %7184 = vmatpush.msra.mxu0 0.0
        %7185 = vmatpush.msra.mxu0 0.0
        %7186 = vmatpush.msra.mxu0 0.0
        %7187 = vmatpush.msra.mxu0 0.0
        %7188 = vmatpush.msra.mxu0 %v7165
        %7189 = vmatpush.msra.mxu0 %v7163
        %7190 = vmatmul.f32.gmra.mxu0 %v7169
        %v7191 = vpop.f32.mrf.mxu0
        %v7192 = vadd.f32 0.0, %v7191
        %7193 = vmatmul.f32.gmra.mxu0 %v7172
        %v7194 = vpop.f32.mrf.mxu0
        %v7195 = vadd.f32 0.0, %v7194
        %7196 = vdwg.mxu0
        %7197 = vrot.lane.b32.xlu0 %v3383, 64
        %v7198 = vpop.permute.xlu0 %7197
        %7199 = vrot.lane.b32.xlu0 %v3385, 64
        %v7200 = vpop.permute.xlu0 %7199
        %v7204 = vsel %vm3393, %v6096, 0
        %v7207 = vsel %vm3393, %v6111, 0
        %7209 = vmatpush.msra.mxu0 0.0
        %7210 = vmatpush.msra.mxu0 0.0
        %7211 = vmatpush.msra.mxu0 0.0
        %7212 = vmatpush.msra.mxu0 0.0
        %7213 = vmatpush.msra.mxu0 0.0
        %7214 = vmatpush.msra.mxu0 0.0
        %7215 = vmatpush.msra.mxu0 0.0
        %7216 = vmatpush.msra.mxu0 0.0
        %7217 = vmatpush.msra.mxu0 0.0
        %7218 = vmatpush.msra.mxu0 0.0
        %7219 = vmatpush.msra.mxu0 0.0
        %7220 = vmatpush.msra.mxu0 0.0
        %7221 = vmatpush.msra.mxu0 0.0
        %7222 = vmatpush.msra.mxu0 0.0
        %7223 = vmatpush.msra.mxu0 %v7200
        %7224 = vmatpush.msra.mxu0 %v7198
        %7225 = vmatmul.f32.gmra.mxu0 %v7204
        %v7226 = vpop.f32.mrf.mxu0
        %v7227 = vadd.f32 0.0, %v7226
        %7228 = vmatmul.f32.gmra.mxu0 %v7207
        %v7229 = vpop.f32.mrf.mxu0
        %v7230 = vadd.f32 0.0, %v7229
        %7231 = vdwg.mxu0
        %7264 = vrot.lane.b32.xlu0 %v6702, 16
        %v7265 = vpop.permute.xlu0 %7264
        %7266 = vrot.lane.b32.xlu0 %v6705, 16
        %v7267 = vpop.permute.xlu0 %7266
        %7268 = vrot.lane.b32.xlu0 %v6737, 16
        %v7269 = vpop.permute.xlu0 %7268
        %7270 = vrot.lane.b32.xlu0 %v6740, 16
        %v7271 = vpop.permute.xlu0 %7270
        %7272 = vrot.lane.b32.xlu0 %v6772, 16
        %v7273 = vpop.permute.xlu0 %7272
        %7274 = vrot.lane.b32.xlu0 %v6775, 16
        %v7275 = vpop.permute.xlu0 %7274
        %7276 = vrot.lane.b32.xlu0 %v6807, 16
        %v7277 = vpop.permute.xlu0 %7276
        %7278 = vrot.lane.b32.xlu0 %v6810, 16
        %v7279 = vpop.permute.xlu0 %7278
        %7280 = vrot.lane.b32.xlu0 %v6842, 16
        %v7281 = vpop.permute.xlu0 %7280
        %7282 = vrot.lane.b32.xlu0 %v6845, 16
        %v7283 = vpop.permute.xlu0 %7282
        %7284 = vrot.lane.b32.xlu0 %v6877, 16
        %v7285 = vpop.permute.xlu0 %7284
        %7286 = vrot.lane.b32.xlu0 %v6880, 16
        %v7287 = vpop.permute.xlu0 %7286
        %7288 = vrot.lane.b32.xlu0 %v6912, 16
        %v7289 = vpop.permute.xlu0 %7288
        %7290 = vrot.lane.b32.xlu0 %v6915, 16
        %v7291 = vpop.permute.xlu0 %7290
        %7292 = vrot.lane.b32.xlu0 %v6947, 16
        %v7293 = vpop.permute.xlu0 %7292
        %7294 = vrot.lane.b32.xlu0 %v6950, 16
        %v7295 = vpop.permute.xlu0 %7294
        %7296 = vrot.lane.b32.xlu0 %v6982, 16
        %v7297 = vpop.permute.xlu0 %7296
        %7298 = vrot.lane.b32.xlu0 %v6985, 16
        %v7299 = vpop.permute.xlu0 %7298
        %7300 = vrot.lane.b32.xlu0 %v7017, 16
        %v7301 = vpop.permute.xlu0 %7300
        %7302 = vrot.lane.b32.xlu0 %v7020, 16
        %v7303 = vpop.permute.xlu0 %7302
        %7304 = vrot.lane.b32.xlu0 %v7052, 16
        %v7305 = vpop.permute.xlu0 %7304
        %7306 = vrot.lane.b32.xlu0 %v7055, 16
        %v7307 = vpop.permute.xlu0 %7306
        %7308 = vrot.lane.b32.xlu0 %v7087, 16
        %v7309 = vpop.permute.xlu0 %7308
        %7310 = vrot.lane.b32.xlu0 %v7090, 16
        %v7311 = vpop.permute.xlu0 %7310
        %7312 = vrot.lane.b32.xlu0 %v7122, 16
        %v7313 = vpop.permute.xlu0 %7312
        %7314 = vrot.lane.b32.xlu0 %v7125, 16
        %v7315 = vpop.permute.xlu0 %7314
        %7316 = vrot.lane.b32.xlu0 %v7157, 16
        %v7317 = vpop.permute.xlu0 %7316
        %7318 = vrot.lane.b32.xlu0 %v7160, 16
        %v7319 = vpop.permute.xlu0 %7318
        %7320 = vrot.lane.b32.xlu0 %v7192, 16
        %v7321 = vpop.permute.xlu0 %7320
        %7322 = vrot.lane.b32.xlu0 %v7195, 16
        %v7323 = vpop.permute.xlu0 %7322
        %7324 = vrot.lane.b32.xlu0 %v7227, 16
        %v7325 = vpop.permute.xlu0 %7324
        %7326 = vrot.lane.b32.xlu0 %v7230, 16
        %v7327 = vpop.permute.xlu0 %7326
        %v7360 = vsel %vm3393, %v6142, %v7265
        %v7361 = vsel %vm3393, %v6145, %v7267
        %v7362 = vsel %vm3393, %v6177, %v7269
        %v7363 = vsel %vm3393, %v6180, %v7271
        %v7364 = vsel %vm3393, %v6212, %v7273
        %v7365 = vsel %vm3393, %v6215, %v7275
        %v7366 = vsel %vm3393, %v6247, %v7277
        %v7367 = vsel %vm3393, %v6250, %v7279
        %v7368 = vsel %vm3393, %v6282, %v7281
        %v7369 = vsel %vm3393, %v6285, %v7283
        %v7370 = vsel %vm3393, %v6317, %v7285
        %v7371 = vsel %vm3393, %v6320, %v7287
        %v7372 = vsel %vm3393, %v6352, %v7289
        %v7373 = vsel %vm3393, %v6355, %v7291
        %v7374 = vsel %vm3393, %v6387, %v7293
        %v7375 = vsel %vm3393, %v6390, %v7295
        %v7376 = vsel %vm3393, %v6422, %v7297
        %v7377 = vsel %vm3393, %v6425, %v7299
        %v7378 = vsel %vm3393, %v6457, %v7301
        %v7379 = vsel %vm3393, %v6460, %v7303
        %v7380 = vsel %vm3393, %v6492, %v7305
        %v7381 = vsel %vm3393, %v6495, %v7307
        %v7382 = vsel %vm3393, %v6527, %v7309
        %v7383 = vsel %vm3393, %v6530, %v7311
        %v7384 = vsel %vm3393, %v6562, %v7313
        %v7385 = vsel %vm3393, %v6565, %v7315
        %v7386 = vsel %vm3393, %v6597, %v7317
        %v7387 = vsel %vm3393, %v6600, %v7319
        %v7388 = vsel %vm3393, %v6632, %v7321
        %v7389 = vsel %vm3393, %v6635, %v7323
        %v7390 = vsel %vm3393, %v6667, %v7325
        %v7391 = vsel %vm3393, %v6670, %v7327
        %v7392 = vld [vmem:[%s7] sm:$0xff]
        %v7393 = vld [vmem:[%s7 + $0x8] sm:$0xff]
        %v7394 = vld [vmem:[%s7 + $0x10] sm:$0xff]
        %v7395 = vld [vmem:[%s7 + $0x18] sm:$0xff]
        %v7396 = vperm.slane %v454, 5
        %v7398 = vsel %vm493, %v7360, 0
        %v7401 = vsel %vm493, %v7361, 0
        %v7404 = vsel %vm493, %v7362, 0
        %v7407 = vsel %vm493, %v7363, 0
        %v7410 = vsel %vm493, %v7364, 0
        %v7413 = vsel %vm493, %v7365, 0
        %v7416 = vsel %vm493, %v7366, 0
        %v7419 = vsel %vm493, %v7367, 0
        %v7422 = vsel %vm493, %v7368, 0
        %v7425 = vsel %vm493, %v7369, 0
        %v7428 = vsel %vm493, %v7370, 0
        %v7431 = vsel %vm493, %v7371, 0
        %v7434 = vsel %vm493, %v7372, 0
        %v7437 = vsel %vm493, %v7373, 0
        %v7440 = vsel %vm493, %v7374, 0
        %v7443 = vsel %vm493, %v7375, 0
        %v7446 = vsel %vm493, %v7376, 0
        %v7449 = vsel %vm493, %v7377, 0
        %v7452 = vsel %vm493, %v7378, 0
        %v7455 = vsel %vm493, %v7379, 0
        %v7458 = vsel %vm493, %v7380, 0
        %v7461 = vsel %vm493, %v7381, 0
        %v7464 = vsel %vm493, %v7382, 0
        %v7467 = vsel %vm493, %v7383, 0
        %v7470 = vsel %vm493, %v7384, 0
        %v7473 = vsel %vm493, %v7385, 0
        %v7476 = vsel %vm493, %v7386, 0
        %v7479 = vsel %vm493, %v7387, 0
        %v7482 = vsel %vm493, %v7388, 0
        %v7485 = vsel %vm493, %v7389, 0
        %v7488 = vsel %vm493, %v7390, 0
        %v7491 = vsel %vm493, %v7391, 0
        %7493 = vmatpush.msra.mxu0 0.0
        %7494 = vmatpush.msra.mxu0 0.0
        %7495 = vmatpush.msra.mxu0 0.0
        %7496 = vmatpush.msra.mxu0 0.0
        %7497 = vmatpush.msra.mxu0 0.0
        %7498 = vmatpush.msra.mxu0 0.0
        %7499 = vmatpush.msra.mxu0 0.0
        %7500 = vmatpush.msra.mxu0 0.0
        %7501 = vmatpush.msra.mxu0 0.0
        %7502 = vmatpush.msra.mxu0 0.0
        %7503 = vmatpush.msra.mxu0 0.0
        %7504 = vmatpush.msra.mxu0 0.0
        %7505 = vmatpush.msra.mxu0 %v7395
        %7506 = vmatpush.msra.mxu0 %v7394
        %7507 = vmatpush.msra.mxu0 %v7393
        %7508 = vmatpush.msra.mxu0 %v7392
        %7509 = vmatmul.f32.gmra.mxu0 %v7398
        %v7510 = vpop.f32.mrf.mxu0
        %v7511 = vadd.f32 %v7396, %v7510
        %7512 = vmatmul.f32.gmra.mxu0 %v7401
        %v7513 = vpop.f32.mrf.mxu0
        %v7514 = vadd.f32 %v7396, %v7513
        %7515 = vmatmul.f32.gmra.mxu0 %v7404
        %v7516 = vpop.f32.mrf.mxu0
        %v7517 = vadd.f32 %v7396, %v7516
        %7518 = vmatmul.f32.gmra.mxu0 %v7407
        %v7519 = vpop.f32.mrf.mxu0
        %v7520 = vadd.f32 %v7396, %v7519
        %7521 = vmatmul.f32.gmra.mxu0 %v7410
        %v7522 = vpop.f32.mrf.mxu0
        %v7523 = vadd.f32 %v7396, %v7522
        %7524 = vmatmul.f32.gmra.mxu0 %v7413
        %v7525 = vpop.f32.mrf.mxu0
        %v7526 = vadd.f32 %v7396, %v7525
        %7527 = vmatmul.f32.gmra.mxu0 %v7416
        %v7528 = vpop.f32.mrf.mxu0
        %v7529 = vadd.f32 %v7396, %v7528
        %7530 = vmatmul.f32.gmra.mxu0 %v7419
        %v7531 = vpop.f32.mrf.mxu0
        %v7532 = vadd.f32 %v7396, %v7531
        %7533 = vmatmul.f32.gmra.mxu0 %v7422
        %v7534 = vpop.f32.mrf.mxu0
        %v7535 = vadd.f32 %v7396, %v7534
        %7536 = vmatmul.f32.gmra.mxu0 %v7425
        %v7537 = vpop.f32.mrf.mxu0
        %v7538 = vadd.f32 %v7396, %v7537
        %7539 = vmatmul.f32.gmra.mxu0 %v7428
        %v7540 = vpop.f32.mrf.mxu0
        %v7541 = vadd.f32 %v7396, %v7540
        %7542 = vmatmul.f32.gmra.mxu0 %v7431
        %v7543 = vpop.f32.mrf.mxu0
        %v7544 = vadd.f32 %v7396, %v7543
        %7545 = vmatmul.f32.gmra.mxu0 %v7434
        %v7546 = vpop.f32.mrf.mxu0
        %v7547 = vadd.f32 %v7396, %v7546
        %7548 = vmatmul.f32.gmra.mxu0 %v7437
        %v7549 = vpop.f32.mrf.mxu0
        %v7550 = vadd.f32 %v7396, %v7549
        %7551 = vmatmul.f32.gmra.mxu0 %v7440
        %v7552 = vpop.f32.mrf.mxu0
        %v7553 = vadd.f32 %v7396, %v7552
        %7554 = vmatmul.f32.gmra.mxu0 %v7443
        %v7555 = vpop.f32.mrf.mxu0
        %v7556 = vadd.f32 %v7396, %v7555
        %7557 = vmatmul.f32.gmra.mxu0 %v7446
        %v7558 = vpop.f32.mrf.mxu0
        %v7559 = vadd.f32 %v7396, %v7558
        %7560 = vmatmul.f32.gmra.mxu0 %v7449
        %v7561 = vpop.f32.mrf.mxu0
        %v7562 = vadd.f32 %v7396, %v7561
        %7563 = vmatmul.f32.gmra.mxu0 %v7452
        %v7564 = vpop.f32.mrf.mxu0
        %v7565 = vadd.f32 %v7396, %v7564
        %7566 = vmatmul.f32.gmra.mxu0 %v7455
        %v7567 = vpop.f32.mrf.mxu0
        %v7568 = vadd.f32 %v7396, %v7567
        %7569 = vmatmul.f32.gmra.mxu0 %v7458
        %v7570 = vpop.f32.mrf.mxu0
        %v7571 = vadd.f32 %v7396, %v7570
        %7572 = vmatmul.f32.gmra.mxu0 %v7461
        %v7573 = vpop.f32.mrf.mxu0
        %v7574 = vadd.f32 %v7396, %v7573
        %7575 = vmatmul.f32.gmra.mxu0 %v7464
        %v7576 = vpop.f32.mrf.mxu0
        %v7577 = vadd.f32 %v7396, %v7576
        %7578 = vmatmul.f32.gmra.mxu0 %v7467
        %v7579 = vpop.f32.mrf.mxu0
        %v7580 = vadd.f32 %v7396, %v7579
        %7581 = vmatmul.f32.gmra.mxu0 %v7470
        %v7582 = vpop.f32.mrf.mxu0
        %v7583 = vadd.f32 %v7396, %v7582
        %7584 = vmatmul.f32.gmra.mxu0 %v7473
        %v7585 = vpop.f32.mrf.mxu0
        %v7586 = vadd.f32 %v7396, %v7585
        %7587 = vmatmul.f32.gmra.mxu0 %v7476
        %v7588 = vpop.f32.mrf.mxu0
        %v7589 = vadd.f32 %v7396, %v7588
        %7590 = vmatmul.f32.gmra.mxu0 %v7479
        %v7591 = vpop.f32.mrf.mxu0
        %v7592 = vadd.f32 %v7396, %v7591
        %7593 = vmatmul.f32.gmra.mxu0 %v7482
        %v7594 = vpop.f32.mrf.mxu0
        %v7595 = vadd.f32 %v7396, %v7594
        %7596 = vmatmul.f32.gmra.mxu0 %v7485
        %v7597 = vpop.f32.mrf.mxu0
        %v7598 = vadd.f32 %v7396, %v7597
        %7599 = vmatmul.f32.gmra.mxu0 %v7488
        %v7600 = vpop.f32.mrf.mxu0
        %v7601 = vadd.f32 %v7396, %v7600
        %7602 = vmatmul.f32.gmra.mxu0 %v7491
        %v7603 = vpop.f32.mrf.mxu0
        %v7604 = vadd.f32 %v7396, %v7603
        %7605 = vdwg.mxu0
        %v7606 = vsel %vm493, %v7511, 0.0
        %7607 = vadd.xlane.f32.xlu0 %v7606
        %v7608 = vpop.xlane.xlu0 %7607
        %v7609 = vsel %vm493, %v7514, 0.0
        %7610 = vadd.xlane.f32.xlu0 %v7609
        %v7611 = vpop.xlane.xlu0 %7610
        %v7612 = vsel %vm493, %v7517, 0.0
        %7613 = vadd.xlane.f32.xlu0 %v7612
        %v7614 = vpop.xlane.xlu0 %7613
        %v7615 = vsel %vm493, %v7520, 0.0
        %7616 = vadd.xlane.f32.xlu0 %v7615
        %v7617 = vpop.xlane.xlu0 %7616
        %v7618 = vsel %vm493, %v7523, 0.0
        %7619 = vadd.xlane.f32.xlu0 %v7618
        %v7620 = vpop.xlane.xlu0 %7619
        %v7621 = vsel %vm493, %v7526, 0.0
        %7622 = vadd.xlane.f32.xlu0 %v7621
        %v7623 = vpop.xlane.xlu0 %7622
        %v7624 = vsel %vm493, %v7529, 0.0
        %7625 = vadd.xlane.f32.xlu0 %v7624
        %v7626 = vpop.xlane.xlu0 %7625
        %v7627 = vsel %vm493, %v7532, 0.0
        %7628 = vadd.xlane.f32.xlu0 %v7627
        %v7629 = vpop.xlane.xlu0 %7628
        %v7630 = vsel %vm493, %v7535, 0.0
        %7631 = vadd.xlane.f32.xlu0 %v7630
        %v7632 = vpop.xlane.xlu0 %7631
        %v7633 = vsel %vm493, %v7538, 0.0
        %7634 = vadd.xlane.f32.xlu0 %v7633
        %v7635 = vpop.xlane.xlu0 %7634
        %v7636 = vsel %vm493, %v7541, 0.0
        %7637 = vadd.xlane.f32.xlu0 %v7636
        %v7638 = vpop.xlane.xlu0 %7637
        %v7639 = vsel %vm493, %v7544, 0.0
        %7640 = vadd.xlane.f32.xlu0 %v7639
        %v7641 = vpop.xlane.xlu0 %7640
        %v7642 = vsel %vm493, %v7547, 0.0
        %7643 = vadd.xlane.f32.xlu0 %v7642
        %v7644 = vpop.xlane.xlu0 %7643
        %v7645 = vsel %vm493, %v7550, 0.0
        %7646 = vadd.xlane.f32.xlu0 %v7645
        %v7647 = vpop.xlane.xlu0 %7646
        %v7648 = vsel %vm493, %v7553, 0.0
        %7649 = vadd.xlane.f32.xlu0 %v7648
        %v7650 = vpop.xlane.xlu0 %7649
        %v7651 = vsel %vm493, %v7556, 0.0
        %7652 = vadd.xlane.f32.xlu0 %v7651
        %v7653 = vpop.xlane.xlu0 %7652
        %v7654 = vsel %vm493, %v7559, 0.0
        %7655 = vadd.xlane.f32.xlu0 %v7654
        %v7656 = vpop.xlane.xlu0 %7655
        %v7657 = vsel %vm493, %v7562, 0.0
        %7658 = vadd.xlane.f32.xlu0 %v7657
        %v7659 = vpop.xlane.xlu0 %7658
        %v7660 = vsel %vm493, %v7565, 0.0
        %7661 = vadd.xlane.f32.xlu0 %v7660
        %v7662 = vpop.xlane.xlu0 %7661
        %v7663 = vsel %vm493, %v7568, 0.0
        %7664 = vadd.xlane.f32.xlu0 %v7663
        %v7665 = vpop.xlane.xlu0 %7664
        %v7666 = vsel %vm493, %v7571, 0.0
        %7667 = vadd.xlane.f32.xlu0 %v7666
        %v7668 = vpop.xlane.xlu0 %7667
        %v7669 = vsel %vm493, %v7574, 0.0
        %7670 = vadd.xlane.f32.xlu0 %v7669
        %v7671 = vpop.xlane.xlu0 %7670
        %v7672 = vsel %vm493, %v7577, 0.0
        %7673 = vadd.xlane.f32.xlu0 %v7672
        %v7674 = vpop.xlane.xlu0 %7673
        %v7675 = vsel %vm493, %v7580, 0.0
        %7676 = vadd.xlane.f32.xlu0 %v7675
        %v7677 = vpop.xlane.xlu0 %7676
        %v7678 = vsel %vm493, %v7583, 0.0
        %7679 = vadd.xlane.f32.xlu0 %v7678
        %v7680 = vpop.xlane.xlu0 %7679
        %v7681 = vsel %vm493, %v7586, 0.0
        %7682 = vadd.xlane.f32.xlu0 %v7681
        %v7683 = vpop.xlane.xlu0 %7682
        %v7684 = vsel %vm493, %v7589, 0.0
        %7685 = vadd.xlane.f32.xlu0 %v7684
        %v7686 = vpop.xlane.xlu0 %7685
        %v7687 = vsel %vm493, %v7592, 0.0
        %7688 = vadd.xlane.f32.xlu0 %v7687
        %v7689 = vpop.xlane.xlu0 %7688
        %v7690 = vsel %vm493, %v7595, 0.0
        %7691 = vadd.xlane.f32.xlu0 %v7690
        %v7692 = vpop.xlane.xlu0 %7691
        %v7693 = vsel %vm493, %v7598, 0.0
        %7694 = vadd.xlane.f32.xlu0 %v7693
        %v7695 = vpop.xlane.xlu0 %7694
        %v7696 = vsel %vm493, %v7601, 0.0
        %7697 = vadd.xlane.f32.xlu0 %v7696
        %v7698 = vpop.xlane.xlu0 %7697
        %v7699 = vsel %vm493, %v7604, 0.0
        %7700 = vadd.xlane.f32.xlu0 %v7699
        %v7701 = vpop.xlane.xlu0 %7700
        %v7702 = vmul.f32 %v7511, %v7511
        %v7703 = vmul.f32 %v7514, %v7514
        %v7704 = vmul.f32 %v7517, %v7517
        %v7705 = vmul.f32 %v7520, %v7520
        %v7706 = vmul.f32 %v7523, %v7523
        %v7707 = vmul.f32 %v7526, %v7526
        %v7708 = vmul.f32 %v7529, %v7529
        %v7709 = vmul.f32 %v7532, %v7532
        %v7710 = vmul.f32 %v7535, %v7535
        %v7711 = vmul.f32 %v7538, %v7538
        %v7712 = vmul.f32 %v7541, %v7541
        %v7713 = vmul.f32 %v7544, %v7544
        %v7714 = vmul.f32 %v7547, %v7547
        %v7715 = vmul.f32 %v7550, %v7550
        %v7716 = vmul.f32 %v7553, %v7553
        %v7717 = vmul.f32 %v7556, %v7556
        %v7718 = vmul.f32 %v7559, %v7559
        %v7719 = vmul.f32 %v7562, %v7562
        %v7720 = vmul.f32 %v7565, %v7565
        %v7721 = vmul.f32 %v7568, %v7568
        %v7722 = vmul.f32 %v7571, %v7571
        %v7723 = vmul.f32 %v7574, %v7574
        %v7724 = vmul.f32 %v7577, %v7577
        %v7725 = vmul.f32 %v7580, %v7580
        %v7726 = vmul.f32 %v7583, %v7583
        %v7727 = vmul.f32 %v7586, %v7586
        %v7728 = vmul.f32 %v7589, %v7589
        %v7729 = vmul.f32 %v7592, %v7592
        %v7730 = vmul.f32 %v7595, %v7595
        %v7731 = vmul.f32 %v7598, %v7598
        %v7732 = vmul.f32 %v7601, %v7601
        %v7733 = vmul.f32 %v7604, %v7604
        %v7734 = vsel %vm493, %v7702, 0.0
        %7735 = vadd.xlane.f32.xlu0 %v7734
        %v7736 = vpop.xlane.xlu0 %7735
        %v7737 = vsel %vm493, %v7703, 0.0
        %7738 = vadd.xlane.f32.xlu0 %v7737
        %v7739 = vpop.xlane.xlu0 %7738
        %v7740 = vsel %vm493, %v7704, 0.0
        %7741 = vadd.xlane.f32.xlu0 %v7740
        %v7742 = vpop.xlane.xlu0 %7741
        %v7743 = vsel %vm493, %v7705, 0.0
        %7744 = vadd.xlane.f32.xlu0 %v7743
        %v7745 = vpop.xlane.xlu0 %7744
        %v7746 = vsel %vm493, %v7706, 0.0
        %7747 = vadd.xlane.f32.xlu0 %v7746
        %v7748 = vpop.xlane.xlu0 %7747
        %v7749 = vsel %vm493, %v7707, 0.0
        %7750 = vadd.xlane.f32.xlu0 %v7749
        %v7751 = vpop.xlane.xlu0 %7750
        %v7752 = vsel %vm493, %v7708, 0.0
        %7753 = vadd.xlane.f32.xlu0 %v7752
        %v7754 = vpop.xlane.xlu0 %7753
        %v7755 = vsel %vm493, %v7709, 0.0
        %7756 = vadd.xlane.f32.xlu0 %v7755
        %v7757 = vpop.xlane.xlu0 %7756
        %v7758 = vsel %vm493, %v7710, 0.0
        %7759 = vadd.xlane.f32.xlu0 %v7758
        %v7760 = vpop.xlane.xlu0 %7759
        %v7761 = vsel %vm493, %v7711, 0.0
        %7762 = vadd.xlane.f32.xlu0 %v7761
        %v7763 = vpop.xlane.xlu0 %7762
        %v7764 = vsel %vm493, %v7712, 0.0
        %7765 = vadd.xlane.f32.xlu0 %v7764
        %v7766 = vpop.xlane.xlu0 %7765
        %v7767 = vsel %vm493, %v7713, 0.0
        %7768 = vadd.xlane.f32.xlu0 %v7767
        %v7769 = vpop.xlane.xlu0 %7768
        %v7770 = vsel %vm493, %v7714, 0.0
        %7771 = vadd.xlane.f32.xlu0 %v7770
        %v7772 = vpop.xlane.xlu0 %7771
        %v7773 = vsel %vm493, %v7715, 0.0
        %7774 = vadd.xlane.f32.xlu0 %v7773
        %v7775 = vpop.xlane.xlu0 %7774
        %v7776 = vsel %vm493, %v7716, 0.0
        %7777 = vadd.xlane.f32.xlu0 %v7776
        %v7778 = vpop.xlane.xlu0 %7777
        %v7779 = vsel %vm493, %v7717, 0.0
        %7780 = vadd.xlane.f32.xlu0 %v7779
        %v7781 = vpop.xlane.xlu0 %7780
        %v7782 = vsel %vm493, %v7718, 0.0
        %7783 = vadd.xlane.f32.xlu0 %v7782
        %v7784 = vpop.xlane.xlu0 %7783
        %v7785 = vsel %vm493, %v7719, 0.0
        %7786 = vadd.xlane.f32.xlu0 %v7785
        %v7787 = vpop.xlane.xlu0 %7786
        %v7788 = vsel %vm493, %v7720, 0.0
        %7789 = vadd.xlane.f32.xlu0 %v7788
        %v7790 = vpop.xlane.xlu0 %7789
        %v7791 = vsel %vm493, %v7721, 0.0
        %7792 = vadd.xlane.f32.xlu0 %v7791
        %v7793 = vpop.xlane.xlu0 %7792
        %v7794 = vsel %vm493, %v7722, 0.0
        %7795 = vadd.xlane.f32.xlu0 %v7794
        %v7796 = vpop.xlane.xlu0 %7795
        %v7797 = vsel %vm493, %v7723, 0.0
        %7798 = vadd.xlane.f32.xlu0 %v7797
        %v7799 = vpop.xlane.xlu0 %7798
        %v7800 = vsel %vm493, %v7724, 0.0
        %7801 = vadd.xlane.f32.xlu0 %v7800
        %v7802 = vpop.xlane.xlu0 %7801
        %v7803 = vsel %vm493, %v7725, 0.0
        %7804 = vadd.xlane.f32.xlu0 %v7803
        %v7805 = vpop.xlane.xlu0 %7804
        %v7806 = vsel %vm493, %v7726, 0.0
        %7807 = vadd.xlane.f32.xlu0 %v7806
        %v7808 = vpop.xlane.xlu0 %7807
        %v7809 = vsel %vm493, %v7727, 0.0
        %7810 = vadd.xlane.f32.xlu0 %v7809
        %v7811 = vpop.xlane.xlu0 %7810
        %v7812 = vsel %vm493, %v7728, 0.0
        %7813 = vadd.xlane.f32.xlu0 %v7812
        %v7814 = vpop.xlane.xlu0 %7813
        %v7815 = vsel %vm493, %v7729, 0.0
        %7816 = vadd.xlane.f32.xlu0 %v7815
        %v7817 = vpop.xlane.xlu0 %7816
        %v7818 = vsel %vm493, %v7730, 0.0
        %7819 = vadd.xlane.f32.xlu0 %v7818
        %v7820 = vpop.xlane.xlu0 %7819
        %v7821 = vsel %vm493, %v7731, 0.0
        %7822 = vadd.xlane.f32.xlu0 %v7821
        %v7823 = vpop.xlane.xlu0 %7822
        %v7824 = vsel %vm493, %v7732, 0.0
        %7825 = vadd.xlane.f32.xlu0 %v7824
        %v7826 = vpop.xlane.xlu0 %7825
        %v7827 = vsel %vm493, %v7733, 0.0
        %7828 = vadd.xlane.f32.xlu0 %v7827
        %v7829 = vpop.xlane.xlu0 %7828
        %v7830 = vmul.f32 %v7608, 0.03125
        %v7831 = vmul.f32 %v7611, 0.03125
        %v7832 = vmul.f32 %v7614, 0.03125
        %v7833 = vmul.f32 %v7617, 0.03125
        %v7834 = vmul.f32 %v7620, 0.03125
        %v7835 = vmul.f32 %v7623, 0.03125
        %v7836 = vmul.f32 %v7626, 0.03125
        %v7837 = vmul.f32 %v7629, 0.03125
        %v7838 = vmul.f32 %v7632, 0.03125
        %v7839 = vmul.f32 %v7635, 0.03125
        %v7840 = vmul.f32 %v7638, 0.03125
        %v7841 = vmul.f32 %v7641, 0.03125
        %v7842 = vmul.f32 %v7644, 0.03125
        %v7843 = vmul.f32 %v7647, 0.03125
        %v7844 = vmul.f32 %v7650, 0.03125
        %v7845 = vmul.f32 %v7653, 0.03125
        %v7846 = vmul.f32 %v7656, 0.03125
        %v7847 = vmul.f32 %v7659, 0.03125
        %v7848 = vmul.f32 %v7662, 0.03125
        %v7849 = vmul.f32 %v7665, 0.03125
        %v7850 = vmul.f32 %v7668, 0.03125
        %v7851 = vmul.f32 %v7671, 0.03125
        %v7852 = vmul.f32 %v7674, 0.03125
        %v7853 = vmul.f32 %v7677, 0.03125
        %v7854 = vmul.f32 %v7680, 0.03125
        %v7855 = vmul.f32 %v7683, 0.03125
        %v7856 = vmul.f32 %v7686, 0.03125
        %v7857 = vmul.f32 %v7689, 0.03125
        %v7858 = vmul.f32 %v7692, 0.03125
        %v7859 = vmul.f32 %v7695, 0.03125
        %v7860 = vmul.f32 %v7698, 0.03125
        %v7861 = vmul.f32 %v7701, 0.03125
        %v7862 = vmul.f32 %v7736, 0.03125
        %v7863 = vmul.f32 %v7739, 0.03125
        %v7864 = vmul.f32 %v7742, 0.03125
        %v7865 = vmul.f32 %v7745, 0.03125
        %v7866 = vmul.f32 %v7748, 0.03125
        %v7867 = vmul.f32 %v7751, 0.03125
        %v7868 = vmul.f32 %v7754, 0.03125
        %v7869 = vmul.f32 %v7757, 0.03125
        %v7870 = vmul.f32 %v7760, 0.03125
        %v7871 = vmul.f32 %v7763, 0.03125
        %v7872 = vmul.f32 %v7766, 0.03125
        %v7873 = vmul.f32 %v7769, 0.03125
        %v7874 = vmul.f32 %v7772, 0.03125
        %v7875 = vmul.f32 %v7775, 0.03125
        %v7876 = vmul.f32 %v7778, 0.03125
        %v7877 = vmul.f32 %v7781, 0.03125
        %v7878 = vmul.f32 %v7784, 0.03125
        %v7879 = vmul.f32 %v7787, 0.03125
        %v7880 = vmul.f32 %v7790, 0.03125
        %v7881 = vmul.f32 %v7793, 0.03125
        %v7882 = vmul.f32 %v7796, 0.03125
        %v7883 = vmul.f32 %v7799, 0.03125
        %v7884 = vmul.f32 %v7802, 0.03125
        %v7885 = vmul.f32 %v7805, 0.03125
        %v7886 = vmul.f32 %v7808, 0.03125
        %v7887 = vmul.f32 %v7811, 0.03125
        %v7888 = vmul.f32 %v7814, 0.03125
        %v7889 = vmul.f32 %v7817, 0.03125
        %v7890 = vmul.f32 %v7820, 0.03125
        %v7891 = vmul.f32 %v7823, 0.03125
        %v7892 = vmul.f32 %v7826, 0.03125
        %v7893 = vmul.f32 %v7829, 0.03125
        %v7894 = vmul.f32 %v7830, %v7830
        %v7895 = vmul.f32 %v7831, %v7831
        %v7896 = vmul.f32 %v7832, %v7832
        %v7897 = vmul.f32 %v7833, %v7833
        %v7898 = vmul.f32 %v7834, %v7834
        %v7899 = vmul.f32 %v7835, %v7835
        %v7900 = vmul.f32 %v7836, %v7836
        %v7901 = vmul.f32 %v7837, %v7837
        %v7902 = vmul.f32 %v7838, %v7838
        %v7903 = vmul.f32 %v7839, %v7839
        %v7904 = vmul.f32 %v7840, %v7840
        %v7905 = vmul.f32 %v7841, %v7841
        %v7906 = vmul.f32 %v7842, %v7842
        %v7907 = vmul.f32 %v7843, %v7843
        %v7908 = vmul.f32 %v7844, %v7844
        %v7909 = vmul.f32 %v7845, %v7845
        %v7910 = vmul.f32 %v7846, %v7846
        %v7911 = vmul.f32 %v7847, %v7847
        %v7912 = vmul.f32 %v7848, %v7848
        %v7913 = vmul.f32 %v7849, %v7849
        %v7914 = vmul.f32 %v7850, %v7850
        %v7915 = vmul.f32 %v7851, %v7851
        %v7916 = vmul.f32 %v7852, %v7852
        %v7917 = vmul.f32 %v7853, %v7853
        %v7918 = vmul.f32 %v7854, %v7854
        %v7919 = vmul.f32 %v7855, %v7855
        %v7920 = vmul.f32 %v7856, %v7856
        %v7921 = vmul.f32 %v7857, %v7857
        %v7922 = vmul.f32 %v7858, %v7858
        %v7923 = vmul.f32 %v7859, %v7859
        %v7924 = vmul.f32 %v7860, %v7860
        %v7925 = vmul.f32 %v7861, %v7861
        %v7926 = vsub.f32 %v7862, %v7894
        %v7927 = vsub.f32 %v7863, %v7895
        %v7928 = vsub.f32 %v7864, %v7896
        %v7929 = vsub.f32 %v7865, %v7897
        %v7930 = vsub.f32 %v7866, %v7898
        %v7931 = vsub.f32 %v7867, %v7899
        %v7932 = vsub.f32 %v7868, %v7900
        %v7933 = vsub.f32 %v7869, %v7901
        %v7934 = vsub.f32 %v7870, %v7902
        %v7935 = vsub.f32 %v7871, %v7903
        %v7936 = vsub.f32 %v7872, %v7904
        %v7937 = vsub.f32 %v7873, %v7905
        %v7938 = vsub.f32 %v7874, %v7906
        %v7939 = vsub.f32 %v7875, %v7907
        %v7940 = vsub.f32 %v7876, %v7908
        %v7941 = vsub.f32 %v7877, %v7909
        %v7942 = vsub.f32 %v7878, %v7910
        %v7943 = vsub.f32 %v7879, %v7911
        %v7944 = vsub.f32 %v7880, %v7912
        %v7945 = vsub.f32 %v7881, %v7913
        %v7946 = vsub.f32 %v7882, %v7914
        %v7947 = vsub.f32 %v7883, %v7915
        %v7948 = vsub.f32 %v7884, %v7916
        %v7949 = vsub.f32 %v7885, %v7917
        %v7950 = vsub.f32 %v7886, %v7918
        %v7951 = vsub.f32 %v7887, %v7919
        %v7952 = vsub.f32 %v7888, %v7920
        %v7953 = vsub.f32 %v7889, %v7921
        %v7954 = vsub.f32 %v7890, %v7922
        %v7955 = vsub.f32 %v7891, %v7923
        %v7956 = vsub.f32 %v7892, %v7924
        %v7957 = vsub.f32 %v7893, %v7925
        %v7958 = vmax.f32 %v7926, 0.0
        %v7959 = vmax.f32 %v7927, 0.0
        %v7960 = vmax.f32 %v7928, 0.0
        %v7961 = vmax.f32 %v7929, 0.0
        %v7962 = vmax.f32 %v7930, 0.0
        %v7963 = vmax.f32 %v7931, 0.0
        %v7964 = vmax.f32 %v7932, 0.0
        %v7965 = vmax.f32 %v7933, 0.0
        %v7966 = vmax.f32 %v7934, 0.0
        %v7967 = vmax.f32 %v7935, 0.0
        %v7968 = vmax.f32 %v7936, 0.0
        %v7969 = vmax.f32 %v7937, 0.0
        %v7970 = vmax.f32 %v7938, 0.0
        %v7971 = vmax.f32 %v7939, 0.0
        %v7972 = vmax.f32 %v7940, 0.0
        %v7973 = vmax.f32 %v7941, 0.0
        %v7974 = vmax.f32 %v7942, 0.0
        %v7975 = vmax.f32 %v7943, 0.0
        %v7976 = vmax.f32 %v7944, 0.0
        %v7977 = vmax.f32 %v7945, 0.0
        %v7978 = vmax.f32 %v7946, 0.0
        %v7979 = vmax.f32 %v7947, 0.0
        %v7980 = vmax.f32 %v7948, 0.0
        %v7981 = vmax.f32 %v7949, 0.0
        %v7982 = vmax.f32 %v7950, 0.0
        %v7983 = vmax.f32 %v7951, 0.0
        %v7984 = vmax.f32 %v7952, 0.0
        %v7985 = vmax.f32 %v7953, 0.0
        %v7986 = vmax.f32 %v7954, 0.0
        %v7987 = vmax.f32 %v7955, 0.0
        %v7988 = vmax.f32 %v7956, 0.0
        %v7989 = vmax.f32 %v7957, 0.0
        %v7990 = vsub.f32 %v7511, %v7830
        %v7991 = vsub.f32 %v7514, %v7831
        %v7992 = vsub.f32 %v7517, %v7832
        %v7993 = vsub.f32 %v7520, %v7833
        %v7994 = vsub.f32 %v7523, %v7834
        %v7995 = vsub.f32 %v7526, %v7835
        %v7996 = vsub.f32 %v7529, %v7836
        %v7997 = vsub.f32 %v7532, %v7837
        %v7998 = vsub.f32 %v7535, %v7838
        %v7999 = vsub.f32 %v7538, %v7839
        %v8000 = vsub.f32 %v7541, %v7840
        %v8001 = vsub.f32 %v7544, %v7841
        %v8002 = vsub.f32 %v7547, %v7842
        %v8003 = vsub.f32 %v7550, %v7843
        %v8004 = vsub.f32 %v7553, %v7844
        %v8005 = vsub.f32 %v7556, %v7845
        %v8006 = vsub.f32 %v7559, %v7846
        %v8007 = vsub.f32 %v7562, %v7847
        %v8008 = vsub.f32 %v7565, %v7848
        %v8009 = vsub.f32 %v7568, %v7849
        %v8010 = vsub.f32 %v7571, %v7850
        %v8011 = vsub.f32 %v7574, %v7851
        %v8012 = vsub.f32 %v7577, %v7852
        %v8013 = vsub.f32 %v7580, %v7853
        %v8014 = vsub.f32 %v7583, %v7854
        %v8015 = vsub.f32 %v7586, %v7855
        %v8016 = vsub.f32 %v7589, %v7856
        %v8017 = vsub.f32 %v7592, %v7857
        %v8018 = vsub.f32 %v7595, %v7858
        %v8019 = vsub.f32 %v7598, %v7859
        %v8020 = vsub.f32 %v7601, %v7860
        %v8021 = vsub.f32 %v7604, %v7861
        %v8022 = vadd.f32 %v7958, 1e-05
        %v8023 = vadd.f32 %v7959, 1e-05
        %v8024 = vadd.f32 %v7960, 1e-05
        %v8025 = vadd.f32 %v7961, 1e-05
        %v8026 = vadd.f32 %v7962, 1e-05
        %v8027 = vadd.f32 %v7963, 1e-05
        %v8028 = vadd.f32 %v7964, 1e-05
        %v8029 = vadd.f32 %v7965, 1e-05
        %v8030 = vadd.f32 %v7966, 1e-05
        %v8031 = vadd.f32 %v7967, 1e-05
        %v8032 = vadd.f32 %v7968, 1e-05
        %v8033 = vadd.f32 %v7969, 1e-05
        %v8034 = vadd.f32 %v7970, 1e-05
        %v8035 = vadd.f32 %v7971, 1e-05
        %v8036 = vadd.f32 %v7972, 1e-05
        %v8037 = vadd.f32 %v7973, 1e-05
        %v8038 = vadd.f32 %v7974, 1e-05
        %v8039 = vadd.f32 %v7975, 1e-05
        %v8040 = vadd.f32 %v7976, 1e-05
        %v8041 = vadd.f32 %v7977, 1e-05
        %v8042 = vadd.f32 %v7978, 1e-05
        %v8043 = vadd.f32 %v7979, 1e-05
        %v8044 = vadd.f32 %v7980, 1e-05
        %v8045 = vadd.f32 %v7981, 1e-05
        %v8046 = vadd.f32 %v7982, 1e-05
        %v8047 = vadd.f32 %v7983, 1e-05
        %v8048 = vadd.f32 %v7984, 1e-05
        %v8049 = vadd.f32 %v7985, 1e-05
        %v8050 = vadd.f32 %v7986, 1e-05
        %v8051 = vadd.f32 %v7987, 1e-05
        %v8052 = vadd.f32 %v7988, 1e-05
        %v8053 = vadd.f32 %v7989, 1e-05
        %v8054 = vrsqrt.pop %v8022
        %v8055 = vmul.f32 %v8054, %v8022
        %v8056 = vmul.f32 %v8055, %v8054
        %v8057 = vmul.f32 0.5, %v8056
        %v8058 = vsub.f32 1.5, %v8057
        %v8059 = vmul.f32 %v8054, %v8058
        %vm8060 = vweird.f32 %v8022
        %vm8061 = vweird.f32 %v8054
        %vm8062 = vmor %vm8060, %vm8061
        %v8063 = vsel %vm8062, %v8054, %v8059
        %v8064 = vrsqrt.pop %v8023
        %v8065 = vmul.f32 %v8064, %v8023
        %v8066 = vmul.f32 %v8065, %v8064
        %v8067 = vmul.f32 0.5, %v8066
        %v8068 = vsub.f32 1.5, %v8067
        %v8069 = vmul.f32 %v8064, %v8068
        %vm8070 = vweird.f32 %v8023
        %vm8071 = vweird.f32 %v8064
        %vm8072 = vmor %vm8070, %vm8071
        %v8073 = vsel %vm8072, %v8064, %v8069
        %v8074 = vrsqrt.pop %v8024
        %v8075 = vmul.f32 %v8074, %v8024
        %v8076 = vmul.f32 %v8075, %v8074
        %v8077 = vmul.f32 0.5, %v8076
        %v8078 = vsub.f32 1.5, %v8077
        %v8079 = vmul.f32 %v8074, %v8078
        %vm8080 = vweird.f32 %v8024
        %vm8081 = vweird.f32 %v8074
        %vm8082 = vmor %vm8080, %vm8081
        %v8083 = vsel %vm8082, %v8074, %v8079
        %v8084 = vrsqrt.pop %v8025
        %v8085 = vmul.f32 %v8084, %v8025
        %v8086 = vmul.f32 %v8085, %v8084
        %v8087 = vmul.f32 0.5, %v8086
        %v8088 = vsub.f32 1.5, %v8087
        %v8089 = vmul.f32 %v8084, %v8088
        %vm8090 = vweird.f32 %v8025
        %vm8091 = vweird.f32 %v8084
        %vm8092 = vmor %vm8090, %vm8091
        %v8093 = vsel %vm8092, %v8084, %v8089
        %v8094 = vrsqrt.pop %v8026
        %v8095 = vmul.f32 %v8094, %v8026
        %v8096 = vmul.f32 %v8095, %v8094
        %v8097 = vmul.f32 0.5, %v8096
        %v8098 = vsub.f32 1.5, %v8097
        %v8099 = vmul.f32 %v8094, %v8098
        %vm8100 = vweird.f32 %v8026
        %vm8101 = vweird.f32 %v8094
        %vm8102 = vmor %vm8100, %vm8101
        %v8103 = vsel %vm8102, %v8094, %v8099
        %v8104 = vrsqrt.pop %v8027
        %v8105 = vmul.f32 %v8104, %v8027
        %v8106 = vmul.f32 %v8105, %v8104
        %v8107 = vmul.f32 0.5, %v8106
        %v8108 = vsub.f32 1.5, %v8107
        %v8109 = vmul.f32 %v8104, %v8108
        %vm8110 = vweird.f32 %v8027
        %vm8111 = vweird.f32 %v8104
        %vm8112 = vmor %vm8110, %vm8111
        %v8113 = vsel %vm8112, %v8104, %v8109
        %v8114 = vrsqrt.pop %v8028
        %v8115 = vmul.f32 %v8114, %v8028
        %v8116 = vmul.f32 %v8115, %v8114
        %v8117 = vmul.f32 0.5, %v8116
        %v8118 = vsub.f32 1.5, %v8117
        %v8119 = vmul.f32 %v8114, %v8118
        %vm8120 = vweird.f32 %v8028
        %vm8121 = vweird.f32 %v8114
        %vm8122 = vmor %vm8120, %vm8121
        %v8123 = vsel %vm8122, %v8114, %v8119
        %v8124 = vrsqrt.pop %v8029
        %v8125 = vmul.f32 %v8124, %v8029
        %v8126 = vmul.f32 %v8125, %v8124
        %v8127 = vmul.f32 0.5, %v8126
        %v8128 = vsub.f32 1.5, %v8127
        %v8129 = vmul.f32 %v8124, %v8128
        %vm8130 = vweird.f32 %v8029
        %vm8131 = vweird.f32 %v8124
        %vm8132 = vmor %vm8130, %vm8131
        %v8133 = vsel %vm8132, %v8124, %v8129
        %v8134 = vrsqrt.pop %v8030
        %v8135 = vmul.f32 %v8134, %v8030
        %v8136 = vmul.f32 %v8135, %v8134
        %v8137 = vmul.f32 0.5, %v8136
        %v8138 = vsub.f32 1.5, %v8137
        %v8139 = vmul.f32 %v8134, %v8138
        %vm8140 = vweird.f32 %v8030
        %vm8141 = vweird.f32 %v8134
        %vm8142 = vmor %vm8140, %vm8141
        %v8143 = vsel %vm8142, %v8134, %v8139
        %v8144 = vrsqrt.pop %v8031
        %v8145 = vmul.f32 %v8144, %v8031
        %v8146 = vmul.f32 %v8145, %v8144
        %v8147 = vmul.f32 0.5, %v8146
        %v8148 = vsub.f32 1.5, %v8147
        %v8149 = vmul.f32 %v8144, %v8148
        %vm8150 = vweird.f32 %v8031
        %vm8151 = vweird.f32 %v8144
        %vm8152 = vmor %vm8150, %vm8151
        %v8153 = vsel %vm8152, %v8144, %v8149
        %v8154 = vrsqrt.pop %v8032
        %v8155 = vmul.f32 %v8154, %v8032
        %v8156 = vmul.f32 %v8155, %v8154
        %v8157 = vmul.f32 0.5, %v8156
        %v8158 = vsub.f32 1.5, %v8157
        %v8159 = vmul.f32 %v8154, %v8158
        %vm8160 = vweird.f32 %v8032
        %vm8161 = vweird.f32 %v8154
        %vm8162 = vmor %vm8160, %vm8161
        %v8163 = vsel %vm8162, %v8154, %v8159
        %v8164 = vrsqrt.pop %v8033
        %v8165 = vmul.f32 %v8164, %v8033
        %v8166 = vmul.f32 %v8165, %v8164
        %v8167 = vmul.f32 0.5, %v8166
        %v8168 = vsub.f32 1.5, %v8167
        %v8169 = vmul.f32 %v8164, %v8168
        %vm8170 = vweird.f32 %v8033
        %vm8171 = vweird.f32 %v8164
        %vm8172 = vmor %vm8170, %vm8171
        %v8173 = vsel %vm8172, %v8164, %v8169
        %v8174 = vrsqrt.pop %v8034
        %v8175 = vmul.f32 %v8174, %v8034
        %v8176 = vmul.f32 %v8175, %v8174
        %v8177 = vmul.f32 0.5, %v8176
        %v8178 = vsub.f32 1.5, %v8177
        %v8179 = vmul.f32 %v8174, %v8178
        %vm8180 = vweird.f32 %v8034
        %vm8181 = vweird.f32 %v8174
        %vm8182 = vmor %vm8180, %vm8181
        %v8183 = vsel %vm8182, %v8174, %v8179
        %v8184 = vrsqrt.pop %v8035
        %v8185 = vmul.f32 %v8184, %v8035
        %v8186 = vmul.f32 %v8185, %v8184
        %v8187 = vmul.f32 0.5, %v8186
        %v8188 = vsub.f32 1.5, %v8187
        %v8189 = vmul.f32 %v8184, %v8188
        %vm8190 = vweird.f32 %v8035
        %vm8191 = vweird.f32 %v8184
        %vm8192 = vmor %vm8190, %vm8191
        %v8193 = vsel %vm8192, %v8184, %v8189
        %v8194 = vrsqrt.pop %v8036
        %v8195 = vmul.f32 %v8194, %v8036
        %v8196 = vmul.f32 %v8195, %v8194
        %v8197 = vmul.f32 0.5, %v8196
        %v8198 = vsub.f32 1.5, %v8197
        %v8199 = vmul.f32 %v8194, %v8198
        %vm8200 = vweird.f32 %v8036
        %vm8201 = vweird.f32 %v8194
        %vm8202 = vmor %vm8200, %vm8201
        %v8203 = vsel %vm8202, %v8194, %v8199
        %v8204 = vrsqrt.pop %v8037
        %v8205 = vmul.f32 %v8204, %v8037
        %v8206 = vmul.f32 %v8205, %v8204
        %v8207 = vmul.f32 0.5, %v8206
        %v8208 = vsub.f32 1.5, %v8207
        %v8209 = vmul.f32 %v8204, %v8208
        %vm8210 = vweird.f32 %v8037
        %vm8211 = vweird.f32 %v8204
        %vm8212 = vmor %vm8210, %vm8211
        %v8213 = vsel %vm8212, %v8204, %v8209
        %v8214 = vrsqrt.pop %v8038
        %v8215 = vmul.f32 %v8214, %v8038
        %v8216 = vmul.f32 %v8215, %v8214
        %v8217 = vmul.f32 0.5, %v8216
        %v8218 = vsub.f32 1.5, %v8217
        %v8219 = vmul.f32 %v8214, %v8218
        %vm8220 = vweird.f32 %v8038
        %vm8221 = vweird.f32 %v8214
        %vm8222 = vmor %vm8220, %vm8221
        %v8223 = vsel %vm8222, %v8214, %v8219
        %v8224 = vrsqrt.pop %v8039
        %v8225 = vmul.f32 %v8224, %v8039
        %v8226 = vmul.f32 %v8225, %v8224
        %v8227 = vmul.f32 0.5, %v8226
        %v8228 = vsub.f32 1.5, %v8227
        %v8229 = vmul.f32 %v8224, %v8228
        %vm8230 = vweird.f32 %v8039
        %vm8231 = vweird.f32 %v8224
        %vm8232 = vmor %vm8230, %vm8231
        %v8233 = vsel %vm8232, %v8224, %v8229
        %v8234 = vrsqrt.pop %v8040
        %v8235 = vmul.f32 %v8234, %v8040
        %v8236 = vmul.f32 %v8235, %v8234
        %v8237 = vmul.f32 0.5, %v8236
        %v8238 = vsub.f32 1.5, %v8237
        %v8239 = vmul.f32 %v8234, %v8238
        %vm8240 = vweird.f32 %v8040
        %vm8241 = vweird.f32 %v8234
        %vm8242 = vmor %vm8240, %vm8241
        %v8243 = vsel %vm8242, %v8234, %v8239
        %v8244 = vrsqrt.pop %v8041
        %v8245 = vmul.f32 %v8244, %v8041
        %v8246 = vmul.f32 %v8245, %v8244
        %v8247 = vmul.f32 0.5, %v8246
        %v8248 = vsub.f32 1.5, %v8247
        %v8249 = vmul.f32 %v8244, %v8248
        %vm8250 = vweird.f32 %v8041
        %vm8251 = vweird.f32 %v8244
        %vm8252 = vmor %vm8250, %vm8251
        %v8253 = vsel %vm8252, %v8244, %v8249
        %v8254 = vrsqrt.pop %v8042
        %v8255 = vmul.f32 %v8254, %v8042
        %v8256 = vmul.f32 %v8255, %v8254
        %v8257 = vmul.f32 0.5, %v8256
        %v8258 = vsub.f32 1.5, %v8257
        %v8259 = vmul.f32 %v8254, %v8258
        %vm8260 = vweird.f32 %v8042
        %vm8261 = vweird.f32 %v8254
        %vm8262 = vmor %vm8260, %vm8261
        %v8263 = vsel %vm8262, %v8254, %v8259
        %v8264 = vrsqrt.pop %v8043
        %v8265 = vmul.f32 %v8264, %v8043
        %v8266 = vmul.f32 %v8265, %v8264
        %v8267 = vmul.f32 0.5, %v8266
        %v8268 = vsub.f32 1.5, %v8267
        %v8269 = vmul.f32 %v8264, %v8268
        %vm8270 = vweird.f32 %v8043
        %vm8271 = vweird.f32 %v8264
        %vm8272 = vmor %vm8270, %vm8271
        %v8273 = vsel %vm8272, %v8264, %v8269
        %v8274 = vrsqrt.pop %v8044
        %v8275 = vmul.f32 %v8274, %v8044
        %v8276 = vmul.f32 %v8275, %v8274
        %v8277 = vmul.f32 0.5, %v8276
        %v8278 = vsub.f32 1.5, %v8277
        %v8279 = vmul.f32 %v8274, %v8278
        %vm8280 = vweird.f32 %v8044
        %vm8281 = vweird.f32 %v8274
        %vm8282 = vmor %vm8280, %vm8281
        %v8283 = vsel %vm8282, %v8274, %v8279
        %v8284 = vrsqrt.pop %v8045
        %v8285 = vmul.f32 %v8284, %v8045
        %v8286 = vmul.f32 %v8285, %v8284
        %v8287 = vmul.f32 0.5, %v8286
        %v8288 = vsub.f32 1.5, %v8287
        %v8289 = vmul.f32 %v8284, %v8288
        %vm8290 = vweird.f32 %v8045
        %vm8291 = vweird.f32 %v8284
        %vm8292 = vmor %vm8290, %vm8291
        %v8293 = vsel %vm8292, %v8284, %v8289
        %v8294 = vrsqrt.pop %v8046
        %v8295 = vmul.f32 %v8294, %v8046
        %v8296 = vmul.f32 %v8295, %v8294
        %v8297 = vmul.f32 0.5, %v8296
        %v8298 = vsub.f32 1.5, %v8297
        %v8299 = vmul.f32 %v8294, %v8298
        %vm8300 = vweird.f32 %v8046
        %vm8301 = vweird.f32 %v8294
        %vm8302 = vmor %vm8300, %vm8301
        %v8303 = vsel %vm8302, %v8294, %v8299
        %v8304 = vrsqrt.pop %v8047
        %v8305 = vmul.f32 %v8304, %v8047
        %v8306 = vmul.f32 %v8305, %v8304
        %v8307 = vmul.f32 0.5, %v8306
        %v8308 = vsub.f32 1.5, %v8307
        %v8309 = vmul.f32 %v8304, %v8308
        %vm8310 = vweird.f32 %v8047
        %vm8311 = vweird.f32 %v8304
        %vm8312 = vmor %vm8310, %vm8311
        %v8313 = vsel %vm8312, %v8304, %v8309
        %v8314 = vrsqrt.pop %v8048
        %v8315 = vmul.f32 %v8314, %v8048
        %v8316 = vmul.f32 %v8315, %v8314
        %v8317 = vmul.f32 0.5, %v8316
        %v8318 = vsub.f32 1.5, %v8317
        %v8319 = vmul.f32 %v8314, %v8318
        %vm8320 = vweird.f32 %v8048
        %vm8321 = vweird.f32 %v8314
        %vm8322 = vmor %vm8320, %vm8321
        %v8323 = vsel %vm8322, %v8314, %v8319
        %v8324 = vrsqrt.pop %v8049
        %v8325 = vmul.f32 %v8324, %v8049
        %v8326 = vmul.f32 %v8325, %v8324
        %v8327 = vmul.f32 0.5, %v8326
        %v8328 = vsub.f32 1.5, %v8327
        %v8329 = vmul.f32 %v8324, %v8328
        %vm8330 = vweird.f32 %v8049
        %vm8331 = vweird.f32 %v8324
        %vm8332 = vmor %vm8330, %vm8331
        %v8333 = vsel %vm8332, %v8324, %v8329
        %v8334 = vrsqrt.pop %v8050
        %v8335 = vmul.f32 %v8334, %v8050
        %v8336 = vmul.f32 %v8335, %v8334
        %v8337 = vmul.f32 0.5, %v8336
        %v8338 = vsub.f32 1.5, %v8337
        %v8339 = vmul.f32 %v8334, %v8338
        %vm8340 = vweird.f32 %v8050
        %vm8341 = vweird.f32 %v8334
        %vm8342 = vmor %vm8340, %vm8341
        %v8343 = vsel %vm8342, %v8334, %v8339
        %v8344 = vrsqrt.pop %v8051
        %v8345 = vmul.f32 %v8344, %v8051
        %v8346 = vmul.f32 %v8345, %v8344
        %v8347 = vmul.f32 0.5, %v8346
        %v8348 = vsub.f32 1.5, %v8347
        %v8349 = vmul.f32 %v8344, %v8348
        %vm8350 = vweird.f32 %v8051
        %vm8351 = vweird.f32 %v8344
        %vm8352 = vmor %vm8350, %vm8351
        %v8353 = vsel %vm8352, %v8344, %v8349
        %v8354 = vrsqrt.pop %v8052
        %v8355 = vmul.f32 %v8354, %v8052
        %v8356 = vmul.f32 %v8355, %v8354
        %v8357 = vmul.f32 0.5, %v8356
        %v8358 = vsub.f32 1.5, %v8357
        %v8359 = vmul.f32 %v8354, %v8358
        %vm8360 = vweird.f32 %v8052
        %vm8361 = vweird.f32 %v8354
        %vm8362 = vmor %vm8360, %vm8361
        %v8363 = vsel %vm8362, %v8354, %v8359
        %v8364 = vrsqrt.pop %v8053
        %v8365 = vmul.f32 %v8364, %v8053
        %v8366 = vmul.f32 %v8365, %v8364
        %v8367 = vmul.f32 0.5, %v8366
        %v8368 = vsub.f32 1.5, %v8367
        %v8369 = vmul.f32 %v8364, %v8368
        %vm8370 = vweird.f32 %v8053
        %vm8371 = vweird.f32 %v8364
        %vm8372 = vmor %vm8370, %vm8371
        %v8373 = vsel %vm8372, %v8364, %v8369
        %v8374 = vmul.f32 %v7990, %v8063
        %v8375 = vmul.f32 %v7991, %v8073
        %v8376 = vmul.f32 %v7992, %v8083
        %v8377 = vmul.f32 %v7993, %v8093
        %v8378 = vmul.f32 %v7994, %v8103
        %v8379 = vmul.f32 %v7995, %v8113
        %v8380 = vmul.f32 %v7996, %v8123
        %v8381 = vmul.f32 %v7997, %v8133
        %v8382 = vmul.f32 %v7998, %v8143
        %v8383 = vmul.f32 %v7999, %v8153
        %v8384 = vmul.f32 %v8000, %v8163
        %v8385 = vmul.f32 %v8001, %v8173
        %v8386 = vmul.f32 %v8002, %v8183
        %v8387 = vmul.f32 %v8003, %v8193
        %v8388 = vmul.f32 %v8004, %v8203
        %v8389 = vmul.f32 %v8005, %v8213
        %v8390 = vmul.f32 %v8006, %v8223
        %v8391 = vmul.f32 %v8007, %v8233
        %v8392 = vmul.f32 %v8008, %v8243
        %v8393 = vmul.f32 %v8009, %v8253
        %v8394 = vmul.f32 %v8010, %v8263
        %v8395 = vmul.f32 %v8011, %v8273
        %v8396 = vmul.f32 %v8012, %v8283
        %v8397 = vmul.f32 %v8013, %v8293
        %v8398 = vmul.f32 %v8014, %v8303
        %v8399 = vmul.f32 %v8015, %v8313
        %v8400 = vmul.f32 %v8016, %v8323
        %v8401 = vmul.f32 %v8017, %v8333
        %v8402 = vmul.f32 %v8018, %v8343
        %v8403 = vmul.f32 %v8019, %v8353
        %v8404 = vmul.f32 %v8020, %v8363
        %v8405 = vmul.f32 %v8021, %v8373
        %v8406 = vmax.f32 %v8374, 0.0
        %v8407 = vmax.f32 %v8375, 0.0
        %v8408 = vmax.f32 %v8376, 0.0
        %v8409 = vmax.f32 %v8377, 0.0
        %v8410 = vmax.f32 %v8378, 0.0
        %v8411 = vmax.f32 %v8379, 0.0
        %v8412 = vmax.f32 %v8380, 0.0
        %v8413 = vmax.f32 %v8381, 0.0
        %v8414 = vmax.f32 %v8382, 0.0
        %v8415 = vmax.f32 %v8383, 0.0
        %v8416 = vmax.f32 %v8384, 0.0
        %v8417 = vmax.f32 %v8385, 0.0
        %v8418 = vmax.f32 %v8386, 0.0
        %v8419 = vmax.f32 %v8387, 0.0
        %v8420 = vmax.f32 %v8388, 0.0
        %v8421 = vmax.f32 %v8389, 0.0
        %v8422 = vmax.f32 %v8390, 0.0
        %v8423 = vmax.f32 %v8391, 0.0
        %v8424 = vmax.f32 %v8392, 0.0
        %v8425 = vmax.f32 %v8393, 0.0
        %v8426 = vmax.f32 %v8394, 0.0
        %v8427 = vmax.f32 %v8395, 0.0
        %v8428 = vmax.f32 %v8396, 0.0
        %v8429 = vmax.f32 %v8397, 0.0
        %v8430 = vmax.f32 %v8398, 0.0
        %v8431 = vmax.f32 %v8399, 0.0
        %v8432 = vmax.f32 %v8400, 0.0
        %v8433 = vmax.f32 %v8401, 0.0
        %v8434 = vmax.f32 %v8402, 0.0
        %v8435 = vmax.f32 %v8403, 0.0
        %v8436 = vmax.f32 %v8404, 0.0
        %v8437 = vmax.f32 %v8405, 0.0
        %v8438 = vld [vmem:[%s9] sm:$0xff]
        %v8439 = vld [vmem:[%s9 + $0x8] sm:$0xff]
        %v8440 = vld [vmem:[%s9 + $0x10] sm:$0xff]
        %v8441 = vld [vmem:[%s9 + $0x18] sm:$0xff]
        %v8442 = vperm.slane %v454, 7
        %v8444 = vsel %vm493, %v8406, 0
        %v8447 = vsel %vm493, %v8407, 0
        %v8450 = vsel %vm493, %v8408, 0
        %v8453 = vsel %vm493, %v8409, 0
        %v8456 = vsel %vm493, %v8410, 0
        %v8459 = vsel %vm493, %v8411, 0
        %v8462 = vsel %vm493, %v8412, 0
        %v8465 = vsel %vm493, %v8413, 0
        %v8468 = vsel %vm493, %v8414, 0
        %v8471 = vsel %vm493, %v8415, 0
        %v8474 = vsel %vm493, %v8416, 0
        %v8477 = vsel %vm493, %v8417, 0
        %v8480 = vsel %vm493, %v8418, 0
        %v8483 = vsel %vm493, %v8419, 0
        %v8486 = vsel %vm493, %v8420, 0
        %v8489 = vsel %vm493, %v8421, 0
        %v8492 = vsel %vm493, %v8422, 0
        %v8495 = vsel %vm493, %v8423, 0
        %v8498 = vsel %vm493, %v8424, 0
        %v8501 = vsel %vm493, %v8425, 0
        %v8504 = vsel %vm493, %v8426, 0
        %v8507 = vsel %vm493, %v8427, 0
        %v8510 = vsel %vm493, %v8428, 0
        %v8513 = vsel %vm493, %v8429, 0
        %v8516 = vsel %vm493, %v8430, 0
        %v8519 = vsel %vm493, %v8431, 0
        %v8522 = vsel %vm493, %v8432, 0
        %v8525 = vsel %vm493, %v8433, 0
        %v8528 = vsel %vm493, %v8434, 0
        %v8531 = vsel %vm493, %v8435, 0
        %v8534 = vsel %vm493, %v8436, 0
        %v8537 = vsel %vm493, %v8437, 0
        %8539 = vmatpush.msra.mxu0 0.0
        %8540 = vmatpush.msra.mxu0 0.0
        %8541 = vmatpush.msra.mxu0 0.0
        %8542 = vmatpush.msra.mxu0 0.0
        %8543 = vmatpush.msra.mxu0 0.0
        %8544 = vmatpush.msra.mxu0 0.0
        %8545 = vmatpush.msra.mxu0 0.0
        %8546 = vmatpush.msra.mxu0 0.0
        %8547 = vmatpush.msra.mxu0 0.0
        %8548 = vmatpush.msra.mxu0 0.0
        %8549 = vmatpush.msra.mxu0 0.0
        %8550 = vmatpush.msra.mxu0 0.0
        %8551 = vmatpush.msra.mxu0 %v8441
        %8552 = vmatpush.msra.mxu0 %v8440
        %8553 = vmatpush.msra.mxu0 %v8439
        %8554 = vmatpush.msra.mxu0 %v8438
        %8555 = vmatmul.f32.gmra.mxu0 %v8444
        %v8556 = vpop.f32.mrf.mxu0
        %v8557 = vadd.f32 %v8442, %v8556
        %8558 = vmatmul.f32.gmra.mxu0 %v8447
        %v8559 = vpop.f32.mrf.mxu0
        %v8560 = vadd.f32 %v8442, %v8559
        %8561 = vmatmul.f32.gmra.mxu0 %v8450
        %v8562 = vpop.f32.mrf.mxu0
        %v8563 = vadd.f32 %v8442, %v8562
        %8564 = vmatmul.f32.gmra.mxu0 %v8453
        %v8565 = vpop.f32.mrf.mxu0
        %v8566 = vadd.f32 %v8442, %v8565
        %8567 = vmatmul.f32.gmra.mxu0 %v8456
        %v8568 = vpop.f32.mrf.mxu0
        %v8569 = vadd.f32 %v8442, %v8568
        %8570 = vmatmul.f32.gmra.mxu0 %v8459
        %v8571 = vpop.f32.mrf.mxu0
        %v8572 = vadd.f32 %v8442, %v8571
        %8573 = vmatmul.f32.gmra.mxu0 %v8462
        %v8574 = vpop.f32.mrf.mxu0
        %v8575 = vadd.f32 %v8442, %v8574
        %8576 = vmatmul.f32.gmra.mxu0 %v8465
        %v8577 = vpop.f32.mrf.mxu0
        %v8578 = vadd.f32 %v8442, %v8577
        %8579 = vmatmul.f32.gmra.mxu0 %v8468
        %v8580 = vpop.f32.mrf.mxu0
        %v8581 = vadd.f32 %v8442, %v8580
        %8582 = vmatmul.f32.gmra.mxu0 %v8471
        %v8583 = vpop.f32.mrf.mxu0
        %v8584 = vadd.f32 %v8442, %v8583
        %8585 = vmatmul.f32.gmra.mxu0 %v8474
        %v8586 = vpop.f32.mrf.mxu0
        %v8587 = vadd.f32 %v8442, %v8586
        %8588 = vmatmul.f32.gmra.mxu0 %v8477
        %v8589 = vpop.f32.mrf.mxu0
        %v8590 = vadd.f32 %v8442, %v8589
        %8591 = vmatmul.f32.gmra.mxu0 %v8480
        %v8592 = vpop.f32.mrf.mxu0
        %v8593 = vadd.f32 %v8442, %v8592
        %8594 = vmatmul.f32.gmra.mxu0 %v8483
        %v8595 = vpop.f32.mrf.mxu0
        %v8596 = vadd.f32 %v8442, %v8595
        %8597 = vmatmul.f32.gmra.mxu0 %v8486
        %v8598 = vpop.f32.mrf.mxu0
        %v8599 = vadd.f32 %v8442, %v8598
        %8600 = vmatmul.f32.gmra.mxu0 %v8489
        %v8601 = vpop.f32.mrf.mxu0
        %v8602 = vadd.f32 %v8442, %v8601
        %8603 = vmatmul.f32.gmra.mxu0 %v8492
        %v8604 = vpop.f32.mrf.mxu0
        %v8605 = vadd.f32 %v8442, %v8604
        %8606 = vmatmul.f32.gmra.mxu0 %v8495
        %v8607 = vpop.f32.mrf.mxu0
        %v8608 = vadd.f32 %v8442, %v8607
        %8609 = vmatmul.f32.gmra.mxu0 %v8498
        %v8610 = vpop.f32.mrf.mxu0
        %v8611 = vadd.f32 %v8442, %v8610
        %8612 = vmatmul.f32.gmra.mxu0 %v8501
        %v8613 = vpop.f32.mrf.mxu0
        %v8614 = vadd.f32 %v8442, %v8613
        %8615 = vmatmul.f32.gmra.mxu0 %v8504
        %v8616 = vpop.f32.mrf.mxu0
        %v8617 = vadd.f32 %v8442, %v8616
        %8618 = vmatmul.f32.gmra.mxu0 %v8507
        %v8619 = vpop.f32.mrf.mxu0
        %v8620 = vadd.f32 %v8442, %v8619
        %8621 = vmatmul.f32.gmra.mxu0 %v8510
        %v8622 = vpop.f32.mrf.mxu0
        %v8623 = vadd.f32 %v8442, %v8622
        %8624 = vmatmul.f32.gmra.mxu0 %v8513
        %v8625 = vpop.f32.mrf.mxu0
        %v8626 = vadd.f32 %v8442, %v8625
        %8627 = vmatmul.f32.gmra.mxu0 %v8516
        %v8628 = vpop.f32.mrf.mxu0
        %v8629 = vadd.f32 %v8442, %v8628
        %8630 = vmatmul.f32.gmra.mxu0 %v8519
        %v8631 = vpop.f32.mrf.mxu0
        %v8632 = vadd.f32 %v8442, %v8631
        %8633 = vmatmul.f32.gmra.mxu0 %v8522
        %v8634 = vpop.f32.mrf.mxu0
        %v8635 = vadd.f32 %v8442, %v8634
        %8636 = vmatmul.f32.gmra.mxu0 %v8525
        %v8637 = vpop.f32.mrf.mxu0
        %v8638 = vadd.f32 %v8442, %v8637
        %8639 = vmatmul.f32.gmra.mxu0 %v8528
        %v8640 = vpop.f32.mrf.mxu0
        %v8641 = vadd.f32 %v8442, %v8640
        %8642 = vmatmul.f32.gmra.mxu0 %v8531
        %v8643 = vpop.f32.mrf.mxu0
        %v8644 = vadd.f32 %v8442, %v8643
        %8645 = vmatmul.f32.gmra.mxu0 %v8534
        %v8646 = vpop.f32.mrf.mxu0
        %v8647 = vadd.f32 %v8442, %v8646
        %8648 = vmatmul.f32.gmra.mxu0 %v8537
        %v8649 = vpop.f32.mrf.mxu0
        %v8650 = vadd.f32 %v8442, %v8649
        %8651 = vdwg.mxu0
        %v8652 = vsel %vm493, %v8557, 0.0
        %8653 = vadd.xlane.f32.xlu0 %v8652
        %v8654 = vpop.xlane.xlu0 %8653
        %v8655 = vsel %vm493, %v8560, 0.0
        %8656 = vadd.xlane.f32.xlu0 %v8655
        %v8657 = vpop.xlane.xlu0 %8656
        %v8658 = vsel %vm493, %v8563, 0.0
        %8659 = vadd.xlane.f32.xlu0 %v8658
        %v8660 = vpop.xlane.xlu0 %8659
        %v8661 = vsel %vm493, %v8566, 0.0
        %8662 = vadd.xlane.f32.xlu0 %v8661
        %v8663 = vpop.xlane.xlu0 %8662
        %v8664 = vsel %vm493, %v8569, 0.0
        %8665 = vadd.xlane.f32.xlu0 %v8664
        %v8666 = vpop.xlane.xlu0 %8665
        %v8667 = vsel %vm493, %v8572, 0.0
        %8668 = vadd.xlane.f32.xlu0 %v8667
        %v8669 = vpop.xlane.xlu0 %8668
        %v8670 = vsel %vm493, %v8575, 0.0
        %8671 = vadd.xlane.f32.xlu0 %v8670
        %v8672 = vpop.xlane.xlu0 %8671
        %v8673 = vsel %vm493, %v8578, 0.0
        %8674 = vadd.xlane.f32.xlu0 %v8673
        %v8675 = vpop.xlane.xlu0 %8674
        %v8676 = vsel %vm493, %v8581, 0.0
        %8677 = vadd.xlane.f32.xlu0 %v8676
        %v8678 = vpop.xlane.xlu0 %8677
        %v8679 = vsel %vm493, %v8584, 0.0
        %8680 = vadd.xlane.f32.xlu0 %v8679
        %v8681 = vpop.xlane.xlu0 %8680
        %v8682 = vsel %vm493, %v8587, 0.0
        %8683 = vadd.xlane.f32.xlu0 %v8682
        %v8684 = vpop.xlane.xlu0 %8683
        %v8685 = vsel %vm493, %v8590, 0.0
        %8686 = vadd.xlane.f32.xlu0 %v8685
        %v8687 = vpop.xlane.xlu0 %8686
        %v8688 = vsel %vm493, %v8593, 0.0
        %8689 = vadd.xlane.f32.xlu0 %v8688
        %v8690 = vpop.xlane.xlu0 %8689
        %v8691 = vsel %vm493, %v8596, 0.0
        %8692 = vadd.xlane.f32.xlu0 %v8691
        %v8693 = vpop.xlane.xlu0 %8692
        %v8694 = vsel %vm493, %v8599, 0.0
        %8695 = vadd.xlane.f32.xlu0 %v8694
        %v8696 = vpop.xlane.xlu0 %8695
        %v8697 = vsel %vm493, %v8602, 0.0
        %8698 = vadd.xlane.f32.xlu0 %v8697
        %v8699 = vpop.xlane.xlu0 %8698
        %v8700 = vsel %vm493, %v8605, 0.0
        %8701 = vadd.xlane.f32.xlu0 %v8700
        %v8702 = vpop.xlane.xlu0 %8701
        %v8703 = vsel %vm493, %v8608, 0.0
        %8704 = vadd.xlane.f32.xlu0 %v8703
        %v8705 = vpop.xlane.xlu0 %8704
        %v8706 = vsel %vm493, %v8611, 0.0
        %8707 = vadd.xlane.f32.xlu0 %v8706
        %v8708 = vpop.xlane.xlu0 %8707
        %v8709 = vsel %vm493, %v8614, 0.0
        %8710 = vadd.xlane.f32.xlu0 %v8709
        %v8711 = vpop.xlane.xlu0 %8710
        %v8712 = vsel %vm493, %v8617, 0.0
        %8713 = vadd.xlane.f32.xlu0 %v8712
        %v8714 = vpop.xlane.xlu0 %8713
        %v8715 = vsel %vm493, %v8620, 0.0
        %8716 = vadd.xlane.f32.xlu0 %v8715
        %v8717 = vpop.xlane.xlu0 %8716
        %v8718 = vsel %vm493, %v8623, 0.0
        %8719 = vadd.xlane.f32.xlu0 %v8718
        %v8720 = vpop.xlane.xlu0 %8719
        %v8721 = vsel %vm493, %v8626, 0.0
        %8722 = vadd.xlane.f32.xlu0 %v8721
        %v8723 = vpop.xlane.xlu0 %8722
        %v8724 = vsel %vm493, %v8629, 0.0
        %8725 = vadd.xlane.f32.xlu0 %v8724
        %v8726 = vpop.xlane.xlu0 %8725
        %v8727 = vsel %vm493, %v8632, 0.0
        %8728 = vadd.xlane.f32.xlu0 %v8727
        %v8729 = vpop.xlane.xlu0 %8728
        %v8730 = vsel %vm493, %v8635, 0.0
        %8731 = vadd.xlane.f32.xlu0 %v8730
        %v8732 = vpop.xlane.xlu0 %8731
        %v8733 = vsel %vm493, %v8638, 0.0
        %8734 = vadd.xlane.f32.xlu0 %v8733
        %v8735 = vpop.xlane.xlu0 %8734
        %v8736 = vsel %vm493, %v8641, 0.0
        %8737 = vadd.xlane.f32.xlu0 %v8736
        %v8738 = vpop.xlane.xlu0 %8737
        %v8739 = vsel %vm493, %v8644, 0.0
        %8740 = vadd.xlane.f32.xlu0 %v8739
        %v8741 = vpop.xlane.xlu0 %8740
        %v8742 = vsel %vm493, %v8647, 0.0
        %8743 = vadd.xlane.f32.xlu0 %v8742
        %v8744 = vpop.xlane.xlu0 %8743
        %v8745 = vsel %vm493, %v8650, 0.0
        %8746 = vadd.xlane.f32.xlu0 %v8745
        %v8747 = vpop.xlane.xlu0 %8746
        %v8748 = vmul.f32 %v8557, %v8557
        %v8749 = vmul.f32 %v8560, %v8560
        %v8750 = vmul.f32 %v8563, %v8563
        %v8751 = vmul.f32 %v8566, %v8566
        %v8752 = vmul.f32 %v8569, %v8569
        %v8753 = vmul.f32 %v8572, %v8572
        %v8754 = vmul.f32 %v8575, %v8575
        %v8755 = vmul.f32 %v8578, %v8578
        %v8756 = vmul.f32 %v8581, %v8581
        %v8757 = vmul.f32 %v8584, %v8584
        %v8758 = vmul.f32 %v8587, %v8587
        %v8759 = vmul.f32 %v8590, %v8590
        %v8760 = vmul.f32 %v8593, %v8593
        %v8761 = vmul.f32 %v8596, %v8596
        %v8762 = vmul.f32 %v8599, %v8599
        %v8763 = vmul.f32 %v8602, %v8602
        %v8764 = vmul.f32 %v8605, %v8605
        %v8765 = vmul.f32 %v8608, %v8608
        %v8766 = vmul.f32 %v8611, %v8611
        %v8767 = vmul.f32 %v8614, %v8614
        %v8768 = vmul.f32 %v8617, %v8617
        %v8769 = vmul.f32 %v8620, %v8620
        %v8770 = vmul.f32 %v8623, %v8623
        %v8771 = vmul.f32 %v8626, %v8626
        %v8772 = vmul.f32 %v8629, %v8629
        %v8773 = vmul.f32 %v8632, %v8632
        %v8774 = vmul.f32 %v8635, %v8635
        %v8775 = vmul.f32 %v8638, %v8638
        %v8776 = vmul.f32 %v8641, %v8641
        %v8777 = vmul.f32 %v8644, %v8644
        %v8778 = vmul.f32 %v8647, %v8647
        %v8779 = vmul.f32 %v8650, %v8650
        %v8780 = vsel %vm493, %v8748, 0.0
        %8781 = vadd.xlane.f32.xlu0 %v8780
        %v8782 = vpop.xlane.xlu0 %8781
        %v8783 = vsel %vm493, %v8749, 0.0
        %8784 = vadd.xlane.f32.xlu0 %v8783
        %v8785 = vpop.xlane.xlu0 %8784
        %v8786 = vsel %vm493, %v8750, 0.0
        %8787 = vadd.xlane.f32.xlu0 %v8786
        %v8788 = vpop.xlane.xlu0 %8787
        %v8789 = vsel %vm493, %v8751, 0.0
        %8790 = vadd.xlane.f32.xlu0 %v8789
        %v8791 = vpop.xlane.xlu0 %8790
        %v8792 = vsel %vm493, %v8752, 0.0
        %8793 = vadd.xlane.f32.xlu0 %v8792
        %v8794 = vpop.xlane.xlu0 %8793
        %v8795 = vsel %vm493, %v8753, 0.0
        %8796 = vadd.xlane.f32.xlu0 %v8795
        %v8797 = vpop.xlane.xlu0 %8796
        %v8798 = vsel %vm493, %v8754, 0.0
        %8799 = vadd.xlane.f32.xlu0 %v8798
        %v8800 = vpop.xlane.xlu0 %8799
        %v8801 = vsel %vm493, %v8755, 0.0
        %8802 = vadd.xlane.f32.xlu0 %v8801
        %v8803 = vpop.xlane.xlu0 %8802
        %v8804 = vsel %vm493, %v8756, 0.0
        %8805 = vadd.xlane.f32.xlu0 %v8804
        %v8806 = vpop.xlane.xlu0 %8805
        %v8807 = vsel %vm493, %v8757, 0.0
        %8808 = vadd.xlane.f32.xlu0 %v8807
        %v8809 = vpop.xlane.xlu0 %8808
        %v8810 = vsel %vm493, %v8758, 0.0
        %8811 = vadd.xlane.f32.xlu0 %v8810
        %v8812 = vpop.xlane.xlu0 %8811
        %v8813 = vsel %vm493, %v8759, 0.0
        %8814 = vadd.xlane.f32.xlu0 %v8813
        %v8815 = vpop.xlane.xlu0 %8814
        %v8816 = vsel %vm493, %v8760, 0.0
        %8817 = vadd.xlane.f32.xlu0 %v8816
        %v8818 = vpop.xlane.xlu0 %8817
        %v8819 = vsel %vm493, %v8761, 0.0
        %8820 = vadd.xlane.f32.xlu0 %v8819
        %v8821 = vpop.xlane.xlu0 %8820
        %v8822 = vsel %vm493, %v8762, 0.0
        %8823 = vadd.xlane.f32.xlu0 %v8822
        %v8824 = vpop.xlane.xlu0 %8823
        %v8825 = vsel %vm493, %v8763, 0.0
        %8826 = vadd.xlane.f32.xlu0 %v8825
        %v8827 = vpop.xlane.xlu0 %8826
        %v8828 = vsel %vm493, %v8764, 0.0
        %8829 = vadd.xlane.f32.xlu0 %v8828
        %v8830 = vpop.xlane.xlu0 %8829
        %v8831 = vsel %vm493, %v8765, 0.0
        %8832 = vadd.xlane.f32.xlu0 %v8831
        %v8833 = vpop.xlane.xlu0 %8832
        %v8834 = vsel %vm493, %v8766, 0.0
        %8835 = vadd.xlane.f32.xlu0 %v8834
        %v8836 = vpop.xlane.xlu0 %8835
        %v8837 = vsel %vm493, %v8767, 0.0
        %8838 = vadd.xlane.f32.xlu0 %v8837
        %v8839 = vpop.xlane.xlu0 %8838
        %v8840 = vsel %vm493, %v8768, 0.0
        %8841 = vadd.xlane.f32.xlu0 %v8840
        %v8842 = vpop.xlane.xlu0 %8841
        %v8843 = vsel %vm493, %v8769, 0.0
        %8844 = vadd.xlane.f32.xlu0 %v8843
        %v8845 = vpop.xlane.xlu0 %8844
        %v8846 = vsel %vm493, %v8770, 0.0
        %8847 = vadd.xlane.f32.xlu0 %v8846
        %v8848 = vpop.xlane.xlu0 %8847
        %v8849 = vsel %vm493, %v8771, 0.0
        %8850 = vadd.xlane.f32.xlu0 %v8849
        %v8851 = vpop.xlane.xlu0 %8850
        %v8852 = vsel %vm493, %v8772, 0.0
        %8853 = vadd.xlane.f32.xlu0 %v8852
        %v8854 = vpop.xlane.xlu0 %8853
        %v8855 = vsel %vm493, %v8773, 0.0
        %8856 = vadd.xlane.f32.xlu0 %v8855
        %v8857 = vpop.xlane.xlu0 %8856
        %v8858 = vsel %vm493, %v8774, 0.0
        %8859 = vadd.xlane.f32.xlu0 %v8858
        %v8860 = vpop.xlane.xlu0 %8859
        %v8861 = vsel %vm493, %v8775, 0.0
        %8862 = vadd.xlane.f32.xlu0 %v8861
        %v8863 = vpop.xlane.xlu0 %8862
        %v8864 = vsel %vm493, %v8776, 0.0
        %8865 = vadd.xlane.f32.xlu0 %v8864
        %v8866 = vpop.xlane.xlu0 %8865
        %v8867 = vsel %vm493, %v8777, 0.0
        %8868 = vadd.xlane.f32.xlu0 %v8867
        %v8869 = vpop.xlane.xlu0 %8868
        %v8870 = vsel %vm493, %v8778, 0.0
        %8871 = vadd.xlane.f32.xlu0 %v8870
        %v8872 = vpop.xlane.xlu0 %8871
        %v8873 = vsel %vm493, %v8779, 0.0
        %8874 = vadd.xlane.f32.xlu0 %v8873
        %v8875 = vpop.xlane.xlu0 %8874
        %v8876 = vmul.f32 %v8654, 0.03125
        %v8877 = vmul.f32 %v8657, 0.03125
        %v8878 = vmul.f32 %v8660, 0.03125
        %v8879 = vmul.f32 %v8663, 0.03125
        %v8880 = vmul.f32 %v8666, 0.03125
        %v8881 = vmul.f32 %v8669, 0.03125
        %v8882 = vmul.f32 %v8672, 0.03125
        %v8883 = vmul.f32 %v8675, 0.03125
        %v8884 = vmul.f32 %v8678, 0.03125
        %v8885 = vmul.f32 %v8681, 0.03125
        %v8886 = vmul.f32 %v8684, 0.03125
        %v8887 = vmul.f32 %v8687, 0.03125
        %v8888 = vmul.f32 %v8690, 0.03125
        %v8889 = vmul.f32 %v8693, 0.03125
        %v8890 = vmul.f32 %v8696, 0.03125
        %v8891 = vmul.f32 %v8699, 0.03125
        %v8892 = vmul.f32 %v8702, 0.03125
        %v8893 = vmul.f32 %v8705, 0.03125
        %v8894 = vmul.f32 %v8708, 0.03125
        %v8895 = vmul.f32 %v8711, 0.03125
        %v8896 = vmul.f32 %v8714, 0.03125
        %v8897 = vmul.f32 %v8717, 0.03125
        %v8898 = vmul.f32 %v8720, 0.03125
        %v8899 = vmul.f32 %v8723, 0.03125
        %v8900 = vmul.f32 %v8726, 0.03125
        %v8901 = vmul.f32 %v8729, 0.03125
        %v8902 = vmul.f32 %v8732, 0.03125
        %v8903 = vmul.f32 %v8735, 0.03125
        %v8904 = vmul.f32 %v8738, 0.03125
        %v8905 = vmul.f32 %v8741, 0.03125
        %v8906 = vmul.f32 %v8744, 0.03125
        %v8907 = vmul.f32 %v8747, 0.03125
        %v8908 = vmul.f32 %v8782, 0.03125
        %v8909 = vmul.f32 %v8785, 0.03125
        %v8910 = vmul.f32 %v8788, 0.03125
        %v8911 = vmul.f32 %v8791, 0.03125
        %v8912 = vmul.f32 %v8794, 0.03125
        %v8913 = vmul.f32 %v8797, 0.03125
        %v8914 = vmul.f32 %v8800, 0.03125
        %v8915 = vmul.f32 %v8803, 0.03125
        %v8916 = vmul.f32 %v8806, 0.03125
        %v8917 = vmul.f32 %v8809, 0.03125
        %v8918 = vmul.f32 %v8812, 0.03125
        %v8919 = vmul.f32 %v8815, 0.03125
        %v8920 = vmul.f32 %v8818, 0.03125
        %v8921 = vmul.f32 %v8821, 0.03125
        %v8922 = vmul.f32 %v8824, 0.03125
        %v8923 = vmul.f32 %v8827, 0.03125
        %v8924 = vmul.f32 %v8830, 0.03125
        %v8925 = vmul.f32 %v8833, 0.03125
        %v8926 = vmul.f32 %v8836, 0.03125
        %v8927 = vmul.f32 %v8839, 0.03125
        %v8928 = vmul.f32 %v8842, 0.03125
        %v8929 = vmul.f32 %v8845, 0.03125
        %v8930 = vmul.f32 %v8848, 0.03125
        %v8931 = vmul.f32 %v8851, 0.03125
        %v8932 = vmul.f32 %v8854, 0.03125
        %v8933 = vmul.f32 %v8857, 0.03125
        %v8934 = vmul.f32 %v8860, 0.03125
        %v8935 = vmul.f32 %v8863, 0.03125
        %v8936 = vmul.f32 %v8866, 0.03125
        %v8937 = vmul.f32 %v8869, 0.03125
        %v8938 = vmul.f32 %v8872, 0.03125
        %v8939 = vmul.f32 %v8875, 0.03125
        %v8940 = vmul.f32 %v8876, %v8876
        %v8941 = vmul.f32 %v8877, %v8877
        %v8942 = vmul.f32 %v8878, %v8878
        %v8943 = vmul.f32 %v8879, %v8879
        %v8944 = vmul.f32 %v8880, %v8880
        %v8945 = vmul.f32 %v8881, %v8881
        %v8946 = vmul.f32 %v8882, %v8882
        %v8947 = vmul.f32 %v8883, %v8883
        %v8948 = vmul.f32 %v8884, %v8884
        %v8949 = vmul.f32 %v8885, %v8885
        %v8950 = vmul.f32 %v8886, %v8886
        %v8951 = vmul.f32 %v8887, %v8887
        %v8952 = vmul.f32 %v8888, %v8888
        %v8953 = vmul.f32 %v8889, %v8889
        %v8954 = vmul.f32 %v8890, %v8890
        %v8955 = vmul.f32 %v8891, %v8891
        %v8956 = vmul.f32 %v8892, %v8892
        %v8957 = vmul.f32 %v8893, %v8893
        %v8958 = vmul.f32 %v8894, %v8894
        %v8959 = vmul.f32 %v8895, %v8895
        %v8960 = vmul.f32 %v8896, %v8896
        %v8961 = vmul.f32 %v8897, %v8897
        %v8962 = vmul.f32 %v8898, %v8898
        %v8963 = vmul.f32 %v8899, %v8899
        %v8964 = vmul.f32 %v8900, %v8900
        %v8965 = vmul.f32 %v8901, %v8901
        %v8966 = vmul.f32 %v8902, %v8902
        %v8967 = vmul.f32 %v8903, %v8903
        %v8968 = vmul.f32 %v8904, %v8904
        %v8969 = vmul.f32 %v8905, %v8905
        %v8970 = vmul.f32 %v8906, %v8906
        %v8971 = vmul.f32 %v8907, %v8907
        %v8972 = vsub.f32 %v8908, %v8940
        %v8973 = vsub.f32 %v8909, %v8941
        %v8974 = vsub.f32 %v8910, %v8942
        %v8975 = vsub.f32 %v8911, %v8943
        %v8976 = vsub.f32 %v8912, %v8944
        %v8977 = vsub.f32 %v8913, %v8945
        %v8978 = vsub.f32 %v8914, %v8946
        %v8979 = vsub.f32 %v8915, %v8947
        %v8980 = vsub.f32 %v8916, %v8948
        %v8981 = vsub.f32 %v8917, %v8949
        %v8982 = vsub.f32 %v8918, %v8950
        %v8983 = vsub.f32 %v8919, %v8951
        %v8984 = vsub.f32 %v8920, %v8952
        %v8985 = vsub.f32 %v8921, %v8953
        %v8986 = vsub.f32 %v8922, %v8954
        %v8987 = vsub.f32 %v8923, %v8955
        %v8988 = vsub.f32 %v8924, %v8956
        %v8989 = vsub.f32 %v8925, %v8957
        %v8990 = vsub.f32 %v8926, %v8958
        %v8991 = vsub.f32 %v8927, %v8959
        %v8992 = vsub.f32 %v8928, %v8960
        %v8993 = vsub.f32 %v8929, %v8961
        %v8994 = vsub.f32 %v8930, %v8962
        %v8995 = vsub.f32 %v8931, %v8963
        %v8996 = vsub.f32 %v8932, %v8964
        %v8997 = vsub.f32 %v8933, %v8965
        %v8998 = vsub.f32 %v8934, %v8966
        %v8999 = vsub.f32 %v8935, %v8967
        %v9000 = vsub.f32 %v8936, %v8968
        %v9001 = vsub.f32 %v8937, %v8969
        %v9002 = vsub.f32 %v8938, %v8970
        %v9003 = vsub.f32 %v8939, %v8971
        %v9004 = vmax.f32 %v8972, 0.0
        %v9005 = vmax.f32 %v8973, 0.0
        %v9006 = vmax.f32 %v8974, 0.0
        %v9007 = vmax.f32 %v8975, 0.0
        %v9008 = vmax.f32 %v8976, 0.0
        %v9009 = vmax.f32 %v8977, 0.0
        %v9010 = vmax.f32 %v8978, 0.0
        %v9011 = vmax.f32 %v8979, 0.0
        %v9012 = vmax.f32 %v8980, 0.0
        %v9013 = vmax.f32 %v8981, 0.0
        %v9014 = vmax.f32 %v8982, 0.0
        %v9015 = vmax.f32 %v8983, 0.0
        %v9016 = vmax.f32 %v8984, 0.0
        %v9017 = vmax.f32 %v8985, 0.0
        %v9018 = vmax.f32 %v8986, 0.0
        %v9019 = vmax.f32 %v8987, 0.0
        %v9020 = vmax.f32 %v8988, 0.0
        %v9021 = vmax.f32 %v8989, 0.0
        %v9022 = vmax.f32 %v8990, 0.0
        %v9023 = vmax.f32 %v8991, 0.0
        %v9024 = vmax.f32 %v8992, 0.0
        %v9025 = vmax.f32 %v8993, 0.0
        %v9026 = vmax.f32 %v8994, 0.0
        %v9027 = vmax.f32 %v8995, 0.0
        %v9028 = vmax.f32 %v8996, 0.0
        %v9029 = vmax.f32 %v8997, 0.0
        %v9030 = vmax.f32 %v8998, 0.0
        %v9031 = vmax.f32 %v8999, 0.0
        %v9032 = vmax.f32 %v9000, 0.0
        %v9033 = vmax.f32 %v9001, 0.0
        %v9034 = vmax.f32 %v9002, 0.0
        %v9035 = vmax.f32 %v9003, 0.0
        %v9036 = vsub.f32 %v8557, %v8876
        %v9037 = vsub.f32 %v8560, %v8877
        %v9038 = vsub.f32 %v8563, %v8878
        %v9039 = vsub.f32 %v8566, %v8879
        %v9040 = vsub.f32 %v8569, %v8880
        %v9041 = vsub.f32 %v8572, %v8881
        %v9042 = vsub.f32 %v8575, %v8882
        %v9043 = vsub.f32 %v8578, %v8883
        %v9044 = vsub.f32 %v8581, %v8884
        %v9045 = vsub.f32 %v8584, %v8885
        %v9046 = vsub.f32 %v8587, %v8886
        %v9047 = vsub.f32 %v8590, %v8887
        %v9048 = vsub.f32 %v8593, %v8888
        %v9049 = vsub.f32 %v8596, %v8889
        %v9050 = vsub.f32 %v8599, %v8890
        %v9051 = vsub.f32 %v8602, %v8891
        %v9052 = vsub.f32 %v8605, %v8892
        %v9053 = vsub.f32 %v8608, %v8893
        %v9054 = vsub.f32 %v8611, %v8894
        %v9055 = vsub.f32 %v8614, %v8895
        %v9056 = vsub.f32 %v8617, %v8896
        %v9057 = vsub.f32 %v8620, %v8897
        %v9058 = vsub.f32 %v8623, %v8898
        %v9059 = vsub.f32 %v8626, %v8899
        %v9060 = vsub.f32 %v8629, %v8900
        %v9061 = vsub.f32 %v8632, %v8901
        %v9062 = vsub.f32 %v8635, %v8902
        %v9063 = vsub.f32 %v8638, %v8903
        %v9064 = vsub.f32 %v8641, %v8904
        %v9065 = vsub.f32 %v8644, %v8905
        %v9066 = vsub.f32 %v8647, %v8906
        %v9067 = vsub.f32 %v8650, %v8907
        %v9068 = vadd.f32 %v9004, 1e-05
        %v9069 = vadd.f32 %v9005, 1e-05
        %v9070 = vadd.f32 %v9006, 1e-05
        %v9071 = vadd.f32 %v9007, 1e-05
        %v9072 = vadd.f32 %v9008, 1e-05
        %v9073 = vadd.f32 %v9009, 1e-05
        %v9074 = vadd.f32 %v9010, 1e-05
        %v9075 = vadd.f32 %v9011, 1e-05
        %v9076 = vadd.f32 %v9012, 1e-05
        %v9077 = vadd.f32 %v9013, 1e-05
        %v9078 = vadd.f32 %v9014, 1e-05
        %v9079 = vadd.f32 %v9015, 1e-05
        %v9080 = vadd.f32 %v9016, 1e-05
        %v9081 = vadd.f32 %v9017, 1e-05
        %v9082 = vadd.f32 %v9018, 1e-05
        %v9083 = vadd.f32 %v9019, 1e-05
        %v9084 = vadd.f32 %v9020, 1e-05
        %v9085 = vadd.f32 %v9021, 1e-05
        %v9086 = vadd.f32 %v9022, 1e-05
        %v9087 = vadd.f32 %v9023, 1e-05
        %v9088 = vadd.f32 %v9024, 1e-05
        %v9089 = vadd.f32 %v9025, 1e-05
        %v9090 = vadd.f32 %v9026, 1e-05
        %v9091 = vadd.f32 %v9027, 1e-05
        %v9092 = vadd.f32 %v9028, 1e-05
        %v9093 = vadd.f32 %v9029, 1e-05
        %v9094 = vadd.f32 %v9030, 1e-05
        %v9095 = vadd.f32 %v9031, 1e-05
        %v9096 = vadd.f32 %v9032, 1e-05
        %v9097 = vadd.f32 %v9033, 1e-05
        %v9098 = vadd.f32 %v9034, 1e-05
        %v9099 = vadd.f32 %v9035, 1e-05
        %v9100 = vrsqrt.pop %v9068
        %v9101 = vmul.f32 %v9100, %v9068
        %v9102 = vmul.f32 %v9101, %v9100
        %v9103 = vmul.f32 0.5, %v9102
        %v9104 = vsub.f32 1.5, %v9103
        %v9105 = vmul.f32 %v9100, %v9104
        %vm9106 = vweird.f32 %v9068
        %vm9107 = vweird.f32 %v9100
        %vm9108 = vmor %vm9106, %vm9107
        %v9109 = vsel %vm9108, %v9100, %v9105
        %v9110 = vrsqrt.pop %v9069
        %v9111 = vmul.f32 %v9110, %v9069
        %v9112 = vmul.f32 %v9111, %v9110
        %v9113 = vmul.f32 0.5, %v9112
        %v9114 = vsub.f32 1.5, %v9113
        %v9115 = vmul.f32 %v9110, %v9114
        %vm9116 = vweird.f32 %v9069
        %vm9117 = vweird.f32 %v9110
        %vm9118 = vmor %vm9116, %vm9117
        %v9119 = vsel %vm9118, %v9110, %v9115
        %v9120 = vrsqrt.pop %v9070
        %v9121 = vmul.f32 %v9120, %v9070
        %v9122 = vmul.f32 %v9121, %v9120
        %v9123 = vmul.f32 0.5, %v9122
        %v9124 = vsub.f32 1.5, %v9123
        %v9125 = vmul.f32 %v9120, %v9124
        %vm9126 = vweird.f32 %v9070
        %vm9127 = vweird.f32 %v9120
        %vm9128 = vmor %vm9126, %vm9127
        %v9129 = vsel %vm9128, %v9120, %v9125
        %v9130 = vrsqrt.pop %v9071
        %v9131 = vmul.f32 %v9130, %v9071
        %v9132 = vmul.f32 %v9131, %v9130
        %v9133 = vmul.f32 0.5, %v9132
        %v9134 = vsub.f32 1.5, %v9133
        %v9135 = vmul.f32 %v9130, %v9134
        %vm9136 = vweird.f32 %v9071
        %vm9137 = vweird.f32 %v9130
        %vm9138 = vmor %vm9136, %vm9137
        %v9139 = vsel %vm9138, %v9130, %v9135
        %v9140 = vrsqrt.pop %v9072
        %v9141 = vmul.f32 %v9140, %v9072
        %v9142 = vmul.f32 %v9141, %v9140
        %v9143 = vmul.f32 0.5, %v9142
        %v9144 = vsub.f32 1.5, %v9143
        %v9145 = vmul.f32 %v9140, %v9144
        %vm9146 = vweird.f32 %v9072
        %vm9147 = vweird.f32 %v9140
        %vm9148 = vmor %vm9146, %vm9147
        %v9149 = vsel %vm9148, %v9140, %v9145
        %v9150 = vrsqrt.pop %v9073
        %v9151 = vmul.f32 %v9150, %v9073
        %v9152 = vmul.f32 %v9151, %v9150
        %v9153 = vmul.f32 0.5, %v9152
        %v9154 = vsub.f32 1.5, %v9153
        %v9155 = vmul.f32 %v9150, %v9154
        %vm9156 = vweird.f32 %v9073
        %vm9157 = vweird.f32 %v9150
        %vm9158 = vmor %vm9156, %vm9157
        %v9159 = vsel %vm9158, %v9150, %v9155
        %v9160 = vrsqrt.pop %v9074
        %v9161 = vmul.f32 %v9160, %v9074
        %v9162 = vmul.f32 %v9161, %v9160
        %v9163 = vmul.f32 0.5, %v9162
        %v9164 = vsub.f32 1.5, %v9163
        %v9165 = vmul.f32 %v9160, %v9164
        %vm9166 = vweird.f32 %v9074
        %vm9167 = vweird.f32 %v9160
        %vm9168 = vmor %vm9166, %vm9167
        %v9169 = vsel %vm9168, %v9160, %v9165
        %v9170 = vrsqrt.pop %v9075
        %v9171 = vmul.f32 %v9170, %v9075
        %v9172 = vmul.f32 %v9171, %v9170
        %v9173 = vmul.f32 0.5, %v9172
        %v9174 = vsub.f32 1.5, %v9173
        %v9175 = vmul.f32 %v9170, %v9174
        %vm9176 = vweird.f32 %v9075
        %vm9177 = vweird.f32 %v9170
        %vm9178 = vmor %vm9176, %vm9177
        %v9179 = vsel %vm9178, %v9170, %v9175
        %v9180 = vrsqrt.pop %v9076
        %v9181 = vmul.f32 %v9180, %v9076
        %v9182 = vmul.f32 %v9181, %v9180
        %v9183 = vmul.f32 0.5, %v9182
        %v9184 = vsub.f32 1.5, %v9183
        %v9185 = vmul.f32 %v9180, %v9184
        %vm9186 = vweird.f32 %v9076
        %vm9187 = vweird.f32 %v9180
        %vm9188 = vmor %vm9186, %vm9187
        %v9189 = vsel %vm9188, %v9180, %v9185
        %v9190 = vrsqrt.pop %v9077
        %v9191 = vmul.f32 %v9190, %v9077
        %v9192 = vmul.f32 %v9191, %v9190
        %v9193 = vmul.f32 0.5, %v9192
        %v9194 = vsub.f32 1.5, %v9193
        %v9195 = vmul.f32 %v9190, %v9194
        %vm9196 = vweird.f32 %v9077
        %vm9197 = vweird.f32 %v9190
        %vm9198 = vmor %vm9196, %vm9197
        %v9199 = vsel %vm9198, %v9190, %v9195
        %v9200 = vrsqrt.pop %v9078
        %v9201 = vmul.f32 %v9200, %v9078
        %v9202 = vmul.f32 %v9201, %v9200
        %v9203 = vmul.f32 0.5, %v9202
        %v9204 = vsub.f32 1.5, %v9203
        %v9205 = vmul.f32 %v9200, %v9204
        %vm9206 = vweird.f32 %v9078
        %vm9207 = vweird.f32 %v9200
        %vm9208 = vmor %vm9206, %vm9207
        %v9209 = vsel %vm9208, %v9200, %v9205
        %v9210 = vrsqrt.pop %v9079
        %v9211 = vmul.f32 %v9210, %v9079
        %v9212 = vmul.f32 %v9211, %v9210
        %v9213 = vmul.f32 0.5, %v9212
        %v9214 = vsub.f32 1.5, %v9213
        %v9215 = vmul.f32 %v9210, %v9214
        %vm9216 = vweird.f32 %v9079
        %vm9217 = vweird.f32 %v9210
        %vm9218 = vmor %vm9216, %vm9217
        %v9219 = vsel %vm9218, %v9210, %v9215
        %v9220 = vrsqrt.pop %v9080
        %v9221 = vmul.f32 %v9220, %v9080
        %v9222 = vmul.f32 %v9221, %v9220
        %v9223 = vmul.f32 0.5, %v9222
        %v9224 = vsub.f32 1.5, %v9223
        %v9225 = vmul.f32 %v9220, %v9224
        %vm9226 = vweird.f32 %v9080
        %vm9227 = vweird.f32 %v9220
        %vm9228 = vmor %vm9226, %vm9227
        %v9229 = vsel %vm9228, %v9220, %v9225
        %v9230 = vrsqrt.pop %v9081
        %v9231 = vmul.f32 %v9230, %v9081
        %v9232 = vmul.f32 %v9231, %v9230
        %v9233 = vmul.f32 0.5, %v9232
        %v9234 = vsub.f32 1.5, %v9233
        %v9235 = vmul.f32 %v9230, %v9234
        %vm9236 = vweird.f32 %v9081
        %vm9237 = vweird.f32 %v9230
        %vm9238 = vmor %vm9236, %vm9237
        %v9239 = vsel %vm9238, %v9230, %v9235
        %v9240 = vrsqrt.pop %v9082
        %v9241 = vmul.f32 %v9240, %v9082
        %v9242 = vmul.f32 %v9241, %v9240
        %v9243 = vmul.f32 0.5, %v9242
        %v9244 = vsub.f32 1.5, %v9243
        %v9245 = vmul.f32 %v9240, %v9244
        %vm9246 = vweird.f32 %v9082
        %vm9247 = vweird.f32 %v9240
        %vm9248 = vmor %vm9246, %vm9247
        %v9249 = vsel %vm9248, %v9240, %v9245
        %v9250 = vrsqrt.pop %v9083
        %v9251 = vmul.f32 %v9250, %v9083
        %v9252 = vmul.f32 %v9251, %v9250
        %v9253 = vmul.f32 0.5, %v9252
        %v9254 = vsub.f32 1.5, %v9253
        %v9255 = vmul.f32 %v9250, %v9254
        %vm9256 = vweird.f32 %v9083
        %vm9257 = vweird.f32 %v9250
        %vm9258 = vmor %vm9256, %vm9257
        %v9259 = vsel %vm9258, %v9250, %v9255
        %v9260 = vrsqrt.pop %v9084
        %v9261 = vmul.f32 %v9260, %v9084
        %v9262 = vmul.f32 %v9261, %v9260
        %v9263 = vmul.f32 0.5, %v9262
        %v9264 = vsub.f32 1.5, %v9263
        %v9265 = vmul.f32 %v9260, %v9264
        %vm9266 = vweird.f32 %v9084
        %vm9267 = vweird.f32 %v9260
        %vm9268 = vmor %vm9266, %vm9267
        %v9269 = vsel %vm9268, %v9260, %v9265
        %v9270 = vrsqrt.pop %v9085
        %v9271 = vmul.f32 %v9270, %v9085
        %v9272 = vmul.f32 %v9271, %v9270
        %v9273 = vmul.f32 0.5, %v9272
        %v9274 = vsub.f32 1.5, %v9273
        %v9275 = vmul.f32 %v9270, %v9274
        %vm9276 = vweird.f32 %v9085
        %vm9277 = vweird.f32 %v9270
        %vm9278 = vmor %vm9276, %vm9277
        %v9279 = vsel %vm9278, %v9270, %v9275
        %v9280 = vrsqrt.pop %v9086
        %v9281 = vmul.f32 %v9280, %v9086
        %v9282 = vmul.f32 %v9281, %v9280
        %v9283 = vmul.f32 0.5, %v9282
        %v9284 = vsub.f32 1.5, %v9283
        %v9285 = vmul.f32 %v9280, %v9284
        %vm9286 = vweird.f32 %v9086
        %vm9287 = vweird.f32 %v9280
        %vm9288 = vmor %vm9286, %vm9287
        %v9289 = vsel %vm9288, %v9280, %v9285
        %v9290 = vrsqrt.pop %v9087
        %v9291 = vmul.f32 %v9290, %v9087
        %v9292 = vmul.f32 %v9291, %v9290
        %v9293 = vmul.f32 0.5, %v9292
        %v9294 = vsub.f32 1.5, %v9293
        %v9295 = vmul.f32 %v9290, %v9294
        %vm9296 = vweird.f32 %v9087
        %vm9297 = vweird.f32 %v9290
        %vm9298 = vmor %vm9296, %vm9297
        %v9299 = vsel %vm9298, %v9290, %v9295
        %v9300 = vrsqrt.pop %v9088
        %v9301 = vmul.f32 %v9300, %v9088
        %v9302 = vmul.f32 %v9301, %v9300
        %v9303 = vmul.f32 0.5, %v9302
        %v9304 = vsub.f32 1.5, %v9303
        %v9305 = vmul.f32 %v9300, %v9304
        %vm9306 = vweird.f32 %v9088
        %vm9307 = vweird.f32 %v9300
        %vm9308 = vmor %vm9306, %vm9307
        %v9309 = vsel %vm9308, %v9300, %v9305
        %v9310 = vrsqrt.pop %v9089
        %v9311 = vmul.f32 %v9310, %v9089
        %v9312 = vmul.f32 %v9311, %v9310
        %v9313 = vmul.f32 0.5, %v9312
        %v9314 = vsub.f32 1.5, %v9313
        %v9315 = vmul.f32 %v9310, %v9314
        %vm9316 = vweird.f32 %v9089
        %vm9317 = vweird.f32 %v9310
        %vm9318 = vmor %vm9316, %vm9317
        %v9319 = vsel %vm9318, %v9310, %v9315
        %v9320 = vrsqrt.pop %v9090
        %v9321 = vmul.f32 %v9320, %v9090
        %v9322 = vmul.f32 %v9321, %v9320
        %v9323 = vmul.f32 0.5, %v9322
        %v9324 = vsub.f32 1.5, %v9323
        %v9325 = vmul.f32 %v9320, %v9324
        %vm9326 = vweird.f32 %v9090
        %vm9327 = vweird.f32 %v9320
        %vm9328 = vmor %vm9326, %vm9327
        %v9329 = vsel %vm9328, %v9320, %v9325
        %v9330 = vrsqrt.pop %v9091
        %v9331 = vmul.f32 %v9330, %v9091
        %v9332 = vmul.f32 %v9331, %v9330
        %v9333 = vmul.f32 0.5, %v9332
        %v9334 = vsub.f32 1.5, %v9333
        %v9335 = vmul.f32 %v9330, %v9334
        %vm9336 = vweird.f32 %v9091
        %vm9337 = vweird.f32 %v9330
        %vm9338 = vmor %vm9336, %vm9337
        %v9339 = vsel %vm9338, %v9330, %v9335
        %v9340 = vrsqrt.pop %v9092
        %v9341 = vmul.f32 %v9340, %v9092
        %v9342 = vmul.f32 %v9341, %v9340
        %v9343 = vmul.f32 0.5, %v9342
        %v9344 = vsub.f32 1.5, %v9343
        %v9345 = vmul.f32 %v9340, %v9344
        %vm9346 = vweird.f32 %v9092
        %vm9347 = vweird.f32 %v9340
        %vm9348 = vmor %vm9346, %vm9347
        %v9349 = vsel %vm9348, %v9340, %v9345
        %v9350 = vrsqrt.pop %v9093
        %v9351 = vmul.f32 %v9350, %v9093
        %v9352 = vmul.f32 %v9351, %v9350
        %v9353 = vmul.f32 0.5, %v9352
        %v9354 = vsub.f32 1.5, %v9353
        %v9355 = vmul.f32 %v9350, %v9354
        %vm9356 = vweird.f32 %v9093
        %vm9357 = vweird.f32 %v9350
        %vm9358 = vmor %vm9356, %vm9357
        %v9359 = vsel %vm9358, %v9350, %v9355
        %v9360 = vrsqrt.pop %v9094
        %v9361 = vmul.f32 %v9360, %v9094
        %v9362 = vmul.f32 %v9361, %v9360
        %v9363 = vmul.f32 0.5, %v9362
        %v9364 = vsub.f32 1.5, %v9363
        %v9365 = vmul.f32 %v9360, %v9364
        %vm9366 = vweird.f32 %v9094
        %vm9367 = vweird.f32 %v9360
        %vm9368 = vmor %vm9366, %vm9367
        %v9369 = vsel %vm9368, %v9360, %v9365
        %v9370 = vrsqrt.pop %v9095
        %v9371 = vmul.f32 %v9370, %v9095
        %v9372 = vmul.f32 %v9371, %v9370
        %v9373 = vmul.f32 0.5, %v9372
        %v9374 = vsub.f32 1.5, %v9373
        %v9375 = vmul.f32 %v9370, %v9374
        %vm9376 = vweird.f32 %v9095
        %vm9377 = vweird.f32 %v9370
        %vm9378 = vmor %vm9376, %vm9377
        %v9379 = vsel %vm9378, %v9370, %v9375
        %v9380 = vrsqrt.pop %v9096
        %v9381 = vmul.f32 %v9380, %v9096
        %v9382 = vmul.f32 %v9381, %v9380
        %v9383 = vmul.f32 0.5, %v9382
        %v9384 = vsub.f32 1.5, %v9383
        %v9385 = vmul.f32 %v9380, %v9384
        %vm9386 = vweird.f32 %v9096
        %vm9387 = vweird.f32 %v9380
        %vm9388 = vmor %vm9386, %vm9387
        %v9389 = vsel %vm9388, %v9380, %v9385
        %v9390 = vrsqrt.pop %v9097
        %v9391 = vmul.f32 %v9390, %v9097
        %v9392 = vmul.f32 %v9391, %v9390
        %v9393 = vmul.f32 0.5, %v9392
        %v9394 = vsub.f32 1.5, %v9393
        %v9395 = vmul.f32 %v9390, %v9394
        %vm9396 = vweird.f32 %v9097
        %vm9397 = vweird.f32 %v9390
        %vm9398 = vmor %vm9396, %vm9397
        %v9399 = vsel %vm9398, %v9390, %v9395
        %v9400 = vrsqrt.pop %v9098
        %v9401 = vmul.f32 %v9400, %v9098
        %v9402 = vmul.f32 %v9401, %v9400
        %v9403 = vmul.f32 0.5, %v9402
        %v9404 = vsub.f32 1.5, %v9403
        %v9405 = vmul.f32 %v9400, %v9404
        %vm9406 = vweird.f32 %v9098
        %vm9407 = vweird.f32 %v9400
        %vm9408 = vmor %vm9406, %vm9407
        %v9409 = vsel %vm9408, %v9400, %v9405
        %v9410 = vrsqrt.pop %v9099
        %v9411 = vmul.f32 %v9410, %v9099
        %v9412 = vmul.f32 %v9411, %v9410
        %v9413 = vmul.f32 0.5, %v9412
        %v9414 = vsub.f32 1.5, %v9413
        %v9415 = vmul.f32 %v9410, %v9414
        %vm9416 = vweird.f32 %v9099
        %vm9417 = vweird.f32 %v9410
        %vm9418 = vmor %vm9416, %vm9417
        %v9419 = vsel %vm9418, %v9410, %v9415
        %v9420 = vmul.f32 %v9036, %v9109
        %v9421 = vmul.f32 %v9037, %v9119
        %v9422 = vmul.f32 %v9038, %v9129
        %v9423 = vmul.f32 %v9039, %v9139
        %v9424 = vmul.f32 %v9040, %v9149
        %v9425 = vmul.f32 %v9041, %v9159
        %v9426 = vmul.f32 %v9042, %v9169
        %v9427 = vmul.f32 %v9043, %v9179
        %v9428 = vmul.f32 %v9044, %v9189
        %v9429 = vmul.f32 %v9045, %v9199
        %v9430 = vmul.f32 %v9046, %v9209
        %v9431 = vmul.f32 %v9047, %v9219
        %v9432 = vmul.f32 %v9048, %v9229
        %v9433 = vmul.f32 %v9049, %v9239
        %v9434 = vmul.f32 %v9050, %v9249
        %v9435 = vmul.f32 %v9051, %v9259
        %v9436 = vmul.f32 %v9052, %v9269
        %v9437 = vmul.f32 %v9053, %v9279
        %v9438 = vmul.f32 %v9054, %v9289
        %v9439 = vmul.f32 %v9055, %v9299
        %v9440 = vmul.f32 %v9056, %v9309
        %v9441 = vmul.f32 %v9057, %v9319
        %v9442 = vmul.f32 %v9058, %v9329
        %v9443 = vmul.f32 %v9059, %v9339
        %v9444 = vmul.f32 %v9060, %v9349
        %v9445 = vmul.f32 %v9061, %v9359
        %v9446 = vmul.f32 %v9062, %v9369
        %v9447 = vmul.f32 %v9063, %v9379
        %v9448 = vmul.f32 %v9064, %v9389
        %v9449 = vmul.f32 %v9065, %v9399
        %v9450 = vmul.f32 %v9066, %v9409
        %v9451 = vmul.f32 %v9067, %v9419
        %v9452 = vmax.f32 %v9420, 0.0
        %v9453 = vmax.f32 %v9421, 0.0
        %v9454 = vmax.f32 %v9422, 0.0
        %v9455 = vmax.f32 %v9423, 0.0
        %v9456 = vmax.f32 %v9424, 0.0
        %v9457 = vmax.f32 %v9425, 0.0
        %v9458 = vmax.f32 %v9426, 0.0
        %v9459 = vmax.f32 %v9427, 0.0
        %v9460 = vmax.f32 %v9428, 0.0
        %v9461 = vmax.f32 %v9429, 0.0
        %v9462 = vmax.f32 %v9430, 0.0
        %v9463 = vmax.f32 %v9431, 0.0
        %v9464 = vmax.f32 %v9432, 0.0
        %v9465 = vmax.f32 %v9433, 0.0
        %v9466 = vmax.f32 %v9434, 0.0
        %v9467 = vmax.f32 %v9435, 0.0
        %v9468 = vmax.f32 %v9436, 0.0
        %v9469 = vmax.f32 %v9437, 0.0
        %v9470 = vmax.f32 %v9438, 0.0
        %v9471 = vmax.f32 %v9439, 0.0
        %v9472 = vmax.f32 %v9440, 0.0
        %v9473 = vmax.f32 %v9441, 0.0
        %v9474 = vmax.f32 %v9442, 0.0
        %v9475 = vmax.f32 %v9443, 0.0
        %v9476 = vmax.f32 %v9444, 0.0
        %v9477 = vmax.f32 %v9445, 0.0
        %v9478 = vmax.f32 %v9446, 0.0
        %v9479 = vmax.f32 %v9447, 0.0
        %v9480 = vmax.f32 %v9448, 0.0
        %v9481 = vmax.f32 %v9449, 0.0
        %v9482 = vmax.f32 %v9450, 0.0
        %v9483 = vmax.f32 %v9451, 0.0
        %s9484 = scalar_lea.vmem %s9, 32
        %v9485 = vld [vmem:[%s9484] sm:$0xff]
        %v9486 = vld [vmem:[%s9484 + $0x8] sm:$0xff]
        %v9487 = vld [vmem:[%s9484 + $0x10] sm:$0xff]
        %v9488 = vld [vmem:[%s9484 + $0x18] sm:$0xff]
        %v9489 = vperm.slane %v455, 0
        %v9491 = vsel %vm493, %v9452, 0
        %v9494 = vsel %vm493, %v9453, 0
        %v9497 = vsel %vm493, %v9454, 0
        %v9500 = vsel %vm493, %v9455, 0
        %v9503 = vsel %vm493, %v9456, 0
        %v9506 = vsel %vm493, %v9457, 0
        %v9509 = vsel %vm493, %v9458, 0
        %v9512 = vsel %vm493, %v9459, 0
        %v9515 = vsel %vm493, %v9460, 0
        %v9518 = vsel %vm493, %v9461, 0
        %v9521 = vsel %vm493, %v9462, 0
        %v9524 = vsel %vm493, %v9463, 0
        %v9527 = vsel %vm493, %v9464, 0
        %v9530 = vsel %vm493, %v9465, 0
        %v9533 = vsel %vm493, %v9466, 0
        %v9536 = vsel %vm493, %v9467, 0
        %v9539 = vsel %vm493, %v9468, 0
        %v9542 = vsel %vm493, %v9469, 0
        %v9545 = vsel %vm493, %v9470, 0
        %v9548 = vsel %vm493, %v9471, 0
        %v9551 = vsel %vm493, %v9472, 0
        %v9554 = vsel %vm493, %v9473, 0
        %v9557 = vsel %vm493, %v9474, 0
        %v9560 = vsel %vm493, %v9475, 0
        %v9563 = vsel %vm493, %v9476, 0
        %v9566 = vsel %vm493, %v9477, 0
        %v9569 = vsel %vm493, %v9478, 0
        %v9572 = vsel %vm493, %v9479, 0
        %v9575 = vsel %vm493, %v9480, 0
        %v9578 = vsel %vm493, %v9481, 0
        %v9581 = vsel %vm493, %v9482, 0
        %v9584 = vsel %vm493, %v9483, 0
        %9586 = vmatpush.msra.mxu0 0.0
        %9587 = vmatpush.msra.mxu0 0.0
        %9588 = vmatpush.msra.mxu0 0.0
        %9589 = vmatpush.msra.mxu0 0.0
        %9590 = vmatpush.msra.mxu0 0.0
        %9591 = vmatpush.msra.mxu0 0.0
        %9592 = vmatpush.msra.mxu0 0.0
        %9593 = vmatpush.msra.mxu0 0.0
        %9594 = vmatpush.msra.mxu0 0.0
        %9595 = vmatpush.msra.mxu0 0.0
        %9596 = vmatpush.msra.mxu0 0.0
        %9597 = vmatpush.msra.mxu0 0.0
        %9598 = vmatpush.msra.mxu0 %v9488
        %9599 = vmatpush.msra.mxu0 %v9487
        %9600 = vmatpush.msra.mxu0 %v9486
        %9601 = vmatpush.msra.mxu0 %v9485
        %9602 = vmatmul.f32.gmra.mxu0 %v9491
        %v9603 = vpop.f32.mrf.mxu0
        %v9604 = vadd.f32 %v9489, %v9603
        %9605 = vmatmul.f32.gmra.mxu0 %v9494
        %v9606 = vpop.f32.mrf.mxu0
        %v9607 = vadd.f32 %v9489, %v9606
        %9608 = vmatmul.f32.gmra.mxu0 %v9497
        %v9609 = vpop.f32.mrf.mxu0
        %v9610 = vadd.f32 %v9489, %v9609
        %9611 = vmatmul.f32.gmra.mxu0 %v9500
        %v9612 = vpop.f32.mrf.mxu0
        %v9613 = vadd.f32 %v9489, %v9612
        %9614 = vmatmul.f32.gmra.mxu0 %v9503
        %v9615 = vpop.f32.mrf.mxu0
        %v9616 = vadd.f32 %v9489, %v9615
        %9617 = vmatmul.f32.gmra.mxu0 %v9506
        %v9618 = vpop.f32.mrf.mxu0
        %v9619 = vadd.f32 %v9489, %v9618
        %9620 = vmatmul.f32.gmra.mxu0 %v9509
        %v9621 = vpop.f32.mrf.mxu0
        %v9622 = vadd.f32 %v9489, %v9621
        %9623 = vmatmul.f32.gmra.mxu0 %v9512
        %v9624 = vpop.f32.mrf.mxu0
        %v9625 = vadd.f32 %v9489, %v9624
        %9626 = vmatmul.f32.gmra.mxu0 %v9515
        %v9627 = vpop.f32.mrf.mxu0
        %v9628 = vadd.f32 %v9489, %v9627
        %9629 = vmatmul.f32.gmra.mxu0 %v9518
        %v9630 = vpop.f32.mrf.mxu0
        %v9631 = vadd.f32 %v9489, %v9630
        %9632 = vmatmul.f32.gmra.mxu0 %v9521
        %v9633 = vpop.f32.mrf.mxu0
        %v9634 = vadd.f32 %v9489, %v9633
        %9635 = vmatmul.f32.gmra.mxu0 %v9524
        %v9636 = vpop.f32.mrf.mxu0
        %v9637 = vadd.f32 %v9489, %v9636
        %9638 = vmatmul.f32.gmra.mxu0 %v9527
        %v9639 = vpop.f32.mrf.mxu0
        %v9640 = vadd.f32 %v9489, %v9639
        %9641 = vmatmul.f32.gmra.mxu0 %v9530
        %v9642 = vpop.f32.mrf.mxu0
        %v9643 = vadd.f32 %v9489, %v9642
        %9644 = vmatmul.f32.gmra.mxu0 %v9533
        %v9645 = vpop.f32.mrf.mxu0
        %v9646 = vadd.f32 %v9489, %v9645
        %9647 = vmatmul.f32.gmra.mxu0 %v9536
        %v9648 = vpop.f32.mrf.mxu0
        %v9649 = vadd.f32 %v9489, %v9648
        %9650 = vmatmul.f32.gmra.mxu0 %v9539
        %v9651 = vpop.f32.mrf.mxu0
        %v9652 = vadd.f32 %v9489, %v9651
        %9653 = vmatmul.f32.gmra.mxu0 %v9542
        %v9654 = vpop.f32.mrf.mxu0
        %v9655 = vadd.f32 %v9489, %v9654
        %9656 = vmatmul.f32.gmra.mxu0 %v9545
        %v9657 = vpop.f32.mrf.mxu0
        %v9658 = vadd.f32 %v9489, %v9657
        %9659 = vmatmul.f32.gmra.mxu0 %v9548
        %v9660 = vpop.f32.mrf.mxu0
        %v9661 = vadd.f32 %v9489, %v9660
        %9662 = vmatmul.f32.gmra.mxu0 %v9551
        %v9663 = vpop.f32.mrf.mxu0
        %v9664 = vadd.f32 %v9489, %v9663
        %9665 = vmatmul.f32.gmra.mxu0 %v9554
        %v9666 = vpop.f32.mrf.mxu0
        %v9667 = vadd.f32 %v9489, %v9666
        %9668 = vmatmul.f32.gmra.mxu0 %v9557
        %v9669 = vpop.f32.mrf.mxu0
        %v9670 = vadd.f32 %v9489, %v9669
        %9671 = vmatmul.f32.gmra.mxu0 %v9560
        %v9672 = vpop.f32.mrf.mxu0
        %v9673 = vadd.f32 %v9489, %v9672
        %9674 = vmatmul.f32.gmra.mxu0 %v9563
        %v9675 = vpop.f32.mrf.mxu0
        %v9676 = vadd.f32 %v9489, %v9675
        %9677 = vmatmul.f32.gmra.mxu0 %v9566
        %v9678 = vpop.f32.mrf.mxu0
        %v9679 = vadd.f32 %v9489, %v9678
        %9680 = vmatmul.f32.gmra.mxu0 %v9569
        %v9681 = vpop.f32.mrf.mxu0
        %v9682 = vadd.f32 %v9489, %v9681
        %9683 = vmatmul.f32.gmra.mxu0 %v9572
        %v9684 = vpop.f32.mrf.mxu0
        %v9685 = vadd.f32 %v9489, %v9684
        %9686 = vmatmul.f32.gmra.mxu0 %v9575
        %v9687 = vpop.f32.mrf.mxu0
        %v9688 = vadd.f32 %v9489, %v9687
        %9689 = vmatmul.f32.gmra.mxu0 %v9578
        %v9690 = vpop.f32.mrf.mxu0
        %v9691 = vadd.f32 %v9489, %v9690
        %9692 = vmatmul.f32.gmra.mxu0 %v9581
        %v9693 = vpop.f32.mrf.mxu0
        %v9694 = vadd.f32 %v9489, %v9693
        %9695 = vmatmul.f32.gmra.mxu0 %v9584
        %v9696 = vpop.f32.mrf.mxu0
        %v9697 = vadd.f32 %v9489, %v9696
        %9698 = vdwg.mxu0
        %v9699 = vsel %vm493, %v9604, 0.0
        %9700 = vadd.xlane.f32.xlu0 %v9699
        %v9701 = vpop.xlane.xlu0 %9700
        %v9702 = vsel %vm493, %v9607, 0.0
        %9703 = vadd.xlane.f32.xlu0 %v9702
        %v9704 = vpop.xlane.xlu0 %9703
        %v9705 = vsel %vm493, %v9610, 0.0
        %9706 = vadd.xlane.f32.xlu0 %v9705
        %v9707 = vpop.xlane.xlu0 %9706
        %v9708 = vsel %vm493, %v9613, 0.0
        %9709 = vadd.xlane.f32.xlu0 %v9708
        %v9710 = vpop.xlane.xlu0 %9709
        %v9711 = vsel %vm493, %v9616, 0.0
        %9712 = vadd.xlane.f32.xlu0 %v9711
        %v9713 = vpop.xlane.xlu0 %9712
        %v9714 = vsel %vm493, %v9619, 0.0
        %9715 = vadd.xlane.f32.xlu0 %v9714
        %v9716 = vpop.xlane.xlu0 %9715
        %v9717 = vsel %vm493, %v9622, 0.0
        %9718 = vadd.xlane.f32.xlu0 %v9717
        %v9719 = vpop.xlane.xlu0 %9718
        %v9720 = vsel %vm493, %v9625, 0.0
        %9721 = vadd.xlane.f32.xlu0 %v9720
        %v9722 = vpop.xlane.xlu0 %9721
        %v9723 = vsel %vm493, %v9628, 0.0
        %9724 = vadd.xlane.f32.xlu0 %v9723
        %v9725 = vpop.xlane.xlu0 %9724
        %v9726 = vsel %vm493, %v9631, 0.0
        %9727 = vadd.xlane.f32.xlu0 %v9726
        %v9728 = vpop.xlane.xlu0 %9727
        %v9729 = vsel %vm493, %v9634, 0.0
        %9730 = vadd.xlane.f32.xlu0 %v9729
        %v9731 = vpop.xlane.xlu0 %9730
        %v9732 = vsel %vm493, %v9637, 0.0
        %9733 = vadd.xlane.f32.xlu0 %v9732
        %v9734 = vpop.xlane.xlu0 %9733
        %v9735 = vsel %vm493, %v9640, 0.0
        %9736 = vadd.xlane.f32.xlu0 %v9735
        %v9737 = vpop.xlane.xlu0 %9736
        %v9738 = vsel %vm493, %v9643, 0.0
        %9739 = vadd.xlane.f32.xlu0 %v9738
        %v9740 = vpop.xlane.xlu0 %9739
        %v9741 = vsel %vm493, %v9646, 0.0
        %9742 = vadd.xlane.f32.xlu0 %v9741
        %v9743 = vpop.xlane.xlu0 %9742
        %v9744 = vsel %vm493, %v9649, 0.0
        %9745 = vadd.xlane.f32.xlu0 %v9744
        %v9746 = vpop.xlane.xlu0 %9745
        %v9747 = vsel %vm493, %v9652, 0.0
        %9748 = vadd.xlane.f32.xlu0 %v9747
        %v9749 = vpop.xlane.xlu0 %9748
        %v9750 = vsel %vm493, %v9655, 0.0
        %9751 = vadd.xlane.f32.xlu0 %v9750
        %v9752 = vpop.xlane.xlu0 %9751
        %v9753 = vsel %vm493, %v9658, 0.0
        %9754 = vadd.xlane.f32.xlu0 %v9753
        %v9755 = vpop.xlane.xlu0 %9754
        %v9756 = vsel %vm493, %v9661, 0.0
        %9757 = vadd.xlane.f32.xlu0 %v9756
        %v9758 = vpop.xlane.xlu0 %9757
        %v9759 = vsel %vm493, %v9664, 0.0
        %9760 = vadd.xlane.f32.xlu0 %v9759
        %v9761 = vpop.xlane.xlu0 %9760
        %v9762 = vsel %vm493, %v9667, 0.0
        %9763 = vadd.xlane.f32.xlu0 %v9762
        %v9764 = vpop.xlane.xlu0 %9763
        %v9765 = vsel %vm493, %v9670, 0.0
        %9766 = vadd.xlane.f32.xlu0 %v9765
        %v9767 = vpop.xlane.xlu0 %9766
        %v9768 = vsel %vm493, %v9673, 0.0
        %9769 = vadd.xlane.f32.xlu0 %v9768
        %v9770 = vpop.xlane.xlu0 %9769
        %v9771 = vsel %vm493, %v9676, 0.0
        %9772 = vadd.xlane.f32.xlu0 %v9771
        %v9773 = vpop.xlane.xlu0 %9772
        %v9774 = vsel %vm493, %v9679, 0.0
        %9775 = vadd.xlane.f32.xlu0 %v9774
        %v9776 = vpop.xlane.xlu0 %9775
        %v9777 = vsel %vm493, %v9682, 0.0
        %9778 = vadd.xlane.f32.xlu0 %v9777
        %v9779 = vpop.xlane.xlu0 %9778
        %v9780 = vsel %vm493, %v9685, 0.0
        %9781 = vadd.xlane.f32.xlu0 %v9780
        %v9782 = vpop.xlane.xlu0 %9781
        %v9783 = vsel %vm493, %v9688, 0.0
        %9784 = vadd.xlane.f32.xlu0 %v9783
        %v9785 = vpop.xlane.xlu0 %9784
        %v9786 = vsel %vm493, %v9691, 0.0
        %9787 = vadd.xlane.f32.xlu0 %v9786
        %v9788 = vpop.xlane.xlu0 %9787
        %v9789 = vsel %vm493, %v9694, 0.0
        %9790 = vadd.xlane.f32.xlu0 %v9789
        %v9791 = vpop.xlane.xlu0 %9790
        %v9792 = vsel %vm493, %v9697, 0.0
        %9793 = vadd.xlane.f32.xlu0 %v9792
        %v9794 = vpop.xlane.xlu0 %9793
        %v9795 = vmul.f32 %v9604, %v9604
        %v9796 = vmul.f32 %v9607, %v9607
        %v9797 = vmul.f32 %v9610, %v9610
        %v9798 = vmul.f32 %v9613, %v9613
        %v9799 = vmul.f32 %v9616, %v9616
        %v9800 = vmul.f32 %v9619, %v9619
        %v9801 = vmul.f32 %v9622, %v9622
        %v9802 = vmul.f32 %v9625, %v9625
        %v9803 = vmul.f32 %v9628, %v9628
        %v9804 = vmul.f32 %v9631, %v9631
        %v9805 = vmul.f32 %v9634, %v9634
        %v9806 = vmul.f32 %v9637, %v9637
        %v9807 = vmul.f32 %v9640, %v9640
        %v9808 = vmul.f32 %v9643, %v9643
        %v9809 = vmul.f32 %v9646, %v9646
        %v9810 = vmul.f32 %v9649, %v9649
        %v9811 = vmul.f32 %v9652, %v9652
        %v9812 = vmul.f32 %v9655, %v9655
        %v9813 = vmul.f32 %v9658, %v9658
        %v9814 = vmul.f32 %v9661, %v9661
        %v9815 = vmul.f32 %v9664, %v9664
        %v9816 = vmul.f32 %v9667, %v9667
        %v9817 = vmul.f32 %v9670, %v9670
        %v9818 = vmul.f32 %v9673, %v9673
        %v9819 = vmul.f32 %v9676, %v9676
        %v9820 = vmul.f32 %v9679, %v9679
        %v9821 = vmul.f32 %v9682, %v9682
        %v9822 = vmul.f32 %v9685, %v9685
        %v9823 = vmul.f32 %v9688, %v9688
        %v9824 = vmul.f32 %v9691, %v9691
        %v9825 = vmul.f32 %v9694, %v9694
        %v9826 = vmul.f32 %v9697, %v9697
        %v9827 = vsel %vm493, %v9795, 0.0
        %9828 = vadd.xlane.f32.xlu0 %v9827
        %v9829 = vpop.xlane.xlu0 %9828
        %v9830 = vsel %vm493, %v9796, 0.0
        %9831 = vadd.xlane.f32.xlu0 %v9830
        %v9832 = vpop.xlane.xlu0 %9831
        %v9833 = vsel %vm493, %v9797, 0.0
        %9834 = vadd.xlane.f32.xlu0 %v9833
        %v9835 = vpop.xlane.xlu0 %9834
        %v9836 = vsel %vm493, %v9798, 0.0
        %9837 = vadd.xlane.f32.xlu0 %v9836
        %v9838 = vpop.xlane.xlu0 %9837
        %v9839 = vsel %vm493, %v9799, 0.0
        %9840 = vadd.xlane.f32.xlu0 %v9839
        %v9841 = vpop.xlane.xlu0 %9840
        %v9842 = vsel %vm493, %v9800, 0.0
        %9843 = vadd.xlane.f32.xlu0 %v9842
        %v9844 = vpop.xlane.xlu0 %9843
        %v9845 = vsel %vm493, %v9801, 0.0
        %9846 = vadd.xlane.f32.xlu0 %v9845
        %v9847 = vpop.xlane.xlu0 %9846
        %v9848 = vsel %vm493, %v9802, 0.0
        %9849 = vadd.xlane.f32.xlu0 %v9848
        %v9850 = vpop.xlane.xlu0 %9849
        %v9851 = vsel %vm493, %v9803, 0.0
        %9852 = vadd.xlane.f32.xlu0 %v9851
        %v9853 = vpop.xlane.xlu0 %9852
        %v9854 = vsel %vm493, %v9804, 0.0
        %9855 = vadd.xlane.f32.xlu0 %v9854
        %v9856 = vpop.xlane.xlu0 %9855
        %v9857 = vsel %vm493, %v9805, 0.0
        %9858 = vadd.xlane.f32.xlu0 %v9857
        %v9859 = vpop.xlane.xlu0 %9858
        %v9860 = vsel %vm493, %v9806, 0.0
        %9861 = vadd.xlane.f32.xlu0 %v9860
        %v9862 = vpop.xlane.xlu0 %9861
        %v9863 = vsel %vm493, %v9807, 0.0
        %9864 = vadd.xlane.f32.xlu0 %v9863
        %v9865 = vpop.xlane.xlu0 %9864
        %v9866 = vsel %vm493, %v9808, 0.0
        %9867 = vadd.xlane.f32.xlu0 %v9866
        %v9868 = vpop.xlane.xlu0 %9867
        %v9869 = vsel %vm493, %v9809, 0.0
        %9870 = vadd.xlane.f32.xlu0 %v9869
        %v9871 = vpop.xlane.xlu0 %9870
        %v9872 = vsel %vm493, %v9810, 0.0
        %9873 = vadd.xlane.f32.xlu0 %v9872
        %v9874 = vpop.xlane.xlu0 %9873
        %v9875 = vsel %vm493, %v9811, 0.0
        %9876 = vadd.xlane.f32.xlu0 %v9875
        %v9877 = vpop.xlane.xlu0 %9876
        %v9878 = vsel %vm493, %v9812, 0.0
        %9879 = vadd.xlane.f32.xlu0 %v9878
        %v9880 = vpop.xlane.xlu0 %9879
        %v9881 = vsel %vm493, %v9813, 0.0
        %9882 = vadd.xlane.f32.xlu0 %v9881
        %v9883 = vpop.xlane.xlu0 %9882
        %v9884 = vsel %vm493, %v9814, 0.0
        %9885 = vadd.xlane.f32.xlu0 %v9884
        %v9886 = vpop.xlane.xlu0 %9885
        %v9887 = vsel %vm493, %v9815, 0.0
        %9888 = vadd.xlane.f32.xlu0 %v9887
        %v9889 = vpop.xlane.xlu0 %9888
        %v9890 = vsel %vm493, %v9816, 0.0
        %9891 = vadd.xlane.f32.xlu0 %v9890
        %v9892 = vpop.xlane.xlu0 %9891
        %v9893 = vsel %vm493, %v9817, 0.0
        %9894 = vadd.xlane.f32.xlu0 %v9893
        %v9895 = vpop.xlane.xlu0 %9894
        %v9896 = vsel %vm493, %v9818, 0.0
        %9897 = vadd.xlane.f32.xlu0 %v9896
        %v9898 = vpop.xlane.xlu0 %9897
        %v9899 = vsel %vm493, %v9819, 0.0
        %9900 = vadd.xlane.f32.xlu0 %v9899
        %v9901 = vpop.xlane.xlu0 %9900
        %v9902 = vsel %vm493, %v9820, 0.0
        %9903 = vadd.xlane.f32.xlu0 %v9902
        %v9904 = vpop.xlane.xlu0 %9903
        %v9905 = vsel %vm493, %v9821, 0.0
        %9906 = vadd.xlane.f32.xlu0 %v9905
        %v9907 = vpop.xlane.xlu0 %9906
        %v9908 = vsel %vm493, %v9822, 0.0
        %9909 = vadd.xlane.f32.xlu0 %v9908
        %v9910 = vpop.xlane.xlu0 %9909
        %v9911 = vsel %vm493, %v9823, 0.0
        %9912 = vadd.xlane.f32.xlu0 %v9911
        %v9913 = vpop.xlane.xlu0 %9912
        %v9914 = vsel %vm493, %v9824, 0.0
        %9915 = vadd.xlane.f32.xlu0 %v9914
        %v9916 = vpop.xlane.xlu0 %9915
        %v9917 = vsel %vm493, %v9825, 0.0
        %9918 = vadd.xlane.f32.xlu0 %v9917
        %v9919 = vpop.xlane.xlu0 %9918
        %v9920 = vsel %vm493, %v9826, 0.0
        %9921 = vadd.xlane.f32.xlu0 %v9920
        %v9922 = vpop.xlane.xlu0 %9921
        %v9923 = vmul.f32 %v9701, 0.03125
        %v9924 = vmul.f32 %v9704, 0.03125
        %v9925 = vmul.f32 %v9707, 0.03125
        %v9926 = vmul.f32 %v9710, 0.03125
        %v9927 = vmul.f32 %v9713, 0.03125
        %v9928 = vmul.f32 %v9716, 0.03125
        %v9929 = vmul.f32 %v9719, 0.03125
        %v9930 = vmul.f32 %v9722, 0.03125
        %v9931 = vmul.f32 %v9725, 0.03125
        %v9932 = vmul.f32 %v9728, 0.03125
        %v9933 = vmul.f32 %v9731, 0.03125
        %v9934 = vmul.f32 %v9734, 0.03125
        %v9935 = vmul.f32 %v9737, 0.03125
        %v9936 = vmul.f32 %v9740, 0.03125
        %v9937 = vmul.f32 %v9743, 0.03125
        %v9938 = vmul.f32 %v9746, 0.03125
        %v9939 = vmul.f32 %v9749, 0.03125
        %v9940 = vmul.f32 %v9752, 0.03125
        %v9941 = vmul.f32 %v9755, 0.03125
        %v9942 = vmul.f32 %v9758, 0.03125
        %v9943 = vmul.f32 %v9761, 0.03125
        %v9944 = vmul.f32 %v9764, 0.03125
        %v9945 = vmul.f32 %v9767, 0.03125
        %v9946 = vmul.f32 %v9770, 0.03125
        %v9947 = vmul.f32 %v9773, 0.03125
        %v9948 = vmul.f32 %v9776, 0.03125
        %v9949 = vmul.f32 %v9779, 0.03125
        %v9950 = vmul.f32 %v9782, 0.03125
        %v9951 = vmul.f32 %v9785, 0.03125
        %v9952 = vmul.f32 %v9788, 0.03125
        %v9953 = vmul.f32 %v9791, 0.03125
        %v9954 = vmul.f32 %v9794, 0.03125
        %v9955 = vmul.f32 %v9829, 0.03125
        %v9956 = vmul.f32 %v9832, 0.03125
        %v9957 = vmul.f32 %v9835, 0.03125
        %v9958 = vmul.f32 %v9838, 0.03125
        %v9959 = vmul.f32 %v9841, 0.03125
        %v9960 = vmul.f32 %v9844, 0.03125
        %v9961 = vmul.f32 %v9847, 0.03125
        %v9962 = vmul.f32 %v9850, 0.03125
        %v9963 = vmul.f32 %v9853, 0.03125
        %v9964 = vmul.f32 %v9856, 0.03125
        %v9965 = vmul.f32 %v9859, 0.03125
        %v9966 = vmul.f32 %v9862, 0.03125
        %v9967 = vmul.f32 %v9865, 0.03125
        %v9968 = vmul.f32 %v9868, 0.03125
        %v9969 = vmul.f32 %v9871, 0.03125
        %v9970 = vmul.f32 %v9874, 0.03125
        %v9971 = vmul.f32 %v9877, 0.03125
        %v9972 = vmul.f32 %v9880, 0.03125
        %v9973 = vmul.f32 %v9883, 0.03125
        %v9974 = vmul.f32 %v9886, 0.03125
        %v9975 = vmul.f32 %v9889, 0.03125
        %v9976 = vmul.f32 %v9892, 0.03125
        %v9977 = vmul.f32 %v9895, 0.03125
        %v9978 = vmul.f32 %v9898, 0.03125
        %v9979 = vmul.f32 %v9901, 0.03125
        %v9980 = vmul.f32 %v9904, 0.03125
        %v9981 = vmul.f32 %v9907, 0.03125
        %v9982 = vmul.f32 %v9910, 0.03125
        %v9983 = vmul.f32 %v9913, 0.03125
        %v9984 = vmul.f32 %v9916, 0.03125
        %v9985 = vmul.f32 %v9919, 0.03125
        %v9986 = vmul.f32 %v9922, 0.03125
        %v9987 = vmul.f32 %v9923, %v9923
        %v9988 = vmul.f32 %v9924, %v9924
        %v9989 = vmul.f32 %v9925, %v9925
        %v9990 = vmul.f32 %v9926, %v9926
        %v9991 = vmul.f32 %v9927, %v9927
        %v9992 = vmul.f32 %v9928, %v9928
        %v9993 = vmul.f32 %v9929, %v9929
        %v9994 = vmul.f32 %v9930, %v9930
        %v9995 = vmul.f32 %v9931, %v9931
        %v9996 = vmul.f32 %v9932, %v9932
        %v9997 = vmul.f32 %v9933, %v9933
        %v9998 = vmul.f32 %v9934, %v9934
        %v9999 = vmul.f32 %v9935, %v9935
        %v10000 = vmul.f32 %v9936, %v9936
        %v10001 = vmul.f32 %v9937, %v9937
        %v10002 = vmul.f32 %v9938, %v9938
        %v10003 = vmul.f32 %v9939, %v9939
        %v10004 = vmul.f32 %v9940, %v9940
        %v10005 = vmul.f32 %v9941, %v9941
        %v10006 = vmul.f32 %v9942, %v9942
        %v10007 = vmul.f32 %v9943, %v9943
        %v10008 = vmul.f32 %v9944, %v9944
        %v10009 = vmul.f32 %v9945, %v9945
        %v10010 = vmul.f32 %v9946, %v9946
        %v10011 = vmul.f32 %v9947, %v9947
        %v10012 = vmul.f32 %v9948, %v9948
        %v10013 = vmul.f32 %v9949, %v9949
        %v10014 = vmul.f32 %v9950, %v9950
        %v10015 = vmul.f32 %v9951, %v9951
        %v10016 = vmul.f32 %v9952, %v9952
        %v10017 = vmul.f32 %v9953, %v9953
        %v10018 = vmul.f32 %v9954, %v9954
        %v10019 = vsub.f32 %v9955, %v9987
        %v10020 = vsub.f32 %v9956, %v9988
        %v10021 = vsub.f32 %v9957, %v9989
        %v10022 = vsub.f32 %v9958, %v9990
        %v10023 = vsub.f32 %v9959, %v9991
        %v10024 = vsub.f32 %v9960, %v9992
        %v10025 = vsub.f32 %v9961, %v9993
        %v10026 = vsub.f32 %v9962, %v9994
        %v10027 = vsub.f32 %v9963, %v9995
        %v10028 = vsub.f32 %v9964, %v9996
        %v10029 = vsub.f32 %v9965, %v9997
        %v10030 = vsub.f32 %v9966, %v9998
        %v10031 = vsub.f32 %v9967, %v9999
        %v10032 = vsub.f32 %v9968, %v10000
        %v10033 = vsub.f32 %v9969, %v10001
        %v10034 = vsub.f32 %v9970, %v10002
        %v10035 = vsub.f32 %v9971, %v10003
        %v10036 = vsub.f32 %v9972, %v10004
        %v10037 = vsub.f32 %v9973, %v10005
        %v10038 = vsub.f32 %v9974, %v10006
        %v10039 = vsub.f32 %v9975, %v10007
        %v10040 = vsub.f32 %v9976, %v10008
        %v10041 = vsub.f32 %v9977, %v10009
        %v10042 = vsub.f32 %v9978, %v10010
        %v10043 = vsub.f32 %v9979, %v10011
        %v10044 = vsub.f32 %v9980, %v10012
        %v10045 = vsub.f32 %v9981, %v10013
        %v10046 = vsub.f32 %v9982, %v10014
        %v10047 = vsub.f32 %v9983, %v10015
        %v10048 = vsub.f32 %v9984, %v10016
        %v10049 = vsub.f32 %v9985, %v10017
        %v10050 = vsub.f32 %v9986, %v10018
        %v10051 = vmax.f32 %v10019, 0.0
        %v10052 = vmax.f32 %v10020, 0.0
        %v10053 = vmax.f32 %v10021, 0.0
        %v10054 = vmax.f32 %v10022, 0.0
        %v10055 = vmax.f32 %v10023, 0.0
        %v10056 = vmax.f32 %v10024, 0.0
        %v10057 = vmax.f32 %v10025, 0.0
        %v10058 = vmax.f32 %v10026, 0.0
        %v10059 = vmax.f32 %v10027, 0.0
        %v10060 = vmax.f32 %v10028, 0.0
        %v10061 = vmax.f32 %v10029, 0.0
        %v10062 = vmax.f32 %v10030, 0.0
        %v10063 = vmax.f32 %v10031, 0.0
        %v10064 = vmax.f32 %v10032, 0.0
        %v10065 = vmax.f32 %v10033, 0.0
        %v10066 = vmax.f32 %v10034, 0.0
        %v10067 = vmax.f32 %v10035, 0.0
        %v10068 = vmax.f32 %v10036, 0.0
        %v10069 = vmax.f32 %v10037, 0.0
        %v10070 = vmax.f32 %v10038, 0.0
        %v10071 = vmax.f32 %v10039, 0.0
        %v10072 = vmax.f32 %v10040, 0.0
        %v10073 = vmax.f32 %v10041, 0.0
        %v10074 = vmax.f32 %v10042, 0.0
        %v10075 = vmax.f32 %v10043, 0.0
        %v10076 = vmax.f32 %v10044, 0.0
        %v10077 = vmax.f32 %v10045, 0.0
        %v10078 = vmax.f32 %v10046, 0.0
        %v10079 = vmax.f32 %v10047, 0.0
        %v10080 = vmax.f32 %v10048, 0.0
        %v10081 = vmax.f32 %v10049, 0.0
        %v10082 = vmax.f32 %v10050, 0.0
        %v10083 = vsub.f32 %v9604, %v9923
        %v10084 = vsub.f32 %v9607, %v9924
        %v10085 = vsub.f32 %v9610, %v9925
        %v10086 = vsub.f32 %v9613, %v9926
        %v10087 = vsub.f32 %v9616, %v9927
        %v10088 = vsub.f32 %v9619, %v9928
        %v10089 = vsub.f32 %v9622, %v9929
        %v10090 = vsub.f32 %v9625, %v9930
        %v10091 = vsub.f32 %v9628, %v9931
        %v10092 = vsub.f32 %v9631, %v9932
        %v10093 = vsub.f32 %v9634, %v9933
        %v10094 = vsub.f32 %v9637, %v9934
        %v10095 = vsub.f32 %v9640, %v9935
        %v10096 = vsub.f32 %v9643, %v9936
        %v10097 = vsub.f32 %v9646, %v9937
        %v10098 = vsub.f32 %v9649, %v9938
        %v10099 = vsub.f32 %v9652, %v9939
        %v10100 = vsub.f32 %v9655, %v9940
        %v10101 = vsub.f32 %v9658, %v9941
        %v10102 = vsub.f32 %v9661, %v9942
        %v10103 = vsub.f32 %v9664, %v9943
        %v10104 = vsub.f32 %v9667, %v9944
        %v10105 = vsub.f32 %v9670, %v9945
        %v10106 = vsub.f32 %v9673, %v9946
        %v10107 = vsub.f32 %v9676, %v9947
        %v10108 = vsub.f32 %v9679, %v9948
        %v10109 = vsub.f32 %v9682, %v9949
        %v10110 = vsub.f32 %v9685, %v9950
        %v10111 = vsub.f32 %v9688, %v9951
        %v10112 = vsub.f32 %v9691, %v9952
        %v10113 = vsub.f32 %v9694, %v9953
        %v10114 = vsub.f32 %v9697, %v9954
        %v10115 = vadd.f32 %v10051, 1e-05
        %v10116 = vadd.f32 %v10052, 1e-05
        %v10117 = vadd.f32 %v10053, 1e-05
        %v10118 = vadd.f32 %v10054, 1e-05
        %v10119 = vadd.f32 %v10055, 1e-05
        %v10120 = vadd.f32 %v10056, 1e-05
        %v10121 = vadd.f32 %v10057, 1e-05
        %v10122 = vadd.f32 %v10058, 1e-05
        %v10123 = vadd.f32 %v10059, 1e-05
        %v10124 = vadd.f32 %v10060, 1e-05
        %v10125 = vadd.f32 %v10061, 1e-05
        %v10126 = vadd.f32 %v10062, 1e-05
        %v10127 = vadd.f32 %v10063, 1e-05
        %v10128 = vadd.f32 %v10064, 1e-05
        %v10129 = vadd.f32 %v10065, 1e-05
        %v10130 = vadd.f32 %v10066, 1e-05
        %v10131 = vadd.f32 %v10067, 1e-05
        %v10132 = vadd.f32 %v10068, 1e-05
        %v10133 = vadd.f32 %v10069, 1e-05
        %v10134 = vadd.f32 %v10070, 1e-05
        %v10135 = vadd.f32 %v10071, 1e-05
        %v10136 = vadd.f32 %v10072, 1e-05
        %v10137 = vadd.f32 %v10073, 1e-05
        %v10138 = vadd.f32 %v10074, 1e-05
        %v10139 = vadd.f32 %v10075, 1e-05
        %v10140 = vadd.f32 %v10076, 1e-05
        %v10141 = vadd.f32 %v10077, 1e-05
        %v10142 = vadd.f32 %v10078, 1e-05
        %v10143 = vadd.f32 %v10079, 1e-05
        %v10144 = vadd.f32 %v10080, 1e-05
        %v10145 = vadd.f32 %v10081, 1e-05
        %v10146 = vadd.f32 %v10082, 1e-05
        %v10147 = vrsqrt.pop %v10115
        %v10148 = vmul.f32 %v10147, %v10115
        %v10149 = vmul.f32 %v10148, %v10147
        %v10150 = vmul.f32 0.5, %v10149
        %v10151 = vsub.f32 1.5, %v10150
        %v10152 = vmul.f32 %v10147, %v10151
        %vm10153 = vweird.f32 %v10115
        %vm10154 = vweird.f32 %v10147
        %vm10155 = vmor %vm10153, %vm10154
        %v10156 = vsel %vm10155, %v10147, %v10152
        %v10157 = vrsqrt.pop %v10116
        %v10158 = vmul.f32 %v10157, %v10116
        %v10159 = vmul.f32 %v10158, %v10157
        %v10160 = vmul.f32 0.5, %v10159
        %v10161 = vsub.f32 1.5, %v10160
        %v10162 = vmul.f32 %v10157, %v10161
        %vm10163 = vweird.f32 %v10116
        %vm10164 = vweird.f32 %v10157
        %vm10165 = vmor %vm10163, %vm10164
        %v10166 = vsel %vm10165, %v10157, %v10162
        %v10167 = vrsqrt.pop %v10117
        %v10168 = vmul.f32 %v10167, %v10117
        %v10169 = vmul.f32 %v10168, %v10167
        %v10170 = vmul.f32 0.5, %v10169
        %v10171 = vsub.f32 1.5, %v10170
        %v10172 = vmul.f32 %v10167, %v10171
        %vm10173 = vweird.f32 %v10117
        %vm10174 = vweird.f32 %v10167
        %vm10175 = vmor %vm10173, %vm10174
        %v10176 = vsel %vm10175, %v10167, %v10172
        %v10177 = vrsqrt.pop %v10118
        %v10178 = vmul.f32 %v10177, %v10118
        %v10179 = vmul.f32 %v10178, %v10177
        %v10180 = vmul.f32 0.5, %v10179
        %v10181 = vsub.f32 1.5, %v10180
        %v10182 = vmul.f32 %v10177, %v10181
        %vm10183 = vweird.f32 %v10118
        %vm10184 = vweird.f32 %v10177
        %vm10185 = vmor %vm10183, %vm10184
        %v10186 = vsel %vm10185, %v10177, %v10182
        %v10187 = vrsqrt.pop %v10119
        %v10188 = vmul.f32 %v10187, %v10119
        %v10189 = vmul.f32 %v10188, %v10187
        %v10190 = vmul.f32 0.5, %v10189
        %v10191 = vsub.f32 1.5, %v10190
        %v10192 = vmul.f32 %v10187, %v10191
        %vm10193 = vweird.f32 %v10119
        %vm10194 = vweird.f32 %v10187
        %vm10195 = vmor %vm10193, %vm10194
        %v10196 = vsel %vm10195, %v10187, %v10192
        %v10197 = vrsqrt.pop %v10120
        %v10198 = vmul.f32 %v10197, %v10120
        %v10199 = vmul.f32 %v10198, %v10197
        %v10200 = vmul.f32 0.5, %v10199
        %v10201 = vsub.f32 1.5, %v10200
        %v10202 = vmul.f32 %v10197, %v10201
        %vm10203 = vweird.f32 %v10120
        %vm10204 = vweird.f32 %v10197
        %vm10205 = vmor %vm10203, %vm10204
        %v10206 = vsel %vm10205, %v10197, %v10202
        %v10207 = vrsqrt.pop %v10121
        %v10208 = vmul.f32 %v10207, %v10121
        %v10209 = vmul.f32 %v10208, %v10207
        %v10210 = vmul.f32 0.5, %v10209
        %v10211 = vsub.f32 1.5, %v10210
        %v10212 = vmul.f32 %v10207, %v10211
        %vm10213 = vweird.f32 %v10121
        %vm10214 = vweird.f32 %v10207
        %vm10215 = vmor %vm10213, %vm10214
        %v10216 = vsel %vm10215, %v10207, %v10212
        %v10217 = vrsqrt.pop %v10122
        %v10218 = vmul.f32 %v10217, %v10122
        %v10219 = vmul.f32 %v10218, %v10217
        %v10220 = vmul.f32 0.5, %v10219
        %v10221 = vsub.f32 1.5, %v10220
        %v10222 = vmul.f32 %v10217, %v10221
        %vm10223 = vweird.f32 %v10122
        %vm10224 = vweird.f32 %v10217
        %vm10225 = vmor %vm10223, %vm10224
        %v10226 = vsel %vm10225, %v10217, %v10222
        %v10227 = vrsqrt.pop %v10123
        %v10228 = vmul.f32 %v10227, %v10123
        %v10229 = vmul.f32 %v10228, %v10227
        %v10230 = vmul.f32 0.5, %v10229
        %v10231 = vsub.f32 1.5, %v10230
        %v10232 = vmul.f32 %v10227, %v10231
        %vm10233 = vweird.f32 %v10123
        %vm10234 = vweird.f32 %v10227
        %vm10235 = vmor %vm10233, %vm10234
        %v10236 = vsel %vm10235, %v10227, %v10232
        %v10237 = vrsqrt.pop %v10124
        %v10238 = vmul.f32 %v10237, %v10124
        %v10239 = vmul.f32 %v10238, %v10237
        %v10240 = vmul.f32 0.5, %v10239
        %v10241 = vsub.f32 1.5, %v10240
        %v10242 = vmul.f32 %v10237, %v10241
        %vm10243 = vweird.f32 %v10124
        %vm10244 = vweird.f32 %v10237
        %vm10245 = vmor %vm10243, %vm10244
        %v10246 = vsel %vm10245, %v10237, %v10242
        %v10247 = vrsqrt.pop %v10125
        %v10248 = vmul.f32 %v10247, %v10125
        %v10249 = vmul.f32 %v10248, %v10247
        %v10250 = vmul.f32 0.5, %v10249
        %v10251 = vsub.f32 1.5, %v10250
        %v10252 = vmul.f32 %v10247, %v10251
        %vm10253 = vweird.f32 %v10125
        %vm10254 = vweird.f32 %v10247
        %vm10255 = vmor %vm10253, %vm10254
        %v10256 = vsel %vm10255, %v10247, %v10252
        %v10257 = vrsqrt.pop %v10126
        %v10258 = vmul.f32 %v10257, %v10126
        %v10259 = vmul.f32 %v10258, %v10257
        %v10260 = vmul.f32 0.5, %v10259
        %v10261 = vsub.f32 1.5, %v10260
        %v10262 = vmul.f32 %v10257, %v10261
        %vm10263 = vweird.f32 %v10126
        %vm10264 = vweird.f32 %v10257
        %vm10265 = vmor %vm10263, %vm10264
        %v10266 = vsel %vm10265, %v10257, %v10262
        %v10267 = vrsqrt.pop %v10127
        %v10268 = vmul.f32 %v10267, %v10127
        %v10269 = vmul.f32 %v10268, %v10267
        %v10270 = vmul.f32 0.5, %v10269
        %v10271 = vsub.f32 1.5, %v10270
        %v10272 = vmul.f32 %v10267, %v10271
        %vm10273 = vweird.f32 %v10127
        %vm10274 = vweird.f32 %v10267
        %vm10275 = vmor %vm10273, %vm10274
        %v10276 = vsel %vm10275, %v10267, %v10272
        %v10277 = vrsqrt.pop %v10128
        %v10278 = vmul.f32 %v10277, %v10128
        %v10279 = vmul.f32 %v10278, %v10277
        %v10280 = vmul.f32 0.5, %v10279
        %v10281 = vsub.f32 1.5, %v10280
        %v10282 = vmul.f32 %v10277, %v10281
        %vm10283 = vweird.f32 %v10128
        %vm10284 = vweird.f32 %v10277
        %vm10285 = vmor %vm10283, %vm10284
        %v10286 = vsel %vm10285, %v10277, %v10282
        %v10287 = vrsqrt.pop %v10129
        %v10288 = vmul.f32 %v10287, %v10129
        %v10289 = vmul.f32 %v10288, %v10287
        %v10290 = vmul.f32 0.5, %v10289
        %v10291 = vsub.f32 1.5, %v10290
        %v10292 = vmul.f32 %v10287, %v10291
        %vm10293 = vweird.f32 %v10129
        %vm10294 = vweird.f32 %v10287
        %vm10295 = vmor %vm10293, %vm10294
        %v10296 = vsel %vm10295, %v10287, %v10292
        %v10297 = vrsqrt.pop %v10130
        %v10298 = vmul.f32 %v10297, %v10130
        %v10299 = vmul.f32 %v10298, %v10297
        %v10300 = vmul.f32 0.5, %v10299
        %v10301 = vsub.f32 1.5, %v10300
        %v10302 = vmul.f32 %v10297, %v10301
        %vm10303 = vweird.f32 %v10130
        %vm10304 = vweird.f32 %v10297
        %vm10305 = vmor %vm10303, %vm10304
        %v10306 = vsel %vm10305, %v10297, %v10302
        %v10307 = vrsqrt.pop %v10131
        %v10308 = vmul.f32 %v10307, %v10131
        %v10309 = vmul.f32 %v10308, %v10307
        %v10310 = vmul.f32 0.5, %v10309
        %v10311 = vsub.f32 1.5, %v10310
        %v10312 = vmul.f32 %v10307, %v10311
        %vm10313 = vweird.f32 %v10131
        %vm10314 = vweird.f32 %v10307
        %vm10315 = vmor %vm10313, %vm10314
        %v10316 = vsel %vm10315, %v10307, %v10312
        %v10317 = vrsqrt.pop %v10132
        %v10318 = vmul.f32 %v10317, %v10132
        %v10319 = vmul.f32 %v10318, %v10317
        %v10320 = vmul.f32 0.5, %v10319
        %v10321 = vsub.f32 1.5, %v10320
        %v10322 = vmul.f32 %v10317, %v10321
        %vm10323 = vweird.f32 %v10132
        %vm10324 = vweird.f32 %v10317
        %vm10325 = vmor %vm10323, %vm10324
        %v10326 = vsel %vm10325, %v10317, %v10322
        %v10327 = vrsqrt.pop %v10133
        %v10328 = vmul.f32 %v10327, %v10133
        %v10329 = vmul.f32 %v10328, %v10327
        %v10330 = vmul.f32 0.5, %v10329
        %v10331 = vsub.f32 1.5, %v10330
        %v10332 = vmul.f32 %v10327, %v10331
        %vm10333 = vweird.f32 %v10133
        %vm10334 = vweird.f32 %v10327
        %vm10335 = vmor %vm10333, %vm10334
        %v10336 = vsel %vm10335, %v10327, %v10332
        %v10337 = vrsqrt.pop %v10134
        %v10338 = vmul.f32 %v10337, %v10134
        %v10339 = vmul.f32 %v10338, %v10337
        %v10340 = vmul.f32 0.5, %v10339
        %v10341 = vsub.f32 1.5, %v10340
        %v10342 = vmul.f32 %v10337, %v10341
        %vm10343 = vweird.f32 %v10134
        %vm10344 = vweird.f32 %v10337
        %vm10345 = vmor %vm10343, %vm10344
        %v10346 = vsel %vm10345, %v10337, %v10342
        %v10347 = vrsqrt.pop %v10135
        %v10348 = vmul.f32 %v10347, %v10135
        %v10349 = vmul.f32 %v10348, %v10347
        %v10350 = vmul.f32 0.5, %v10349
        %v10351 = vsub.f32 1.5, %v10350
        %v10352 = vmul.f32 %v10347, %v10351
        %vm10353 = vweird.f32 %v10135
        %vm10354 = vweird.f32 %v10347
        %vm10355 = vmor %vm10353, %vm10354
        %v10356 = vsel %vm10355, %v10347, %v10352
        %v10357 = vrsqrt.pop %v10136
        %v10358 = vmul.f32 %v10357, %v10136
        %v10359 = vmul.f32 %v10358, %v10357
        %v10360 = vmul.f32 0.5, %v10359
        %v10361 = vsub.f32 1.5, %v10360
        %v10362 = vmul.f32 %v10357, %v10361
        %vm10363 = vweird.f32 %v10136
        %vm10364 = vweird.f32 %v10357
        %vm10365 = vmor %vm10363, %vm10364
        %v10366 = vsel %vm10365, %v10357, %v10362
        %v10367 = vrsqrt.pop %v10137
        %v10368 = vmul.f32 %v10367, %v10137
        %v10369 = vmul.f32 %v10368, %v10367
        %v10370 = vmul.f32 0.5, %v10369
        %v10371 = vsub.f32 1.5, %v10370
        %v10372 = vmul.f32 %v10367, %v10371
        %vm10373 = vweird.f32 %v10137
        %vm10374 = vweird.f32 %v10367
        %vm10375 = vmor %vm10373, %vm10374
        %v10376 = vsel %vm10375, %v10367, %v10372
        %v10377 = vrsqrt.pop %v10138
        %v10378 = vmul.f32 %v10377, %v10138
        %v10379 = vmul.f32 %v10378, %v10377
        %v10380 = vmul.f32 0.5, %v10379
        %v10381 = vsub.f32 1.5, %v10380
        %v10382 = vmul.f32 %v10377, %v10381
        %vm10383 = vweird.f32 %v10138
        %vm10384 = vweird.f32 %v10377
        %vm10385 = vmor %vm10383, %vm10384
        %v10386 = vsel %vm10385, %v10377, %v10382
        %v10387 = vrsqrt.pop %v10139
        %v10388 = vmul.f32 %v10387, %v10139
        %v10389 = vmul.f32 %v10388, %v10387
        %v10390 = vmul.f32 0.5, %v10389
        %v10391 = vsub.f32 1.5, %v10390
        %v10392 = vmul.f32 %v10387, %v10391
        %vm10393 = vweird.f32 %v10139
        %vm10394 = vweird.f32 %v10387
        %vm10395 = vmor %vm10393, %vm10394
        %v10396 = vsel %vm10395, %v10387, %v10392
        %v10397 = vrsqrt.pop %v10140
        %v10398 = vmul.f32 %v10397, %v10140
        %v10399 = vmul.f32 %v10398, %v10397
        %v10400 = vmul.f32 0.5, %v10399
        %v10401 = vsub.f32 1.5, %v10400
        %v10402 = vmul.f32 %v10397, %v10401
        %vm10403 = vweird.f32 %v10140
        %vm10404 = vweird.f32 %v10397
        %vm10405 = vmor %vm10403, %vm10404
        %v10406 = vsel %vm10405, %v10397, %v10402
        %v10407 = vrsqrt.pop %v10141
        %v10408 = vmul.f32 %v10407, %v10141
        %v10409 = vmul.f32 %v10408, %v10407
        %v10410 = vmul.f32 0.5, %v10409
        %v10411 = vsub.f32 1.5, %v10410
        %v10412 = vmul.f32 %v10407, %v10411
        %vm10413 = vweird.f32 %v10141
        %vm10414 = vweird.f32 %v10407
        %vm10415 = vmor %vm10413, %vm10414
        %v10416 = vsel %vm10415, %v10407, %v10412
        %v10417 = vrsqrt.pop %v10142
        %v10418 = vmul.f32 %v10417, %v10142
        %v10419 = vmul.f32 %v10418, %v10417
        %v10420 = vmul.f32 0.5, %v10419
        %v10421 = vsub.f32 1.5, %v10420
        %v10422 = vmul.f32 %v10417, %v10421
        %vm10423 = vweird.f32 %v10142
        %vm10424 = vweird.f32 %v10417
        %vm10425 = vmor %vm10423, %vm10424
        %v10426 = vsel %vm10425, %v10417, %v10422
        %v10427 = vrsqrt.pop %v10143
        %v10428 = vmul.f32 %v10427, %v10143
        %v10429 = vmul.f32 %v10428, %v10427
        %v10430 = vmul.f32 0.5, %v10429
        %v10431 = vsub.f32 1.5, %v10430
        %v10432 = vmul.f32 %v10427, %v10431
        %vm10433 = vweird.f32 %v10143
        %vm10434 = vweird.f32 %v10427
        %vm10435 = vmor %vm10433, %vm10434
        %v10436 = vsel %vm10435, %v10427, %v10432
        %v10437 = vrsqrt.pop %v10144
        %v10438 = vmul.f32 %v10437, %v10144
        %v10439 = vmul.f32 %v10438, %v10437
        %v10440 = vmul.f32 0.5, %v10439
        %v10441 = vsub.f32 1.5, %v10440
        %v10442 = vmul.f32 %v10437, %v10441
        %vm10443 = vweird.f32 %v10144
        %vm10444 = vweird.f32 %v10437
        %vm10445 = vmor %vm10443, %vm10444
        %v10446 = vsel %vm10445, %v10437, %v10442
        %v10447 = vrsqrt.pop %v10145
        %v10448 = vmul.f32 %v10447, %v10145
        %v10449 = vmul.f32 %v10448, %v10447
        %v10450 = vmul.f32 0.5, %v10449
        %v10451 = vsub.f32 1.5, %v10450
        %v10452 = vmul.f32 %v10447, %v10451
        %vm10453 = vweird.f32 %v10145
        %vm10454 = vweird.f32 %v10447
        %vm10455 = vmor %vm10453, %vm10454
        %v10456 = vsel %vm10455, %v10447, %v10452
        %v10457 = vrsqrt.pop %v10146
        %v10458 = vmul.f32 %v10457, %v10146
        %v10459 = vmul.f32 %v10458, %v10457
        %v10460 = vmul.f32 0.5, %v10459
        %v10461 = vsub.f32 1.5, %v10460
        %v10462 = vmul.f32 %v10457, %v10461
        %vm10463 = vweird.f32 %v10146
        %vm10464 = vweird.f32 %v10457
        %vm10465 = vmor %vm10463, %vm10464
        %v10466 = vsel %vm10465, %v10457, %v10462
        %v10467 = vmul.f32 %v10083, %v10156
        %v10468 = vmul.f32 %v10084, %v10166
        %v10469 = vmul.f32 %v10085, %v10176
        %v10470 = vmul.f32 %v10086, %v10186
        %v10471 = vmul.f32 %v10087, %v10196
        %v10472 = vmul.f32 %v10088, %v10206
        %v10473 = vmul.f32 %v10089, %v10216
        %v10474 = vmul.f32 %v10090, %v10226
        %v10475 = vmul.f32 %v10091, %v10236
        %v10476 = vmul.f32 %v10092, %v10246
        %v10477 = vmul.f32 %v10093, %v10256
        %v10478 = vmul.f32 %v10094, %v10266
        %v10479 = vmul.f32 %v10095, %v10276
        %v10480 = vmul.f32 %v10096, %v10286
        %v10481 = vmul.f32 %v10097, %v10296
        %v10482 = vmul.f32 %v10098, %v10306
        %v10483 = vmul.f32 %v10099, %v10316
        %v10484 = vmul.f32 %v10100, %v10326
        %v10485 = vmul.f32 %v10101, %v10336
        %v10486 = vmul.f32 %v10102, %v10346
        %v10487 = vmul.f32 %v10103, %v10356
        %v10488 = vmul.f32 %v10104, %v10366
        %v10489 = vmul.f32 %v10105, %v10376
        %v10490 = vmul.f32 %v10106, %v10386
        %v10491 = vmul.f32 %v10107, %v10396
        %v10492 = vmul.f32 %v10108, %v10406
        %v10493 = vmul.f32 %v10109, %v10416
        %v10494 = vmul.f32 %v10110, %v10426
        %v10495 = vmul.f32 %v10111, %v10436
        %v10496 = vmul.f32 %v10112, %v10446
        %v10497 = vmul.f32 %v10113, %v10456
        %v10498 = vmul.f32 %v10114, %v10466
        %v10499 = vmax.f32 %v10467, 0.0
        %v10500 = vmax.f32 %v10468, 0.0
        %v10501 = vmax.f32 %v10469, 0.0
        %v10502 = vmax.f32 %v10470, 0.0
        %v10503 = vmax.f32 %v10471, 0.0
        %v10504 = vmax.f32 %v10472, 0.0
        %v10505 = vmax.f32 %v10473, 0.0
        %v10506 = vmax.f32 %v10474, 0.0
        %v10507 = vmax.f32 %v10475, 0.0
        %v10508 = vmax.f32 %v10476, 0.0
        %v10509 = vmax.f32 %v10477, 0.0
        %v10510 = vmax.f32 %v10478, 0.0
        %v10511 = vmax.f32 %v10479, 0.0
        %v10512 = vmax.f32 %v10480, 0.0
        %v10513 = vmax.f32 %v10481, 0.0
        %v10514 = vmax.f32 %v10482, 0.0
        %v10515 = vmax.f32 %v10483, 0.0
        %v10516 = vmax.f32 %v10484, 0.0
        %v10517 = vmax.f32 %v10485, 0.0
        %v10518 = vmax.f32 %v10486, 0.0
        %v10519 = vmax.f32 %v10487, 0.0
        %v10520 = vmax.f32 %v10488, 0.0
        %v10521 = vmax.f32 %v10489, 0.0
        %v10522 = vmax.f32 %v10490, 0.0
        %v10523 = vmax.f32 %v10491, 0.0
        %v10524 = vmax.f32 %v10492, 0.0
        %v10525 = vmax.f32 %v10493, 0.0
        %v10526 = vmax.f32 %v10494, 0.0
        %v10527 = vmax.f32 %v10495, 0.0
        %v10528 = vmax.f32 %v10496, 0.0
        %v10529 = vmax.f32 %v10497, 0.0
        %v10530 = vmax.f32 %v10498, 0.0
        %s10531 = scalar_lea.vmem %s9, 64
        %v10532 = vld [vmem:[%s10531] sm:$0xff]
        %v10533 = vld [vmem:[%s10531 + $0x8] sm:$0xff]
        %v10534 = vld [vmem:[%s10531 + $0x10] sm:$0xff]
        %v10535 = vld [vmem:[%s10531 + $0x18] sm:$0xff]
        %v10536 = vperm.slane %v455, 1
        %v10538 = vsel %vm493, %v10499, 0
        %v10541 = vsel %vm493, %v10500, 0
        %v10544 = vsel %vm493, %v10501, 0
        %v10547 = vsel %vm493, %v10502, 0
        %v10550 = vsel %vm493, %v10503, 0
        %v10553 = vsel %vm493, %v10504, 0
        %v10556 = vsel %vm493, %v10505, 0
        %v10559 = vsel %vm493, %v10506, 0
        %v10562 = vsel %vm493, %v10507, 0
        %v10565 = vsel %vm493, %v10508, 0
        %v10568 = vsel %vm493, %v10509, 0
        %v10571 = vsel %vm493, %v10510, 0
        %v10574 = vsel %vm493, %v10511, 0
        %v10577 = vsel %vm493, %v10512, 0
        %v10580 = vsel %vm493, %v10513, 0
        %v10583 = vsel %vm493, %v10514, 0
        %v10586 = vsel %vm493, %v10515, 0
        %v10589 = vsel %vm493, %v10516, 0
        %v10592 = vsel %vm493, %v10517, 0
        %v10595 = vsel %vm493, %v10518, 0
        %v10598 = vsel %vm493, %v10519, 0
        %v10601 = vsel %vm493, %v10520, 0
        %v10604 = vsel %vm493, %v10521, 0
        %v10607 = vsel %vm493, %v10522, 0
        %v10610 = vsel %vm493, %v10523, 0
        %v10613 = vsel %vm493, %v10524, 0
        %v10616 = vsel %vm493, %v10525, 0
        %v10619 = vsel %vm493, %v10526, 0
        %v10622 = vsel %vm493, %v10527, 0
        %v10625 = vsel %vm493, %v10528, 0
        %v10628 = vsel %vm493, %v10529, 0
        %v10631 = vsel %vm493, %v10530, 0
        %10633 = vmatpush.msra.mxu0 0.0
        %10634 = vmatpush.msra.mxu0 0.0
        %10635 = vmatpush.msra.mxu0 0.0
        %10636 = vmatpush.msra.mxu0 0.0
        %10637 = vmatpush.msra.mxu0 0.0
        %10638 = vmatpush.msra.mxu0 0.0
        %10639 = vmatpush.msra.mxu0 0.0
        %10640 = vmatpush.msra.mxu0 0.0
        %10641 = vmatpush.msra.mxu0 0.0
        %10642 = vmatpush.msra.mxu0 0.0
        %10643 = vmatpush.msra.mxu0 0.0
        %10644 = vmatpush.msra.mxu0 0.0
        %10645 = vmatpush.msra.mxu0 %v10535
        %10646 = vmatpush.msra.mxu0 %v10534
        %10647 = vmatpush.msra.mxu0 %v10533
        %10648 = vmatpush.msra.mxu0 %v10532
        %10649 = vmatmul.f32.gmra.mxu0 %v10538
        %v10650 = vpop.f32.mrf.mxu0
        %v10651 = vadd.f32 %v10536, %v10650
        %10652 = vmatmul.f32.gmra.mxu0 %v10541
        %v10653 = vpop.f32.mrf.mxu0
        %v10654 = vadd.f32 %v10536, %v10653
        %10655 = vmatmul.f32.gmra.mxu0 %v10544
        %v10656 = vpop.f32.mrf.mxu0
        %v10657 = vadd.f32 %v10536, %v10656
        %10658 = vmatmul.f32.gmra.mxu0 %v10547
        %v10659 = vpop.f32.mrf.mxu0
        %v10660 = vadd.f32 %v10536, %v10659
        %10661 = vmatmul.f32.gmra.mxu0 %v10550
        %v10662 = vpop.f32.mrf.mxu0
        %v10663 = vadd.f32 %v10536, %v10662
        %10664 = vmatmul.f32.gmra.mxu0 %v10553
        %v10665 = vpop.f32.mrf.mxu0
        %v10666 = vadd.f32 %v10536, %v10665
        %10667 = vmatmul.f32.gmra.mxu0 %v10556
        %v10668 = vpop.f32.mrf.mxu0
        %v10669 = vadd.f32 %v10536, %v10668
        %10670 = vmatmul.f32.gmra.mxu0 %v10559
        %v10671 = vpop.f32.mrf.mxu0
        %v10672 = vadd.f32 %v10536, %v10671
        %10673 = vmatmul.f32.gmra.mxu0 %v10562
        %v10674 = vpop.f32.mrf.mxu0
        %v10675 = vadd.f32 %v10536, %v10674
        %10676 = vmatmul.f32.gmra.mxu0 %v10565
        %v10677 = vpop.f32.mrf.mxu0
        %v10678 = vadd.f32 %v10536, %v10677
        %10679 = vmatmul.f32.gmra.mxu0 %v10568
        %v10680 = vpop.f32.mrf.mxu0
        %v10681 = vadd.f32 %v10536, %v10680
        %10682 = vmatmul.f32.gmra.mxu0 %v10571
        %v10683 = vpop.f32.mrf.mxu0
        %v10684 = vadd.f32 %v10536, %v10683
        %10685 = vmatmul.f32.gmra.mxu0 %v10574
        %v10686 = vpop.f32.mrf.mxu0
        %v10687 = vadd.f32 %v10536, %v10686
        %10688 = vmatmul.f32.gmra.mxu0 %v10577
        %v10689 = vpop.f32.mrf.mxu0
        %v10690 = vadd.f32 %v10536, %v10689
        %10691 = vmatmul.f32.gmra.mxu0 %v10580
        %v10692 = vpop.f32.mrf.mxu0
        %v10693 = vadd.f32 %v10536, %v10692
        %10694 = vmatmul.f32.gmra.mxu0 %v10583
        %v10695 = vpop.f32.mrf.mxu0
        %v10696 = vadd.f32 %v10536, %v10695
        %10697 = vmatmul.f32.gmra.mxu0 %v10586
        %v10698 = vpop.f32.mrf.mxu0
        %v10699 = vadd.f32 %v10536, %v10698
        %10700 = vmatmul.f32.gmra.mxu0 %v10589
        %v10701 = vpop.f32.mrf.mxu0
        %v10702 = vadd.f32 %v10536, %v10701
        %10703 = vmatmul.f32.gmra.mxu0 %v10592
        %v10704 = vpop.f32.mrf.mxu0
        %v10705 = vadd.f32 %v10536, %v10704
        %10706 = vmatmul.f32.gmra.mxu0 %v10595
        %v10707 = vpop.f32.mrf.mxu0
        %v10708 = vadd.f32 %v10536, %v10707
        %10709 = vmatmul.f32.gmra.mxu0 %v10598
        %v10710 = vpop.f32.mrf.mxu0
        %v10711 = vadd.f32 %v10536, %v10710
        %10712 = vmatmul.f32.gmra.mxu0 %v10601
        %v10713 = vpop.f32.mrf.mxu0
        %v10714 = vadd.f32 %v10536, %v10713
        %10715 = vmatmul.f32.gmra.mxu0 %v10604
        %v10716 = vpop.f32.mrf.mxu0
        %v10717 = vadd.f32 %v10536, %v10716
        %10718 = vmatmul.f32.gmra.mxu0 %v10607
        %v10719 = vpop.f32.mrf.mxu0
        %v10720 = vadd.f32 %v10536, %v10719
        %10721 = vmatmul.f32.gmra.mxu0 %v10610
        %v10722 = vpop.f32.mrf.mxu0
        %v10723 = vadd.f32 %v10536, %v10722
        %10724 = vmatmul.f32.gmra.mxu0 %v10613
        %v10725 = vpop.f32.mrf.mxu0
        %v10726 = vadd.f32 %v10536, %v10725
        %10727 = vmatmul.f32.gmra.mxu0 %v10616
        %v10728 = vpop.f32.mrf.mxu0
        %v10729 = vadd.f32 %v10536, %v10728
        %10730 = vmatmul.f32.gmra.mxu0 %v10619
        %v10731 = vpop.f32.mrf.mxu0
        %v10732 = vadd.f32 %v10536, %v10731
        %10733 = vmatmul.f32.gmra.mxu0 %v10622
        %v10734 = vpop.f32.mrf.mxu0
        %v10735 = vadd.f32 %v10536, %v10734
        %10736 = vmatmul.f32.gmra.mxu0 %v10625
        %v10737 = vpop.f32.mrf.mxu0
        %v10738 = vadd.f32 %v10536, %v10737
        %10739 = vmatmul.f32.gmra.mxu0 %v10628
        %v10740 = vpop.f32.mrf.mxu0
        %v10741 = vadd.f32 %v10536, %v10740
        %10742 = vmatmul.f32.gmra.mxu0 %v10631
        %v10743 = vpop.f32.mrf.mxu0
        %v10744 = vadd.f32 %v10536, %v10743
        %10745 = vdwg.mxu0
        %v10746 = vld [vmem:[%s445] sm:$0xff]
        %v10747 = vld [vmem:[%s445 + $0x8] sm:$0xff]
        %v10748 = vsel %vm2568, %v10746, 0.0
        %10749 = vadd.xlane.f32.xlu0 %v10748
        %v10750 = vpop.xlane.xlu0 %10749
        %v10751 = vsel %vm2568, %v10747, 0.0
        %10752 = vadd.xlane.f32.xlu0 %v10751
        %v10753 = vpop.xlane.xlu0 %10752
        %v10754 = vmul.f32 %v10746, %v10746
        %v10755 = vmul.f32 %v10747, %v10747
        %v10756 = vsel %vm2568, %v10754, 0.0
        %10757 = vadd.xlane.f32.xlu0 %v10756
        %v10758 = vpop.xlane.xlu0 %10757
        %v10759 = vsel %vm2568, %v10755, 0.0
        %10760 = vadd.xlane.f32.xlu0 %v10759
        %v10761 = vpop.xlane.xlu0 %10760
        %v10762 = vmul.f32 %v10750, 0.015625
        %v10763 = vmul.f32 %v10753, 0.015625
        %v10764 = vmul.f32 %v10758, 0.015625
        %v10765 = vmul.f32 %v10761, 0.015625
        %v10766 = vmul.f32 %v10762, %v10762
        %v10767 = vmul.f32 %v10763, %v10763
        %v10768 = vsub.f32 %v10764, %v10766
        %v10769 = vsub.f32 %v10765, %v10767
        %v10770 = vmax.f32 %v10768, 0.0
        %v10771 = vmax.f32 %v10769, 0.0
        %v10772 = vsub.f32 %v10746, %v10762
        %v10773 = vsub.f32 %v10747, %v10763
        %v10774 = vadd.f32 %v10770, 1e-05
        %v10775 = vadd.f32 %v10771, 1e-05
        %v10776 = vrsqrt.pop %v10774
        %v10777 = vmul.f32 %v10776, %v10774
        %v10778 = vmul.f32 %v10777, %v10776
        %v10779 = vmul.f32 0.5, %v10778
        %v10780 = vsub.f32 1.5, %v10779
        %v10781 = vmul.f32 %v10776, %v10780
        %vm10782 = vweird.f32 %v10774
        %vm10783 = vweird.f32 %v10776
        %vm10784 = vmor %vm10782, %vm10783
        %v10785 = vsel %vm10784, %v10776, %v10781
        %v10786 = vrsqrt.pop %v10775
        %v10787 = vmul.f32 %v10786, %v10775
        %v10788 = vmul.f32 %v10787, %v10786
        %v10789 = vmul.f32 0.5, %v10788
        %v10790 = vsub.f32 1.5, %v10789
        %v10791 = vmul.f32 %v10786, %v10790
        %vm10792 = vweird.f32 %v10775
        %vm10793 = vweird.f32 %v10786
        %vm10794 = vmor %vm10792, %vm10793
        %v10795 = vsel %vm10794, %v10786, %v10791
        %v10796 = vmul.f32 %v10772, %v10785
        %v10797 = vmul.f32 %v10773, %v10795
        %v10798 = vmax.f32 %v10796, 0.0
        %v10799 = vmax.f32 %v10797, 0.0
        %v10800 = vld [vmem:[%s8] sm:$0xff]
        %v10801 = vld [vmem:[%s8 + $0x8] sm:$0xff]
        %v10802 = vld [vmem:[%s8 + $0x10] sm:$0xff]
        %v10803 = vld [vmem:[%s8 + $0x18] sm:$0xff]
        %v10804 = vld [vmem:[%s8 + $0x20] sm:$0xff]
        %v10805 = vld [vmem:[%s8 + $0x28] sm:$0xff]
        %v10806 = vld [vmem:[%s8 + $0x30] sm:$0xff]
        %v10807 = vld [vmem:[%s8 + $0x38] sm:$0xff]
        %v10808 = vperm.slane %v454, 6
        %v10810 = vsel %vm2568, %v10798, 0
        %v10813 = vsel %vm2568, %v10799, 0
        %10815 = vmatpush.msra.mxu0 0.0
        %10816 = vmatpush.msra.mxu0 0.0
        %10817 = vmatpush.msra.mxu0 0.0
        %10818 = vmatpush.msra.mxu0 0.0
        %10819 = vmatpush.msra.mxu0 0.0
        %10820 = vmatpush.msra.mxu0 0.0
        %10821 = vmatpush.msra.mxu0 0.0
        %10822 = vmatpush.msra.mxu0 0.0
        %10823 = vmatpush.msra.mxu0 %v10807
        %10824 = vmatpush.msra.mxu0 %v10806
        %10825 = vmatpush.msra.mxu0 %v10805
        %10826 = vmatpush.msra.mxu0 %v10804
        %10827 = vmatpush.msra.mxu0 %v10803
        %10828 = vmatpush.msra.mxu0 %v10802
        %10829 = vmatpush.msra.mxu0 %v10801
        %10830 = vmatpush.msra.mxu0 %v10800
        %10831 = vmatmul.f32.gmra.mxu0 %v10810
        %v10832 = vpop.f32.mrf.mxu0
        %v10833 = vadd.f32 %v10808, %v10832
        %10834 = vmatmul.f32.gmra.mxu0 %v10813
        %v10835 = vpop.f32.mrf.mxu0
        %v10836 = vadd.f32 %v10808, %v10835
        %10837 = vdwg.mxu0
        %v10840 = vrot.slane %v10833, 1
        %v10841 = vrot.slane %v10833, 2
        %v10842 = vrot.slane %v10833, 3
        %v10843 = vrot.slane %v10833, 4
        %v10844 = vrot.slane %v10833, 5
        %v10845 = vrot.slane %v10833, 6
        %v10846 = vrot.slane %v10833, 7
        %v10847 = vrot.slane %v10836, 1
        %v10848 = vrot.slane %v10836, 2
        %v10849 = vrot.slane %v10836, 3
        %v10850 = vrot.slane %v10836, 4
        %v10851 = vrot.slane %v10836, 5
        %v10852 = vrot.slane %v10836, 6
        %v10853 = vrot.slane %v10836, 7
        %v10854 = vperm.slane %v10833, 0
        %v10855 = vperm.slane %v10840, 0
        %v10856 = vperm.slane %v10841, 0
        %v10857 = vperm.slane %v10842, 0
        %v10858 = vperm.slane %v10843, 0
        %v10859 = vperm.slane %v10844, 0
        %v10860 = vperm.slane %v10845, 0
        %v10861 = vperm.slane %v10846, 0
        %v10862 = vperm.slane %v10836, 0
        %v10863 = vperm.slane %v10847, 0
        %v10864 = vperm.slane %v10848, 0
        %v10865 = vperm.slane %v10849, 0
        %v10866 = vperm.slane %v10850, 0
        %v10867 = vperm.slane %v10851, 0
        %v10868 = vperm.slane %v10852, 0
        %v10869 = vperm.slane %v10853, 0
        %v10886 = vmul.f32 %v10651, %v10854
        %v10887 = vmul.f32 %v10654, %v10854
        %v10888 = vmul.f32 %v10657, %v10855
        %v10889 = vmul.f32 %v10660, %v10855
        %v10890 = vmul.f32 %v10663, %v10856
        %v10891 = vmul.f32 %v10666, %v10856
        %v10892 = vmul.f32 %v10669, %v10857
        %v10893 = vmul.f32 %v10672, %v10857
        %v10894 = vmul.f32 %v10675, %v10858
        %v10895 = vmul.f32 %v10678, %v10858
        %v10896 = vmul.f32 %v10681, %v10859
        %v10897 = vmul.f32 %v10684, %v10859
        %v10898 = vmul.f32 %v10687, %v10860
        %v10899 = vmul.f32 %v10690, %v10860
        %v10900 = vmul.f32 %v10693, %v10861
        %v10901 = vmul.f32 %v10696, %v10861
        %v10902 = vmul.f32 %v10699, %v10862
        %v10903 = vmul.f32 %v10702, %v10862
        %v10904 = vmul.f32 %v10705, %v10863
        %v10905 = vmul.f32 %v10708, %v10863
        %v10906 = vmul.f32 %v10711, %v10864
        %v10907 = vmul.f32 %v10714, %v10864
        %v10908 = vmul.f32 %v10717, %v10865
        %v10909 = vmul.f32 %v10720, %v10865
        %v10910 = vmul.f32 %v10723, %v10866
        %v10911 = vmul.f32 %v10726, %v10866
        %v10912 = vmul.f32 %v10729, %v10867
        %v10913 = vmul.f32 %v10732, %v10867
        %v10914 = vmul.f32 %v10735, %v10868
        %v10915 = vmul.f32 %v10738, %v10868
        %v10916 = vmul.f32 %v10741, %v10869
        %v10917 = vmul.f32 %v10744, %v10869
        %v10918 = vsel %vm493, %v10886, 0.0
        %10919 = vadd.xlane.f32.xlu0 %v10918
        %v10920 = vpop.xlane.xlu0 %10919
        %v10921 = vsel %vm493, %v10887, 0.0
        %10922 = vadd.xlane.f32.xlu0 %v10921
        %v10923 = vpop.xlane.xlu0 %10922
        %v10924 = vsel %vm493, %v10888, 0.0
        %10925 = vadd.xlane.f32.xlu0 %v10924
        %v10926 = vpop.xlane.xlu0 %10925
        %v10927 = vsel %vm493, %v10889, 0.0
        %10928 = vadd.xlane.f32.xlu0 %v10927
        %v10929 = vpop.xlane.xlu0 %10928
        %v10930 = vsel %vm493, %v10890, 0.0
        %10931 = vadd.xlane.f32.xlu0 %v10930
        %v10932 = vpop.xlane.xlu0 %10931
        %v10933 = vsel %vm493, %v10891, 0.0
        %10934 = vadd.xlane.f32.xlu0 %v10933
        %v10935 = vpop.xlane.xlu0 %10934
        %v10936 = vsel %vm493, %v10892, 0.0
        %10937 = vadd.xlane.f32.xlu0 %v10936
        %v10938 = vpop.xlane.xlu0 %10937
        %v10939 = vsel %vm493, %v10893, 0.0
        %10940 = vadd.xlane.f32.xlu0 %v10939
        %v10941 = vpop.xlane.xlu0 %10940
        %v10942 = vsel %vm493, %v10894, 0.0
        %10943 = vadd.xlane.f32.xlu0 %v10942
        %v10944 = vpop.xlane.xlu0 %10943
        %v10945 = vsel %vm493, %v10895, 0.0
        %10946 = vadd.xlane.f32.xlu0 %v10945
        %v10947 = vpop.xlane.xlu0 %10946
        %v10948 = vsel %vm493, %v10896, 0.0
        %10949 = vadd.xlane.f32.xlu0 %v10948
        %v10950 = vpop.xlane.xlu0 %10949
        %v10951 = vsel %vm493, %v10897, 0.0
        %10952 = vadd.xlane.f32.xlu0 %v10951
        %v10953 = vpop.xlane.xlu0 %10952
        %v10954 = vsel %vm493, %v10898, 0.0
        %10955 = vadd.xlane.f32.xlu0 %v10954
        %v10956 = vpop.xlane.xlu0 %10955
        %v10957 = vsel %vm493, %v10899, 0.0
        %10958 = vadd.xlane.f32.xlu0 %v10957
        %v10959 = vpop.xlane.xlu0 %10958
        %v10960 = vsel %vm493, %v10900, 0.0
        %10961 = vadd.xlane.f32.xlu0 %v10960
        %v10962 = vpop.xlane.xlu0 %10961
        %v10963 = vsel %vm493, %v10901, 0.0
        %10964 = vadd.xlane.f32.xlu0 %v10963
        %v10965 = vpop.xlane.xlu0 %10964
        %v10966 = vsel %vm493, %v10902, 0.0
        %10967 = vadd.xlane.f32.xlu0 %v10966
        %v10968 = vpop.xlane.xlu0 %10967
        %v10969 = vsel %vm493, %v10903, 0.0
        %10970 = vadd.xlane.f32.xlu0 %v10969
        %v10971 = vpop.xlane.xlu0 %10970
        %v10972 = vsel %vm493, %v10904, 0.0
        %10973 = vadd.xlane.f32.xlu0 %v10972
        %v10974 = vpop.xlane.xlu0 %10973
        %v10975 = vsel %vm493, %v10905, 0.0
        %10976 = vadd.xlane.f32.xlu0 %v10975
        %v10977 = vpop.xlane.xlu0 %10976
        %v10978 = vsel %vm493, %v10906, 0.0
        %10979 = vadd.xlane.f32.xlu0 %v10978
        %v10980 = vpop.xlane.xlu0 %10979
        %v10981 = vsel %vm493, %v10907, 0.0
        %10982 = vadd.xlane.f32.xlu0 %v10981
        %v10983 = vpop.xlane.xlu0 %10982
        %v10984 = vsel %vm493, %v10908, 0.0
        %10985 = vadd.xlane.f32.xlu0 %v10984
        %v10986 = vpop.xlane.xlu0 %10985
        %v10987 = vsel %vm493, %v10909, 0.0
        %10988 = vadd.xlane.f32.xlu0 %v10987
        %v10989 = vpop.xlane.xlu0 %10988
        %v10990 = vsel %vm493, %v10910, 0.0
        %10991 = vadd.xlane.f32.xlu0 %v10990
        %v10992 = vpop.xlane.xlu0 %10991
        %v10993 = vsel %vm493, %v10911, 0.0
        %10994 = vadd.xlane.f32.xlu0 %v10993
        %v10995 = vpop.xlane.xlu0 %10994
        %v10996 = vsel %vm493, %v10912, 0.0
        %10997 = vadd.xlane.f32.xlu0 %v10996
        %v10998 = vpop.xlane.xlu0 %10997
        %v10999 = vsel %vm493, %v10913, 0.0
        %11000 = vadd.xlane.f32.xlu0 %v10999
        %v11001 = vpop.xlane.xlu0 %11000
        %v11002 = vsel %vm493, %v10914, 0.0
        %11003 = vadd.xlane.f32.xlu0 %v11002
        %v11004 = vpop.xlane.xlu0 %11003
        %v11005 = vsel %vm493, %v10915, 0.0
        %11006 = vadd.xlane.f32.xlu0 %v11005
        %v11007 = vpop.xlane.xlu0 %11006
        %v11008 = vsel %vm493, %v10916, 0.0
        %11009 = vadd.xlane.f32.xlu0 %v11008
        %v11010 = vpop.xlane.xlu0 %11009
        %v11011 = vsel %vm493, %v10917, 0.0
        %11012 = vadd.xlane.f32.xlu0 %v11011
        %v11013 = vpop.xlane.xlu0 %11012
        %v11014 = vld [vmem:[%s451] sm:$0xff]
        %v11015 = vld [vmem:[%s451 + $0x8] sm:$0xff]
        %vm11016 = vcmp.gt.f32.partialorder %v11014, 0.5
        %vm11017 = vcmp.gt.f32.partialorder %v11015, 0.5
        %v11050 = vperm.slane %v10920, %v3387
        %v11051 = vadd.s32 %v3387, 4294967288
        %v11052 = vperm.slane %v10923, %v11051
        %vm11053 = vcmask 130112
        %v11054 = vsel %vm11053, %v11052, %v11050
        %v11055 = vperm.slane %v10926, %v3387
        %v11056 = vperm.slane %v10929, %v11051
        %v11057 = vsel %vm11053, %v11056, %v11055
        %v11058 = vperm.slane %v10932, %v3387
        %v11059 = vperm.slane %v10935, %v11051
        %v11060 = vsel %vm11053, %v11059, %v11058
        %v11061 = vperm.slane %v10938, %v3387
        %v11062 = vperm.slane %v10941, %v11051
        %v11063 = vsel %vm11053, %v11062, %v11061
        %v11064 = vperm.slane %v10944, %v3387
        %v11065 = vperm.slane %v10947, %v11051
        %v11066 = vsel %vm11053, %v11065, %v11064
        %v11067 = vperm.slane %v10950, %v3387
        %v11068 = vperm.slane %v10953, %v11051
        %v11069 = vsel %vm11053, %v11068, %v11067
        %v11070 = vperm.slane %v10956, %v3387
        %v11071 = vperm.slane %v10959, %v11051
        %v11072 = vsel %vm11053, %v11071, %v11070
        %v11073 = vperm.slane %v10962, %v3387
        %v11074 = vperm.slane %v10965, %v11051
        %v11075 = vsel %vm11053, %v11074, %v11073
        %v11076 = vperm.slane %v10968, %v3387
        %v11077 = vperm.slane %v10971, %v11051
        %v11078 = vsel %vm11053, %v11077, %v11076
        %v11079 = vperm.slane %v10974, %v3387
        %v11080 = vperm.slane %v10977, %v11051
        %v11081 = vsel %vm11053, %v11080, %v11079
        %v11082 = vperm.slane %v10980, %v3387
        %v11083 = vperm.slane %v10983, %v11051
        %v11084 = vsel %vm11053, %v11083, %v11082
        %v11085 = vperm.slane %v10986, %v3387
        %v11086 = vperm.slane %v10989, %v11051
        %v11087 = vsel %vm11053, %v11086, %v11085
        %v11088 = vperm.slane %v10992, %v3387
        %v11089 = vperm.slane %v10995, %v11051
        %v11090 = vsel %vm11053, %v11089, %v11088
        %v11091 = vperm.slane %v10998, %v3387
        %v11092 = vperm.slane %v11001, %v11051
        %v11093 = vsel %vm11053, %v11092, %v11091
        %v11094 = vperm.slane %v11004, %v3387
        %v11095 = vperm.slane %v11007, %v11051
        %v11096 = vsel %vm11053, %v11095, %v11094
        %v11097 = vperm.slane %v11010, %v3387
        %v11098 = vperm.slane %v11013, %v11051
        %v11099 = vsel %vm11053, %v11098, %v11097
        %vm11100 = vcmask 1041409
        %v11101 = vsel %vm11100, %v11057, %v11054
        %vm11102 = vcmask 1042434
        %v11103 = vsel %vm11102, %v11060, %v11101
        %vm11104 = vcmask 1043459
        %v11105 = vsel %vm11104, %v11063, %v11103
        %vm11106 = vcmask 1044484
        %v11107 = vsel %vm11106, %v11066, %v11105
        %vm11108 = vcmask 1045509
        %v11109 = vsel %vm11108, %v11069, %v11107
        %vm11110 = vcmask 1046534
        %v11111 = vsel %vm11110, %v11072, %v11109
        %vm11112 = vcmask 1047559
        %v11113 = vsel %vm11112, %v11075, %v11111
        %v11114 = vsel %vm11100, %v11081, %v11078
        %v11115 = vsel %vm11102, %v11084, %v11114
        %v11116 = vsel %vm11104, %v11087, %v11115
        %v11117 = vsel %vm11106, %v11090, %v11116
        %v11118 = vsel %vm11108, %v11093, %v11117
        %v11119 = vsel %vm11110, %v11096, %v11118
        %v11120 = vsel %vm11112, %v11099, %v11119
        %v11123 = vsel %vm4511, %v11113, 1e+30
        %v11124 = vsel %vm4511, %v11120, 1e+30
        %v11125 = vsel %vm3393, %v11123, inf
        %11126 = vmin.xlane.f32.xlu0 %v11125
        %v11127 = vpop.xlane.xlu0 %11126
        %v11128 = vsel %vm3393, %v11124, inf
        %11129 = vmin.xlane.f32.xlu0 %v11128
        %v11130 = vpop.xlane.xlu0 %11129
        %v11131 = vsel %vm11016, %v11113, %v11127
        %v11132 = vsel %vm11017, %v11120, %v11130
        %v11133 = vsel %vm3393, %v11131, -inf
        %11134 = vmax.xlane.f32.xlu0 %v11133
        %v11135 = vpop.xlane.xlu0 %11134
        %v11136 = vsel %vm3393, %v11132, -inf
        %11137 = vmax.xlane.f32.xlu0 %v11136
        %v11138 = vpop.xlane.xlu0 %11137
        %v11139 = vsub.f32 %v11131, %v11135
        %v11140 = vsub.f32 %v11132, %v11138
        %v11141 = vmul.f32 %v11139, %v11014
        %v11142 = vmul.f32 %v11140, %v11015
        %v11143 = vmul.f32 %v11141, 1.442695
        %v11144 = vpow.pop %v11143
        %v11145 = vmul.f32 %v11142, 1.442695
        %v11146 = vpow.pop %v11145
        %v11147 = vsel %vm11016, %v11144, 0.0
        %v11148 = vsel %vm11017, %v11146, 0.0
        %v11149 = vsel %vm3393, %v11147, 0.0
        %11150 = vadd.xlane.f32.xlu0 %v11149
        %v11151 = vpop.xlane.xlu0 %11150
        %v11152 = vsel %vm3393, %v11148, 0.0
        %11153 = vadd.xlane.f32.xlu0 %v11152
        %v11154 = vpop.xlane.xlu0 %11153
        %v11155 = vrcp.pop %v11151
        %v11156 = vrcp.pop %v11154
        %v11157 = vmul.f32 %v11147, %v11155
        %v11158 = vmul.f32 %v11148, %v11156
        %v11159 = vsel %vm11016, %v11113, -1e+30
        %v11160 = vsel %vm11017, %v11120, -1e+30
        %v11161 = vsel %vm3393, %v11159, -inf
        %11162 = vmax.xlane.f32.xlu0 %v11161
        %v11163 = vpop.xlane.xlu0 %11162
        %v11164 = vsel %vm3393, %v11160, -inf
        %11165 = vmax.xlane.f32.xlu0 %v11164
        %v11166 = vpop.xlane.xlu0 %11165
        %v11167 = vsub.f32 %v11159, %v11163
        %v11168 = vsub.f32 %v11160, %v11166
        %v11169 = vmul.f32 %v11167, 1.442695
        %v11170 = vpow.pop %v11169
        %v11171 = vmul.f32 %v11168, 1.442695
        %v11172 = vpow.pop %v11171
        %v11173 = vsel %vm11016, %v11170, 0.0
        %v11174 = vsel %vm11017, %v11172, 0.0
        %v11175 = vsel %vm3393, %v11173, 0.0
        %11176 = vadd.xlane.f32.xlu0 %v11175
        %v11177 = vpop.xlane.xlu0 %11176
        %v11178 = vsel %vm3393, %v11174, 0.0
        %11179 = vadd.xlane.f32.xlu0 %v11178
        %v11180 = vpop.xlane.xlu0 %11179
        %v11181 = vlog2.pop %v11177
        %v11182 = vmul.f32 %v11181, 0.6931472
        %v11183 = vlog2.pop %v11180
        %v11184 = vmul.f32 %v11183, 0.6931472
        %v11185 = vadd.f32 %v11182, %v11163
        %v11186 = vadd.f32 %v11184, %v11166
        %v11189 = vperm.slane %v11185, 0
        %v11190 = vperm.slane %v11185, 1
        %v11191 = vperm.slane %v11185, 2
        %v11192 = vperm.slane %v11185, 3
        %v11193 = vperm.slane %v11185, 4
        %v11194 = vperm.slane %v11185, 5
        %v11195 = vperm.slane %v11185, 6
        %v11196 = vperm.slane %v11185, 7
        %v11197 = vperm.slane %v11186, 0
        %v11198 = vperm.slane %v11186, 1
        %v11199 = vperm.slane %v11186, 2
        %v11200 = vperm.slane %v11186, 3
        %v11201 = vperm.slane %v11186, 4
        %v11202 = vperm.slane %v11186, 5
        %v11203 = vperm.slane %v11186, 6
        %v11204 = vperm.slane %v11186, 7
        %v11221 = vsub.f32 %v10920, %v11189
        %v11222 = vsub.f32 %v10923, %v11189
        %v11223 = vsub.f32 %v10926, %v11190
        %v11224 = vsub.f32 %v10929, %v11190
        %v11225 = vsub.f32 %v10932, %v11191
        %v11226 = vsub.f32 %v10935, %v11191
        %v11227 = vsub.f32 %v10938, %v11192
        %v11228 = vsub.f32 %v10941, %v11192
        %v11229 = vsub.f32 %v10944, %v11193
        %v11230 = vsub.f32 %v10947, %v11193
        %v11231 = vsub.f32 %v10950, %v11194
        %v11232 = vsub.f32 %v10953, %v11194
        %v11233 = vsub.f32 %v10956, %v11195
        %v11234 = vsub.f32 %v10959, %v11195
        %v11235 = vsub.f32 %v10962, %v11196
        %v11236 = vsub.f32 %v10965, %v11196
        %v11237 = vsub.f32 %v10968, %v11197
        %v11238 = vsub.f32 %v10971, %v11197
        %v11239 = vsub.f32 %v10974, %v11198
        %v11240 = vsub.f32 %v10977, %v11198
        %v11241 = vsub.f32 %v10980, %v11199
        %v11242 = vsub.f32 %v10983, %v11199
        %v11243 = vsub.f32 %v10986, %v11200
        %v11244 = vsub.f32 %v10989, %v11200
        %v11245 = vsub.f32 %v10992, %v11201
        %v11246 = vsub.f32 %v10995, %v11201
        %v11247 = vsub.f32 %v10998, %v11202
        %v11248 = vsub.f32 %v11001, %v11202
        %v11249 = vsub.f32 %v11004, %v11203
        %v11250 = vsub.f32 %v11007, %v11203
        %v11251 = vsub.f32 %v11010, %v11204
        %v11252 = vsub.f32 %v11013, %v11204
        %11285 = vset.pattern.permute.xlu0 0
        %11286 = vperm.xlu0 %11285, %v11221
        %v11287 = vpop.permute.xlu0 %11286
        %11288 = vset.pattern.permute.xlu0 0
        %11289 = vperm.xlu0 %11288, %v11222
        %v11290 = vpop.permute.xlu0 %11289
        %11291 = vset.pattern.permute.xlu0 0
        %11292 = vperm.xlu0 %11291, %v11223
        %v11293 = vpop.permute.xlu0 %11292
        %11294 = vset.pattern.permute.xlu0 0
        %11295 = vperm.xlu0 %11294, %v11224
        %v11296 = vpop.permute.xlu0 %11295
        %11297 = vset.pattern.permute.xlu0 0
        %11298 = vperm.xlu0 %11297, %v11225
        %v11299 = vpop.permute.xlu0 %11298
        %11300 = vset.pattern.permute.xlu0 0
        %11301 = vperm.xlu0 %11300, %v11226
        %v11302 = vpop.permute.xlu0 %11301
        %11303 = vset.pattern.permute.xlu0 0
        %11304 = vperm.xlu0 %11303, %v11227
        %v11305 = vpop.permute.xlu0 %11304
        %11306 = vset.pattern.permute.xlu0 0
        %11307 = vperm.xlu0 %11306, %v11228
        %v11308 = vpop.permute.xlu0 %11307
        %11309 = vset.pattern.permute.xlu0 0
        %11310 = vperm.xlu0 %11309, %v11229
        %v11311 = vpop.permute.xlu0 %11310
        %11312 = vset.pattern.permute.xlu0 0
        %11313 = vperm.xlu0 %11312, %v11230
        %v11314 = vpop.permute.xlu0 %11313
        %11315 = vset.pattern.permute.xlu0 0
        %11316 = vperm.xlu0 %11315, %v11231
        %v11317 = vpop.permute.xlu0 %11316
        %11318 = vset.pattern.permute.xlu0 0
        %11319 = vperm.xlu0 %11318, %v11232
        %v11320 = vpop.permute.xlu0 %11319
        %11321 = vset.pattern.permute.xlu0 0
        %11322 = vperm.xlu0 %11321, %v11233
        %v11323 = vpop.permute.xlu0 %11322
        %11324 = vset.pattern.permute.xlu0 0
        %11325 = vperm.xlu0 %11324, %v11234
        %v11326 = vpop.permute.xlu0 %11325
        %11327 = vset.pattern.permute.xlu0 0
        %11328 = vperm.xlu0 %11327, %v11235
        %v11329 = vpop.permute.xlu0 %11328
        %11330 = vset.pattern.permute.xlu0 0
        %11331 = vperm.xlu0 %11330, %v11236
        %v11332 = vpop.permute.xlu0 %11331
        %11333 = vset.pattern.permute.xlu0 0
        %11334 = vperm.xlu0 %11333, %v11237
        %v11335 = vpop.permute.xlu0 %11334
        %11336 = vset.pattern.permute.xlu0 0
        %11337 = vperm.xlu0 %11336, %v11238
        %v11338 = vpop.permute.xlu0 %11337
        %11339 = vset.pattern.permute.xlu0 0
        %11340 = vperm.xlu0 %11339, %v11239
        %v11341 = vpop.permute.xlu0 %11340
        %11342 = vset.pattern.permute.xlu0 0
        %11343 = vperm.xlu0 %11342, %v11240
        %v11344 = vpop.permute.xlu0 %11343
        %11345 = vset.pattern.permute.xlu0 0
        %11346 = vperm.xlu0 %11345, %v11241
        %v11347 = vpop.permute.xlu0 %11346
        %11348 = vset.pattern.permute.xlu0 0
        %11349 = vperm.xlu0 %11348, %v11242
        %v11350 = vpop.permute.xlu0 %11349
        %11351 = vset.pattern.permute.xlu0 0
        %11352 = vperm.xlu0 %11351, %v11243
        %v11353 = vpop.permute.xlu0 %11352
        %11354 = vset.pattern.permute.xlu0 0
        %11355 = vperm.xlu0 %11354, %v11244
        %v11356 = vpop.permute.xlu0 %11355
        %11357 = vset.pattern.permute.xlu0 0
        %11358 = vperm.xlu0 %11357, %v11245
        %v11359 = vpop.permute.xlu0 %11358
        %11360 = vset.pattern.permute.xlu0 0
        %11361 = vperm.xlu0 %11360, %v11246
        %v11362 = vpop.permute.xlu0 %11361
        %11363 = vset.pattern.permute.xlu0 0
        %11364 = vperm.xlu0 %11363, %v11247
        %v11365 = vpop.permute.xlu0 %11364
        %11366 = vset.pattern.permute.xlu0 0
        %11367 = vperm.xlu0 %11366, %v11248
        %v11368 = vpop.permute.xlu0 %11367
        %11369 = vset.pattern.permute.xlu0 0
        %11370 = vperm.xlu0 %11369, %v11249
        %v11371 = vpop.permute.xlu0 %11370
        %11372 = vset.pattern.permute.xlu0 0
        %11373 = vperm.xlu0 %11372, %v11250
        %v11374 = vpop.permute.xlu0 %11373
        %11375 = vset.pattern.permute.xlu0 0
        %11376 = vperm.xlu0 %11375, %v11251
        %v11377 = vpop.permute.xlu0 %11376
        %11378 = vset.pattern.permute.xlu0 0
        %11379 = vperm.xlu0 %11378, %v11252
        %v11380 = vpop.permute.xlu0 %11379
        %v11381 = vperm.slane %v11287, %v3387
        %v11382 = vperm.slane %v11290, %v11051
        %v11383 = vsel %vm11053, %v11382, %v11381
        %v11384 = vperm.slane %v11293, %v3387
        %v11385 = vperm.slane %v11296, %v11051
        %v11386 = vsel %vm11053, %v11385, %v11384
        %v11387 = vperm.slane %v11299, %v3387
        %v11388 = vperm.slane %v11302, %v11051
        %v11389 = vsel %vm11053, %v11388, %v11387
        %v11390 = vperm.slane %v11305, %v3387
        %v11391 = vperm.slane %v11308, %v11051
        %v11392 = vsel %vm11053, %v11391, %v11390
        %v11393 = vperm.slane %v11311, %v3387
        %v11394 = vperm.slane %v11314, %v11051
        %v11395 = vsel %vm11053, %v11394, %v11393
        %v11396 = vperm.slane %v11317, %v3387
        %v11397 = vperm.slane %v11320, %v11051
        %v11398 = vsel %vm11053, %v11397, %v11396
        %v11399 = vperm.slane %v11323, %v3387
        %v11400 = vperm.slane %v11326, %v11051
        %v11401 = vsel %vm11053, %v11400, %v11399
        %v11402 = vperm.slane %v11329, %v3387
        %v11403 = vperm.slane %v11332, %v11051
        %v11404 = vsel %vm11053, %v11403, %v11402
        %v11405 = vperm.slane %v11335, %v3387
        %v11406 = vperm.slane %v11338, %v11051
        %v11407 = vsel %vm11053, %v11406, %v11405
        %v11408 = vperm.slane %v11341, %v3387
        %v11409 = vperm.slane %v11344, %v11051
        %v11410 = vsel %vm11053, %v11409, %v11408
        %v11411 = vperm.slane %v11347, %v3387
        %v11412 = vperm.slane %v11350, %v11051
        %v11413 = vsel %vm11053, %v11412, %v11411
        %v11414 = vperm.slane %v11353, %v3387
        %v11415 = vperm.slane %v11356, %v11051
        %v11416 = vsel %vm11053, %v11415, %v11414
        %v11417 = vperm.slane %v11359, %v3387
        %v11418 = vperm.slane %v11362, %v11051
        %v11419 = vsel %vm11053, %v11418, %v11417
        %v11420 = vperm.slane %v11365, %v3387
        %v11421 = vperm.slane %v11368, %v11051
        %v11422 = vsel %vm11053, %v11421, %v11420
        %v11423 = vperm.slane %v11371, %v3387
        %v11424 = vperm.slane %v11374, %v11051
        %v11425 = vsel %vm11053, %v11424, %v11423
        %v11426 = vperm.slane %v11377, %v3387
        %v11427 = vperm.slane %v11380, %v11051
        %v11428 = vsel %vm11053, %v11427, %v11426
        %v11429 = vsel %vm11100, %v11386, %v11383
        %v11430 = vsel %vm11102, %v11389, %v11429
        %v11431 = vsel %vm11104, %v11392, %v11430
        %v11432 = vsel %vm11106, %v11395, %v11431
        %v11433 = vsel %vm11108, %v11398, %v11432
        %v11434 = vsel %vm11110, %v11401, %v11433
        %v11435 = vsel %vm11112, %v11404, %v11434
        %v11436 = vsel %vm11100, %v11410, %v11407
        %v11437 = vsel %vm11102, %v11413, %v11436
        %v11438 = vsel %vm11104, %v11416, %v11437
        %v11439 = vsel %vm11106, %v11419, %v11438
        %v11440 = vsel %vm11108, %v11422, %v11439
        %v11441 = vsel %vm11110, %v11425, %v11440
        %v11442 = vsel %vm11112, %v11428, %v11441
        %v11445 = vsel %vm11016, %v11435, 0.0
        %v11446 = vsel %vm11017, %v11442, 0.0
        %11449 = vrot.lane.b32.xlu0 %v11445, 16
        %v11450 = vpop.permute.xlu0 %11449
        %11451 = vrot.lane.b32.xlu0 %v11446, 16
        %v11452 = vpop.permute.xlu0 %11451
        %v11455 = vadd.s32 %v3387, 4294967264
        %v11456 = vperm.slane %v10920, %v11455
        %v11457 = vadd.s32 %v3387, 4294967256
        %v11458 = vperm.slane %v10923, %v11457
        %vm11459 = vcmask 392512
        %v11460 = vsel %vm11459, %v11458, %v11456
        %v11461 = vperm.slane %v10926, %v11455
        %v11462 = vperm.slane %v10929, %v11457
        %v11463 = vsel %vm11459, %v11462, %v11461
        %v11464 = vperm.slane %v10932, %v11455
        %v11465 = vperm.slane %v10935, %v11457
        %v11466 = vsel %vm11459, %v11465, %v11464
        %v11467 = vperm.slane %v10938, %v11455
        %v11468 = vperm.slane %v10941, %v11457
        %v11469 = vsel %vm11459, %v11468, %v11467
        %v11470 = vperm.slane %v10944, %v11455
        %v11471 = vperm.slane %v10947, %v11457
        %v11472 = vsel %vm11459, %v11471, %v11470
        %v11473 = vperm.slane %v10950, %v11455
        %v11474 = vperm.slane %v10953, %v11457
        %v11475 = vsel %vm11459, %v11474, %v11473
        %v11476 = vperm.slane %v10956, %v11455
        %v11477 = vperm.slane %v10959, %v11457
        %v11478 = vsel %vm11459, %v11477, %v11476
        %v11479 = vperm.slane %v10962, %v11455
        %v11480 = vperm.slane %v10965, %v11457
        %v11481 = vsel %vm11459, %v11480, %v11479
        %v11482 = vperm.slane %v10968, %v11455
        %v11483 = vperm.slane %v10971, %v11457
        %v11484 = vsel %vm11459, %v11483, %v11482
        %v11485 = vperm.slane %v10974, %v11455
        %v11486 = vperm.slane %v10977, %v11457
        %v11487 = vsel %vm11459, %v11486, %v11485
        %v11488 = vperm.slane %v10980, %v11455
        %v11489 = vperm.slane %v10983, %v11457
        %v11490 = vsel %vm11459, %v11489, %v11488
        %v11491 = vperm.slane %v10986, %v11455
        %v11492 = vperm.slane %v10989, %v11457
        %v11493 = vsel %vm11459, %v11492, %v11491
        %v11494 = vperm.slane %v10992, %v11455
        %v11495 = vperm.slane %v10995, %v11457
        %v11496 = vsel %vm11459, %v11495, %v11494
        %v11497 = vperm.slane %v10998, %v11455
        %v11498 = vperm.slane %v11001, %v11457
        %v11499 = vsel %vm11459, %v11498, %v11497
        %v11500 = vperm.slane %v11004, %v11455
        %v11501 = vperm.slane %v11007, %v11457
        %v11502 = vsel %vm11459, %v11501, %v11500
        %v11503 = vperm.slane %v11010, %v11455
        %v11504 = vperm.slane %v11013, %v11457
        %v11505 = vsel %vm11459, %v11504, %v11503
        %v11506 = vsel %vm11100, %v11463, %v11460
        %v11507 = vsel %vm11102, %v11466, %v11506
        %v11508 = vsel %vm11104, %v11469, %v11507
        %v11509 = vsel %vm11106, %v11472, %v11508
        %v11510 = vsel %vm11108, %v11475, %v11509
        %v11511 = vsel %vm11110, %v11478, %v11510
        %v11512 = vsel %vm11112, %v11481, %v11511
        %v11513 = vsel %vm11100, %v11487, %v11484
        %v11514 = vsel %vm11102, %v11490, %v11513
        %v11515 = vsel %vm11104, %v11493, %v11514
        %v11516 = vsel %vm11106, %v11496, %v11515
        %v11517 = vsel %vm11108, %v11499, %v11516
        %v11518 = vsel %vm11110, %v11502, %v11517
        %v11519 = vsel %vm11112, %v11505, %v11518
        %v11522 = vsel %vm3393, %v11157, %v11450
        %v11523 = vsel %vm3393, %v11158, %v11452
        %v11524 = vsel %vm493, %v11522, %v11512
        %v11525 = vsel %vm493, %v11523, %v11519
        %vm11526 = vcmask 392192
        %11527 = vst.msk [vmem:[%s428] sm:$0xff] %vm11526, %v11524
        %11528 = vst.msk [vmem:[%s428 + $0x8] sm:$0xff] %vm11526, %v11525
        %s11529 = sand.u32 %s284, 1
        %s11530 = scalar_lea.sflag [#allocation3], %s11529
        %s11531 = sand.u32 %s284, 1
        %s11532 = smul.addr %s11531, 16
        %s11533 = scalar_lea.vmem [#allocation2], %s11532
        // Predicated region
        $region65: #{tpu_custom_call.1} parent=63 // pred_check
          %p11534 = pneg %p294
        $region66: #{tpu_custom_call.1} parent=63 // pred_check_branch
          %11536 = sbr.rel (%p11534) target = $region68
        $region67: #{tpu_custom_call.1} parent=63 // pred_region
          %s11537 = smul.u32 2, %s25
          %11539 = vsyncadd %s11530, 0
          %s11540 = smul.addr %s11537, 8
          %s11541 = scalar_lea.hbm %s11, %s11540
          %s11542 = sshll.u32 %s11533, 4
          %s11543 = int_to_ptr.vmem [resolvable:$true] %s11542
          %s11544 = sshll.u32 %s11541, 4
          %s11545 = int_to_ptr.hbm [resolvable:$true] %s11544
          %11550 = dma.vmem_to_hbm [thread:$0]  %s11543, 256, %s11545, %s11530, 128, 128, 8
        $region68: #{tpu_custom_call.1} parent=63 // pred_fallthru
          _
      $region64: #{tpu_custom_call.1} parent=5 // pred_fallthru
        _
      %p11551 = scmp.le.s32.totalorder 2, %s20
      // Predicated region
      $region69: #{tpu_custom_call.1} parent=5 // pred_check
        %p11552 = pneg %p11551
      $region70: #{tpu_custom_call.1} parent=5 // pred_check_branch
        %11554 = sbr.rel (%p11552) target = $region72
      $region71: #{tpu_custom_call.1} parent=5 // pred_region
        %s11555 = ssub.s32 %s20, 2
        // Predicated region
        $region73: #{tpu_custom_call.1} parent=71 // pred_check
          %p11556 = pneg %p300
        $region74: #{tpu_custom_call.1} parent=71 // pred_check_branch
          %11558 = sbr.rel (%p11556) target = $region76
        $region75: #{tpu_custom_call.1} parent=71 // pred_region
          %s11559 = sand.u32 %s285, 1
          %s11560 = scalar_lea.sflag [#allocation3], %s11559
          %s11561 = sand.u32 %s285, 1
          %s11562 = smul.addr %s11561, 16
          %s11563 = scalar_lea.vmem [#allocation2], %s11562
          %11565 = dma.done %s11560, 256
        $region76: #{tpu_custom_call.1} parent=71 // pred_fallthru
          _
      $region72: #{tpu_custom_call.1} parent=5 // pred_fallthru
        _
    $region6: #{tpu_custom_call.1} parent=1 // loop_footer
      %s24 = sadd.s32 1, %s20
    $region7: #{tpu_custom_call.1} parent=1 // loop_footer_branch
      %19 = sbr.rel target = $region3
    $region8: #{tpu_custom_call.1} parent=1 // loop_exit
      _
    %11566 = vsyncpa [#allocation3], 1
    %s11567 = scalar_lea.sflag [#allocation3], 1
    %11568 = vsyncpa %s11567, 1

</llo_original>
